<compile_context>
chip_gen: v5e
topology: v5e:2x2
jax: 0.10.0
libtpu: 0.0.40
codegen_flags: <defaults>
</compile_context>

<pallas_src>
import math
import functools

import jax
import jax.numpy as jnp
from jax.experimental import pallas as pl
from jax.experimental.pallas import tpu as pltpu

_EPS = 1e-5
_DN_MM = (((1,), (0,)), ((), ()))   # (M, K) @ (K, N)   -> (M, N)
_DN_NT = (((1,), (1,)), ((), ()))   # (M, K) @ (N, K)^T -> (M, N)


# ----------------------------- in-kernel helpers -----------------------------


def _ln(x, g, b, eps=_EPS):
    mu = jnp.mean(x, axis=-1, keepdims=True)
    xc = x - mu
    var = jnp.mean(xc * xc, axis=-1, keepdims=True)
    return xc * jax.lax.rsqrt(var + eps) * g + b


def _mm(a_f32, w_bf16, bias_f32=None):
    # (M, K) f32 x (K, N) bf16 weight -> (M, N) f32 (MXU, f32 accumulation).
    y = jax.lax.dot_general(a_f32.astype(jnp.bfloat16), w_bf16, _DN_MM,
                            preferred_element_type=jnp.float32)
    return y if bias_f32 is None else y + bias_f32


def _mm_t(a_f32, w_bf16, bias_f32=None):
    # (M, K) f32 x (N, K) bf16 weight (PyTorch layout, used transposed) -> (M, N) f32.
    y = jax.lax.dot_general(a_f32.astype(jnp.bfloat16), w_bf16, _DN_NT,
                            preferred_element_type=jnp.float32)
    return y if bias_f32 is None else y + bias_f32


def _mha(h_q, kv_src, w_qkv, b_qkv, wo, bo, *, Bc, Sq, Sk, nhead, hd, mask):
    """Multi-head attention with per-head, pre-split bf16 weight refs.

    h_q:    (Bc*Sq, D) f32  normalized query-side input
    kv_src: (Bc*Sk, D) f32  key/value source (== h_q for self-attention)
    w_qkv:  ref block (1, 3, nhead, hd, D) bf16
    b_qkv:  ref block (1, 3, nhead, 1, hd) f32
    wo:     ref block (1, nhead, hd, D)    bf16
    bo:     ref block (1, 1, D)            f32
    mask:   None or (Sq, Sk) additive f32
    returns (Bc*Sq, D) f32 (output projection applied, no residual).
    """
    scale = 1.0 / math.sqrt(hd)
    out = None
    for hi in range(nhead):
        q = _mm_t(h_q,    w_qkv[0, 0, hi], b_qkv[0, 0, hi])          # (Bc*Sq, hd)
        k = _mm_t(kv_src, w_qkv[0, 1, hi], b_qkv[0, 1, hi])          # (Bc*Sk, hd)
        v = _mm_t(kv_src, w_qkv[0, 2, hi], b_qkv[0, 2, hi])          # (Bc*Sk, hd)
        q3 = q.reshape(Bc, Sq, hd)          # leading-dim split only (free)
        k3 = k.reshape(Bc, Sk, hd)
        v3 = v.reshape(Bc, Sk, hd)
        s = jnp.einsum('bqd,bkd->bqk', q3.astype(jnp.bfloat16),
                       k3.astype(jnp.bfloat16),
                       preferred_element_type=jnp.float32) * scale   # (Bc, Sq, Sk)
        if mask is not None:
            s = s + mask[None]
        s = s - jnp.max(s, axis=-1, keepdims=True)
        p = jnp.exp(s)
        p = p * pl.reciprocal(jnp.sum(p, axis=-1, keepdims=True), approx=True)
        o = jnp.einsum('bqk,bkd->bqd', p.astype(jnp.bfloat16),
                       v3.astype(jnp.bfloat16),
                       preferred_element_type=jnp.float32)           # (Bc, Sq, hd)
        o_proj = _mm(o.reshape(Bc * Sq, hd), wo[0, hi])              # (Bc*Sq, D)
        out = o_proj if out is None else out + o_proj
    return out + bo[0]


# ----------------------------- fused stack kernels -----------------------------


def _encoder_stack_kernel(x_ref,
                          ln1_g, ln1_b, w_qkv, b_qkv, wo, bo,
                          ln2_g, ln2_b, w1, b1, w2, b2,
                          fin_g, fin_b,
                          mem_ref, x_sc,
                          *, Bc, S, nhead, n_layers):
    l = pl.program_id(1)

    @pl.when(l == 0)
    def _():                                  # load residual stream into VMEM scratch
        x_sc[...] = x_ref[...].astype(jnp.float32)

    D = x_ref.shape[-1]
    hd = D // nhead
    x = x_sc[...]

    # --- self-attention sub-layer: x = x + W_o(MHA(LN1(x))) ---
    h = _ln(x, ln1_g[0], ln1_b[0])
    x = x + _mha(h, h, w_qkv, b_qkv, wo, bo,
                 Bc=Bc, Sq=S, Sk=S, nhead=nhead, hd=hd, mask=None)

    # --- feed-forward sub-layer: x = x + W2(relu(W1(LN2(x)))) ---
    h = _ln(x, ln2_g[0], ln2_b[0])
    x = x + _mm(jnp.maximum(_mm(h, w1[0], b1[0]), 0.0), w2[0], b2[0])

    x_sc[...] = x

    # --- final encoder LayerNorm fused into the last layer step ---
    @pl.when(l == n_layers - 1)
    def _():
        mem_ref[...] = _ln(x, fin_g[...], fin_b[...]).astype(mem_ref.dtype)


def _decoder_stack_kernel(y_ref, mem_ref,
                          ln1_g, ln1_b, sa_w_qkv, sa_b_qkv, sa_wo, sa_bo,
                          ln2_g, ln2_b, ca_w_qkv, ca_b_qkv, ca_wo, ca_bo,
                          ln3_g, ln3_b, w1, b1, w2, b2,
                          fin_g, fin_b, fc_w, fc_b,
                          logit_ref, y_sc, mask_sc,
                          *, Bc, St, Ss, nhead, n_layers):
    l = pl.program_id(1)

    @pl.when(l == 0)
    def _():
        y_sc[...] = y_ref[...].astype(jnp.float32)
        # causal mask built once per batch chunk, reused by every layer step
        ri = jax.lax.broadcasted_iota(jnp.int32, (St, St), 0)
        ci = jax.lax.broadcasted_iota(jnp.int32, (St, St), 1)
        mask_sc[...] = jnp.where(ci > ri, -1e30, 0.0).astype(jnp.float32)

    D = y_ref.shape[-1]
    hd = D // nhead
    y = y_sc[...]

    # --- causal self-attention sub-layer ---
    h = _ln(y, ln1_g[0], ln1_b[0])
    y = y + _mha(h, h, sa_w_qkv, sa_b_qkv, sa_wo, sa_bo,
                 Bc=Bc, Sq=St, Sk=St, nhead=nhead, hd=hd, mask=mask_sc[...])

    # --- cross-attention over encoder memory (memory already LayerNormed by encoder) ---
    h = _ln(y, ln2_g[0], ln2_b[0])
    mem = mem_ref[...].astype(jnp.float32)
    y = y + _mha(h, mem, ca_w_qkv, ca_b_qkv, ca_wo, ca_bo,
                 Bc=Bc, Sq=St, Sk=Ss, nhead=nhead, hd=hd, mask=None)

    # --- feed-forward sub-layer ---
    h = _ln(y, ln3_g[0], ln3_b[0])
    y = y + _mm(jnp.maximum(_mm(h, w1[0], b1[0]), 0.0), w2[0], b2[0])

    y_sc[...] = y

    # --- final LayerNorm + dropout(identity) + fc_out fused into the last layer step ---
    @pl.when(l == n_layers - 1)
    def _():
        logit_ref[...] = _mm(_ln(y, fin_g[...], fin_b[...]),
                             fc_w[...], fc_b[...]).astype(logit_ref.dtype)


# ----------------------------- BlockSpec helpers & wrappers -----------------------------


def _stack_spec(arr):
    # stacked-over-layers parameter: one layer per grid step along the "arbitrary" axis
    shape = arr.shape
    tail = (0,) * (len(shape) - 1)
    return pl.BlockSpec((1,) + tuple(shape[1:]), lambda b, l: (l,) + tail)


def _full_spec(arr):
    # whole-array block, constant across grid steps (stays VMEM-resident)
    shape = tuple(arr.shape)
    zero = (0,) * len(shape)
    return pl.BlockSpec(shape, lambda b, l: zero)


def _rows_spec(rows, cols):
    # batch-chunked activation rows
    return pl.BlockSpec((rows, cols), lambda b, l: (b, 0))


_COMPILER_PARAMS = pltpu.CompilerParams(
    dimension_semantics=("parallel", "arbitrary"),   # batch chunks || , layers sequential
    vmem_limit_bytes=32 * 1024 * 1024,               # budgeted against v7x's 64 MiB VMEM
)


def encoder_stack(x2d, p, fin_g, fin_b, *, B, S, nhead, b_chunks):
    M, D = x2d.shape
    L = p["w_qkv"].shape[0]
    rows = M // b_chunks
    kern = functools.partial(_encoder_stack_kernel, Bc=B // b_chunks, S=S,
                             nhead=nhead, n_layers=L)
    stacked = (p["ln1_g"], p["ln1_b"], p["w_qkv"], p["b_qkv"], p["wo"], p["bo"],
               p["ln2_g"], p["ln2_b"], p["w1"], p["b1"], p["w2"], p["b2"])
    in_specs = ([_rows_spec(rows, D)] + [_stack_spec(a) for a in stacked]
                + [_full_spec(fin_g), _full_spec(fin_b)])
    return pl.pallas_call(
        kern,
        out_shape=jax.ShapeDtypeStruct((M, D), jnp.float32),
        grid_spec=pltpu.PrefetchScalarGridSpec(
            num_scalar_prefetch=0,
            grid=(b_chunks, L),
            in_specs=in_specs,
            out_specs=_rows_spec(rows, D),
            scratch_shapes=[pltpu.VMEM((rows, D), jnp.float32)],   # residual stream
        ),
        compiler_params=_COMPILER_PARAMS,
    )(x2d, *stacked, fin_g, fin_b)


def decoder_stack(y2d, memory, p, fin_g, fin_b, fc_w, fc_b, *,
                  B, St, Ss, nhead, b_chunks):
    Mt, D = y2d.shape
    V = fc_w.shape[1]
    L = p["sa_w_qkv"].shape[0]
    rows_t = Mt // b_chunks
    rows_s = memory.shape[0] // b_chunks
    kern = functools.partial(_decoder_stack_kernel, Bc=B // b_chunks, St=St, Ss=Ss,
                             nhead=nhead, n_layers=L)
    stacked = (p["ln1_g"], p["ln1_b"], p["sa_w_qkv"], p["sa_b_qkv"], p["sa_wo"], p["sa_bo"],
               p["ln2_g"], p["ln2_b"], p["ca_w_qkv"], p["ca_b_qkv"], p["ca_wo"], p["ca_bo"],
               p["ln3_g"], p["ln3_b"], p["w1"], p["b1"], p["w2"], p["b2"])
    in_specs = ([_rows_spec(rows_t, D), _rows_spec(rows_s, D)]
                + [_stack_spec(a) for a in stacked]
                + [_full_spec(fin_g), _full_spec(fin_b),
                   _full_spec(fc_w), _full_spec(fc_b)])
    return pl.pallas_call(
        kern,
        out_shape=jax.ShapeDtypeStruct((Mt, V), jnp.float32),
        grid_spec=pltpu.PrefetchScalarGridSpec(
            num_scalar_prefetch=0,
            grid=(b_chunks, L),
            in_specs=in_specs,
            out_specs=_rows_spec(rows_t, V),
            scratch_shapes=[pltpu.VMEM((rows_t, D), jnp.float32),   # residual stream
                            pltpu.VMEM((St, St), jnp.float32)],     # causal mask
        ),
        compiler_params=_COMPILER_PARAMS,
    )(y2d, memory, *stacked, fin_g, fin_b, fc_w, fc_b)


# ----------------------------- model forward (plain JAX glue, all under jit) ----------


def seq2seq_forward(params, src, tgt, *, cfg, b_chunks):
    # TODO(synk): src/tgt key_padding_mask support omitted (forward() permits None).
    D, nhead = cfg["d_model"], cfg["nhead"]
    B, Ss = src.shape
    _, St = tgt.shape
    scale = math.sqrt(D)
    pe = params["pe"]

    # Token embedding gather + sqrt(d_model) scaling + positional encoding in plain JAX
    # (gathers have no useful Pallas form at this size); dropout = identity (eval).
    src_emb = (params["src_emb"][src] * scale + pe[None, :Ss, :]).reshape(B * Ss, D)
    tgt_emb = (params["tgt_emb"][tgt] * scale + pe[None, :St, :]).reshape(B * St, D)

    memory = encoder_stack(src_emb, params["enc"], params["enc_norm_g"],
                           params["enc_norm_b"], B=B, S=Ss, nhead=nhead,
                           b_chunks=b_chunks)
    logits = decoder_stack(tgt_emb, memory, params["dec"], params["dec_norm_g"],
                           params["dec_norm_b"], params["fc_w"], params["fc_b"],
                           B=B, St=St, Ss=Ss, nhead=nhead, b_chunks=b_chunks)
    return logits.reshape(B, St, cfg["tgt_vocab"])


# ----------------------------- positional encoding & parameter init -------------------


def positional_encoding(max_len, d_model):
    pos = jnp.arange(max_len, dtype=jnp.float32)[:, None]
    div = jnp.exp(jnp.arange(0, d_model, 2, dtype=jnp.float32)
                  * (-math.log(10000.0) / d_model))
    pe = jnp.zeros((max_len, d_model), jnp.float32)
    pe = pe.at[:, 0::2].set(jnp.sin(pos * div))
    pe = pe.at[:, 1::2].set(jnp.cos(pos * div))   # d_model is even here
    return pe


def init_params(key, cfg):
    D, dff, H = cfg["d_model"], cfg["dff"], cfg["nhead"]
    hd = D // H
    keys = iter(jax.random.split(key, 256))

    def nrm(shape, scl=0.05):
        return jax.random.normal(next(keys), shape, jnp.float32) * scl

    def xavier(shape):
        bound = math.sqrt(6.0 / (shape[0] + shape[1]))
        return jax.random.uniform(next(keys), shape, jnp.float32, -bound, bound)

    zeros = lambda s: jnp.zeros(s, jnp.float32)
    ones = lambda s: jnp.ones(s, jnp.float32)
    bf16 = lambda a: a.astype(jnp.bfloat16)          # matmul weights live in bf16

    def attn(n):
        # Per-head Q/K/V tiles in PyTorch layout (out=hd, in=D) and per-head output
        # projection tiles (in=hd, out=D), stacked over layers.  Mathematically
        # identical to the fused in_proj / out_proj of nn.MultiheadAttention.
        return dict(w_qkv=bf16(nrm((n, 3, H, hd, D))),
                    b_qkv=zeros((n, 3, H, 1, hd)),
                    wo=bf16(nrm((n, H, hd, D))),
                    bo=zeros((n, 1, D)))

    def ff(n):
        return dict(w1=bf16(nrm((n, D, dff))), b1=zeros((n, 1, dff)),
                    w2=bf16(nrm((n, dff, D))), b2=zeros((n, 1, D)))

    n_enc, n_dec = cfg["n_enc"], cfg["n_dec"]
    enc = dict(ln1_g=ones((n_enc, 1, D)), ln1_b=zeros((n_enc, 1, D)),
               ln2_g=ones((n_enc, 1, D)), ln2_b=zeros((n_enc, 1, D)),
               **attn(n_enc), **ff(n_enc))
    dec_sa = {"sa_" + k: v for k, v in attn(n_dec).items()}
    dec_ca = {"ca_" + k: v for k, v in attn(n_dec).items()}
    dec = dict(ln1_g=ones((n_dec, 1, D)), ln1_b=zeros((n_dec, 1, D)),
               ln2_g=ones((n_dec, 1, D)), ln2_b=zeros((n_dec, 1, D)),
               ln3_g=ones((n_dec, 1, D)), ln3_b=zeros((n_dec, 1, D)),
               **dec_sa, **dec_ca, **ff(n_dec))

    return dict(
        src_emb=xavier((cfg["src_vocab"], D)),
        tgt_emb=xavier((cfg["tgt_vocab"], D)),
        pe=positional_encoding(cfg["max_seq_length"], D),
        enc=enc, dec=dec,
        enc_norm_g=ones((1, D)), enc_norm_b=zeros((1, D)),
        dec_norm_g=ones((1, D)), dec_norm_b=zeros((1, D)),
        fc_w=bf16(xavier((D, cfg["tgt_vocab"]))), fc_b=zeros((1, cfg["tgt_vocab"])),
    )


# ----------------------------- main -----------------------------

if __name__ == "__main__":
    cfg = dict(
        src_vocab=96,
        tgt_vocab=128,
        d_model=128,
        nhead=4,
        dff=256,
        n_enc=2,
        n_dec=2,
        max_seq_length=64,
    )
    B, S_src, S_tgt = 2, 8, 8
    # Parallel batch-chunk grid axis: uses both TensorCores on v7x; on v5e/v6e it is
    # just a short serial loop with negligible overhead.  Must divide B.
    B_CHUNKS = 2

    key = jax.random.PRNGKey(0)
    k_params, k_src, k_tgt = jax.random.split(key, 3)
    params = init_params(k_params, cfg)

    src = jax.random.randint(k_src, (B, S_src), 0, cfg["src_vocab"], dtype=jnp.int32)
    tgt = jax.random.randint(k_tgt, (B, S_tgt), 0, cfg["tgt_vocab"], dtype=jnp.int32)

    fwd = jax.jit(functools.partial(seq2seq_forward, cfg=cfg, b_chunks=B_CHUNKS))
    logits = jax.block_until_ready(fwd(params, src, tgt))

    assert logits.shape == (B, S_tgt, cfg["tgt_vocab"])
    assert bool(jnp.all(jnp.isfinite(logits)))
    print("KERNEL_OK")
</pallas_src>

<mosaic_0001>
module attributes {stable_mosaic.version = 11 : i64} {
  func.func @_encoder_stack_kernel(%arg0: i32, %arg1: i32, %arg2: memref<8x128xf32, #tpu.memory_space<vmem>>, %arg3: memref<1x1x128xf32, #tpu.memory_space<vmem>>, %arg4: memref<1x1x128xf32, #tpu.memory_space<vmem>>, %arg5: memref<1x3x4x32x128xbf16, #tpu.memory_space<vmem>>, %arg6: memref<1x3x4x1x32xf32, #tpu.memory_space<vmem>>, %arg7: memref<1x4x32x128xbf16, #tpu.memory_space<vmem>>, %arg8: memref<1x1x128xf32, #tpu.memory_space<vmem>>, %arg9: memref<1x1x128xf32, #tpu.memory_space<vmem>>, %arg10: memref<1x1x128xf32, #tpu.memory_space<vmem>>, %arg11: memref<1x128x256xbf16, #tpu.memory_space<vmem>>, %arg12: memref<1x1x256xf32, #tpu.memory_space<vmem>>, %arg13: memref<1x256x128xbf16, #tpu.memory_space<vmem>>, %arg14: memref<1x1x128xf32, #tpu.memory_space<vmem>>, %arg15: memref<1x128xf32, #tpu.memory_space<vmem>>, %arg16: memref<1x128xf32, #tpu.memory_space<vmem>>, %arg17: memref<8x128xf32, #tpu.memory_space<vmem>>, %arg18: memref<8x128xf32, #tpu.memory_space<vmem>>) attributes {dimension_semantics = [#tpu.dimension_semantics<parallel>, #tpu.dimension_semantics<arbitrary>], iteration_bounds = array<i64: 2, 2>, scalar_prefetch = 0 : i64, scratch_operands = 1 : i64, tpu.core_type = #tpu.core_type<tc>, window_params = [{transform_indices = @transform_0, window_bounds = array<i64: 8, 128>}, {transform_indices = @transform_1, window_bounds = array<i64: 1, 1, 128>}, {transform_indices = @transform_2, window_bounds = array<i64: 1, 1, 128>}, {transform_indices = @transform_3, window_bounds = array<i64: 1, 3, 4, 32, 128>}, {transform_indices = @transform_4, window_bounds = array<i64: 1, 3, 4, 1, 32>}, {transform_indices = @transform_5, window_bounds = array<i64: 1, 4, 32, 128>}, {transform_indices = @transform_6, window_bounds = array<i64: 1, 1, 128>}, {transform_indices = @transform_7, window_bounds = array<i64: 1, 1, 128>}, {transform_indices = @transform_8, window_bounds = array<i64: 1, 1, 128>}, {transform_indices = @transform_9, window_bounds = array<i64: 1, 128, 256>}, {transform_indices = @transform_10, window_bounds = array<i64: 1, 1, 256>}, {transform_indices = @transform_11, window_bounds = array<i64: 1, 256, 128>}, {transform_indices = @transform_12, window_bounds = array<i64: 1, 1, 128>}, {pipeline_mode = #tpu.pipeline_mode<synchronous>, transform_indices = @transform_13, window_bounds = array<i64: 1, 128>}, {pipeline_mode = #tpu.pipeline_mode<synchronous>, transform_indices = @transform_14, window_bounds = array<i64: 1, 128>}, {transform_indices = @transform_15, window_bounds = array<i64: 8, 128>}]} {
    %c0_i32 = arith.constant 0 : i32
    %0 = arith.cmpi eq, %arg1, %c0_i32 : i32
    %1 = arith.extui %0 : i1 to i32
    %c0_i32_0 = arith.constant 0 : i32
    %2 = arith.cmpi ne, %1, %c0_i32_0 : i32
    scf.if %2 {
      %c0_213 = arith.constant 0 : index
      %c0_214 = arith.constant 0 : index
      %283 = vector.load %arg2[%c0_213, %c0_214] : memref<8x128xf32, #tpu.memory_space<vmem>>, vector<8x128xf32>
      %c0_215 = arith.constant 0 : index
      %c0_216 = arith.constant 0 : index
      %284 = vector.load %arg18[%c0_215, %c0_216] : memref<8x128xf32, #tpu.memory_space<vmem>>, vector<8x128xf32>
      tpu.vector_store %arg18[%c0_215, %c0_216], %283 {strides = array<i32>} : memref<8x128xf32, #tpu.memory_space<vmem>>, vector<8x128xf32>,
    } else {
    }
    %c0 = arith.constant 0 : index
    %c0_1 = arith.constant 0 : index
    %3 = vector.load %arg18[%c0, %c0_1] : memref<8x128xf32, #tpu.memory_space<vmem>>, vector<8x128xf32>
    %c0_2 = arith.constant 0 : index
    %c0_3 = arith.constant 0 : index
    %c0_4 = arith.constant 0 : index
    %4 = vector.load %arg3[%c0_2, %c0_3, %c0_4] : memref<1x1x128xf32, #tpu.memory_space<vmem>>, vector<1x1x128xf32>
    %5 = vector.shape_cast %4 : vector<1x1x128xf32> to vector<1x128xf32>
    %c0_5 = arith.constant 0 : index
    %c0_6 = arith.constant 0 : index
    %c0_7 = arith.constant 0 : index
    %6 = vector.load %arg4[%c0_5, %c0_6, %c0_7] : memref<1x1x128xf32, #tpu.memory_space<vmem>>, vector<1x1x128xf32>
    %7 = vector.shape_cast %6 : vector<1x1x128xf32> to vector<1x128xf32>
    %cst = arith.constant dense<0.000000e+00> : vector<8xf32>
    %8 = vector.multi_reduction <add>, %3, %cst [1] : vector<8x128xf32> to vector<8xf32>
    %9 = vector.shape_cast %8 : vector<8xf32> to vector<8x1xf32>
    %cst_8 = arith.constant 1.280000e+02 : f32
    %10 = vector.broadcast %cst_8 : f32 to vector<8x1xf32>
    %11 = arith.divf %9, %10 : vector<8x1xf32>
    %12 = vector.broadcast %11 : vector<8x1xf32> to vector<8x128xf32>
    %13 = arith.subf %3, %12 : vector<8x128xf32>
    %14 = arith.mulf %13, %13 : vector<8x128xf32>
    %cst_9 = arith.constant dense<0.000000e+00> : vector<8xf32>
    %15 = vector.multi_reduction <add>, %14, %cst_9 [1] : vector<8x128xf32> to vector<8xf32>
    %16 = vector.shape_cast %15 : vector<8xf32> to vector<8x1xf32>
    %cst_10 = arith.constant 1.280000e+02 : f32
    %17 = vector.broadcast %cst_10 : f32 to vector<8x1xf32>
    %18 = arith.divf %16, %17 : vector<8x1xf32>
    %cst_11 = arith.constant 9.99999974E-6 : f32
    %19 = vector.broadcast %cst_11 : f32 to vector<8x1xf32>
    %20 = arith.addf %18, %19 : vector<8x1xf32>
    %21 = math.rsqrt %20 : vector<8x1xf32>
    %22 = vector.broadcast %21 : vector<8x1xf32> to vector<8x128xf32>
    %23 = arith.mulf %13, %22 : vector<8x128xf32>
    %24 = vector.broadcast %5 : vector<1x128xf32> to vector<8x128xf32>
    %25 = arith.mulf %23, %24 : vector<8x128xf32>
    %26 = vector.broadcast %7 : vector<1x128xf32> to vector<8x128xf32>
    %27 = arith.addf %25, %26 : vector<8x128xf32>
    %c0_12 = arith.constant 0 : index
    %c0_13 = arith.constant 0 : index
    %c0_14 = arith.constant 0 : index
    %c0_15 = arith.constant 0 : index
    %c0_16 = arith.constant 0 : index
    %28 = vector.load %arg5[%c0_12, %c0_13, %c0_14, %c0_15, %c0_16] : memref<1x3x4x32x128xbf16, #tpu.memory_space<vmem>>, vector<1x1x1x32x128xbf16>
    %29 = vector.shape_cast %28 : vector<1x1x1x32x128xbf16> to vector<32x128xbf16>
    %c0_17 = arith.constant 0 : index
    %c0_18 = arith.constant 0 : index
    %c0_19 = arith.constant 0 : index
    %c0_20 = arith.constant 0 : index
    %c0_21 = arith.constant 0 : index
    %30 = vector.load %arg6[%c0_17, %c0_18, %c0_19, %c0_20, %c0_21] : memref<1x3x4x1x32xf32, #tpu.memory_space<vmem>>, vector<1x1x1x1x32xf32>
    %31 = vector.shape_cast %30 : vector<1x1x1x1x32xf32> to vector<1x32xf32>
    %32 = arith.truncf %27 : vector<8x128xf32> to vector<8x128xbf16>
    %cst_22 = arith.constant dense<0.000000e+00> : vector<8x32xf32>
    %33 = tpu.matmul %32, %29, %cst_22 {dimension_numbers = #tpu.dot_dimension_numbers<[1], [1], [0], [0], [0, 0, 1, 0], [], []>} : vector<8x128xbf16>, vector<32x128xbf16>, vector<8x32xf32> -> vector<8x32xf32>
    %34 = vector.broadcast %31 : vector<1x32xf32> to vector<8x32xf32>
    %35 = arith.addf %33, %34 : vector<8x32xf32>
    %c0_23 = arith.constant 0 : index
    %c1 = arith.constant 1 : index
    %c0_24 = arith.constant 0 : index
    %c0_25 = arith.constant 0 : index
    %c0_26 = arith.constant 0 : index
    %36 = vector.load %arg5[%c0_23, %c1, %c0_24, %c0_25, %c0_26] : memref<1x3x4x32x128xbf16, #tpu.memory_space<vmem>>, vector<1x1x1x32x128xbf16>
    %37 = vector.shape_cast %36 : vector<1x1x1x32x128xbf16> to vector<32x128xbf16>
    %c0_27 = arith.constant 0 : index
    %c1_28 = arith.constant 1 : index
    %c0_29 = arith.constant 0 : index
    %c0_30 = arith.constant 0 : index
    %c0_31 = arith.constant 0 : index
    %38 = vector.load %arg6[%c0_27, %c1_28, %c0_29, %c0_30, %c0_31] : memref<1x3x4x1x32xf32, #tpu.memory_space<vmem>>, vector<1x1x1x1x32xf32>
    %39 = vector.shape_cast %38 : vector<1x1x1x1x32xf32> to vector<1x32xf32>
    %40 = arith.truncf %27 : vector<8x128xf32> to vector<8x128xbf16>
    %cst_32 = arith.constant dense<0.000000e+00> : vector<8x32xf32>
    %41 = tpu.matmul %40, %37, %cst_32 {dimension_numbers = #tpu.dot_dimension_numbers<[1], [1], [0], [0], [0, 0, 1, 0], [], []>} : vector<8x128xbf16>, vector<32x128xbf16>, vector<8x32xf32> -> vector<8x32xf32>
    %42 = vector.broadcast %39 : vector<1x32xf32> to vector<8x32xf32>
    %43 = arith.addf %41, %42 : vector<8x32xf32>
    %c0_33 = arith.constant 0 : index
    %c2 = arith.constant 2 : index
    %c0_34 = arith.constant 0 : index
    %c0_35 = arith.constant 0 : index
    %c0_36 = arith.constant 0 : index
    %44 = vector.load %arg5[%c0_33, %c2, %c0_34, %c0_35, %c0_36] : memref<1x3x4x32x128xbf16, #tpu.memory_space<vmem>>, vector<1x1x1x32x128xbf16>
    %45 = vector.shape_cast %44 : vector<1x1x1x32x128xbf16> to vector<32x128xbf16>
    %c0_37 = arith.constant 0 : index
    %c2_38 = arith.constant 2 : index
    %c0_39 = arith.constant 0 : index
    %c0_40 = arith.constant 0 : index
    %c0_41 = arith.constant 0 : index
    %46 = vector.load %arg6[%c0_37, %c2_38, %c0_39, %c0_40, %c0_41] : memref<1x3x4x1x32xf32, #tpu.memory_space<vmem>>, vector<1x1x1x1x32xf32>
    %47 = vector.shape_cast %46 : vector<1x1x1x1x32xf32> to vector<1x32xf32>
    %48 = arith.truncf %27 : vector<8x128xf32> to vector<8x128xbf16>
    %cst_42 = arith.constant dense<0.000000e+00> : vector<8x32xf32>
    %49 = tpu.matmul %48, %45, %cst_42 {dimension_numbers = #tpu.dot_dimension_numbers<[1], [1], [0], [0], [0, 0, 1, 0], [], []>} : vector<8x128xbf16>, vector<32x128xbf16>, vector<8x32xf32> -> vector<8x32xf32>
    %50 = vector.broadcast %47 : vector<1x32xf32> to vector<8x32xf32>
    %51 = arith.addf %49, %50 : vector<8x32xf32>
    %52 = vector.shape_cast %35 : vector<8x32xf32> to vector<1x8x32xf32>
    %53 = vector.shape_cast %43 : vector<8x32xf32> to vector<1x8x32xf32>
    %54 = vector.shape_cast %51 : vector<8x32xf32> to vector<1x8x32xf32>
    %55 = arith.truncf %52 : vector<1x8x32xf32> to vector<1x8x32xbf16>
    %56 = arith.truncf %53 : vector<1x8x32xf32> to vector<1x8x32xbf16>
    "tpu.trace_start"() <{level = 10 : i32, message = "bqd,bkd->bqk"}> : () -> ()
    %cst_43 = arith.constant dense<0.000000e+00> : vector<1x8x8xf32>
    %57 = tpu.matmul %55, %56, %cst_43 {dimension_numbers = #tpu.dot_dimension_numbers<[2], [2], [1], [1], [0, 0, 0, 1, 1, 1], [0], [0]>} : vector<1x8x32xbf16>, vector<1x8x32xbf16>, vector<1x8x8xf32> -> vector<1x8x8xf32>
    "tpu.trace_stop"() : () -> ()
    %cst_44 = arith.constant 0.176776692 : f32
    %58 = vector.broadcast %cst_44 : f32 to vector<1x8x8xf32>
    %59 = arith.mulf %57, %58 : vector<1x8x8xf32>
    %cst_45 = arith.constant dense<0xFF800000> : vector<1x8xf32>
    %60 = vector.multi_reduction <maximumf>, %59, %cst_45 [2] : vector<1x8x8xf32> to vector<1x8xf32>
    %61 = vector.shape_cast %60 : vector<1x8xf32> to vector<1x8x1xf32>
    %62 = vector.broadcast %61 : vector<1x8x1xf32> to vector<1x8x8xf32>
    %63 = arith.subf %59, %62 : vector<1x8x8xf32>
    %64 = math.exp %63 : vector<1x8x8xf32>
    %cst_46 = arith.constant dense<0.000000e+00> : vector<1x8xf32>
    %65 = vector.multi_reduction <add>, %64, %cst_46 [2] : vector<1x8x8xf32> to vector<1x8xf32>
    %66 = vector.shape_cast %65 : vector<1x8xf32> to vector<1x8x1xf32>
    %67 = tpu.reciprocal %66 {approx = true} : vector<1x8x1xf32> -> vector<1x8x1xf32>
    %68 = vector.broadcast %67 : vector<1x8x1xf32> to vector<1x8x8xf32>
    %69 = arith.mulf %64, %68 : vector<1x8x8xf32>
    %70 = arith.truncf %69 : vector<1x8x8xf32> to vector<1x8x8xbf16>
    %71 = arith.truncf %54 : vector<1x8x32xf32> to vector<1x8x32xbf16>
    "tpu.trace_start"() <{level = 10 : i32, message = "bqk,bkd->bqd"}> : () -> ()
    %cst_47 = arith.constant dense<0.000000e+00> : vector<1x8x32xf32>
    %72 = tpu.matmul %70, %71, %cst_47 {dimension_numbers = #tpu.dot_dimension_numbers<[2], [1], [1], [2], [0, 0, 0, 1, 1, 2], [0], [0]>} : vector<1x8x8xbf16>, vector<1x8x32xbf16>, vector<1x8x32xf32> -> vector<1x8x32xf32>
    "tpu.trace_stop"() : () -> ()
    %73 = vector.shape_cast %72 : vector<1x8x32xf32> to vector<8x32xf32>
    %c0_48 = arith.constant 0 : index
    %c0_49 = arith.constant 0 : index
    %c0_50 = arith.constant 0 : index
    %c0_51 = arith.constant 0 : index
    %74 = vector.load %arg7[%c0_48, %c0_49, %c0_50, %c0_51] : memref<1x4x32x128xbf16, #tpu.memory_space<vmem>>, vector<1x1x32x128xbf16>
    %75 = vector.shape_cast %74 : vector<1x1x32x128xbf16> to vector<32x128xbf16>
    %76 = arith.truncf %73 : vector<8x32xf32> to vector<8x32xbf16>
    %cst_52 = arith.constant dense<0.000000e+00> : vector<8x128xf32>
    %77 = tpu.matmul %76, %75, %cst_52 {dimension_numbers = #tpu.dot_dimension_numbers<[1], [0], [0], [1], [0, 0, 1, 1], [], []>} : vector<8x32xbf16>, vector<32x128xbf16>, vector<8x128xf32> -> vector<8x128xf32>
    %c0_53 = arith.constant 0 : index
    %c0_54 = arith.constant 0 : index
    %c1_55 = arith.constant 1 : index
    %c0_56 = arith.constant 0 : index
    %c0_57 = arith.constant 0 : index
    %78 = vector.load %arg5[%c0_53, %c0_54, %c1_55, %c0_56, %c0_57] : memref<1x3x4x32x128xbf16, #tpu.memory_space<vmem>>, vector<1x1x1x32x128xbf16>
    %79 = vector.shape_cast %78 : vector<1x1x1x32x128xbf16> to vector<32x128xbf16>
    %c0_58 = arith.constant 0 : index
    %c0_59 = arith.constant 0 : index
    %c1_60 = arith.constant 1 : index
    %c0_61 = arith.constant 0 : index
    %c0_62 = arith.constant 0 : index
    %80 = vector.load %arg6[%c0_58, %c0_59, %c1_60, %c0_61, %c0_62] : memref<1x3x4x1x32xf32, #tpu.memory_space<vmem>>, vector<1x1x1x1x32xf32>
    %81 = vector.shape_cast %80 : vector<1x1x1x1x32xf32> to vector<1x32xf32>
    %82 = arith.truncf %27 : vector<8x128xf32> to vector<8x128xbf16>
    %cst_63 = arith.constant dense<0.000000e+00> : vector<8x32xf32>
    %83 = tpu.matmul %82, %79, %cst_63 {dimension_numbers = #tpu.dot_dimension_numbers<[1], [1], [0], [0], [0, 0, 1, 0], [], []>} : vector<8x128xbf16>, vector<32x128xbf16>, vector<8x32xf32> -> vector<8x32xf32>
    %84 = vector.broadcast %81 : vector<1x32xf32> to vector<8x32xf32>
    %85 = arith.addf %83, %84 : vector<8x32xf32>
    %c0_64 = arith.constant 0 : index
    %c1_65 = arith.constant 1 : index
    %c1_66 = arith.constant 1 : index
    %c0_67 = arith.constant 0 : index
    %c0_68 = arith.constant 0 : index
    %86 = vector.load %arg5[%c0_64, %c1_65, %c1_66, %c0_67, %c0_68] : memref<1x3x4x32x128xbf16, #tpu.memory_space<vmem>>, vector<1x1x1x32x128xbf16>
    %87 = vector.shape_cast %86 : vector<1x1x1x32x128xbf16> to vector<32x128xbf16>
    %c0_69 = arith.constant 0 : index
    %c1_70 = arith.constant 1 : index
    %c1_71 = arith.constant 1 : index
    %c0_72 = arith.constant 0 : index
    %c0_73 = arith.constant 0 : index
    %88 = vector.load %arg6[%c0_69, %c1_70, %c1_71, %c0_72, %c0_73] : memref<1x3x4x1x32xf32, #tpu.memory_space<vmem>>, vector<1x1x1x1x32xf32>
    %89 = vector.shape_cast %88 : vector<1x1x1x1x32xf32> to vector<1x32xf32>
    %90 = arith.truncf %27 : vector<8x128xf32> to vector<8x128xbf16>
    %cst_74 = arith.constant dense<0.000000e+00> : vector<8x32xf32>
    %91 = tpu.matmul %90, %87, %cst_74 {dimension_numbers = #tpu.dot_dimension_numbers<[1], [1], [0], [0], [0, 0, 1, 0], [], []>} : vector<8x128xbf16>, vector<32x128xbf16>, vector<8x32xf32> -> vector<8x32xf32>
    %92 = vector.broadcast %89 : vector<1x32xf32> to vector<8x32xf32>
    %93 = arith.addf %91, %92 : vector<8x32xf32>
    %c0_75 = arith.constant 0 : index
    %c2_76 = arith.constant 2 : index
    %c1_77 = arith.constant 1 : index
    %c0_78 = arith.constant 0 : index
    %c0_79 = arith.constant 0 : index
    %94 = vector.load %arg5[%c0_75, %c2_76, %c1_77, %c0_78, %c0_79] : memref<1x3x4x32x128xbf16, #tpu.memory_space<vmem>>, vector<1x1x1x32x128xbf16>
    %95 = vector.shape_cast %94 : vector<1x1x1x32x128xbf16> to vector<32x128xbf16>
    %c0_80 = arith.constant 0 : index
    %c2_81 = arith.constant 2 : index
    %c1_82 = arith.constant 1 : index
    %c0_83 = arith.constant 0 : index
    %c0_84 = arith.constant 0 : index
    %96 = vector.load %arg6[%c0_80, %c2_81, %c1_82, %c0_83, %c0_84] : memref<1x3x4x1x32xf32, #tpu.memory_space<vmem>>, vector<1x1x1x1x32xf32>
    %97 = vector.shape_cast %96 : vector<1x1x1x1x32xf32> to vector<1x32xf32>
    %98 = arith.truncf %27 : vector<8x128xf32> to vector<8x128xbf16>
    %cst_85 = arith.constant dense<0.000000e+00> : vector<8x32xf32>
    %99 = tpu.matmul %98, %95, %cst_85 {dimension_numbers = #tpu.dot_dimension_numbers<[1], [1], [0], [0], [0, 0, 1, 0], [], []>} : vector<8x128xbf16>, vector<32x128xbf16>, vector<8x32xf32> -> vector<8x32xf32>
    %100 = vector.broadcast %97 : vector<1x32xf32> to vector<8x32xf32>
    %101 = arith.addf %99, %100 : vector<8x32xf32>
    %102 = vector.shape_cast %85 : vector<8x32xf32> to vector<1x8x32xf32>
    %103 = vector.shape_cast %93 : vector<8x32xf32> to vector<1x8x32xf32>
    %104 = vector.shape_cast %101 : vector<8x32xf32> to vector<1x8x32xf32>
    %105 = arith.truncf %102 : vector<1x8x32xf32> to vector<1x8x32xbf16>
    %106 = arith.truncf %103 : vector<1x8x32xf32> to vector<1x8x32xbf16>
    "tpu.trace_start"() <{level = 10 : i32, message = "bqd,bkd->bqk"}> : () -> ()
    %cst_86 = arith.constant dense<0.000000e+00> : vector<1x8x8xf32>
    %107 = tpu.matmul %105, %106, %cst_86 {dimension_numbers = #tpu.dot_dimension_numbers<[2], [2], [1], [1], [0, 0, 0, 1, 1, 1], [0], [0]>} : vector<1x8x32xbf16>, vector<1x8x32xbf16>, vector<1x8x8xf32> -> vector<1x8x8xf32>
    "tpu.trace_stop"() : () -> ()
    %cst_87 = arith.constant 0.176776692 : f32
    %108 = vector.broadcast %cst_87 : f32 to vector<1x8x8xf32>
    %109 = arith.mulf %107, %108 : vector<1x8x8xf32>
    %cst_88 = arith.constant dense<0xFF800000> : vector<1x8xf32>
    %110 = vector.multi_reduction <maximumf>, %109, %cst_88 [2] : vector<1x8x8xf32> to vector<1x8xf32>
    %111 = vector.shape_cast %110 : vector<1x8xf32> to vector<1x8x1xf32>
    %112 = vector.broadcast %111 : vector<1x8x1xf32> to vector<1x8x8xf32>
    %113 = arith.subf %109, %112 : vector<1x8x8xf32>
    %114 = math.exp %113 : vector<1x8x8xf32>
    %cst_89 = arith.constant dense<0.000000e+00> : vector<1x8xf32>
    %115 = vector.multi_reduction <add>, %114, %cst_89 [2] : vector<1x8x8xf32> to vector<1x8xf32>
    %116 = vector.shape_cast %115 : vector<1x8xf32> to vector<1x8x1xf32>
    %117 = tpu.reciprocal %116 {approx = true} : vector<1x8x1xf32> -> vector<1x8x1xf32>
    %118 = vector.broadcast %117 : vector<1x8x1xf32> to vector<1x8x8xf32>
    %119 = arith.mulf %114, %118 : vector<1x8x8xf32>
    %120 = arith.truncf %119 : vector<1x8x8xf32> to vector<1x8x8xbf16>
    %121 = arith.truncf %104 : vector<1x8x32xf32> to vector<1x8x32xbf16>
    "tpu.trace_start"() <{level = 10 : i32, message = "bqk,bkd->bqd"}> : () -> ()
    %cst_90 = arith.constant dense<0.000000e+00> : vector<1x8x32xf32>
    %122 = tpu.matmul %120, %121, %cst_90 {dimension_numbers = #tpu.dot_dimension_numbers<[2], [1], [1], [2], [0, 0, 0, 1, 1, 2], [0], [0]>} : vector<1x8x8xbf16>, vector<1x8x32xbf16>, vector<1x8x32xf32> -> vector<1x8x32xf32>
    "tpu.trace_stop"() : () -> ()
    %123 = vector.shape_cast %122 : vector<1x8x32xf32> to vector<8x32xf32>
    %c0_91 = arith.constant 0 : index
    %c1_92 = arith.constant 1 : index
    %c0_93 = arith.constant 0 : index
    %c0_94 = arith.constant 0 : index
    %124 = vector.load %arg7[%c0_91, %c1_92, %c0_93, %c0_94] : memref<1x4x32x128xbf16, #tpu.memory_space<vmem>>, vector<1x1x32x128xbf16>
    %125 = vector.shape_cast %124 : vector<1x1x32x128xbf16> to vector<32x128xbf16>
    %126 = arith.truncf %123 : vector<8x32xf32> to vector<8x32xbf16>
    %cst_95 = arith.constant dense<0.000000e+00> : vector<8x128xf32>
    %127 = tpu.matmul %126, %125, %cst_95 {dimension_numbers = #tpu.dot_dimension_numbers<[1], [0], [0], [1], [0, 0, 1, 1], [], []>} : vector<8x32xbf16>, vector<32x128xbf16>, vector<8x128xf32> -> vector<8x128xf32>
    %128 = arith.addf %77, %127 : vector<8x128xf32>
    %c0_96 = arith.constant 0 : index
    %c0_97 = arith.constant 0 : index
    %c2_98 = arith.constant 2 : index
    %c0_99 = arith.constant 0 : index
    %c0_100 = arith.constant 0 : index
    %129 = vector.load %arg5[%c0_96, %c0_97, %c2_98, %c0_99, %c0_100] : memref<1x3x4x32x128xbf16, #tpu.memory_space<vmem>>, vector<1x1x1x32x128xbf16>
    %130 = vector.shape_cast %129 : vector<1x1x1x32x128xbf16> to vector<32x128xbf16>
    %c0_101 = arith.constant 0 : index
    %c0_102 = arith.constant 0 : index
    %c2_103 = arith.constant 2 : index
    %c0_104 = arith.constant 0 : index
    %c0_105 = arith.constant 0 : index
    %131 = vector.load %arg6[%c0_101, %c0_102, %c2_103, %c0_104, %c0_105] : memref<1x3x4x1x32xf32, #tpu.memory_space<vmem>>, vector<1x1x1x1x32xf32>
    %132 = vector.shape_cast %131 : vector<1x1x1x1x32xf32> to vector<1x32xf32>
    %133 = arith.truncf %27 : vector<8x128xf32> to vector<8x128xbf16>
    %cst_106 = arith.constant dense<0.000000e+00> : vector<8x32xf32>
    %134 = tpu.matmul %133, %130, %cst_106 {dimension_numbers = #tpu.dot_dimension_numbers<[1], [1], [0], [0], [0, 0, 1, 0], [], []>} : vector<8x128xbf16>, vector<32x128xbf16>, vector<8x32xf32> -> vector<8x32xf32>
    %135 = vector.broadcast %132 : vector<1x32xf32> to vector<8x32xf32>
    %136 = arith.addf %134, %135 : vector<8x32xf32>
    %c0_107 = arith.constant 0 : index
    %c1_108 = arith.constant 1 : index
    %c2_109 = arith.constant 2 : index
    %c0_110 = arith.constant 0 : index
    %c0_111 = arith.constant 0 : index
    %137 = vector.load %arg5[%c0_107, %c1_108, %c2_109, %c0_110, %c0_111] : memref<1x3x4x32x128xbf16, #tpu.memory_space<vmem>>, vector<1x1x1x32x128xbf16>
    %138 = vector.shape_cast %137 : vector<1x1x1x32x128xbf16> to vector<32x128xbf16>
    %c0_112 = arith.constant 0 : index
    %c1_113 = arith.constant 1 : index
    %c2_114 = arith.constant 2 : index
    %c0_115 = arith.constant 0 : index
    %c0_116 = arith.constant 0 : index
    %139 = vector.load %arg6[%c0_112, %c1_113, %c2_114, %c0_115, %c0_116] : memref<1x3x4x1x32xf32, #tpu.memory_space<vmem>>, vector<1x1x1x1x32xf32>
    %140 = vector.shape_cast %139 : vector<1x1x1x1x32xf32> to vector<1x32xf32>
    %141 = arith.truncf %27 : vector<8x128xf32> to vector<8x128xbf16>
    %cst_117 = arith.constant dense<0.000000e+00> : vector<8x32xf32>
    %142 = tpu.matmul %141, %138, %cst_117 {dimension_numbers = #tpu.dot_dimension_numbers<[1], [1], [0], [0], [0, 0, 1, 0], [], []>} : vector<8x128xbf16>, vector<32x128xbf16>, vector<8x32xf32> -> vector<8x32xf32>
    %143 = vector.broadcast %140 : vector<1x32xf32> to vector<8x32xf32>
    %144 = arith.addf %142, %143 : vector<8x32xf32>
    %c0_118 = arith.constant 0 : index
    %c2_119 = arith.constant 2 : index
    %c2_120 = arith.constant 2 : index
    %c0_121 = arith.constant 0 : index
    %c0_122 = arith.constant 0 : index
    %145 = vector.load %arg5[%c0_118, %c2_119, %c2_120, %c0_121, %c0_122] : memref<1x3x4x32x128xbf16, #tpu.memory_space<vmem>>, vector<1x1x1x32x128xbf16>
    %146 = vector.shape_cast %145 : vector<1x1x1x32x128xbf16> to vector<32x128xbf16>
    %c0_123 = arith.constant 0 : index
    %c2_124 = arith.constant 2 : index
    %c2_125 = arith.constant 2 : index
    %c0_126 = arith.constant 0 : index
    %c0_127 = arith.constant 0 : index
    %147 = vector.load %arg6[%c0_123, %c2_124, %c2_125, %c0_126, %c0_127] : memref<1x3x4x1x32xf32, #tpu.memory_space<vmem>>, vector<1x1x1x1x32xf32>
    %148 = vector.shape_cast %147 : vector<1x1x1x1x32xf32> to vector<1x32xf32>
    %149 = arith.truncf %27 : vector<8x128xf32> to vector<8x128xbf16>
    %cst_128 = arith.constant dense<0.000000e+00> : vector<8x32xf32>
    %150 = tpu.matmul %149, %146, %cst_128 {dimension_numbers = #tpu.dot_dimension_numbers<[1], [1], [0], [0], [0, 0, 1, 0], [], []>} : vector<8x128xbf16>, vector<32x128xbf16>, vector<8x32xf32> -> vector<8x32xf32>
    %151 = vector.broadcast %148 : vector<1x32xf32> to vector<8x32xf32>
    %152 = arith.addf %150, %151 : vector<8x32xf32>
    %153 = vector.shape_cast %136 : vector<8x32xf32> to vector<1x8x32xf32>
    %154 = vector.shape_cast %144 : vector<8x32xf32> to vector<1x8x32xf32>
    %155 = vector.shape_cast %152 : vector<8x32xf32> to vector<1x8x32xf32>
    %156 = arith.truncf %153 : vector<1x8x32xf32> to vector<1x8x32xbf16>
    %157 = arith.truncf %154 : vector<1x8x32xf32> to vector<1x8x32xbf16>
    "tpu.trace_start"() <{level = 10 : i32, message = "bqd,bkd->bqk"}> : () -> ()
    %cst_129 = arith.constant dense<0.000000e+00> : vector<1x8x8xf32>
    %158 = tpu.matmul %156, %157, %cst_129 {dimension_numbers = #tpu.dot_dimension_numbers<[2], [2], [1], [1], [0, 0, 0, 1, 1, 1], [0], [0]>} : vector<1x8x32xbf16>, vector<1x8x32xbf16>, vector<1x8x8xf32> -> vector<1x8x8xf32>
    "tpu.trace_stop"() : () -> ()
    %cst_130 = arith.constant 0.176776692 : f32
    %159 = vector.broadcast %cst_130 : f32 to vector<1x8x8xf32>
    %160 = arith.mulf %158, %159 : vector<1x8x8xf32>
    %cst_131 = arith.constant dense<0xFF800000> : vector<1x8xf32>
    %161 = vector.multi_reduction <maximumf>, %160, %cst_131 [2] : vector<1x8x8xf32> to vector<1x8xf32>
    %162 = vector.shape_cast %161 : vector<1x8xf32> to vector<1x8x1xf32>
    %163 = vector.broadcast %162 : vector<1x8x1xf32> to vector<1x8x8xf32>
    %164 = arith.subf %160, %163 : vector<1x8x8xf32>
    %165 = math.exp %164 : vector<1x8x8xf32>
    %cst_132 = arith.constant dense<0.000000e+00> : vector<1x8xf32>
    %166 = vector.multi_reduction <add>, %165, %cst_132 [2] : vector<1x8x8xf32> to vector<1x8xf32>
    %167 = vector.shape_cast %166 : vector<1x8xf32> to vector<1x8x1xf32>
    %168 = tpu.reciprocal %167 {approx = true} : vector<1x8x1xf32> -> vector<1x8x1xf32>
    %169 = vector.broadcast %168 : vector<1x8x1xf32> to vector<1x8x8xf32>
    %170 = arith.mulf %165, %169 : vector<1x8x8xf32>
    %171 = arith.truncf %170 : vector<1x8x8xf32> to vector<1x8x8xbf16>
    %172 = arith.truncf %155 : vector<1x8x32xf32> to vector<1x8x32xbf16>
    "tpu.trace_start"() <{level = 10 : i32, message = "bqk,bkd->bqd"}> : () -> ()
    %cst_133 = arith.constant dense<0.000000e+00> : vector<1x8x32xf32>
    %173 = tpu.matmul %171, %172, %cst_133 {dimension_numbers = #tpu.dot_dimension_numbers<[2], [1], [1], [2], [0, 0, 0, 1, 1, 2], [0], [0]>} : vector<1x8x8xbf16>, vector<1x8x32xbf16>, vector<1x8x32xf32> -> vector<1x8x32xf32>
    "tpu.trace_stop"() : () -> ()
    %174 = vector.shape_cast %173 : vector<1x8x32xf32> to vector<8x32xf32>
    %c0_134 = arith.constant 0 : index
    %c2_135 = arith.constant 2 : index
    %c0_136 = arith.constant 0 : index
    %c0_137 = arith.constant 0 : index
    %175 = vector.load %arg7[%c0_134, %c2_135, %c0_136, %c0_137] : memref<1x4x32x128xbf16, #tpu.memory_space<vmem>>, vector<1x1x32x128xbf16>
    %176 = vector.shape_cast %175 : vector<1x1x32x128xbf16> to vector<32x128xbf16>
    %177 = arith.truncf %174 : vector<8x32xf32> to vector<8x32xbf16>
    %cst_138 = arith.constant dense<0.000000e+00> : vector<8x128xf32>
    %178 = tpu.matmul %177, %176, %cst_138 {dimension_numbers = #tpu.dot_dimension_numbers<[1], [0], [0], [1], [0, 0, 1, 1], [], []>} : vector<8x32xbf16>, vector<32x128xbf16>, vector<8x128xf32> -> vector<8x128xf32>
    %179 = arith.addf %128, %178 : vector<8x128xf32>
    %c0_139 = arith.constant 0 : index
    %c0_140 = arith.constant 0 : index
    %c3 = arith.constant 3 : index
    %c0_141 = arith.constant 0 : index
    %c0_142 = arith.constant 0 : index
    %180 = vector.load %arg5[%c0_139, %c0_140, %c3, %c0_141, %c0_142] : memref<1x3x4x32x128xbf16, #tpu.memory_space<vmem>>, vector<1x1x1x32x128xbf16>
    %181 = vector.shape_cast %180 : vector<1x1x1x32x128xbf16> to vector<32x128xbf16>
    %c0_143 = arith.constant 0 : index
    %c0_144 = arith.constant 0 : index
    %c3_145 = arith.constant 3 : index
    %c0_146 = arith.constant 0 : index
    %c0_147 = arith.constant 0 : index
    %182 = vector.load %arg6[%c0_143, %c0_144, %c3_145, %c0_146, %c0_147] : memref<1x3x4x1x32xf32, #tpu.memory_space<vmem>>, vector<1x1x1x1x32xf32>
    %183 = vector.shape_cast %182 : vector<1x1x1x1x32xf32> to vector<1x32xf32>
    %184 = arith.truncf %27 : vector<8x128xf32> to vector<8x128xbf16>
    %cst_148 = arith.constant dense<0.000000e+00> : vector<8x32xf32>
    %185 = tpu.matmul %184, %181, %cst_148 {dimension_numbers = #tpu.dot_dimension_numbers<[1], [1], [0], [0], [0, 0, 1, 0], [], []>} : vector<8x128xbf16>, vector<32x128xbf16>, vector<8x32xf32> -> vector<8x32xf32>
    %186 = vector.broadcast %183 : vector<1x32xf32> to vector<8x32xf32>
    %187 = arith.addf %185, %186 : vector<8x32xf32>
    %c0_149 = arith.constant 0 : index
    %c1_150 = arith.constant 1 : index
    %c3_151 = arith.constant 3 : index
    %c0_152 = arith.constant 0 : index
    %c0_153 = arith.constant 0 : index
    %188 = vector.load %arg5[%c0_149, %c1_150, %c3_151, %c0_152, %c0_153] : memref<1x3x4x32x128xbf16, #tpu.memory_space<vmem>>, vector<1x1x1x32x128xbf16>
    %189 = vector.shape_cast %188 : vector<1x1x1x32x128xbf16> to vector<32x128xbf16>
    %c0_154 = arith.constant 0 : index
    %c1_155 = arith.constant 1 : index
    %c3_156 = arith.constant 3 : index
    %c0_157 = arith.constant 0 : index
    %c0_158 = arith.constant 0 : index
    %190 = vector.load %arg6[%c0_154, %c1_155, %c3_156, %c0_157, %c0_158] : memref<1x3x4x1x32xf32, #tpu.memory_space<vmem>>, vector<1x1x1x1x32xf32>
    %191 = vector.shape_cast %190 : vector<1x1x1x1x32xf32> to vector<1x32xf32>
    %192 = arith.truncf %27 : vector<8x128xf32> to vector<8x128xbf16>
    %cst_159 = arith.constant dense<0.000000e+00> : vector<8x32xf32>
    %193 = tpu.matmul %192, %189, %cst_159 {dimension_numbers = #tpu.dot_dimension_numbers<[1], [1], [0], [0], [0, 0, 1, 0], [], []>} : vector<8x128xbf16>, vector<32x128xbf16>, vector<8x32xf32> -> vector<8x32xf32>
    %194 = vector.broadcast %191 : vector<1x32xf32> to vector<8x32xf32>
    %195 = arith.addf %193, %194 : vector<8x32xf32>
    %c0_160 = arith.constant 0 : index
    %c2_161 = arith.constant 2 : index
    %c3_162 = arith.constant 3 : index
    %c0_163 = arith.constant 0 : index
    %c0_164 = arith.constant 0 : index
    %196 = vector.load %arg5[%c0_160, %c2_161, %c3_162, %c0_163, %c0_164] : memref<1x3x4x32x128xbf16, #tpu.memory_space<vmem>>, vector<1x1x1x32x128xbf16>
    %197 = vector.shape_cast %196 : vector<1x1x1x32x128xbf16> to vector<32x128xbf16>
    %c0_165 = arith.constant 0 : index
    %c2_166 = arith.constant 2 : index
    %c3_167 = arith.constant 3 : index
    %c0_168 = arith.constant 0 : index
    %c0_169 = arith.constant 0 : index
    %198 = vector.load %arg6[%c0_165, %c2_166, %c3_167, %c0_168, %c0_169] : memref<1x3x4x1x32xf32, #tpu.memory_space<vmem>>, vector<1x1x1x1x32xf32>
    %199 = vector.shape_cast %198 : vector<1x1x1x1x32xf32> to vector<1x32xf32>
    %200 = arith.truncf %27 : vector<8x128xf32> to vector<8x128xbf16>
    %cst_170 = arith.constant dense<0.000000e+00> : vector<8x32xf32>
    %201 = tpu.matmul %200, %197, %cst_170 {dimension_numbers = #tpu.dot_dimension_numbers<[1], [1], [0], [0], [0, 0, 1, 0], [], []>} : vector<8x128xbf16>, vector<32x128xbf16>, vector<8x32xf32> -> vector<8x32xf32>
    %202 = vector.broadcast %199 : vector<1x32xf32> to vector<8x32xf32>
    %203 = arith.addf %201, %202 : vector<8x32xf32>
    %204 = vector.shape_cast %187 : vector<8x32xf32> to vector<1x8x32xf32>
    %205 = vector.shape_cast %195 : vector<8x32xf32> to vector<1x8x32xf32>
    %206 = vector.shape_cast %203 : vector<8x32xf32> to vector<1x8x32xf32>
    %207 = arith.truncf %204 : vector<1x8x32xf32> to vector<1x8x32xbf16>
    %208 = arith.truncf %205 : vector<1x8x32xf32> to vector<1x8x32xbf16>
    "tpu.trace_start"() <{level = 10 : i32, message = "bqd,bkd->bqk"}> : () -> ()
    %cst_171 = arith.constant dense<0.000000e+00> : vector<1x8x8xf32>
    %209 = tpu.matmul %207, %208, %cst_171 {dimension_numbers = #tpu.dot_dimension_numbers<[2], [2], [1], [1], [0, 0, 0, 1, 1, 1], [0], [0]>} : vector<1x8x32xbf16>, vector<1x8x32xbf16>, vector<1x8x8xf32> -> vector<1x8x8xf32>
    "tpu.trace_stop"() : () -> ()
    %cst_172 = arith.constant 0.176776692 : f32
    %210 = vector.broadcast %cst_172 : f32 to vector<1x8x8xf32>
    %211 = arith.mulf %209, %210 : vector<1x8x8xf32>
    %cst_173 = arith.constant dense<0xFF800000> : vector<1x8xf32>
    %212 = vector.multi_reduction <maximumf>, %211, %cst_173 [2] : vector<1x8x8xf32> to vector<1x8xf32>
    %213 = vector.shape_cast %212 : vector<1x8xf32> to vector<1x8x1xf32>
    %214 = vector.broadcast %213 : vector<1x8x1xf32> to vector<1x8x8xf32>
    %215 = arith.subf %211, %214 : vector<1x8x8xf32>
    %216 = math.exp %215 : vector<1x8x8xf32>
    %cst_174 = arith.constant dense<0.000000e+00> : vector<1x8xf32>
    %217 = vector.multi_reduction <add>, %216, %cst_174 [2] : vector<1x8x8xf32> to vector<1x8xf32>
    %218 = vector.shape_cast %217 : vector<1x8xf32> to vector<1x8x1xf32>
    %219 = tpu.reciprocal %218 {approx = true} : vector<1x8x1xf32> -> vector<1x8x1xf32>
    %220 = vector.broadcast %219 : vector<1x8x1xf32> to vector<1x8x8xf32>
    %221 = arith.mulf %216, %220 : vector<1x8x8xf32>
    %222 = arith.truncf %221 : vector<1x8x8xf32> to vector<1x8x8xbf16>
    %223 = arith.truncf %206 : vector<1x8x32xf32> to vector<1x8x32xbf16>
    "tpu.trace_start"() <{level = 10 : i32, message = "bqk,bkd->bqd"}> : () -> ()
    %cst_175 = arith.constant dense<0.000000e+00> : vector<1x8x32xf32>
    %224 = tpu.matmul %222, %223, %cst_175 {dimension_numbers = #tpu.dot_dimension_numbers<[2], [1], [1], [2], [0, 0, 0, 1, 1, 2], [0], [0]>} : vector<1x8x8xbf16>, vector<1x8x32xbf16>, vector<1x8x32xf32> -> vector<1x8x32xf32>
    "tpu.trace_stop"() : () -> ()
    %225 = vector.shape_cast %224 : vector<1x8x32xf32> to vector<8x32xf32>
    %c0_176 = arith.constant 0 : index
    %c3_177 = arith.constant 3 : index
    %c0_178 = arith.constant 0 : index
    %c0_179 = arith.constant 0 : index
    %226 = vector.load %arg7[%c0_176, %c3_177, %c0_178, %c0_179] : memref<1x4x32x128xbf16, #tpu.memory_space<vmem>>, vector<1x1x32x128xbf16>
    %227 = vector.shape_cast %226 : vector<1x1x32x128xbf16> to vector<32x128xbf16>
    %228 = arith.truncf %225 : vector<8x32xf32> to vector<8x32xbf16>
    %cst_180 = arith.constant dense<0.000000e+00> : vector<8x128xf32>
    %229 = tpu.matmul %228, %227, %cst_180 {dimension_numbers = #tpu.dot_dimension_numbers<[1], [0], [0], [1], [0, 0, 1, 1], [], []>} : vector<8x32xbf16>, vector<32x128xbf16>, vector<8x128xf32> -> vector<8x128xf32>
    %230 = arith.addf %179, %229 : vector<8x128xf32>
    %c0_181 = arith.constant 0 : index
    %c0_182 = arith.constant 0 : index
    %c0_183 = arith.constant 0 : index
    %231 = vector.load %arg8[%c0_181, %c0_182, %c0_183] : memref<1x1x128xf32, #tpu.memory_space<vmem>>, vector<1x1x128xf32>
    %232 = vector.shape_cast %231 : vector<1x1x128xf32> to vector<1x128xf32>
    %233 = vector.broadcast %232 : vector<1x128xf32> to vector<8x128xf32>
    %234 = arith.addf %230, %233 : vector<8x128xf32>
    %235 = arith.addf %3, %234 : vector<8x128xf32>
    %c0_184 = arith.constant 0 : index
    %c0_185 = arith.constant 0 : index
    %c0_186 = arith.constant 0 : index
    %236 = vector.load %arg9[%c0_184, %c0_185, %c0_186] : memref<1x1x128xf32, #tpu.memory_space<vmem>>, vector<1x1x128xf32>
    %237 = vector.shape_cast %236 : vector<1x1x128xf32> to vector<1x128xf32>
    %c0_187 = arith.constant 0 : index
    %c0_188 = arith.constant 0 : index
    %c0_189 = arith.constant 0 : index
    %238 = vector.load %arg10[%c0_187, %c0_188, %c0_189] : memref<1x1x128xf32, #tpu.memory_space<vmem>>, vector<1x1x128xf32>
    %239 = vector.shape_cast %238 : vector<1x1x128xf32> to vector<1x128xf32>
    %cst_190 = arith.constant dense<0.000000e+00> : vector<8xf32>
    %240 = vector.multi_reduction <add>, %235, %cst_190 [1] : vector<8x128xf32> to vector<8xf32>
    %241 = vector.shape_cast %240 : vector<8xf32> to vector<8x1xf32>
    %cst_191 = arith.constant 1.280000e+02 : f32
    %242 = vector.broadcast %cst_191 : f32 to vector<8x1xf32>
    %243 = arith.divf %241, %242 : vector<8x1xf32>
    %244 = vector.broadcast %243 : vector<8x1xf32> to vector<8x128xf32>
    %245 = arith.subf %235, %244 : vector<8x128xf32>
    %246 = arith.mulf %245, %245 : vector<8x128xf32>
    %cst_192 = arith.constant dense<0.000000e+00> : vector<8xf32>
    %247 = vector.multi_reduction <add>, %246, %cst_192 [1] : vector<8x128xf32> to vector<8xf32>
    %248 = vector.shape_cast %247 : vector<8xf32> to vector<8x1xf32>
    %cst_193 = arith.constant 1.280000e+02 : f32
    %249 = vector.broadcast %cst_193 : f32 to vector<8x1xf32>
    %250 = arith.divf %248, %249 : vector<8x1xf32>
    %cst_194 = arith.constant 9.99999974E-6 : f32
    %251 = vector.broadcast %cst_194 : f32 to vector<8x1xf32>
    %252 = arith.addf %250, %251 : vector<8x1xf32>
    %253 = math.rsqrt %252 : vector<8x1xf32>
    %254 = vector.broadcast %253 : vector<8x1xf32> to vector<8x128xf32>
    %255 = arith.mulf %245, %254 : vector<8x128xf32>
    %256 = vector.broadcast %237 : vector<1x128xf32> to vector<8x128xf32>
    %257 = arith.mulf %255, %256 : vector<8x128xf32>
    %258 = vector.broadcast %239 : vector<1x128xf32> to vector<8x128xf32>
    %259 = arith.addf %257, %258 : vector<8x128xf32>
    %c0_195 = arith.constant 0 : index
    %c0_196 = arith.constant 0 : index
    %c0_197 = arith.constant 0 : index
    %260 = vector.load %arg11[%c0_195, %c0_196, %c0_197] : memref<1x128x256xbf16, #tpu.memory_space<vmem>>, vector<1x128x256xbf16>
    %261 = vector.shape_cast %260 : vector<1x128x256xbf16> to vector<128x256xbf16>
    %c0_198 = arith.constant 0 : index
    %c0_199 = arith.constant 0 : index
    %c0_200 = arith.constant 0 : index
    %262 = vector.load %arg12[%c0_198, %c0_199, %c0_200] : memref<1x1x256xf32, #tpu.memory_space<vmem>>, vector<1x1x256xf32>
    %263 = vector.shape_cast %262 : vector<1x1x256xf32> to vector<1x256xf32>
    %264 = arith.truncf %259 : vector<8x128xf32> to vector<8x128xbf16>
    %cst_201 = arith.constant dense<0.000000e+00> : vector<8x256xf32>
    %265 = tpu.matmul %264, %261, %cst_201 {dimension_numbers = #tpu.dot_dimension_numbers<[1], [0], [0], [1], [0, 0, 1, 1], [], []>} : vector<8x128xbf16>, vector<128x256xbf16>, vector<8x256xf32> -> vector<8x256xf32>
    %266 = vector.broadcast %263 : vector<1x256xf32> to vector<8x256xf32>
    %267 = arith.addf %265, %266 : vector<8x256xf32>
    %cst_202 = arith.constant 0.000000e+00 : f32
    %268 = vector.broadcast %cst_202 : f32 to vector<8x256xf32>
    %269 = arith.maximumf %267, %268 : vector<8x256xf32>
    %c0_203 = arith.constant 0 : index
    %c0_204 = arith.constant 0 : index
    %c0_205 = arith.constant 0 : index
    %270 = vector.load %arg13[%c0_203, %c0_204, %c0_205] : memref<1x256x128xbf16, #tpu.memory_space<vmem>>, vector<1x256x128xbf16>
    %271 = vector.shape_cast %270 : vector<1x256x128xbf16> to vector<256x128xbf16>
    %c0_206 = arith.constant 0 : index
    %c0_207 = arith.constant 0 : index
    %c0_208 = arith.constant 0 : index
    %272 = vector.load %arg14[%c0_206, %c0_207, %c0_208] : memref<1x1x128xf32, #tpu.memory_space<vmem>>, vector<1x1x128xf32>
    %273 = vector.shape_cast %272 : vector<1x1x128xf32> to vector<1x128xf32>
    %274 = arith.truncf %269 : vector<8x256xf32> to vector<8x256xbf16>
    %cst_209 = arith.constant dense<0.000000e+00> : vector<8x128xf32>
    %275 = tpu.matmul %274, %271, %cst_209 {dimension_numbers = #tpu.dot_dimension_numbers<[1], [0], [0], [1], [0, 0, 1, 1], [], []>} : vector<8x256xbf16>, vector<256x128xbf16>, vector<8x128xf32> -> vector<8x128xf32>
    %276 = vector.broadcast %273 : vector<1x128xf32> to vector<8x128xf32>
    %277 = arith.addf %275, %276 : vector<8x128xf32>
    %278 = arith.addf %235, %277 : vector<8x128xf32>
    %c0_210 = arith.constant 0 : index
    %c0_211 = arith.constant 0 : index
    %279 = vector.load %arg18[%c0_210, %c0_211] : memref<8x128xf32, #tpu.memory_space<vmem>>, vector<8x128xf32>
    tpu.vector_store %arg18[%c0_210, %c0_211], %278 {strides = array<i32>} : memref<8x128xf32, #tpu.memory_space<vmem>>, vector<8x128xf32>,
    %c1_i32 = arith.constant 1 : i32
    %280 = arith.cmpi eq, %arg1, %c1_i32 : i32
    %281 = arith.extui %280 : i1 to i32
    %c0_i32_212 = arith.constant 0 : i32
    %282 = arith.cmpi ne, %281, %c0_i32_212 : i32
    scf.if %282 {
      %c0_213 = arith.constant 0 : index
      %c0_214 = arith.constant 0 : index
      %283 = vector.load %arg15[%c0_213, %c0_214] : memref<1x128xf32, #tpu.memory_space<vmem>>, vector<1x128xf32>
      %c0_215 = arith.constant 0 : index
      %c0_216 = arith.constant 0 : index
      %284 = vector.load %arg16[%c0_215, %c0_216] : memref<1x128xf32, #tpu.memory_space<vmem>>, vector<1x128xf32>
      %cst_217 = arith.constant dense<0.000000e+00> : vector<8xf32>
      %285 = vector.multi_reduction <add>, %278, %cst_217 [1] : vector<8x128xf32> to vector<8xf32>
      %286 = vector.shape_cast %285 : vector<8xf32> to vector<8x1xf32>
      %cst_218 = arith.constant 1.280000e+02 : f32
      %287 = vector.broadcast %cst_218 : f32 to vector<8x1xf32>
      %288 = arith.divf %286, %287 : vector<8x1xf32>
      %289 = vector.broadcast %288 : vector<8x1xf32> to vector<8x128xf32>
      %290 = arith.subf %278, %289 : vector<8x128xf32>
      %291 = arith.mulf %290, %290 : vector<8x128xf32>
      %cst_219 = arith.constant dense<0.000000e+00> : vector<8xf32>
      %292 = vector.multi_reduction <add>, %291, %cst_219 [1] : vector<8x128xf32> to vector<8xf32>
      %293 = vector.shape_cast %292 : vector<8xf32> to vector<8x1xf32>
      %cst_220 = arith.constant 1.280000e+02 : f32
      %294 = vector.broadcast %cst_220 : f32 to vector<8x1xf32>
      %295 = arith.divf %293, %294 : vector<8x1xf32>
      %cst_221 = arith.constant 9.99999974E-6 : f32
      %296 = vector.broadcast %cst_221 : f32 to vector<8x1xf32>
      %297 = arith.addf %295, %296 : vector<8x1xf32>
      %298 = math.rsqrt %297 : vector<8x1xf32>
      %299 = vector.broadcast %298 : vector<8x1xf32> to vector<8x128xf32>
      %300 = arith.mulf %290, %299 : vector<8x128xf32>
      %301 = vector.broadcast %283 : vector<1x128xf32> to vector<8x128xf32>
      %302 = arith.mulf %300, %301 : vector<8x128xf32>
      %303 = vector.broadcast %284 : vector<1x128xf32> to vector<8x128xf32>
      %304 = arith.addf %302, %303 : vector<8x128xf32>
      %c0_222 = arith.constant 0 : index
      %c0_223 = arith.constant 0 : index
      %305 = vector.load %arg17[%c0_222, %c0_223] : memref<8x128xf32, #tpu.memory_space<vmem>>, vector<8x128xf32>
      tpu.vector_store %arg17[%c0_222, %c0_223], %304 {strides = array<i32>} : memref<8x128xf32, #tpu.memory_space<vmem>>, vector<8x128xf32>,
    } else {
    }
    return
  }
  func.func @transform_0(%arg0: i32, %arg1: i32) -> (i32, i32) {
    %c0_i32 = arith.constant 0 : i32
    %c0_i32_0 = arith.constant 0 : i32
    return %arg0, %c0_i32 : i32, i32
  }
  func.func @transform_1(%arg0: i32, %arg1: i32) -> (i32, i32, i32) {
    %c0_i32 = arith.constant 0 : i32
    %c0_i32_0 = arith.constant 0 : i32
    %c0_i32_1 = arith.constant 0 : i32
    return %arg1, %c0_i32, %c0_i32_0 : i32, i32, i32
  }
  func.func @transform_2(%arg0: i32, %arg1: i32) -> (i32, i32, i32) {
    %c0_i32 = arith.constant 0 : i32
    %c0_i32_0 = arith.constant 0 : i32
    %c0_i32_1 = arith.constant 0 : i32
    return %arg1, %c0_i32, %c0_i32_0 : i32, i32, i32
  }
  func.func @transform_3(%arg0: i32, %arg1: i32) -> (i32, i32, i32, i32, i32) {
    %c0_i32 = arith.constant 0 : i32
    %c0_i32_0 = arith.constant 0 : i32
    %c0_i32_1 = arith.constant 0 : i32
    %c0_i32_2 = arith.constant 0 : i32
    %c0_i32_3 = arith.constant 0 : i32
    return %arg1, %c0_i32, %c0_i32_0, %c0_i32_1, %c0_i32_2 : i32, i32, i32, i32, i32
  }
  func.func @transform_4(%arg0: i32, %arg1: i32) -> (i32, i32, i32, i32, i32) {
    %c0_i32 = arith.constant 0 : i32
    %c0_i32_0 = arith.constant 0 : i32
    %c0_i32_1 = arith.constant 0 : i32
    %c0_i32_2 = arith.constant 0 : i32
    %c0_i32_3 = arith.constant 0 : i32
    return %arg1, %c0_i32, %c0_i32_0, %c0_i32_1, %c0_i32_2 : i32, i32, i32, i32, i32
  }
  func.func @transform_5(%arg0: i32, %arg1: i32) -> (i32, i32, i32, i32) {
    %c0_i32 = arith.constant 0 : i32
    %c0_i32_0 = arith.constant 0 : i32
    %c0_i32_1 = arith.constant 0 : i32
    %c0_i32_2 = arith.constant 0 : i32
    return %arg1, %c0_i32, %c0_i32_0, %c0_i32_1 : i32, i32, i32, i32
  }
  func.func @transform_6(%arg0: i32, %arg1: i32) -> (i32, i32, i32) {
    %c0_i32 = arith.constant 0 : i32
    %c0_i32_0 = arith.constant 0 : i32
    %c0_i32_1 = arith.constant 0 : i32
    return %arg1, %c0_i32, %c0_i32_0 : i32, i32, i32
  }
  func.func @transform_7(%arg0: i32, %arg1: i32) -> (i32, i32, i32) {
    %c0_i32 = arith.constant 0 : i32
    %c0_i32_0 = arith.constant 0 : i32
    %c0_i32_1 = arith.constant 0 : i32
    return %arg1, %c0_i32, %c0_i32_0 : i32, i32, i32
  }
  func.func @transform_8(%arg0: i32, %arg1: i32) -> (i32, i32, i32) {
    %c0_i32 = arith.constant 0 : i32
    %c0_i32_0 = arith.constant 0 : i32
    %c0_i32_1 = arith.constant 0 : i32
    return %arg1, %c0_i32, %c0_i32_0 : i32, i32, i32
  }
  func.func @transform_9(%arg0: i32, %arg1: i32) -> (i32, i32, i32) {
    %c0_i32 = arith.constant 0 : i32
    %c0_i32_0 = arith.constant 0 : i32
    %c0_i32_1 = arith.constant 0 : i32
    return %arg1, %c0_i32, %c0_i32_0 : i32, i32, i32
  }
  func.func @transform_10(%arg0: i32, %arg1: i32) -> (i32, i32, i32) {
    %c0_i32 = arith.constant 0 : i32
    %c0_i32_0 = arith.constant 0 : i32
    %c0_i32_1 = arith.constant 0 : i32
    return %arg1, %c0_i32, %c0_i32_0 : i32, i32, i32
  }
  func.func @transform_11(%arg0: i32, %arg1: i32) -> (i32, i32, i32) {
    %c0_i32 = arith.constant 0 : i32
    %c0_i32_0 = arith.constant 0 : i32
    %c0_i32_1 = arith.constant 0 : i32
    return %arg1, %c0_i32, %c0_i32_0 : i32, i32, i32
  }
  func.func @transform_12(%arg0: i32, %arg1: i32) -> (i32, i32, i32) {
    %c0_i32 = arith.constant 0 : i32
    %c0_i32_0 = arith.constant 0 : i32
    %c0_i32_1 = arith.constant 0 : i32
    return %arg1, %c0_i32, %c0_i32_0 : i32, i32, i32
  }
  func.func @transform_13(%arg0: i32, %arg1: i32) -> (i32, i32) {
    %c0_i32 = arith.constant 0 : i32
    %c0_i32_0 = arith.constant 0 : i32
    %c0_i32_1 = arith.constant 0 : i32
    return %c0_i32, %c0_i32_0 : i32, i32
  }
  func.func @transform_14(%arg0: i32, %arg1: i32) -> (i32, i32) {
    %c0_i32 = arith.constant 0 : i32
    %c0_i32_0 = arith.constant 0 : i32
    %c0_i32_1 = arith.constant 0 : i32
    return %c0_i32, %c0_i32_0 : i32, i32
  }
  func.func @transform_15(%arg0: i32, %arg1: i32) -> (i32, i32) {
    %c0_i32 = arith.constant 0 : i32
    %c0_i32_0 = arith.constant 0 : i32
    return %arg0, %c0_i32 : i32, i32
  }
}

module attributes {stable_mosaic.version = 11 : i64} {
  func.func @_decoder_stack_kernel(%arg0: i32, %arg1: i32, %arg2: memref<8x128xf32, #tpu.memory_space<vmem>>, %arg3: memref<8x128xf32, #tpu.memory_space<vmem>>, %arg4: memref<1x1x128xf32, #tpu.memory_space<vmem>>, %arg5: memref<1x1x128xf32, #tpu.memory_space<vmem>>, %arg6: memref<1x3x4x32x128xbf16, #tpu.memory_space<vmem>>, %arg7: memref<1x3x4x1x32xf32, #tpu.memory_space<vmem>>, %arg8: memref<1x4x32x128xbf16, #tpu.memory_space<vmem>>, %arg9: memref<1x1x128xf32, #tpu.memory_space<vmem>>, %arg10: memref<1x1x128xf32, #tpu.memory_space<vmem>>, %arg11: memref<1x1x128xf32, #tpu.memory_space<vmem>>, %arg12: memref<1x3x4x32x128xbf16, #tpu.memory_space<vmem>>, %arg13: memref<1x3x4x1x32xf32, #tpu.memory_space<vmem>>, %arg14: memref<1x4x32x128xbf16, #tpu.memory_space<vmem>>, %arg15: memref<1x1x128xf32, #tpu.memory_space<vmem>>, %arg16: memref<1x1x128xf32, #tpu.memory_space<vmem>>, %arg17: memref<1x1x128xf32, #tpu.memory_space<vmem>>, %arg18: memref<1x128x256xbf16, #tpu.memory_space<vmem>>, %arg19: memref<1x1x256xf32, #tpu.memory_space<vmem>>, %arg20: memref<1x256x128xbf16, #tpu.memory_space<vmem>>, %arg21: memref<1x1x128xf32, #tpu.memory_space<vmem>>, %arg22: memref<1x128xf32, #tpu.memory_space<vmem>>, %arg23: memref<1x128xf32, #tpu.memory_space<vmem>>, %arg24: memref<128x128xbf16, #tpu.memory_space<vmem>>, %arg25: memref<1x128xf32, #tpu.memory_space<vmem>>, %arg26: memref<8x128xf32, #tpu.memory_space<vmem>>, %arg27: memref<8x128xf32, #tpu.memory_space<vmem>>, %arg28: memref<8x8xf32, #tpu.memory_space<vmem>>) attributes {dimension_semantics = [#tpu.dimension_semantics<parallel>, #tpu.dimension_semantics<arbitrary>], iteration_bounds = array<i64: 2, 2>, scalar_prefetch = 0 : i64, scratch_operands = 2 : i64, tpu.core_type = #tpu.core_type<tc>, window_params = [{transform_indices = @transform_0, window_bounds = array<i64: 8, 128>}, {transform_indices = @transform_1, window_bounds = array<i64: 8, 128>}, {transform_indices = @transform_2, window_bounds = array<i64: 1, 1, 128>}, {transform_indices = @transform_3, window_bounds = array<i64: 1, 1, 128>}, {transform_indices = @transform_4, window_bounds = array<i64: 1, 3, 4, 32, 128>}, {transform_indices = @transform_5, window_bounds = array<i64: 1, 3, 4, 1, 32>}, {transform_indices = @transform_6, window_bounds = array<i64: 1, 4, 32, 128>}, {transform_indices = @transform_7, window_bounds = array<i64: 1, 1, 128>}, {transform_indices = @transform_8, window_bounds = array<i64: 1, 1, 128>}, {transform_indices = @transform_9, window_bounds = array<i64: 1, 1, 128>}, {transform_indices = @transform_10, window_bounds = array<i64: 1, 3, 4, 32, 128>}, {transform_indices = @transform_11, window_bounds = array<i64: 1, 3, 4, 1, 32>}, {transform_indices = @transform_12, window_bounds = array<i64: 1, 4, 32, 128>}, {transform_indices = @transform_13, window_bounds = array<i64: 1, 1, 128>}, {transform_indices = @transform_14, window_bounds = array<i64: 1, 1, 128>}, {transform_indices = @transform_15, window_bounds = array<i64: 1, 1, 128>}, {transform_indices = @transform_16, window_bounds = array<i64: 1, 128, 256>}, {transform_indices = @transform_17, window_bounds = array<i64: 1, 1, 256>}, {transform_indices = @transform_18, window_bounds = array<i64: 1, 256, 128>}, {transform_indices = @transform_19, window_bounds = array<i64: 1, 1, 128>}, {pipeline_mode = #tpu.pipeline_mode<synchronous>, transform_indices = @transform_20, window_bounds = array<i64: 1, 128>}, {pipeline_mode = #tpu.pipeline_mode<synchronous>, transform_indices = @transform_21, window_bounds = array<i64: 1, 128>}, {pipeline_mode = #tpu.pipeline_mode<synchronous>, transform_indices = @transform_22, window_bounds = array<i64: 128, 128>}, {pipeline_mode = #tpu.pipeline_mode<synchronous>, transform_indices = @transform_23, window_bounds = array<i64: 1, 128>}, {transform_indices = @transform_24, window_bounds = array<i64: 8, 128>}]} {
    %c0_i32 = arith.constant 0 : i32
    %0 = arith.cmpi eq, %arg1, %c0_i32 : i32
    %1 = arith.extui %0 : i1 to i32
    %c0_i32_0 = arith.constant 0 : i32
    %2 = arith.cmpi ne, %1, %c0_i32_0 : i32
    scf.if %2 {
      %c0_403 = arith.constant 0 : index
      %c0_404 = arith.constant 0 : index
      %525 = vector.load %arg2[%c0_403, %c0_404] : memref<8x128xf32, #tpu.memory_space<vmem>>, vector<8x128xf32>
      %c0_405 = arith.constant 0 : index
      %c0_406 = arith.constant 0 : index
      %526 = vector.load %arg27[%c0_405, %c0_406] : memref<8x128xf32, #tpu.memory_space<vmem>>, vector<8x128xf32>
      tpu.vector_store %arg27[%c0_405, %c0_406], %525 {strides = array<i32>} : memref<8x128xf32, #tpu.memory_space<vmem>>, vector<8x128xf32>,
      %527 = tpu.iota {dimensions = array<i32: 0>} : vector<8x8xi32>
      %528 = tpu.iota {dimensions = array<i32: 1>} : vector<8x8xi32>
      %529 = arith.cmpi sgt, %528, %527 : vector<8x8xi32>
      %cst_407 = arith.constant -1.000000e+30 : f32
      %cst_408 = arith.constant 0.000000e+00 : f32
      %530 = vector.broadcast %cst_407 : f32 to vector<8x8xf32>
      %531 = vector.broadcast %cst_408 : f32 to vector<8x8xf32>
      %532 = arith.select %529, %530, %531 : vector<8x8xi1>, vector<8x8xf32>
      %c0_409 = arith.constant 0 : index
      %c0_410 = arith.constant 0 : index
      %533 = vector.load %arg28[%c0_409, %c0_410] : memref<8x8xf32, #tpu.memory_space<vmem>>, vector<8x8xf32>
      tpu.vector_store %arg28[%c0_409, %c0_410], %532 {strides = array<i32>} : memref<8x8xf32, #tpu.memory_space<vmem>>, vector<8x8xf32>,
    } else {
    }
    %c0 = arith.constant 0 : index
    %c0_1 = arith.constant 0 : index
    %3 = vector.load %arg27[%c0, %c0_1] : memref<8x128xf32, #tpu.memory_space<vmem>>, vector<8x128xf32>
    %c0_2 = arith.constant 0 : index
    %c0_3 = arith.constant 0 : index
    %c0_4 = arith.constant 0 : index
    %4 = vector.load %arg4[%c0_2, %c0_3, %c0_4] : memref<1x1x128xf32, #tpu.memory_space<vmem>>, vector<1x1x128xf32>
    %5 = vector.shape_cast %4 : vector<1x1x128xf32> to vector<1x128xf32>
    %c0_5 = arith.constant 0 : index
    %c0_6 = arith.constant 0 : index
    %c0_7 = arith.constant 0 : index
    %6 = vector.load %arg5[%c0_5, %c0_6, %c0_7] : memref<1x1x128xf32, #tpu.memory_space<vmem>>, vector<1x1x128xf32>
    %7 = vector.shape_cast %6 : vector<1x1x128xf32> to vector<1x128xf32>
    %cst = arith.constant dense<0.000000e+00> : vector<8xf32>
    %8 = vector.multi_reduction <add>, %3, %cst [1] : vector<8x128xf32> to vector<8xf32>
    %9 = vector.shape_cast %8 : vector<8xf32> to vector<8x1xf32>
    %cst_8 = arith.constant 1.280000e+02 : f32
    %10 = vector.broadcast %cst_8 : f32 to vector<8x1xf32>
    %11 = arith.divf %9, %10 : vector<8x1xf32>
    %12 = vector.broadcast %11 : vector<8x1xf32> to vector<8x128xf32>
    %13 = arith.subf %3, %12 : vector<8x128xf32>
    %14 = arith.mulf %13, %13 : vector<8x128xf32>
    %cst_9 = arith.constant dense<0.000000e+00> : vector<8xf32>
    %15 = vector.multi_reduction <add>, %14, %cst_9 [1] : vector<8x128xf32> to vector<8xf32>
    %16 = vector.shape_cast %15 : vector<8xf32> to vector<8x1xf32>
    %cst_10 = arith.constant 1.280000e+02 : f32
    %17 = vector.broadcast %cst_10 : f32 to vector<8x1xf32>
    %18 = arith.divf %16, %17 : vector<8x1xf32>
    %cst_11 = arith.constant 9.99999974E-6 : f32
    %19 = vector.broadcast %cst_11 : f32 to vector<8x1xf32>
    %20 = arith.addf %18, %19 : vector<8x1xf32>
    %21 = math.rsqrt %20 : vector<8x1xf32>
    %22 = vector.broadcast %21 : vector<8x1xf32> to vector<8x128xf32>
    %23 = arith.mulf %13, %22 : vector<8x128xf32>
    %24 = vector.broadcast %5 : vector<1x128xf32> to vector<8x128xf32>
    %25 = arith.mulf %23, %24 : vector<8x128xf32>
    %26 = vector.broadcast %7 : vector<1x128xf32> to vector<8x128xf32>
    %27 = arith.addf %25, %26 : vector<8x128xf32>
    %c0_12 = arith.constant 0 : index
    %c0_13 = arith.constant 0 : index
    %28 = vector.load %arg28[%c0_12, %c0_13] : memref<8x8xf32, #tpu.memory_space<vmem>>, vector<8x8xf32>
    %c0_14 = arith.constant 0 : index
    %c0_15 = arith.constant 0 : index
    %c0_16 = arith.constant 0 : index
    %c0_17 = arith.constant 0 : index
    %c0_18 = arith.constant 0 : index
    %29 = vector.load %arg6[%c0_14, %c0_15, %c0_16, %c0_17, %c0_18] : memref<1x3x4x32x128xbf16, #tpu.memory_space<vmem>>, vector<1x1x1x32x128xbf16>
    %30 = vector.shape_cast %29 : vector<1x1x1x32x128xbf16> to vector<32x128xbf16>
    %c0_19 = arith.constant 0 : index
    %c0_20 = arith.constant 0 : index
    %c0_21 = arith.constant 0 : index
    %c0_22 = arith.constant 0 : index
    %c0_23 = arith.constant 0 : index
    %31 = vector.load %arg7[%c0_19, %c0_20, %c0_21, %c0_22, %c0_23] : memref<1x3x4x1x32xf32, #tpu.memory_space<vmem>>, vector<1x1x1x1x32xf32>
    %32 = vector.shape_cast %31 : vector<1x1x1x1x32xf32> to vector<1x32xf32>
    %33 = arith.truncf %27 : vector<8x128xf32> to vector<8x128xbf16>
    %cst_24 = arith.constant dense<0.000000e+00> : vector<8x32xf32>
    %34 = tpu.matmul %33, %30, %cst_24 {dimension_numbers = #tpu.dot_dimension_numbers<[1], [1], [0], [0], [0, 0, 1, 0], [], []>} : vector<8x128xbf16>, vector<32x128xbf16>, vector<8x32xf32> -> vector<8x32xf32>
    %35 = vector.broadcast %32 : vector<1x32xf32> to vector<8x32xf32>
    %36 = arith.addf %34, %35 : vector<8x32xf32>
    %c0_25 = arith.constant 0 : index
    %c1 = arith.constant 1 : index
    %c0_26 = arith.constant 0 : index
    %c0_27 = arith.constant 0 : index
    %c0_28 = arith.constant 0 : index
    %37 = vector.load %arg6[%c0_25, %c1, %c0_26, %c0_27, %c0_28] : memref<1x3x4x32x128xbf16, #tpu.memory_space<vmem>>, vector<1x1x1x32x128xbf16>
    %38 = vector.shape_cast %37 : vector<1x1x1x32x128xbf16> to vector<32x128xbf16>
    %c0_29 = arith.constant 0 : index
    %c1_30 = arith.constant 1 : index
    %c0_31 = arith.constant 0 : index
    %c0_32 = arith.constant 0 : index
    %c0_33 = arith.constant 0 : index
    %39 = vector.load %arg7[%c0_29, %c1_30, %c0_31, %c0_32, %c0_33] : memref<1x3x4x1x32xf32, #tpu.memory_space<vmem>>, vector<1x1x1x1x32xf32>
    %40 = vector.shape_cast %39 : vector<1x1x1x1x32xf32> to vector<1x32xf32>
    %41 = arith.truncf %27 : vector<8x128xf32> to vector<8x128xbf16>
    %cst_34 = arith.constant dense<0.000000e+00> : vector<8x32xf32>
    %42 = tpu.matmul %41, %38, %cst_34 {dimension_numbers = #tpu.dot_dimension_numbers<[1], [1], [0], [0], [0, 0, 1, 0], [], []>} : vector<8x128xbf16>, vector<32x128xbf16>, vector<8x32xf32> -> vector<8x32xf32>
    %43 = vector.broadcast %40 : vector<1x32xf32> to vector<8x32xf32>
    %44 = arith.addf %42, %43 : vector<8x32xf32>
    %c0_35 = arith.constant 0 : index
    %c2 = arith.constant 2 : index
    %c0_36 = arith.constant 0 : index
    %c0_37 = arith.constant 0 : index
    %c0_38 = arith.constant 0 : index
    %45 = vector.load %arg6[%c0_35, %c2, %c0_36, %c0_37, %c0_38] : memref<1x3x4x32x128xbf16, #tpu.memory_space<vmem>>, vector<1x1x1x32x128xbf16>
    %46 = vector.shape_cast %45 : vector<1x1x1x32x128xbf16> to vector<32x128xbf16>
    %c0_39 = arith.constant 0 : index
    %c2_40 = arith.constant 2 : index
    %c0_41 = arith.constant 0 : index
    %c0_42 = arith.constant 0 : index
    %c0_43 = arith.constant 0 : index
    %47 = vector.load %arg7[%c0_39, %c2_40, %c0_41, %c0_42, %c0_43] : memref<1x3x4x1x32xf32, #tpu.memory_space<vmem>>, vector<1x1x1x1x32xf32>
    %48 = vector.shape_cast %47 : vector<1x1x1x1x32xf32> to vector<1x32xf32>
    %49 = arith.truncf %27 : vector<8x128xf32> to vector<8x128xbf16>
    %cst_44 = arith.constant dense<0.000000e+00> : vector<8x32xf32>
    %50 = tpu.matmul %49, %46, %cst_44 {dimension_numbers = #tpu.dot_dimension_numbers<[1], [1], [0], [0], [0, 0, 1, 0], [], []>} : vector<8x128xbf16>, vector<32x128xbf16>, vector<8x32xf32> -> vector<8x32xf32>
    %51 = vector.broadcast %48 : vector<1x32xf32> to vector<8x32xf32>
    %52 = arith.addf %50, %51 : vector<8x32xf32>
    %53 = vector.shape_cast %36 : vector<8x32xf32> to vector<1x8x32xf32>
    %54 = vector.shape_cast %44 : vector<8x32xf32> to vector<1x8x32xf32>
    %55 = vector.shape_cast %52 : vector<8x32xf32> to vector<1x8x32xf32>
    %56 = arith.truncf %53 : vector<1x8x32xf32> to vector<1x8x32xbf16>
    %57 = arith.truncf %54 : vector<1x8x32xf32> to vector<1x8x32xbf16>
    "tpu.trace_start"() <{level = 10 : i32, message = "bqd,bkd->bqk"}> : () -> ()
    %cst_45 = arith.constant dense<0.000000e+00> : vector<1x8x8xf32>
    %58 = tpu.matmul %56, %57, %cst_45 {dimension_numbers = #tpu.dot_dimension_numbers<[2], [2], [1], [1], [0, 0, 0, 1, 1, 1], [0], [0]>} : vector<1x8x32xbf16>, vector<1x8x32xbf16>, vector<1x8x8xf32> -> vector<1x8x8xf32>
    "tpu.trace_stop"() : () -> ()
    %cst_46 = arith.constant 0.176776692 : f32
    %59 = vector.broadcast %cst_46 : f32 to vector<1x8x8xf32>
    %60 = arith.mulf %58, %59 : vector<1x8x8xf32>
    %61 = vector.shape_cast %28 : vector<8x8xf32> to vector<1x8x8xf32>
    %62 = arith.addf %60, %61 : vector<1x8x8xf32>
    %cst_47 = arith.constant dense<0xFF800000> : vector<1x8xf32>
    %63 = vector.multi_reduction <maximumf>, %62, %cst_47 [2] : vector<1x8x8xf32> to vector<1x8xf32>
    %64 = vector.shape_cast %63 : vector<1x8xf32> to vector<1x8x1xf32>
    %65 = vector.broadcast %64 : vector<1x8x1xf32> to vector<1x8x8xf32>
    %66 = arith.subf %62, %65 : vector<1x8x8xf32>
    %67 = math.exp %66 : vector<1x8x8xf32>
    %cst_48 = arith.constant dense<0.000000e+00> : vector<1x8xf32>
    %68 = vector.multi_reduction <add>, %67, %cst_48 [2] : vector<1x8x8xf32> to vector<1x8xf32>
    %69 = vector.shape_cast %68 : vector<1x8xf32> to vector<1x8x1xf32>
    %70 = tpu.reciprocal %69 {approx = true} : vector<1x8x1xf32> -> vector<1x8x1xf32>
    %71 = vector.broadcast %70 : vector<1x8x1xf32> to vector<1x8x8xf32>
    %72 = arith.mulf %67, %71 : vector<1x8x8xf32>
    %73 = arith.truncf %72 : vector<1x8x8xf32> to vector<1x8x8xbf16>
    %74 = arith.truncf %55 : vector<1x8x32xf32> to vector<1x8x32xbf16>
    "tpu.trace_start"() <{level = 10 : i32, message = "bqk,bkd->bqd"}> : () -> ()
    %cst_49 = arith.constant dense<0.000000e+00> : vector<1x8x32xf32>
    %75 = tpu.matmul %73, %74, %cst_49 {dimension_numbers = #tpu.dot_dimension_numbers<[2], [1], [1], [2], [0, 0, 0, 1, 1, 2], [0], [0]>} : vector<1x8x8xbf16>, vector<1x8x32xbf16>, vector<1x8x32xf32> -> vector<1x8x32xf32>
    "tpu.trace_stop"() : () -> ()
    %76 = vector.shape_cast %75 : vector<1x8x32xf32> to vector<8x32xf32>
    %c0_50 = arith.constant 0 : index
    %c0_51 = arith.constant 0 : index
    %c0_52 = arith.constant 0 : index
    %c0_53 = arith.constant 0 : index
    %77 = vector.load %arg8[%c0_50, %c0_51, %c0_52, %c0_53] : memref<1x4x32x128xbf16, #tpu.memory_space<vmem>>, vector<1x1x32x128xbf16>
    %78 = vector.shape_cast %77 : vector<1x1x32x128xbf16> to vector<32x128xbf16>
    %79 = arith.truncf %76 : vector<8x32xf32> to vector<8x32xbf16>
    %cst_54 = arith.constant dense<0.000000e+00> : vector<8x128xf32>
    %80 = tpu.matmul %79, %78, %cst_54 {dimension_numbers = #tpu.dot_dimension_numbers<[1], [0], [0], [1], [0, 0, 1, 1], [], []>} : vector<8x32xbf16>, vector<32x128xbf16>, vector<8x128xf32> -> vector<8x128xf32>
    %c0_55 = arith.constant 0 : index
    %c0_56 = arith.constant 0 : index
    %c1_57 = arith.constant 1 : index
    %c0_58 = arith.constant 0 : index
    %c0_59 = arith.constant 0 : index
    %81 = vector.load %arg6[%c0_55, %c0_56, %c1_57, %c0_58, %c0_59] : memref<1x3x4x32x128xbf16, #tpu.memory_space<vmem>>, vector<1x1x1x32x128xbf16>
    %82 = vector.shape_cast %81 : vector<1x1x1x32x128xbf16> to vector<32x128xbf16>
    %c0_60 = arith.constant 0 : index
    %c0_61 = arith.constant 0 : index
    %c1_62 = arith.constant 1 : index
    %c0_63 = arith.constant 0 : index
    %c0_64 = arith.constant 0 : index
    %83 = vector.load %arg7[%c0_60, %c0_61, %c1_62, %c0_63, %c0_64] : memref<1x3x4x1x32xf32, #tpu.memory_space<vmem>>, vector<1x1x1x1x32xf32>
    %84 = vector.shape_cast %83 : vector<1x1x1x1x32xf32> to vector<1x32xf32>
    %85 = arith.truncf %27 : vector<8x128xf32> to vector<8x128xbf16>
    %cst_65 = arith.constant dense<0.000000e+00> : vector<8x32xf32>
    %86 = tpu.matmul %85, %82, %cst_65 {dimension_numbers = #tpu.dot_dimension_numbers<[1], [1], [0], [0], [0, 0, 1, 0], [], []>} : vector<8x128xbf16>, vector<32x128xbf16>, vector<8x32xf32> -> vector<8x32xf32>
    %87 = vector.broadcast %84 : vector<1x32xf32> to vector<8x32xf32>
    %88 = arith.addf %86, %87 : vector<8x32xf32>
    %c0_66 = arith.constant 0 : index
    %c1_67 = arith.constant 1 : index
    %c1_68 = arith.constant 1 : index
    %c0_69 = arith.constant 0 : index
    %c0_70 = arith.constant 0 : index
    %89 = vector.load %arg6[%c0_66, %c1_67, %c1_68, %c0_69, %c0_70] : memref<1x3x4x32x128xbf16, #tpu.memory_space<vmem>>, vector<1x1x1x32x128xbf16>
    %90 = vector.shape_cast %89 : vector<1x1x1x32x128xbf16> to vector<32x128xbf16>
    %c0_71 = arith.constant 0 : index
    %c1_72 = arith.constant 1 : index
    %c1_73 = arith.constant 1 : index
    %c0_74 = arith.constant 0 : index
    %c0_75 = arith.constant 0 : index
    %91 = vector.load %arg7[%c0_71, %c1_72, %c1_73, %c0_74, %c0_75] : memref<1x3x4x1x32xf32, #tpu.memory_space<vmem>>, vector<1x1x1x1x32xf32>
    %92 = vector.shape_cast %91 : vector<1x1x1x1x32xf32> to vector<1x32xf32>
    %93 = arith.truncf %27 : vector<8x128xf32> to vector<8x128xbf16>
    %cst_76 = arith.constant dense<0.000000e+00> : vector<8x32xf32>
    %94 = tpu.matmul %93, %90, %cst_76 {dimension_numbers = #tpu.dot_dimension_numbers<[1], [1], [0], [0], [0, 0, 1, 0], [], []>} : vector<8x128xbf16>, vector<32x128xbf16>, vector<8x32xf32> -> vector<8x32xf32>
    %95 = vector.broadcast %92 : vector<1x32xf32> to vector<8x32xf32>
    %96 = arith.addf %94, %95 : vector<8x32xf32>
    %c0_77 = arith.constant 0 : index
    %c2_78 = arith.constant 2 : index
    %c1_79 = arith.constant 1 : index
    %c0_80 = arith.constant 0 : index
    %c0_81 = arith.constant 0 : index
    %97 = vector.load %arg6[%c0_77, %c2_78, %c1_79, %c0_80, %c0_81] : memref<1x3x4x32x128xbf16, #tpu.memory_space<vmem>>, vector<1x1x1x32x128xbf16>
    %98 = vector.shape_cast %97 : vector<1x1x1x32x128xbf16> to vector<32x128xbf16>
    %c0_82 = arith.constant 0 : index
    %c2_83 = arith.constant 2 : index
    %c1_84 = arith.constant 1 : index
    %c0_85 = arith.constant 0 : index
    %c0_86 = arith.constant 0 : index
    %99 = vector.load %arg7[%c0_82, %c2_83, %c1_84, %c0_85, %c0_86] : memref<1x3x4x1x32xf32, #tpu.memory_space<vmem>>, vector<1x1x1x1x32xf32>
    %100 = vector.shape_cast %99 : vector<1x1x1x1x32xf32> to vector<1x32xf32>
    %101 = arith.truncf %27 : vector<8x128xf32> to vector<8x128xbf16>
    %cst_87 = arith.constant dense<0.000000e+00> : vector<8x32xf32>
    %102 = tpu.matmul %101, %98, %cst_87 {dimension_numbers = #tpu.dot_dimension_numbers<[1], [1], [0], [0], [0, 0, 1, 0], [], []>} : vector<8x128xbf16>, vector<32x128xbf16>, vector<8x32xf32> -> vector<8x32xf32>
    %103 = vector.broadcast %100 : vector<1x32xf32> to vector<8x32xf32>
    %104 = arith.addf %102, %103 : vector<8x32xf32>
    %105 = vector.shape_cast %88 : vector<8x32xf32> to vector<1x8x32xf32>
    %106 = vector.shape_cast %96 : vector<8x32xf32> to vector<1x8x32xf32>
    %107 = vector.shape_cast %104 : vector<8x32xf32> to vector<1x8x32xf32>
    %108 = arith.truncf %105 : vector<1x8x32xf32> to vector<1x8x32xbf16>
    %109 = arith.truncf %106 : vector<1x8x32xf32> to vector<1x8x32xbf16>
    "tpu.trace_start"() <{level = 10 : i32, message = "bqd,bkd->bqk"}> : () -> ()
    %cst_88 = arith.constant dense<0.000000e+00> : vector<1x8x8xf32>
    %110 = tpu.matmul %108, %109, %cst_88 {dimension_numbers = #tpu.dot_dimension_numbers<[2], [2], [1], [1], [0, 0, 0, 1, 1, 1], [0], [0]>} : vector<1x8x32xbf16>, vector<1x8x32xbf16>, vector<1x8x8xf32> -> vector<1x8x8xf32>
    "tpu.trace_stop"() : () -> ()
    %cst_89 = arith.constant 0.176776692 : f32
    %111 = vector.broadcast %cst_89 : f32 to vector<1x8x8xf32>
    %112 = arith.mulf %110, %111 : vector<1x8x8xf32>
    %113 = vector.shape_cast %28 : vector<8x8xf32> to vector<1x8x8xf32>
    %114 = arith.addf %112, %113 : vector<1x8x8xf32>
    %cst_90 = arith.constant dense<0xFF800000> : vector<1x8xf32>
    %115 = vector.multi_reduction <maximumf>, %114, %cst_90 [2] : vector<1x8x8xf32> to vector<1x8xf32>
    %116 = vector.shape_cast %115 : vector<1x8xf32> to vector<1x8x1xf32>
    %117 = vector.broadcast %116 : vector<1x8x1xf32> to vector<1x8x8xf32>
    %118 = arith.subf %114, %117 : vector<1x8x8xf32>
    %119 = math.exp %118 : vector<1x8x8xf32>
    %cst_91 = arith.constant dense<0.000000e+00> : vector<1x8xf32>
    %120 = vector.multi_reduction <add>, %119, %cst_91 [2] : vector<1x8x8xf32> to vector<1x8xf32>
    %121 = vector.shape_cast %120 : vector<1x8xf32> to vector<1x8x1xf32>
    %122 = tpu.reciprocal %121 {approx = true} : vector<1x8x1xf32> -> vector<1x8x1xf32>
    %123 = vector.broadcast %122 : vector<1x8x1xf32> to vector<1x8x8xf32>
    %124 = arith.mulf %119, %123 : vector<1x8x8xf32>
    %125 = arith.truncf %124 : vector<1x8x8xf32> to vector<1x8x8xbf16>
    %126 = arith.truncf %107 : vector<1x8x32xf32> to vector<1x8x32xbf16>
    "tpu.trace_start"() <{level = 10 : i32, message = "bqk,bkd->bqd"}> : () -> ()
    %cst_92 = arith.constant dense<0.000000e+00> : vector<1x8x32xf32>
    %127 = tpu.matmul %125, %126, %cst_92 {dimension_numbers = #tpu.dot_dimension_numbers<[2], [1], [1], [2], [0, 0, 0, 1, 1, 2], [0], [0]>} : vector<1x8x8xbf16>, vector<1x8x32xbf16>, vector<1x8x32xf32> -> vector<1x8x32xf32>
    "tpu.trace_stop"() : () -> ()
    %128 = vector.shape_cast %127 : vector<1x8x32xf32> to vector<8x32xf32>
    %c0_93 = arith.constant 0 : index
    %c1_94 = arith.constant 1 : index
    %c0_95 = arith.constant 0 : index
    %c0_96 = arith.constant 0 : index
    %129 = vector.load %arg8[%c0_93, %c1_94, %c0_95, %c0_96] : memref<1x4x32x128xbf16, #tpu.memory_space<vmem>>, vector<1x1x32x128xbf16>
    %130 = vector.shape_cast %129 : vector<1x1x32x128xbf16> to vector<32x128xbf16>
    %131 = arith.truncf %128 : vector<8x32xf32> to vector<8x32xbf16>
    %cst_97 = arith.constant dense<0.000000e+00> : vector<8x128xf32>
    %132 = tpu.matmul %131, %130, %cst_97 {dimension_numbers = #tpu.dot_dimension_numbers<[1], [0], [0], [1], [0, 0, 1, 1], [], []>} : vector<8x32xbf16>, vector<32x128xbf16>, vector<8x128xf32> -> vector<8x128xf32>
    %133 = arith.addf %80, %132 : vector<8x128xf32>
    %c0_98 = arith.constant 0 : index
    %c0_99 = arith.constant 0 : index
    %c2_100 = arith.constant 2 : index
    %c0_101 = arith.constant 0 : index
    %c0_102 = arith.constant 0 : index
    %134 = vector.load %arg6[%c0_98, %c0_99, %c2_100, %c0_101, %c0_102] : memref<1x3x4x32x128xbf16, #tpu.memory_space<vmem>>, vector<1x1x1x32x128xbf16>
    %135 = vector.shape_cast %134 : vector<1x1x1x32x128xbf16> to vector<32x128xbf16>
    %c0_103 = arith.constant 0 : index
    %c0_104 = arith.constant 0 : index
    %c2_105 = arith.constant 2 : index
    %c0_106 = arith.constant 0 : index
    %c0_107 = arith.constant 0 : index
    %136 = vector.load %arg7[%c0_103, %c0_104, %c2_105, %c0_106, %c0_107] : memref<1x3x4x1x32xf32, #tpu.memory_space<vmem>>, vector<1x1x1x1x32xf32>
    %137 = vector.shape_cast %136 : vector<1x1x1x1x32xf32> to vector<1x32xf32>
    %138 = arith.truncf %27 : vector<8x128xf32> to vector<8x128xbf16>
    %cst_108 = arith.constant dense<0.000000e+00> : vector<8x32xf32>
    %139 = tpu.matmul %138, %135, %cst_108 {dimension_numbers = #tpu.dot_dimension_numbers<[1], [1], [0], [0], [0, 0, 1, 0], [], []>} : vector<8x128xbf16>, vector<32x128xbf16>, vector<8x32xf32> -> vector<8x32xf32>
    %140 = vector.broadcast %137 : vector<1x32xf32> to vector<8x32xf32>
    %141 = arith.addf %139, %140 : vector<8x32xf32>
    %c0_109 = arith.constant 0 : index
    %c1_110 = arith.constant 1 : index
    %c2_111 = arith.constant 2 : index
    %c0_112 = arith.constant 0 : index
    %c0_113 = arith.constant 0 : index
    %142 = vector.load %arg6[%c0_109, %c1_110, %c2_111, %c0_112, %c0_113] : memref<1x3x4x32x128xbf16, #tpu.memory_space<vmem>>, vector<1x1x1x32x128xbf16>
    %143 = vector.shape_cast %142 : vector<1x1x1x32x128xbf16> to vector<32x128xbf16>
    %c0_114 = arith.constant 0 : index
    %c1_115 = arith.constant 1 : index
    %c2_116 = arith.constant 2 : index
    %c0_117 = arith.constant 0 : index
    %c0_118 = arith.constant 0 : index
    %144 = vector.load %arg7[%c0_114, %c1_115, %c2_116, %c0_117, %c0_118] : memref<1x3x4x1x32xf32, #tpu.memory_space<vmem>>, vector<1x1x1x1x32xf32>
    %145 = vector.shape_cast %144 : vector<1x1x1x1x32xf32> to vector<1x32xf32>
    %146 = arith.truncf %27 : vector<8x128xf32> to vector<8x128xbf16>
    %cst_119 = arith.constant dense<0.000000e+00> : vector<8x32xf32>
    %147 = tpu.matmul %146, %143, %cst_119 {dimension_numbers = #tpu.dot_dimension_numbers<[1], [1], [0], [0], [0, 0, 1, 0], [], []>} : vector<8x128xbf16>, vector<32x128xbf16>, vector<8x32xf32> -> vector<8x32xf32>
    %148 = vector.broadcast %145 : vector<1x32xf32> to vector<8x32xf32>
    %149 = arith.addf %147, %148 : vector<8x32xf32>
    %c0_120 = arith.constant 0 : index
    %c2_121 = arith.constant 2 : index
    %c2_122 = arith.constant 2 : index
    %c0_123 = arith.constant 0 : index
    %c0_124 = arith.constant 0 : index
    %150 = vector.load %arg6[%c0_120, %c2_121, %c2_122, %c0_123, %c0_124] : memref<1x3x4x32x128xbf16, #tpu.memory_space<vmem>>, vector<1x1x1x32x128xbf16>
    %151 = vector.shape_cast %150 : vector<1x1x1x32x128xbf16> to vector<32x128xbf16>
    %c0_125 = arith.constant 0 : index
    %c2_126 = arith.constant 2 : index
    %c2_127 = arith.constant 2 : index
    %c0_128 = arith.constant 0 : index
    %c0_129 = arith.constant 0 : index
    %152 = vector.load %arg7[%c0_125, %c2_126, %c2_127, %c0_128, %c0_129] : memref<1x3x4x1x32xf32, #tpu.memory_space<vmem>>, vector<1x1x1x1x32xf32>
    %153 = vector.shape_cast %152 : vector<1x1x1x1x32xf32> to vector<1x32xf32>
    %154 = arith.truncf %27 : vector<8x128xf32> to vector<8x128xbf16>
    %cst_130 = arith.constant dense<0.000000e+00> : vector<8x32xf32>
    %155 = tpu.matmul %154, %151, %cst_130 {dimension_numbers = #tpu.dot_dimension_numbers<[1], [1], [0], [0], [0, 0, 1, 0], [], []>} : vector<8x128xbf16>, vector<32x128xbf16>, vector<8x32xf32> -> vector<8x32xf32>
    %156 = vector.broadcast %153 : vector<1x32xf32> to vector<8x32xf32>
    %157 = arith.addf %155, %156 : vector<8x32xf32>
    %158 = vector.shape_cast %141 : vector<8x32xf32> to vector<1x8x32xf32>
    %159 = vector.shape_cast %149 : vector<8x32xf32> to vector<1x8x32xf32>
    %160 = vector.shape_cast %157 : vector<8x32xf32> to vector<1x8x32xf32>
    %161 = arith.truncf %158 : vector<1x8x32xf32> to vector<1x8x32xbf16>
    %162 = arith.truncf %159 : vector<1x8x32xf32> to vector<1x8x32xbf16>
    "tpu.trace_start"() <{level = 10 : i32, message = "bqd,bkd->bqk"}> : () -> ()
    %cst_131 = arith.constant dense<0.000000e+00> : vector<1x8x8xf32>
    %163 = tpu.matmul %161, %162, %cst_131 {dimension_numbers = #tpu.dot_dimension_numbers<[2], [2], [1], [1], [0, 0, 0, 1, 1, 1], [0], [0]>} : vector<1x8x32xbf16>, vector<1x8x32xbf16>, vector<1x8x8xf32> -> vector<1x8x8xf32>
    "tpu.trace_stop"() : () -> ()
    %cst_132 = arith.constant 0.176776692 : f32
    %164 = vector.broadcast %cst_132 : f32 to vector<1x8x8xf32>
    %165 = arith.mulf %163, %164 : vector<1x8x8xf32>
    %166 = vector.shape_cast %28 : vector<8x8xf32> to vector<1x8x8xf32>
    %167 = arith.addf %165, %166 : vector<1x8x8xf32>
    %cst_133 = arith.constant dense<0xFF800000> : vector<1x8xf32>
    %168 = vector.multi_reduction <maximumf>, %167, %cst_133 [2] : vector<1x8x8xf32> to vector<1x8xf32>
    %169 = vector.shape_cast %168 : vector<1x8xf32> to vector<1x8x1xf32>
    %170 = vector.broadcast %169 : vector<1x8x1xf32> to vector<1x8x8xf32>
    %171 = arith.subf %167, %170 : vector<1x8x8xf32>
    %172 = math.exp %171 : vector<1x8x8xf32>
    %cst_134 = arith.constant dense<0.000000e+00> : vector<1x8xf32>
    %173 = vector.multi_reduction <add>, %172, %cst_134 [2] : vector<1x8x8xf32> to vector<1x8xf32>
    %174 = vector.shape_cast %173 : vector<1x8xf32> to vector<1x8x1xf32>
    %175 = tpu.reciprocal %174 {approx = true} : vector<1x8x1xf32> -> vector<1x8x1xf32>
    %176 = vector.broadcast %175 : vector<1x8x1xf32> to vector<1x8x8xf32>
    %177 = arith.mulf %172, %176 : vector<1x8x8xf32>
    %178 = arith.truncf %177 : vector<1x8x8xf32> to vector<1x8x8xbf16>
    %179 = arith.truncf %160 : vector<1x8x32xf32> to vector<1x8x32xbf16>
    "tpu.trace_start"() <{level = 10 : i32, message = "bqk,bkd->bqd"}> : () -> ()
    %cst_135 = arith.constant dense<0.000000e+00> : vector<1x8x32xf32>
    %180 = tpu.matmul %178, %179, %cst_135 {dimension_numbers = #tpu.dot_dimension_numbers<[2], [1], [1], [2], [0, 0, 0, 1, 1, 2], [0], [0]>} : vector<1x8x8xbf16>, vector<1x8x32xbf16>, vector<1x8x32xf32> -> vector<1x8x32xf32>
    "tpu.trace_stop"() : () -> ()
    %181 = vector.shape_cast %180 : vector<1x8x32xf32> to vector<8x32xf32>
    %c0_136 = arith.constant 0 : index
    %c2_137 = arith.constant 2 : index
    %c0_138 = arith.constant 0 : index
    %c0_139 = arith.constant 0 : index
    %182 = vector.load %arg8[%c0_136, %c2_137, %c0_138, %c0_139] : memref<1x4x32x128xbf16, #tpu.memory_space<vmem>>, vector<1x1x32x128xbf16>
    %183 = vector.shape_cast %182 : vector<1x1x32x128xbf16> to vector<32x128xbf16>
    %184 = arith.truncf %181 : vector<8x32xf32> to vector<8x32xbf16>
    %cst_140 = arith.constant dense<0.000000e+00> : vector<8x128xf32>
    %185 = tpu.matmul %184, %183, %cst_140 {dimension_numbers = #tpu.dot_dimension_numbers<[1], [0], [0], [1], [0, 0, 1, 1], [], []>} : vector<8x32xbf16>, vector<32x128xbf16>, vector<8x128xf32> -> vector<8x128xf32>
    %186 = arith.addf %133, %185 : vector<8x128xf32>
    %c0_141 = arith.constant 0 : index
    %c0_142 = arith.constant 0 : index
    %c3 = arith.constant 3 : index
    %c0_143 = arith.constant 0 : index
    %c0_144 = arith.constant 0 : index
    %187 = vector.load %arg6[%c0_141, %c0_142, %c3, %c0_143, %c0_144] : memref<1x3x4x32x128xbf16, #tpu.memory_space<vmem>>, vector<1x1x1x32x128xbf16>
    %188 = vector.shape_cast %187 : vector<1x1x1x32x128xbf16> to vector<32x128xbf16>
    %c0_145 = arith.constant 0 : index
    %c0_146 = arith.constant 0 : index
    %c3_147 = arith.constant 3 : index
    %c0_148 = arith.constant 0 : index
    %c0_149 = arith.constant 0 : index
    %189 = vector.load %arg7[%c0_145, %c0_146, %c3_147, %c0_148, %c0_149] : memref<1x3x4x1x32xf32, #tpu.memory_space<vmem>>, vector<1x1x1x1x32xf32>
    %190 = vector.shape_cast %189 : vector<1x1x1x1x32xf32> to vector<1x32xf32>
    %191 = arith.truncf %27 : vector<8x128xf32> to vector<8x128xbf16>
    %cst_150 = arith.constant dense<0.000000e+00> : vector<8x32xf32>
    %192 = tpu.matmul %191, %188, %cst_150 {dimension_numbers = #tpu.dot_dimension_numbers<[1], [1], [0], [0], [0, 0, 1, 0], [], []>} : vector<8x128xbf16>, vector<32x128xbf16>, vector<8x32xf32> -> vector<8x32xf32>
    %193 = vector.broadcast %190 : vector<1x32xf32> to vector<8x32xf32>
    %194 = arith.addf %192, %193 : vector<8x32xf32>
    %c0_151 = arith.constant 0 : index
    %c1_152 = arith.constant 1 : index
    %c3_153 = arith.constant 3 : index
    %c0_154 = arith.constant 0 : index
    %c0_155 = arith.constant 0 : index
    %195 = vector.load %arg6[%c0_151, %c1_152, %c3_153, %c0_154, %c0_155] : memref<1x3x4x32x128xbf16, #tpu.memory_space<vmem>>, vector<1x1x1x32x128xbf16>
    %196 = vector.shape_cast %195 : vector<1x1x1x32x128xbf16> to vector<32x128xbf16>
    %c0_156 = arith.constant 0 : index
    %c1_157 = arith.constant 1 : index
    %c3_158 = arith.constant 3 : index
    %c0_159 = arith.constant 0 : index
    %c0_160 = arith.constant 0 : index
    %197 = vector.load %arg7[%c0_156, %c1_157, %c3_158, %c0_159, %c0_160] : memref<1x3x4x1x32xf32, #tpu.memory_space<vmem>>, vector<1x1x1x1x32xf32>
    %198 = vector.shape_cast %197 : vector<1x1x1x1x32xf32> to vector<1x32xf32>
    %199 = arith.truncf %27 : vector<8x128xf32> to vector<8x128xbf16>
    %cst_161 = arith.constant dense<0.000000e+00> : vector<8x32xf32>
    %200 = tpu.matmul %199, %196, %cst_161 {dimension_numbers = #tpu.dot_dimension_numbers<[1], [1], [0], [0], [0, 0, 1, 0], [], []>} : vector<8x128xbf16>, vector<32x128xbf16>, vector<8x32xf32> -> vector<8x32xf32>
    %201 = vector.broadcast %198 : vector<1x32xf32> to vector<8x32xf32>
    %202 = arith.addf %200, %201 : vector<8x32xf32>
    %c0_162 = arith.constant 0 : index
    %c2_163 = arith.constant 2 : index
    %c3_164 = arith.constant 3 : index
    %c0_165 = arith.constant 0 : index
    %c0_166 = arith.constant 0 : index
    %203 = vector.load %arg6[%c0_162, %c2_163, %c3_164, %c0_165, %c0_166] : memref<1x3x4x32x128xbf16, #tpu.memory_space<vmem>>, vector<1x1x1x32x128xbf16>
    %204 = vector.shape_cast %203 : vector<1x1x1x32x128xbf16> to vector<32x128xbf16>
    %c0_167 = arith.constant 0 : index
    %c2_168 = arith.constant 2 : index
    %c3_169 = arith.constant 3 : index
    %c0_170 = arith.constant 0 : index
    %c0_171 = arith.constant 0 : index
    %205 = vector.load %arg7[%c0_167, %c2_168, %c3_169, %c0_170, %c0_171] : memref<1x3x4x1x32xf32, #tpu.memory_space<vmem>>, vector<1x1x1x1x32xf32>
    %206 = vector.shape_cast %205 : vector<1x1x1x1x32xf32> to vector<1x32xf32>
    %207 = arith.truncf %27 : vector<8x128xf32> to vector<8x128xbf16>
    %cst_172 = arith.constant dense<0.000000e+00> : vector<8x32xf32>
    %208 = tpu.matmul %207, %204, %cst_172 {dimension_numbers = #tpu.dot_dimension_numbers<[1], [1], [0], [0], [0, 0, 1, 0], [], []>} : vector<8x128xbf16>, vector<32x128xbf16>, vector<8x32xf32> -> vector<8x32xf32>
    %209 = vector.broadcast %206 : vector<1x32xf32> to vector<8x32xf32>
    %210 = arith.addf %208, %209 : vector<8x32xf32>
    %211 = vector.shape_cast %194 : vector<8x32xf32> to vector<1x8x32xf32>
    %212 = vector.shape_cast %202 : vector<8x32xf32> to vector<1x8x32xf32>
    %213 = vector.shape_cast %210 : vector<8x32xf32> to vector<1x8x32xf32>
    %214 = arith.truncf %211 : vector<1x8x32xf32> to vector<1x8x32xbf16>
    %215 = arith.truncf %212 : vector<1x8x32xf32> to vector<1x8x32xbf16>
    "tpu.trace_start"() <{level = 10 : i32, message = "bqd,bkd->bqk"}> : () -> ()
    %cst_173 = arith.constant dense<0.000000e+00> : vector<1x8x8xf32>
    %216 = tpu.matmul %214, %215, %cst_173 {dimension_numbers = #tpu.dot_dimension_numbers<[2], [2], [1], [1], [0, 0, 0, 1, 1, 1], [0], [0]>} : vector<1x8x32xbf16>, vector<1x8x32xbf16>, vector<1x8x8xf32> -> vector<1x8x8xf32>
    "tpu.trace_stop"() : () -> ()
    %cst_174 = arith.constant 0.176776692 : f32
    %217 = vector.broadcast %cst_174 : f32 to vector<1x8x8xf32>
    %218 = arith.mulf %216, %217 : vector<1x8x8xf32>
    %219 = vector.shape_cast %28 : vector<8x8xf32> to vector<1x8x8xf32>
    %220 = arith.addf %218, %219 : vector<1x8x8xf32>
    %cst_175 = arith.constant dense<0xFF800000> : vector<1x8xf32>
    %221 = vector.multi_reduction <maximumf>, %220, %cst_175 [2] : vector<1x8x8xf32> to vector<1x8xf32>
    %222 = vector.shape_cast %221 : vector<1x8xf32> to vector<1x8x1xf32>
    %223 = vector.broadcast %222 : vector<1x8x1xf32> to vector<1x8x8xf32>
    %224 = arith.subf %220, %223 : vector<1x8x8xf32>
    %225 = math.exp %224 : vector<1x8x8xf32>
    %cst_176 = arith.constant dense<0.000000e+00> : vector<1x8xf32>
    %226 = vector.multi_reduction <add>, %225, %cst_176 [2] : vector<1x8x8xf32> to vector<1x8xf32>
    %227 = vector.shape_cast %226 : vector<1x8xf32> to vector<1x8x1xf32>
    %228 = tpu.reciprocal %227 {approx = true} : vector<1x8x1xf32> -> vector<1x8x1xf32>
    %229 = vector.broadcast %228 : vector<1x8x1xf32> to vector<1x8x8xf32>
    %230 = arith.mulf %225, %229 : vector<1x8x8xf32>
    %231 = arith.truncf %230 : vector<1x8x8xf32> to vector<1x8x8xbf16>
    %232 = arith.truncf %213 : vector<1x8x32xf32> to vector<1x8x32xbf16>
    "tpu.trace_start"() <{level = 10 : i32, message = "bqk,bkd->bqd"}> : () -> ()
    %cst_177 = arith.constant dense<0.000000e+00> : vector<1x8x32xf32>
    %233 = tpu.matmul %231, %232, %cst_177 {dimension_numbers = #tpu.dot_dimension_numbers<[2], [1], [1], [2], [0, 0, 0, 1, 1, 2], [0], [0]>} : vector<1x8x8xbf16>, vector<1x8x32xbf16>, vector<1x8x32xf32> -> vector<1x8x32xf32>
    "tpu.trace_stop"() : () -> ()
    %234 = vector.shape_cast %233 : vector<1x8x32xf32> to vector<8x32xf32>
    %c0_178 = arith.constant 0 : index
    %c3_179 = arith.constant 3 : index
    %c0_180 = arith.constant 0 : index
    %c0_181 = arith.constant 0 : index
    %235 = vector.load %arg8[%c0_178, %c3_179, %c0_180, %c0_181] : memref<1x4x32x128xbf16, #tpu.memory_space<vmem>>, vector<1x1x32x128xbf16>
    %236 = vector.shape_cast %235 : vector<1x1x32x128xbf16> to vector<32x128xbf16>
    %237 = arith.truncf %234 : vector<8x32xf32> to vector<8x32xbf16>
    %cst_182 = arith.constant dense<0.000000e+00> : vector<8x128xf32>
    %238 = tpu.matmul %237, %236, %cst_182 {dimension_numbers = #tpu.dot_dimension_numbers<[1], [0], [0], [1], [0, 0, 1, 1], [], []>} : vector<8x32xbf16>, vector<32x128xbf16>, vector<8x128xf32> -> vector<8x128xf32>
    %239 = arith.addf %186, %238 : vector<8x128xf32>
    %c0_183 = arith.constant 0 : index
    %c0_184 = arith.constant 0 : index
    %c0_185 = arith.constant 0 : index
    %240 = vector.load %arg9[%c0_183, %c0_184, %c0_185] : memref<1x1x128xf32, #tpu.memory_space<vmem>>, vector<1x1x128xf32>
    %241 = vector.shape_cast %240 : vector<1x1x128xf32> to vector<1x128xf32>
    %242 = vector.broadcast %241 : vector<1x128xf32> to vector<8x128xf32>
    %243 = arith.addf %239, %242 : vector<8x128xf32>
    %244 = arith.addf %3, %243 : vector<8x128xf32>
    %c0_186 = arith.constant 0 : index
    %c0_187 = arith.constant 0 : index
    %c0_188 = arith.constant 0 : index
    %245 = vector.load %arg10[%c0_186, %c0_187, %c0_188] : memref<1x1x128xf32, #tpu.memory_space<vmem>>, vector<1x1x128xf32>
    %246 = vector.shape_cast %245 : vector<1x1x128xf32> to vector<1x128xf32>
    %c0_189 = arith.constant 0 : index
    %c0_190 = arith.constant 0 : index
    %c0_191 = arith.constant 0 : index
    %247 = vector.load %arg11[%c0_189, %c0_190, %c0_191] : memref<1x1x128xf32, #tpu.memory_space<vmem>>, vector<1x1x128xf32>
    %248 = vector.shape_cast %247 : vector<1x1x128xf32> to vector<1x128xf32>
    %cst_192 = arith.constant dense<0.000000e+00> : vector<8xf32>
    %249 = vector.multi_reduction <add>, %244, %cst_192 [1] : vector<8x128xf32> to vector<8xf32>
    %250 = vector.shape_cast %249 : vector<8xf32> to vector<8x1xf32>
    %cst_193 = arith.constant 1.280000e+02 : f32
    %251 = vector.broadcast %cst_193 : f32 to vector<8x1xf32>
    %252 = arith.divf %250, %251 : vector<8x1xf32>
    %253 = vector.broadcast %252 : vector<8x1xf32> to vector<8x128xf32>
    %254 = arith.subf %244, %253 : vector<8x128xf32>
    %255 = arith.mulf %254, %254 : vector<8x128xf32>
    %cst_194 = arith.constant dense<0.000000e+00> : vector<8xf32>
    %256 = vector.multi_reduction <add>, %255, %cst_194 [1] : vector<8x128xf32> to vector<8xf32>
    %257 = vector.shape_cast %256 : vector<8xf32> to vector<8x1xf32>
    %cst_195 = arith.constant 1.280000e+02 : f32
    %258 = vector.broadcast %cst_195 : f32 to vector<8x1xf32>
    %259 = arith.divf %257, %258 : vector<8x1xf32>
    %cst_196 = arith.constant 9.99999974E-6 : f32
    %260 = vector.broadcast %cst_196 : f32 to vector<8x1xf32>
    %261 = arith.addf %259, %260 : vector<8x1xf32>
    %262 = math.rsqrt %261 : vector<8x1xf32>
    %263 = vector.broadcast %262 : vector<8x1xf32> to vector<8x128xf32>
    %264 = arith.mulf %254, %263 : vector<8x128xf32>
    %265 = vector.broadcast %246 : vector<1x128xf32> to vector<8x128xf32>
    %266 = arith.mulf %264, %265 : vector<8x128xf32>
    %267 = vector.broadcast %248 : vector<1x128xf32> to vector<8x128xf32>
    %268 = arith.addf %266, %267 : vector<8x128xf32>
    %c0_197 = arith.constant 0 : index
    %c0_198 = arith.constant 0 : index
    %269 = vector.load %arg3[%c0_197, %c0_198] : memref<8x128xf32, #tpu.memory_space<vmem>>, vector<8x128xf32>
    %c0_199 = arith.constant 0 : index
    %c0_200 = arith.constant 0 : index
    %c0_201 = arith.constant 0 : index
    %c0_202 = arith.constant 0 : index
    %c0_203 = arith.constant 0 : index
    %270 = vector.load %arg12[%c0_199, %c0_200, %c0_201, %c0_202, %c0_203] : memref<1x3x4x32x128xbf16, #tpu.memory_space<vmem>>, vector<1x1x1x32x128xbf16>
    %271 = vector.shape_cast %270 : vector<1x1x1x32x128xbf16> to vector<32x128xbf16>
    %c0_204 = arith.constant 0 : index
    %c0_205 = arith.constant 0 : index
    %c0_206 = arith.constant 0 : index
    %c0_207 = arith.constant 0 : index
    %c0_208 = arith.constant 0 : index
    %272 = vector.load %arg13[%c0_204, %c0_205, %c0_206, %c0_207, %c0_208] : memref<1x3x4x1x32xf32, #tpu.memory_space<vmem>>, vector<1x1x1x1x32xf32>
    %273 = vector.shape_cast %272 : vector<1x1x1x1x32xf32> to vector<1x32xf32>
    %274 = arith.truncf %268 : vector<8x128xf32> to vector<8x128xbf16>
    %cst_209 = arith.constant dense<0.000000e+00> : vector<8x32xf32>
    %275 = tpu.matmul %274, %271, %cst_209 {dimension_numbers = #tpu.dot_dimension_numbers<[1], [1], [0], [0], [0, 0, 1, 0], [], []>} : vector<8x128xbf16>, vector<32x128xbf16>, vector<8x32xf32> -> vector<8x32xf32>
    %276 = vector.broadcast %273 : vector<1x32xf32> to vector<8x32xf32>
    %277 = arith.addf %275, %276 : vector<8x32xf32>
    %c0_210 = arith.constant 0 : index
    %c1_211 = arith.constant 1 : index
    %c0_212 = arith.constant 0 : index
    %c0_213 = arith.constant 0 : index
    %c0_214 = arith.constant 0 : index
    %278 = vector.load %arg12[%c0_210, %c1_211, %c0_212, %c0_213, %c0_214] : memref<1x3x4x32x128xbf16, #tpu.memory_space<vmem>>, vector<1x1x1x32x128xbf16>
    %279 = vector.shape_cast %278 : vector<1x1x1x32x128xbf16> to vector<32x128xbf16>
    %c0_215 = arith.constant 0 : index
    %c1_216 = arith.constant 1 : index
    %c0_217 = arith.constant 0 : index
    %c0_218 = arith.constant 0 : index
    %c0_219 = arith.constant 0 : index
    %280 = vector.load %arg13[%c0_215, %c1_216, %c0_217, %c0_218, %c0_219] : memref<1x3x4x1x32xf32, #tpu.memory_space<vmem>>, vector<1x1x1x1x32xf32>
    %281 = vector.shape_cast %280 : vector<1x1x1x1x32xf32> to vector<1x32xf32>
    %282 = arith.truncf %269 : vector<8x128xf32> to vector<8x128xbf16>
    %cst_220 = arith.constant dense<0.000000e+00> : vector<8x32xf32>
    %283 = tpu.matmul %282, %279, %cst_220 {dimension_numbers = #tpu.dot_dimension_numbers<[1], [1], [0], [0], [0, 0, 1, 0], [], []>} : vector<8x128xbf16>, vector<32x128xbf16>, vector<8x32xf32> -> vector<8x32xf32>
    %284 = vector.broadcast %281 : vector<1x32xf32> to vector<8x32xf32>
    %285 = arith.addf %283, %284 : vector<8x32xf32>
    %c0_221 = arith.constant 0 : index
    %c2_222 = arith.constant 2 : index
    %c0_223 = arith.constant 0 : index
    %c0_224 = arith.constant 0 : index
    %c0_225 = arith.constant 0 : index
    %286 = vector.load %arg12[%c0_221, %c2_222, %c0_223, %c0_224, %c0_225] : memref<1x3x4x32x128xbf16, #tpu.memory_space<vmem>>, vector<1x1x1x32x128xbf16>
    %287 = vector.shape_cast %286 : vector<1x1x1x32x128xbf16> to vector<32x128xbf16>
    %c0_226 = arith.constant 0 : index
    %c2_227 = arith.constant 2 : index
    %c0_228 = arith.constant 0 : index
    %c0_229 = arith.constant 0 : index
    %c0_230 = arith.constant 0 : index
    %288 = vector.load %arg13[%c0_226, %c2_227, %c0_228, %c0_229, %c0_230] : memref<1x3x4x1x32xf32, #tpu.memory_space<vmem>>, vector<1x1x1x1x32xf32>
    %289 = vector.shape_cast %288 : vector<1x1x1x1x32xf32> to vector<1x32xf32>
    %290 = arith.truncf %269 : vector<8x128xf32> to vector<8x128xbf16>
    %cst_231 = arith.constant dense<0.000000e+00> : vector<8x32xf32>
    %291 = tpu.matmul %290, %287, %cst_231 {dimension_numbers = #tpu.dot_dimension_numbers<[1], [1], [0], [0], [0, 0, 1, 0], [], []>} : vector<8x128xbf16>, vector<32x128xbf16>, vector<8x32xf32> -> vector<8x32xf32>
    %292 = vector.broadcast %289 : vector<1x32xf32> to vector<8x32xf32>
    %293 = arith.addf %291, %292 : vector<8x32xf32>
    %294 = vector.shape_cast %277 : vector<8x32xf32> to vector<1x8x32xf32>
    %295 = vector.shape_cast %285 : vector<8x32xf32> to vector<1x8x32xf32>
    %296 = vector.shape_cast %293 : vector<8x32xf32> to vector<1x8x32xf32>
    %297 = arith.truncf %294 : vector<1x8x32xf32> to vector<1x8x32xbf16>
    %298 = arith.truncf %295 : vector<1x8x32xf32> to vector<1x8x32xbf16>
    "tpu.trace_start"() <{level = 10 : i32, message = "bqd,bkd->bqk"}> : () -> ()
    %cst_232 = arith.constant dense<0.000000e+00> : vector<1x8x8xf32>
    %299 = tpu.matmul %297, %298, %cst_232 {dimension_numbers = #tpu.dot_dimension_numbers<[2], [2], [1], [1], [0, 0, 0, 1, 1, 1], [0], [0]>} : vector<1x8x32xbf16>, vector<1x8x32xbf16>, vector<1x8x8xf32> -> vector<1x8x8xf32>
    "tpu.trace_stop"() : () -> ()
    %cst_233 = arith.constant 0.176776692 : f32
    %300 = vector.broadcast %cst_233 : f32 to vector<1x8x8xf32>
    %301 = arith.mulf %299, %300 : vector<1x8x8xf32>
    %cst_234 = arith.constant dense<0xFF800000> : vector<1x8xf32>
    %302 = vector.multi_reduction <maximumf>, %301, %cst_234 [2] : vector<1x8x8xf32> to vector<1x8xf32>
    %303 = vector.shape_cast %302 : vector<1x8xf32> to vector<1x8x1xf32>
    %304 = vector.broadcast %303 : vector<1x8x1xf32> to vector<1x8x8xf32>
    %305 = arith.subf %301, %304 : vector<1x8x8xf32>
    %306 = math.exp %305 : vector<1x8x8xf32>
    %cst_235 = arith.constant dense<0.000000e+00> : vector<1x8xf32>
    %307 = vector.multi_reduction <add>, %306, %cst_235 [2] : vector<1x8x8xf32> to vector<1x8xf32>
    %308 = vector.shape_cast %307 : vector<1x8xf32> to vector<1x8x1xf32>
    %309 = tpu.reciprocal %308 {approx = true} : vector<1x8x1xf32> -> vector<1x8x1xf32>
    %310 = vector.broadcast %309 : vector<1x8x1xf32> to vector<1x8x8xf32>
    %311 = arith.mulf %306, %310 : vector<1x8x8xf32>
    %312 = arith.truncf %311 : vector<1x8x8xf32> to vector<1x8x8xbf16>
    %313 = arith.truncf %296 : vector<1x8x32xf32> to vector<1x8x32xbf16>
    "tpu.trace_start"() <{level = 10 : i32, message = "bqk,bkd->bqd"}> : () -> ()
    %cst_236 = arith.constant dense<0.000000e+00> : vector<1x8x32xf32>
    %314 = tpu.matmul %312, %313, %cst_236 {dimension_numbers = #tpu.dot_dimension_numbers<[2], [1], [1], [2], [0, 0, 0, 1, 1, 2], [0], [0]>} : vector<1x8x8xbf16>, vector<1x8x32xbf16>, vector<1x8x32xf32> -> vector<1x8x32xf32>
    "tpu.trace_stop"() : () -> ()
    %315 = vector.shape_cast %314 : vector<1x8x32xf32> to vector<8x32xf32>
    %c0_237 = arith.constant 0 : index
    %c0_238 = arith.constant 0 : index
    %c0_239 = arith.constant 0 : index
    %c0_240 = arith.constant 0 : index
    %316 = vector.load %arg14[%c0_237, %c0_238, %c0_239, %c0_240] : memref<1x4x32x128xbf16, #tpu.memory_space<vmem>>, vector<1x1x32x128xbf16>
    %317 = vector.shape_cast %316 : vector<1x1x32x128xbf16> to vector<32x128xbf16>
    %318 = arith.truncf %315 : vector<8x32xf32> to vector<8x32xbf16>
    %cst_241 = arith.constant dense<0.000000e+00> : vector<8x128xf32>
    %319 = tpu.matmul %318, %317, %cst_241 {dimension_numbers = #tpu.dot_dimension_numbers<[1], [0], [0], [1], [0, 0, 1, 1], [], []>} : vector<8x32xbf16>, vector<32x128xbf16>, vector<8x128xf32> -> vector<8x128xf32>
    %c0_242 = arith.constant 0 : index
    %c0_243 = arith.constant 0 : index
    %c1_244 = arith.constant 1 : index
    %c0_245 = arith.constant 0 : index
    %c0_246 = arith.constant 0 : index
    %320 = vector.load %arg12[%c0_242, %c0_243, %c1_244, %c0_245, %c0_246] : memref<1x3x4x32x128xbf16, #tpu.memory_space<vmem>>, vector<1x1x1x32x128xbf16>
    %321 = vector.shape_cast %320 : vector<1x1x1x32x128xbf16> to vector<32x128xbf16>
    %c0_247 = arith.constant 0 : index
    %c0_248 = arith.constant 0 : index
    %c1_249 = arith.constant 1 : index
    %c0_250 = arith.constant 0 : index
    %c0_251 = arith.constant 0 : index
    %322 = vector.load %arg13[%c0_247, %c0_248, %c1_249, %c0_250, %c0_251] : memref<1x3x4x1x32xf32, #tpu.memory_space<vmem>>, vector<1x1x1x1x32xf32>
    %323 = vector.shape_cast %322 : vector<1x1x1x1x32xf32> to vector<1x32xf32>
    %324 = arith.truncf %268 : vector<8x128xf32> to vector<8x128xbf16>
    %cst_252 = arith.constant dense<0.000000e+00> : vector<8x32xf32>
    %325 = tpu.matmul %324, %321, %cst_252 {dimension_numbers = #tpu.dot_dimension_numbers<[1], [1], [0], [0], [0, 0, 1, 0], [], []>} : vector<8x128xbf16>, vector<32x128xbf16>, vector<8x32xf32> -> vector<8x32xf32>
    %326 = vector.broadcast %323 : vector<1x32xf32> to vector<8x32xf32>
    %327 = arith.addf %325, %326 : vector<8x32xf32>
    %c0_253 = arith.constant 0 : index
    %c1_254 = arith.constant 1 : index
    %c1_255 = arith.constant 1 : index
    %c0_256 = arith.constant 0 : index
    %c0_257 = arith.constant 0 : index
    %328 = vector.load %arg12[%c0_253, %c1_254, %c1_255, %c0_256, %c0_257] : memref<1x3x4x32x128xbf16, #tpu.memory_space<vmem>>, vector<1x1x1x32x128xbf16>
    %329 = vector.shape_cast %328 : vector<1x1x1x32x128xbf16> to vector<32x128xbf16>
    %c0_258 = arith.constant 0 : index
    %c1_259 = arith.constant 1 : index
    %c1_260 = arith.constant 1 : index
    %c0_261 = arith.constant 0 : index
    %c0_262 = arith.constant 0 : index
    %330 = vector.load %arg13[%c0_258, %c1_259, %c1_260, %c0_261, %c0_262] : memref<1x3x4x1x32xf32, #tpu.memory_space<vmem>>, vector<1x1x1x1x32xf32>
    %331 = vector.shape_cast %330 : vector<1x1x1x1x32xf32> to vector<1x32xf32>
    %332 = arith.truncf %269 : vector<8x128xf32> to vector<8x128xbf16>
    %cst_263 = arith.constant dense<0.000000e+00> : vector<8x32xf32>
    %333 = tpu.matmul %332, %329, %cst_263 {dimension_numbers = #tpu.dot_dimension_numbers<[1], [1], [0], [0], [0, 0, 1, 0], [], []>} : vector<8x128xbf16>, vector<32x128xbf16>, vector<8x32xf32> -> vector<8x32xf32>
    %334 = vector.broadcast %331 : vector<1x32xf32> to vector<8x32xf32>
    %335 = arith.addf %333, %334 : vector<8x32xf32>
    %c0_264 = arith.constant 0 : index
    %c2_265 = arith.constant 2 : index
    %c1_266 = arith.constant 1 : index
    %c0_267 = arith.constant 0 : index
    %c0_268 = arith.constant 0 : index
    %336 = vector.load %arg12[%c0_264, %c2_265, %c1_266, %c0_267, %c0_268] : memref<1x3x4x32x128xbf16, #tpu.memory_space<vmem>>, vector<1x1x1x32x128xbf16>
    %337 = vector.shape_cast %336 : vector<1x1x1x32x128xbf16> to vector<32x128xbf16>
    %c0_269 = arith.constant 0 : index
    %c2_270 = arith.constant 2 : index
    %c1_271 = arith.constant 1 : index
    %c0_272 = arith.constant 0 : index
    %c0_273 = arith.constant 0 : index
    %338 = vector.load %arg13[%c0_269, %c2_270, %c1_271, %c0_272, %c0_273] : memref<1x3x4x1x32xf32, #tpu.memory_space<vmem>>, vector<1x1x1x1x32xf32>
    %339 = vector.shape_cast %338 : vector<1x1x1x1x32xf32> to vector<1x32xf32>
    %340 = arith.truncf %269 : vector<8x128xf32> to vector<8x128xbf16>
    %cst_274 = arith.constant dense<0.000000e+00> : vector<8x32xf32>
    %341 = tpu.matmul %340, %337, %cst_274 {dimension_numbers = #tpu.dot_dimension_numbers<[1], [1], [0], [0], [0, 0, 1, 0], [], []>} : vector<8x128xbf16>, vector<32x128xbf16>, vector<8x32xf32> -> vector<8x32xf32>
    %342 = vector.broadcast %339 : vector<1x32xf32> to vector<8x32xf32>
    %343 = arith.addf %341, %342 : vector<8x32xf32>
    %344 = vector.shape_cast %327 : vector<8x32xf32> to vector<1x8x32xf32>
    %345 = vector.shape_cast %335 : vector<8x32xf32> to vector<1x8x32xf32>
    %346 = vector.shape_cast %343 : vector<8x32xf32> to vector<1x8x32xf32>
    %347 = arith.truncf %344 : vector<1x8x32xf32> to vector<1x8x32xbf16>
    %348 = arith.truncf %345 : vector<1x8x32xf32> to vector<1x8x32xbf16>
    "tpu.trace_start"() <{level = 10 : i32, message = "bqd,bkd->bqk"}> : () -> ()
    %cst_275 = arith.constant dense<0.000000e+00> : vector<1x8x8xf32>
    %349 = tpu.matmul %347, %348, %cst_275 {dimension_numbers = #tpu.dot_dimension_numbers<[2], [2], [1], [1], [0, 0, 0, 1, 1, 1], [0], [0]>} : vector<1x8x32xbf16>, vector<1x8x32xbf16>, vector<1x8x8xf32> -> vector<1x8x8xf32>
    "tpu.trace_stop"() : () -> ()
    %cst_276 = arith.constant 0.176776692 : f32
    %350 = vector.broadcast %cst_276 : f32 to vector<1x8x8xf32>
    %351 = arith.mulf %349, %350 : vector<1x8x8xf32>
    %cst_277 = arith.constant dense<0xFF800000> : vector<1x8xf32>
    %352 = vector.multi_reduction <maximumf>, %351, %cst_277 [2] : vector<1x8x8xf32> to vector<1x8xf32>
    %353 = vector.shape_cast %352 : vector<1x8xf32> to vector<1x8x1xf32>
    %354 = vector.broadcast %353 : vector<1x8x1xf32> to vector<1x8x8xf32>
    %355 = arith.subf %351, %354 : vector<1x8x8xf32>
    %356 = math.exp %355 : vector<1x8x8xf32>
    %cst_278 = arith.constant dense<0.000000e+00> : vector<1x8xf32>
    %357 = vector.multi_reduction <add>, %356, %cst_278 [2] : vector<1x8x8xf32> to vector<1x8xf32>
    %358 = vector.shape_cast %357 : vector<1x8xf32> to vector<1x8x1xf32>
    %359 = tpu.reciprocal %358 {approx = true} : vector<1x8x1xf32> -> vector<1x8x1xf32>
    %360 = vector.broadcast %359 : vector<1x8x1xf32> to vector<1x8x8xf32>
    %361 = arith.mulf %356, %360 : vector<1x8x8xf32>
    %362 = arith.truncf %361 : vector<1x8x8xf32> to vector<1x8x8xbf16>
    %363 = arith.truncf %346 : vector<1x8x32xf32> to vector<1x8x32xbf16>
    "tpu.trace_start"() <{level = 10 : i32, message = "bqk,bkd->bqd"}> : () -> ()
    %cst_279 = arith.constant dense<0.000000e+00> : vector<1x8x32xf32>
    %364 = tpu.matmul %362, %363, %cst_279 {dimension_numbers = #tpu.dot_dimension_numbers<[2], [1], [1], [2], [0, 0, 0, 1, 1, 2], [0], [0]>} : vector<1x8x8xbf16>, vector<1x8x32xbf16>, vector<1x8x32xf32> -> vector<1x8x32xf32>
    "tpu.trace_stop"() : () -> ()
    %365 = vector.shape_cast %364 : vector<1x8x32xf32> to vector<8x32xf32>
    %c0_280 = arith.constant 0 : index
    %c1_281 = arith.constant 1 : index
    %c0_282 = arith.constant 0 : index
    %c0_283 = arith.constant 0 : index
    %366 = vector.load %arg14[%c0_280, %c1_281, %c0_282, %c0_283] : memref<1x4x32x128xbf16, #tpu.memory_space<vmem>>, vector<1x1x32x128xbf16>
    %367 = vector.shape_cast %366 : vector<1x1x32x128xbf16> to vector<32x128xbf16>
    %368 = arith.truncf %365 : vector<8x32xf32> to vector<8x32xbf16>
    %cst_284 = arith.constant dense<0.000000e+00> : vector<8x128xf32>
    %369 = tpu.matmul %368, %367, %cst_284 {dimension_numbers = #tpu.dot_dimension_numbers<[1], [0], [0], [1], [0, 0, 1, 1], [], []>} : vector<8x32xbf16>, vector<32x128xbf16>, vector<8x128xf32> -> vector<8x128xf32>
    %370 = arith.addf %319, %369 : vector<8x128xf32>
    %c0_285 = arith.constant 0 : index
    %c0_286 = arith.constant 0 : index
    %c2_287 = arith.constant 2 : index
    %c0_288 = arith.constant 0 : index
    %c0_289 = arith.constant 0 : index
    %371 = vector.load %arg12[%c0_285, %c0_286, %c2_287, %c0_288, %c0_289] : memref<1x3x4x32x128xbf16, #tpu.memory_space<vmem>>, vector<1x1x1x32x128xbf16>
    %372 = vector.shape_cast %371 : vector<1x1x1x32x128xbf16> to vector<32x128xbf16>
    %c0_290 = arith.constant 0 : index
    %c0_291 = arith.constant 0 : index
    %c2_292 = arith.constant 2 : index
    %c0_293 = arith.constant 0 : index
    %c0_294 = arith.constant 0 : index
    %373 = vector.load %arg13[%c0_290, %c0_291, %c2_292, %c0_293, %c0_294] : memref<1x3x4x1x32xf32, #tpu.memory_space<vmem>>, vector<1x1x1x1x32xf32>
    %374 = vector.shape_cast %373 : vector<1x1x1x1x32xf32> to vector<1x32xf32>
    %375 = arith.truncf %268 : vector<8x128xf32> to vector<8x128xbf16>
    %cst_295 = arith.constant dense<0.000000e+00> : vector<8x32xf32>
    %376 = tpu.matmul %375, %372, %cst_295 {dimension_numbers = #tpu.dot_dimension_numbers<[1], [1], [0], [0], [0, 0, 1, 0], [], []>} : vector<8x128xbf16>, vector<32x128xbf16>, vector<8x32xf32> -> vector<8x32xf32>
    %377 = vector.broadcast %374 : vector<1x32xf32> to vector<8x32xf32>
    %378 = arith.addf %376, %377 : vector<8x32xf32>
    %c0_296 = arith.constant 0 : index
    %c1_297 = arith.constant 1 : index
    %c2_298 = arith.constant 2 : index
    %c0_299 = arith.constant 0 : index
    %c0_300 = arith.constant 0 : index
    %379 = vector.load %arg12[%c0_296, %c1_297, %c2_298, %c0_299, %c0_300] : memref<1x3x4x32x128xbf16, #tpu.memory_space<vmem>>, vector<1x1x1x32x128xbf16>
    %380 = vector.shape_cast %379 : vector<1x1x1x32x128xbf16> to vector<32x128xbf16>
    %c0_301 = arith.constant 0 : index
    %c1_302 = arith.constant 1 : index
    %c2_303 = arith.constant 2 : index
    %c0_304 = arith.constant 0 : index
    %c0_305 = arith.constant 0 : index
    %381 = vector.load %arg13[%c0_301, %c1_302, %c2_303, %c0_304, %c0_305] : memref<1x3x4x1x32xf32, #tpu.memory_space<vmem>>, vector<1x1x1x1x32xf32>
    %382 = vector.shape_cast %381 : vector<1x1x1x1x32xf32> to vector<1x32xf32>
    %383 = arith.truncf %269 : vector<8x128xf32> to vector<8x128xbf16>
    %cst_306 = arith.constant dense<0.000000e+00> : vector<8x32xf32>
    %384 = tpu.matmul %383, %380, %cst_306 {dimension_numbers = #tpu.dot_dimension_numbers<[1], [1], [0], [0], [0, 0, 1, 0], [], []>} : vector<8x128xbf16>, vector<32x128xbf16>, vector<8x32xf32> -> vector<8x32xf32>
    %385 = vector.broadcast %382 : vector<1x32xf32> to vector<8x32xf32>
    %386 = arith.addf %384, %385 : vector<8x32xf32>
    %c0_307 = arith.constant 0 : index
    %c2_308 = arith.constant 2 : index
    %c2_309 = arith.constant 2 : index
    %c0_310 = arith.constant 0 : index
    %c0_311 = arith.constant 0 : index
    %387 = vector.load %arg12[%c0_307, %c2_308, %c2_309, %c0_310, %c0_311] : memref<1x3x4x32x128xbf16, #tpu.memory_space<vmem>>, vector<1x1x1x32x128xbf16>
    %388 = vector.shape_cast %387 : vector<1x1x1x32x128xbf16> to vector<32x128xbf16>
    %c0_312 = arith.constant 0 : index
    %c2_313 = arith.constant 2 : index
    %c2_314 = arith.constant 2 : index
    %c0_315 = arith.constant 0 : index
    %c0_316 = arith.constant 0 : index
    %389 = vector.load %arg13[%c0_312, %c2_313, %c2_314, %c0_315, %c0_316] : memref<1x3x4x1x32xf32, #tpu.memory_space<vmem>>, vector<1x1x1x1x32xf32>
    %390 = vector.shape_cast %389 : vector<1x1x1x1x32xf32> to vector<1x32xf32>
    %391 = arith.truncf %269 : vector<8x128xf32> to vector<8x128xbf16>
    %cst_317 = arith.constant dense<0.000000e+00> : vector<8x32xf32>
    %392 = tpu.matmul %391, %388, %cst_317 {dimension_numbers = #tpu.dot_dimension_numbers<[1], [1], [0], [0], [0, 0, 1, 0], [], []>} : vector<8x128xbf16>, vector<32x128xbf16>, vector<8x32xf32> -> vector<8x32xf32>
    %393 = vector.broadcast %390 : vector<1x32xf32> to vector<8x32xf32>
    %394 = arith.addf %392, %393 : vector<8x32xf32>
    %395 = vector.shape_cast %378 : vector<8x32xf32> to vector<1x8x32xf32>
    %396 = vector.shape_cast %386 : vector<8x32xf32> to vector<1x8x32xf32>
    %397 = vector.shape_cast %394 : vector<8x32xf32> to vector<1x8x32xf32>
    %398 = arith.truncf %395 : vector<1x8x32xf32> to vector<1x8x32xbf16>
    %399 = arith.truncf %396 : vector<1x8x32xf32> to vector<1x8x32xbf16>
    "tpu.trace_start"() <{level = 10 : i32, message = "bqd,bkd->bqk"}> : () -> ()
    %cst_318 = arith.constant dense<0.000000e+00> : vector<1x8x8xf32>
    %400 = tpu.matmul %398, %399, %cst_318 {dimension_numbers = #tpu.dot_dimension_numbers<[2], [2], [1], [1], [0, 0, 0, 1, 1, 1], [0], [0]>} : vector<1x8x32xbf16>, vector<1x8x32xbf16>, vector<1x8x8xf32> -> vector<1x8x8xf32>
    "tpu.trace_stop"() : () -> ()
    %cst_319 = arith.constant 0.176776692 : f32
    %401 = vector.broadcast %cst_319 : f32 to vector<1x8x8xf32>
    %402 = arith.mulf %400, %401 : vector<1x8x8xf32>
    %cst_320 = arith.constant dense<0xFF800000> : vector<1x8xf32>
    %403 = vector.multi_reduction <maximumf>, %402, %cst_320 [2] : vector<1x8x8xf32> to vector<1x8xf32>
    %404 = vector.shape_cast %403 : vector<1x8xf32> to vector<1x8x1xf32>
    %405 = vector.broadcast %404 : vector<1x8x1xf32> to vector<1x8x8xf32>
    %406 = arith.subf %402, %405 : vector<1x8x8xf32>
    %407 = math.exp %406 : vector<1x8x8xf32>
    %cst_321 = arith.constant dense<0.000000e+00> : vector<1x8xf32>
    %408 = vector.multi_reduction <add>, %407, %cst_321 [2] : vector<1x8x8xf32> to vector<1x8xf32>
    %409 = vector.shape_cast %408 : vector<1x8xf32> to vector<1x8x1xf32>
    %410 = tpu.reciprocal %409 {approx = true} : vector<1x8x1xf32> -> vector<1x8x1xf32>
    %411 = vector.broadcast %410 : vector<1x8x1xf32> to vector<1x8x8xf32>
    %412 = arith.mulf %407, %411 : vector<1x8x8xf32>
    %413 = arith.truncf %412 : vector<1x8x8xf32> to vector<1x8x8xbf16>
    %414 = arith.truncf %397 : vector<1x8x32xf32> to vector<1x8x32xbf16>
    "tpu.trace_start"() <{level = 10 : i32, message = "bqk,bkd->bqd"}> : () -> ()
    %cst_322 = arith.constant dense<0.000000e+00> : vector<1x8x32xf32>
    %415 = tpu.matmul %413, %414, %cst_322 {dimension_numbers = #tpu.dot_dimension_numbers<[2], [1], [1], [2], [0, 0, 0, 1, 1, 2], [0], [0]>} : vector<1x8x8xbf16>, vector<1x8x32xbf16>, vector<1x8x32xf32> -> vector<1x8x32xf32>
    "tpu.trace_stop"() : () -> ()
    %416 = vector.shape_cast %415 : vector<1x8x32xf32> to vector<8x32xf32>
    %c0_323 = arith.constant 0 : index
    %c2_324 = arith.constant 2 : index
    %c0_325 = arith.constant 0 : index
    %c0_326 = arith.constant 0 : index
    %417 = vector.load %arg14[%c0_323, %c2_324, %c0_325, %c0_326] : memref<1x4x32x128xbf16, #tpu.memory_space<vmem>>, vector<1x1x32x128xbf16>
    %418 = vector.shape_cast %417 : vector<1x1x32x128xbf16> to vector<32x128xbf16>
    %419 = arith.truncf %416 : vector<8x32xf32> to vector<8x32xbf16>
    %cst_327 = arith.constant dense<0.000000e+00> : vector<8x128xf32>
    %420 = tpu.matmul %419, %418, %cst_327 {dimension_numbers = #tpu.dot_dimension_numbers<[1], [0], [0], [1], [0, 0, 1, 1], [], []>} : vector<8x32xbf16>, vector<32x128xbf16>, vector<8x128xf32> -> vector<8x128xf32>
    %421 = arith.addf %370, %420 : vector<8x128xf32>
    %c0_328 = arith.constant 0 : index
    %c0_329 = arith.constant 0 : index
    %c3_330 = arith.constant 3 : index
    %c0_331 = arith.constant 0 : index
    %c0_332 = arith.constant 0 : index
    %422 = vector.load %arg12[%c0_328, %c0_329, %c3_330, %c0_331, %c0_332] : memref<1x3x4x32x128xbf16, #tpu.memory_space<vmem>>, vector<1x1x1x32x128xbf16>
    %423 = vector.shape_cast %422 : vector<1x1x1x32x128xbf16> to vector<32x128xbf16>
    %c0_333 = arith.constant 0 : index
    %c0_334 = arith.constant 0 : index
    %c3_335 = arith.constant 3 : index
    %c0_336 = arith.constant 0 : index
    %c0_337 = arith.constant 0 : index
    %424 = vector.load %arg13[%c0_333, %c0_334, %c3_335, %c0_336, %c0_337] : memref<1x3x4x1x32xf32, #tpu.memory_space<vmem>>, vector<1x1x1x1x32xf32>
    %425 = vector.shape_cast %424 : vector<1x1x1x1x32xf32> to vector<1x32xf32>
    %426 = arith.truncf %268 : vector<8x128xf32> to vector<8x128xbf16>
    %cst_338 = arith.constant dense<0.000000e+00> : vector<8x32xf32>
    %427 = tpu.matmul %426, %423, %cst_338 {dimension_numbers = #tpu.dot_dimension_numbers<[1], [1], [0], [0], [0, 0, 1, 0], [], []>} : vector<8x128xbf16>, vector<32x128xbf16>, vector<8x32xf32> -> vector<8x32xf32>
    %428 = vector.broadcast %425 : vector<1x32xf32> to vector<8x32xf32>
    %429 = arith.addf %427, %428 : vector<8x32xf32>
    %c0_339 = arith.constant 0 : index
    %c1_340 = arith.constant 1 : index
    %c3_341 = arith.constant 3 : index
    %c0_342 = arith.constant 0 : index
    %c0_343 = arith.constant 0 : index
    %430 = vector.load %arg12[%c0_339, %c1_340, %c3_341, %c0_342, %c0_343] : memref<1x3x4x32x128xbf16, #tpu.memory_space<vmem>>, vector<1x1x1x32x128xbf16>
    %431 = vector.shape_cast %430 : vector<1x1x1x32x128xbf16> to vector<32x128xbf16>
    %c0_344 = arith.constant 0 : index
    %c1_345 = arith.constant 1 : index
    %c3_346 = arith.constant 3 : index
    %c0_347 = arith.constant 0 : index
    %c0_348 = arith.constant 0 : index
    %432 = vector.load %arg13[%c0_344, %c1_345, %c3_346, %c0_347, %c0_348] : memref<1x3x4x1x32xf32, #tpu.memory_space<vmem>>, vector<1x1x1x1x32xf32>
    %433 = vector.shape_cast %432 : vector<1x1x1x1x32xf32> to vector<1x32xf32>
    %434 = arith.truncf %269 : vector<8x128xf32> to vector<8x128xbf16>
    %cst_349 = arith.constant dense<0.000000e+00> : vector<8x32xf32>
    %435 = tpu.matmul %434, %431, %cst_349 {dimension_numbers = #tpu.dot_dimension_numbers<[1], [1], [0], [0], [0, 0, 1, 0], [], []>} : vector<8x128xbf16>, vector<32x128xbf16>, vector<8x32xf32> -> vector<8x32xf32>
    %436 = vector.broadcast %433 : vector<1x32xf32> to vector<8x32xf32>
    %437 = arith.addf %435, %436 : vector<8x32xf32>
    %c0_350 = arith.constant 0 : index
    %c2_351 = arith.constant 2 : index
    %c3_352 = arith.constant 3 : index
    %c0_353 = arith.constant 0 : index
    %c0_354 = arith.constant 0 : index
    %438 = vector.load %arg12[%c0_350, %c2_351, %c3_352, %c0_353, %c0_354] : memref<1x3x4x32x128xbf16, #tpu.memory_space<vmem>>, vector<1x1x1x32x128xbf16>
    %439 = vector.shape_cast %438 : vector<1x1x1x32x128xbf16> to vector<32x128xbf16>
    %c0_355 = arith.constant 0 : index
    %c2_356 = arith.constant 2 : index
    %c3_357 = arith.constant 3 : index
    %c0_358 = arith.constant 0 : index
    %c0_359 = arith.constant 0 : index
    %440 = vector.load %arg13[%c0_355, %c2_356, %c3_357, %c0_358, %c0_359] : memref<1x3x4x1x32xf32, #tpu.memory_space<vmem>>, vector<1x1x1x1x32xf32>
    %441 = vector.shape_cast %440 : vector<1x1x1x1x32xf32> to vector<1x32xf32>
    %442 = arith.truncf %269 : vector<8x128xf32> to vector<8x128xbf16>
    %cst_360 = arith.constant dense<0.000000e+00> : vector<8x32xf32>
    %443 = tpu.matmul %442, %439, %cst_360 {dimension_numbers = #tpu.dot_dimension_numbers<[1], [1], [0], [0], [0, 0, 1, 0], [], []>} : vector<8x128xbf16>, vector<32x128xbf16>, vector<8x32xf32> -> vector<8x32xf32>
    %444 = vector.broadcast %441 : vector<1x32xf32> to vector<8x32xf32>
    %445 = arith.addf %443, %444 : vector<8x32xf32>
    %446 = vector.shape_cast %429 : vector<8x32xf32> to vector<1x8x32xf32>
    %447 = vector.shape_cast %437 : vector<8x32xf32> to vector<1x8x32xf32>
    %448 = vector.shape_cast %445 : vector<8x32xf32> to vector<1x8x32xf32>
    %449 = arith.truncf %446 : vector<1x8x32xf32> to vector<1x8x32xbf16>
    %450 = arith.truncf %447 : vector<1x8x32xf32> to vector<1x8x32xbf16>
    "tpu.trace_start"() <{level = 10 : i32, message = "bqd,bkd->bqk"}> : () -> ()
    %cst_361 = arith.constant dense<0.000000e+00> : vector<1x8x8xf32>
    %451 = tpu.matmul %449, %450, %cst_361 {dimension_numbers = #tpu.dot_dimension_numbers<[2], [2], [1], [1], [0, 0, 0, 1, 1, 1], [0], [0]>} : vector<1x8x32xbf16>, vector<1x8x32xbf16>, vector<1x8x8xf32> -> vector<1x8x8xf32>
    "tpu.trace_stop"() : () -> ()
    %cst_362 = arith.constant 0.176776692 : f32
    %452 = vector.broadcast %cst_362 : f32 to vector<1x8x8xf32>
    %453 = arith.mulf %451, %452 : vector<1x8x8xf32>
    %cst_363 = arith.constant dense<0xFF800000> : vector<1x8xf32>
    %454 = vector.multi_reduction <maximumf>, %453, %cst_363 [2] : vector<1x8x8xf32> to vector<1x8xf32>
    %455 = vector.shape_cast %454 : vector<1x8xf32> to vector<1x8x1xf32>
    %456 = vector.broadcast %455 : vector<1x8x1xf32> to vector<1x8x8xf32>
    %457 = arith.subf %453, %456 : vector<1x8x8xf32>
    %458 = math.exp %457 : vector<1x8x8xf32>
    %cst_364 = arith.constant dense<0.000000e+00> : vector<1x8xf32>
    %459 = vector.multi_reduction <add>, %458, %cst_364 [2] : vector<1x8x8xf32> to vector<1x8xf32>
    %460 = vector.shape_cast %459 : vector<1x8xf32> to vector<1x8x1xf32>
    %461 = tpu.reciprocal %460 {approx = true} : vector<1x8x1xf32> -> vector<1x8x1xf32>
    %462 = vector.broadcast %461 : vector<1x8x1xf32> to vector<1x8x8xf32>
    %463 = arith.mulf %458, %462 : vector<1x8x8xf32>
    %464 = arith.truncf %463 : vector<1x8x8xf32> to vector<1x8x8xbf16>
    %465 = arith.truncf %448 : vector<1x8x32xf32> to vector<1x8x32xbf16>
    "tpu.trace_start"() <{level = 10 : i32, message = "bqk,bkd->bqd"}> : () -> ()
    %cst_365 = arith.constant dense<0.000000e+00> : vector<1x8x32xf32>
    %466 = tpu.matmul %464, %465, %cst_365 {dimension_numbers = #tpu.dot_dimension_numbers<[2], [1], [1], [2], [0, 0, 0, 1, 1, 2], [0], [0]>} : vector<1x8x8xbf16>, vector<1x8x32xbf16>, vector<1x8x32xf32> -> vector<1x8x32xf32>
    "tpu.trace_stop"() : () -> ()
    %467 = vector.shape_cast %466 : vector<1x8x32xf32> to vector<8x32xf32>
    %c0_366 = arith.constant 0 : index
    %c3_367 = arith.constant 3 : index
    %c0_368 = arith.constant 0 : index
    %c0_369 = arith.constant 0 : index
    %468 = vector.load %arg14[%c0_366, %c3_367, %c0_368, %c0_369] : memref<1x4x32x128xbf16, #tpu.memory_space<vmem>>, vector<1x1x32x128xbf16>
    %469 = vector.shape_cast %468 : vector<1x1x32x128xbf16> to vector<32x128xbf16>
    %470 = arith.truncf %467 : vector<8x32xf32> to vector<8x32xbf16>
    %cst_370 = arith.constant dense<0.000000e+00> : vector<8x128xf32>
    %471 = tpu.matmul %470, %469, %cst_370 {dimension_numbers = #tpu.dot_dimension_numbers<[1], [0], [0], [1], [0, 0, 1, 1], [], []>} : vector<8x32xbf16>, vector<32x128xbf16>, vector<8x128xf32> -> vector<8x128xf32>
    %472 = arith.addf %421, %471 : vector<8x128xf32>
    %c0_371 = arith.constant 0 : index
    %c0_372 = arith.constant 0 : index
    %c0_373 = arith.constant 0 : index
    %473 = vector.load %arg15[%c0_371, %c0_372, %c0_373] : memref<1x1x128xf32, #tpu.memory_space<vmem>>, vector<1x1x128xf32>
    %474 = vector.shape_cast %473 : vector<1x1x128xf32> to vector<1x128xf32>
    %475 = vector.broadcast %474 : vector<1x128xf32> to vector<8x128xf32>
    %476 = arith.addf %472, %475 : vector<8x128xf32>
    %477 = arith.addf %244, %476 : vector<8x128xf32>
    %c0_374 = arith.constant 0 : index
    %c0_375 = arith.constant 0 : index
    %c0_376 = arith.constant 0 : index
    %478 = vector.load %arg16[%c0_374, %c0_375, %c0_376] : memref<1x1x128xf32, #tpu.memory_space<vmem>>, vector<1x1x128xf32>
    %479 = vector.shape_cast %478 : vector<1x1x128xf32> to vector<1x128xf32>
    %c0_377 = arith.constant 0 : index
    %c0_378 = arith.constant 0 : index
    %c0_379 = arith.constant 0 : index
    %480 = vector.load %arg17[%c0_377, %c0_378, %c0_379] : memref<1x1x128xf32, #tpu.memory_space<vmem>>, vector<1x1x128xf32>
    %481 = vector.shape_cast %480 : vector<1x1x128xf32> to vector<1x128xf32>
    %cst_380 = arith.constant dense<0.000000e+00> : vector<8xf32>
    %482 = vector.multi_reduction <add>, %477, %cst_380 [1] : vector<8x128xf32> to vector<8xf32>
    %483 = vector.shape_cast %482 : vector<8xf32> to vector<8x1xf32>
    %cst_381 = arith.constant 1.280000e+02 : f32
    %484 = vector.broadcast %cst_381 : f32 to vector<8x1xf32>
    %485 = arith.divf %483, %484 : vector<8x1xf32>
    %486 = vector.broadcast %485 : vector<8x1xf32> to vector<8x128xf32>
    %487 = arith.subf %477, %486 : vector<8x128xf32>
    %488 = arith.mulf %487, %487 : vector<8x128xf32>
    %cst_382 = arith.constant dense<0.000000e+00> : vector<8xf32>
    %489 = vector.multi_reduction <add>, %488, %cst_382 [1] : vector<8x128xf32> to vector<8xf32>
    %490 = vector.shape_cast %489 : vector<8xf32> to vector<8x1xf32>
    %cst_383 = arith.constant 1.280000e+02 : f32
    %491 = vector.broadcast %cst_383 : f32 to vector<8x1xf32>
    %492 = arith.divf %490, %491 : vector<8x1xf32>
    %cst_384 = arith.constant 9.99999974E-6 : f32
    %493 = vector.broadcast %cst_384 : f32 to vector<8x1xf32>
    %494 = arith.addf %492, %493 : vector<8x1xf32>
    %495 = math.rsqrt %494 : vector<8x1xf32>
    %496 = vector.broadcast %495 : vector<8x1xf32> to vector<8x128xf32>
    %497 = arith.mulf %487, %496 : vector<8x128xf32>
    %498 = vector.broadcast %479 : vector<1x128xf32> to vector<8x128xf32>
    %499 = arith.mulf %497, %498 : vector<8x128xf32>
    %500 = vector.broadcast %481 : vector<1x128xf32> to vector<8x128xf32>
    %501 = arith.addf %499, %500 : vector<8x128xf32>
    %c0_385 = arith.constant 0 : index
    %c0_386 = arith.constant 0 : index
    %c0_387 = arith.constant 0 : index
    %502 = vector.load %arg18[%c0_385, %c0_386, %c0_387] : memref<1x128x256xbf16, #tpu.memory_space<vmem>>, vector<1x128x256xbf16>
    %503 = vector.shape_cast %502 : vector<1x128x256xbf16> to vector<128x256xbf16>
    %c0_388 = arith.constant 0 : index
    %c0_389 = arith.constant 0 : index
    %c0_390 = arith.constant 0 : index
    %504 = vector.load %arg19[%c0_388, %c0_389, %c0_390] : memref<1x1x256xf32, #tpu.memory_space<vmem>>, vector<1x1x256xf32>
    %505 = vector.shape_cast %504 : vector<1x1x256xf32> to vector<1x256xf32>
    %506 = arith.truncf %501 : vector<8x128xf32> to vector<8x128xbf16>
    %cst_391 = arith.constant dense<0.000000e+00> : vector<8x256xf32>
    %507 = tpu.matmul %506, %503, %cst_391 {dimension_numbers = #tpu.dot_dimension_numbers<[1], [0], [0], [1], [0, 0, 1, 1], [], []>} : vector<8x128xbf16>, vector<128x256xbf16>, vector<8x256xf32> -> vector<8x256xf32>
    %508 = vector.broadcast %505 : vector<1x256xf32> to vector<8x256xf32>
    %509 = arith.addf %507, %508 : vector<8x256xf32>
    %cst_392 = arith.constant 0.000000e+00 : f32
    %510 = vector.broadcast %cst_392 : f32 to vector<8x256xf32>
    %511 = arith.maximumf %509, %510 : vector<8x256xf32>
    %c0_393 = arith.constant 0 : index
    %c0_394 = arith.constant 0 : index
    %c0_395 = arith.constant 0 : index
    %512 = vector.load %arg20[%c0_393, %c0_394, %c0_395] : memref<1x256x128xbf16, #tpu.memory_space<vmem>>, vector<1x256x128xbf16>
    %513 = vector.shape_cast %512 : vector<1x256x128xbf16> to vector<256x128xbf16>
    %c0_396 = arith.constant 0 : index
    %c0_397 = arith.constant 0 : index
    %c0_398 = arith.constant 0 : index
    %514 = vector.load %arg21[%c0_396, %c0_397, %c0_398] : memref<1x1x128xf32, #tpu.memory_space<vmem>>, vector<1x1x128xf32>
    %515 = vector.shape_cast %514 : vector<1x1x128xf32> to vector<1x128xf32>
    %516 = arith.truncf %511 : vector<8x256xf32> to vector<8x256xbf16>
    %cst_399 = arith.constant dense<0.000000e+00> : vector<8x128xf32>
    %517 = tpu.matmul %516, %513, %cst_399 {dimension_numbers = #tpu.dot_dimension_numbers<[1], [0], [0], [1], [0, 0, 1, 1], [], []>} : vector<8x256xbf16>, vector<256x128xbf16>, vector<8x128xf32> -> vector<8x128xf32>
    %518 = vector.broadcast %515 : vector<1x128xf32> to vector<8x128xf32>
    %519 = arith.addf %517, %518 : vector<8x128xf32>
    %520 = arith.addf %477, %519 : vector<8x128xf32>
    %c0_400 = arith.constant 0 : index
    %c0_401 = arith.constant 0 : index
    %521 = vector.load %arg27[%c0_400, %c0_401] : memref<8x128xf32, #tpu.memory_space<vmem>>, vector<8x128xf32>
    tpu.vector_store %arg27[%c0_400, %c0_401], %520 {strides = array<i32>} : memref<8x128xf32, #tpu.memory_space<vmem>>, vector<8x128xf32>,
    %c1_i32 = arith.constant 1 : i32
    %522 = arith.cmpi eq, %arg1, %c1_i32 : i32
    %523 = arith.extui %522 : i1 to i32
    %c0_i32_402 = arith.constant 0 : i32
    %524 = arith.cmpi ne, %523, %c0_i32_402 : i32
    scf.if %524 {
      %c0_403 = arith.constant 0 : index
      %c0_404 = arith.constant 0 : index
      %525 = vector.load %arg22[%c0_403, %c0_404] : memref<1x128xf32, #tpu.memory_space<vmem>>, vector<1x128xf32>
      %c0_405 = arith.constant 0 : index
      %c0_406 = arith.constant 0 : index
      %526 = vector.load %arg23[%c0_405, %c0_406] : memref<1x128xf32, #tpu.memory_space<vmem>>, vector<1x128xf32>
      %cst_407 = arith.constant dense<0.000000e+00> : vector<8xf32>
      %527 = vector.multi_reduction <add>, %520, %cst_407 [1] : vector<8x128xf32> to vector<8xf32>
      %528 = vector.shape_cast %527 : vector<8xf32> to vector<8x1xf32>
      %cst_408 = arith.constant 1.280000e+02 : f32
      %529 = vector.broadcast %cst_408 : f32 to vector<8x1xf32>
      %530 = arith.divf %528, %529 : vector<8x1xf32>
      %531 = vector.broadcast %530 : vector<8x1xf32> to vector<8x128xf32>
      %532 = arith.subf %520, %531 : vector<8x128xf32>
      %533 = arith.mulf %532, %532 : vector<8x128xf32>
      %cst_409 = arith.constant dense<0.000000e+00> : vector<8xf32>
      %534 = vector.multi_reduction <add>, %533, %cst_409 [1] : vector<8x128xf32> to vector<8xf32>
      %535 = vector.shape_cast %534 : vector<8xf32> to vector<8x1xf32>
      %cst_410 = arith.constant 1.280000e+02 : f32
      %536 = vector.broadcast %cst_410 : f32 to vector<8x1xf32>
      %537 = arith.divf %535, %536 : vector<8x1xf32>
      %cst_411 = arith.constant 9.99999974E-6 : f32
      %538 = vector.broadcast %cst_411 : f32 to vector<8x1xf32>
      %539 = arith.addf %537, %538 : vector<8x1xf32>
      %540 = math.rsqrt %539 : vector<8x1xf32>
      %541 = vector.broadcast %540 : vector<8x1xf32> to vector<8x128xf32>
      %542 = arith.mulf %532, %541 : vector<8x128xf32>
      %543 = vector.broadcast %525 : vector<1x128xf32> to vector<8x128xf32>
      %544 = arith.mulf %542, %543 : vector<8x128xf32>
      %545 = vector.broadcast %526 : vector<1x128xf32> to vector<8x128xf32>
      %546 = arith.addf %544, %545 : vector<8x128xf32>
      %c0_412 = arith.constant 0 : index
      %c0_413 = arith.constant 0 : index
      %547 = vector.load %arg24[%c0_412, %c0_413] : memref<128x128xbf16, #tpu.memory_space<vmem>>, vector<128x128xbf16>
      %c0_414 = arith.constant 0 : index
      %c0_415 = arith.constant 0 : index
      %548 = vector.load %arg25[%c0_414, %c0_415] : memref<1x128xf32, #tpu.memory_space<vmem>>, vector<1x128xf32>
      %549 = arith.truncf %546 : vector<8x128xf32> to vector<8x128xbf16>
      %cst_416 = arith.constant dense<0.000000e+00> : vector<8x128xf32>
      %550 = tpu.matmul %549, %547, %cst_416 {dimension_numbers = #tpu.dot_dimension_numbers<[1], [0], [0], [1], [0, 0, 1, 1], [], []>} : vector<8x128xbf16>, vector<128x128xbf16>, vector<8x128xf32> -> vector<8x128xf32>
      %551 = vector.broadcast %548 : vector<1x128xf32> to vector<8x128xf32>
      %552 = arith.addf %550, %551 : vector<8x128xf32>
      %c0_417 = arith.constant 0 : index
      %c0_418 = arith.constant 0 : index
      %553 = vector.load %arg26[%c0_417, %c0_418] : memref<8x128xf32, #tpu.memory_space<vmem>>, vector<8x128xf32>
      tpu.vector_store %arg26[%c0_417, %c0_418], %552 {strides = array<i32>} : memref<8x128xf32, #tpu.memory_space<vmem>>, vector<8x128xf32>,
    } else {
    }
    return
  }
  func.func @transform_0(%arg0: i32, %arg1: i32) -> (i32, i32) {
    %c0_i32 = arith.constant 0 : i32
    %c0_i32_0 = arith.constant 0 : i32
    return %arg0, %c0_i32 : i32, i32
  }
  func.func @transform_1(%arg0: i32, %arg1: i32) -> (i32, i32) {
    %c0_i32 = arith.constant 0 : i32
    %c0_i32_0 = arith.constant 0 : i32
    return %arg0, %c0_i32 : i32, i32
  }
  func.func @transform_2(%arg0: i32, %arg1: i32) -> (i32, i32, i32) {
    %c0_i32 = arith.constant 0 : i32
    %c0_i32_0 = arith.constant 0 : i32
    %c0_i32_1 = arith.constant 0 : i32
    return %arg1, %c0_i32, %c0_i32_0 : i32, i32, i32
  }
  func.func @transform_3(%arg0: i32, %arg1: i32) -> (i32, i32, i32) {
    %c0_i32 = arith.constant 0 : i32
    %c0_i32_0 = arith.constant 0 : i32
    %c0_i32_1 = arith.constant 0 : i32
    return %arg1, %c0_i32, %c0_i32_0 : i32, i32, i32
  }
  func.func @transform_4(%arg0: i32, %arg1: i32) -> (i32, i32, i32, i32, i32) {
    %c0_i32 = arith.constant 0 : i32
    %c0_i32_0 = arith.constant 0 : i32
    %c0_i32_1 = arith.constant 0 : i32
    %c0_i32_2 = arith.constant 0 : i32
    %c0_i32_3 = arith.constant 0 : i32
    return %arg1, %c0_i32, %c0_i32_0, %c0_i32_1, %c0_i32_2 : i32, i32, i32, i32, i32
  }
  func.func @transform_5(%arg0: i32, %arg1: i32) -> (i32, i32, i32, i32, i32) {
    %c0_i32 = arith.constant 0 : i32
    %c0_i32_0 = arith.constant 0 : i32
    %c0_i32_1 = arith.constant 0 : i32
    %c0_i32_2 = arith.constant 0 : i32
    %c0_i32_3 = arith.constant 0 : i32
    return %arg1, %c0_i32, %c0_i32_0, %c0_i32_1, %c0_i32_2 : i32, i32, i32, i32, i32
  }
  func.func @transform_6(%arg0: i32, %arg1: i32) -> (i32, i32, i32, i32) {
    %c0_i32 = arith.constant 0 : i32
    %c0_i32_0 = arith.constant 0 : i32
    %c0_i32_1 = arith.constant 0 : i32
    %c0_i32_2 = arith.constant 0 : i32
    return %arg1, %c0_i32, %c0_i32_0, %c0_i32_1 : i32, i32, i32, i32
  }
  func.func @transform_7(%arg0: i32, %arg1: i32) -> (i32, i32, i32) {
    %c0_i32 = arith.constant 0 : i32
    %c0_i32_0 = arith.constant 0 : i32
    %c0_i32_1 = arith.constant 0 : i32
    return %arg1, %c0_i32, %c0_i32_0 : i32, i32, i32
  }
  func.func @transform_8(%arg0: i32, %arg1: i32) -> (i32, i32, i32) {
    %c0_i32 = arith.constant 0 : i32
    %c0_i32_0 = arith.constant 0 : i32
    %c0_i32_1 = arith.constant 0 : i32
    return %arg1, %c0_i32, %c0_i32_0 : i32, i32, i32
  }
  func.func @transform_9(%arg0: i32, %arg1: i32) -> (i32, i32, i32) {
    %c0_i32 = arith.constant 0 : i32
    %c0_i32_0 = arith.constant 0 : i32
    %c0_i32_1 = arith.constant 0 : i32
    return %arg1, %c0_i32, %c0_i32_0 : i32, i32, i32
  }
  func.func @transform_10(%arg0: i32, %arg1: i32) -> (i32, i32, i32, i32, i32) {
    %c0_i32 = arith.constant 0 : i32
    %c0_i32_0 = arith.constant 0 : i32
    %c0_i32_1 = arith.constant 0 : i32
    %c0_i32_2 = arith.constant 0 : i32
    %c0_i32_3 = arith.constant 0 : i32
    return %arg1, %c0_i32, %c0_i32_0, %c0_i32_1, %c0_i32_2 : i32, i32, i32, i32, i32
  }
  func.func @transform_11(%arg0: i32, %arg1: i32) -> (i32, i32, i32, i32, i32) {
    %c0_i32 = arith.constant 0 : i32
    %c0_i32_0 = arith.constant 0 : i32
    %c0_i32_1 = arith.constant 0 : i32
    %c0_i32_2 = arith.constant 0 : i32
    %c0_i32_3 = arith.constant 0 : i32
    return %arg1, %c0_i32, %c0_i32_0, %c0_i32_1, %c0_i32_2 : i32, i32, i32, i32, i32
  }
  func.func @transform_12(%arg0: i32, %arg1: i32) -> (i32, i32, i32, i32) {
    %c0_i32 = arith.constant 0 : i32
    %c0_i32_0 = arith.constant 0 : i32
    %c0_i32_1 = arith.constant 0 : i32
    %c0_i32_2 = arith.constant 0 : i32
    return %arg1, %c0_i32, %c0_i32_0, %c0_i32_1 : i32, i32, i32, i32
  }
  func.func @transform_13(%arg0: i32, %arg1: i32) -> (i32, i32, i32) {
    %c0_i32 = arith.constant 0 : i32
    %c0_i32_0 = arith.constant 0 : i32
    %c0_i32_1 = arith.constant 0 : i32
    return %arg1, %c0_i32, %c0_i32_0 : i32, i32, i32
  }
  func.func @transform_14(%arg0: i32, %arg1: i32) -> (i32, i32, i32) {
    %c0_i32 = arith.constant 0 : i32
    %c0_i32_0 = arith.constant 0 : i32
    %c0_i32_1 = arith.constant 0 : i32
    return %arg1, %c0_i32, %c0_i32_0 : i32, i32, i32
  }
  func.func @transform_15(%arg0: i32, %arg1: i32) -> (i32, i32, i32) {
    %c0_i32 = arith.constant 0 : i32
    %c0_i32_0 = arith.constant 0 : i32
    %c0_i32_1 = arith.constant 0 : i32
    return %arg1, %c0_i32, %c0_i32_0 : i32, i32, i32
  }
  func.func @transform_16(%arg0: i32, %arg1: i32) -> (i32, i32, i32) {
    %c0_i32 = arith.constant 0 : i32
    %c0_i32_0 = arith.constant 0 : i32
    %c0_i32_1 = arith.constant 0 : i32
    return %arg1, %c0_i32, %c0_i32_0 : i32, i32, i32
  }
  func.func @transform_17(%arg0: i32, %arg1: i32) -> (i32, i32, i32) {
    %c0_i32 = arith.constant 0 : i32
    %c0_i32_0 = arith.constant 0 : i32
    %c0_i32_1 = arith.constant 0 : i32
    return %arg1, %c0_i32, %c0_i32_0 : i32, i32, i32
  }
  func.func @transform_18(%arg0: i32, %arg1: i32) -> (i32, i32, i32) {
    %c0_i32 = arith.constant 0 : i32
    %c0_i32_0 = arith.constant 0 : i32
    %c0_i32_1 = arith.constant 0 : i32
    return %arg1, %c0_i32, %c0_i32_0 : i32, i32, i32
  }
  func.func @transform_19(%arg0: i32, %arg1: i32) -> (i32, i32, i32) {
    %c0_i32 = arith.constant 0 : i32
    %c0_i32_0 = arith.constant 0 : i32
    %c0_i32_1 = arith.constant 0 : i32
    return %arg1, %c0_i32, %c0_i32_0 : i32, i32, i32
  }
  func.func @transform_20(%arg0: i32, %arg1: i32) -> (i32, i32) {
    %c0_i32 = arith.constant 0 : i32
    %c0_i32_0 = arith.constant 0 : i32
    %c0_i32_1 = arith.constant 0 : i32
    return %c0_i32, %c0_i32_0 : i32, i32
  }
  func.func @transform_21(%arg0: i32, %arg1: i32) -> (i32, i32) {
    %c0_i32 = arith.constant 0 : i32
    %c0_i32_0 = arith.constant 0 : i32
    %c0_i32_1 = arith.constant 0 : i32
    return %c0_i32, %c0_i32_0 : i32, i32
  }
  func.func @transform_22(%arg0: i32, %arg1: i32) -> (i32, i32) {
    %c0_i32 = arith.constant 0 : i32
    %c0_i32_0 = arith.constant 0 : i32
    %c0_i32_1 = arith.constant 0 : i32
    return %c0_i32, %c0_i32_0 : i32, i32
  }
  func.func @transform_23(%arg0: i32, %arg1: i32) -> (i32, i32) {
    %c0_i32 = arith.constant 0 : i32
    %c0_i32_0 = arith.constant 0 : i32
    %c0_i32_1 = arith.constant 0 : i32
    return %c0_i32, %c0_i32_0 : i32, i32
  }
  func.func @transform_24(%arg0: i32, %arg1: i32) -> (i32, i32) {
    %c0_i32 = arith.constant 0 : i32
    %c0_i32_0 = arith.constant 0 : i32
    return %arg0, %c0_i32 : i32, i32
  }
}

</mosaic_0001>

<llo_original>
// kernel: seq2seq_forward.2
$region0: #{seq2seq_forward.2}
  #allocation0 [shape = 'u32[]', space=smem, size = 0x4, offset = 0x4, fixed_abs, tag = 'smem constant byte address 0x4 - core index']
  #allocation1 [shape = 'u32[72,128]{1,0:T(1,128)}', space=vmem, size = 0x9000, scoped, tag = 'internal scratch']
  #allocation2 [shape = 'f32[8,128]{1,0:T(8,128)}', space=vmem, size = 0x1000, scoped, tag = 'scratch operand']
  %s0 = inlined_call_operand.vmem [shape: f32[16,128], index: 0, kind: input, shape index: {}]
  %s1 = inlined_call_operand.vmem [shape: f32[2,1,128], index: 1, kind: input, shape index: {}]
  %s2 = inlined_call_operand.vmem [shape: f32[2,1,128], index: 2, kind: input, shape index: {}]
  %s3 = inlined_call_operand.hbm [shape: bf16[2,3,4,32,128], index: 3, kind: input, shape index: {}]
  %s4 = inlined_call_operand.vmem [shape: f32[2,3,4,1,32], index: 4, kind: input, shape index: {}]
  %s5 = inlined_call_operand.hbm [shape: bf16[2,4,32,128], index: 5, kind: input, shape index: {}]
  %s6 = inlined_call_operand.vmem [shape: f32[2,1,128], index: 6, kind: input, shape index: {}]
  %s7 = inlined_call_operand.vmem [shape: f32[2,1,128], index: 7, kind: input, shape index: {}]
  %s8 = inlined_call_operand.vmem [shape: f32[2,1,128], index: 8, kind: input, shape index: {}]
  %s9 = inlined_call_operand.vmem [shape: bf16[2,128,256], index: 9, kind: input, shape index: {}]
  %s10 = inlined_call_operand.vmem [shape: f32[2,1,256], index: 10, kind: input, shape index: {}]
  %s11 = inlined_call_operand.hbm [shape: bf16[2,256,128], index: 11, kind: input, shape index: {}]
  %s12 = inlined_call_operand.vmem [shape: f32[2,1,128], index: 12, kind: input, shape index: {}]
  %s13 = inlined_call_operand.vmem [shape: f32[1,128], index: 13, kind: input, shape index: {}]
  %s14 = inlined_call_operand.vmem [shape: f32[1,128], index: 14, kind: input, shape index: {}]
  %s15 = inlined_call_operand.vmem [shape: f32[16,128], index: 15, kind: output, shape index: {}]
  %s16 = sld [smem:[#allocation0]]
  $region113: #{seq2seq_forward.2} parent=0
    _
  %s18 = ssub.s32 1, %s16
  %s19 = scalar_select 0, %s18, %s16
  $region1: #{seq2seq_forward.2} parent=0
    #allocation3 [shape = 'u8[196608]{0}', space=vmem, size = 0x30000, scoped, tag = 'input window, operand 3']
    #allocation4 [shape = 's32[2]{0}', space=sflag, size = 0x8, scoped, tag = 'scoped memory for seq2seq_forward.2']
    #allocation5 [shape = 'u8[65536]{0}', space=vmem, size = 0x10000, scoped, tag = 'input window, operand 5']
    #allocation6 [shape = 's32[2]{0}', space=sflag, size = 0x8, scoped, tag = 'scoped memory for seq2seq_forward.2']
    #allocation7 [shape = 'u8[131072]{0}', space=vmem, size = 0x20000, scoped, tag = 'input window, operand 11']
    %20 = vsyncpa [#allocation4], 0
    %s21 = scalar_lea.sflag [#allocation4], 1
    %22 = vsyncpa %s21, 0
    %23 = vsyncpa [#allocation6], 0
    %s24 = scalar_lea.sflag [#allocation6], 1
    %25 = vsyncpa %s24, 0
    loop: start=0, step=1, limit=6
    $region2: #{seq2seq_forward.2} parent=1 // loop_pre_header
      _
    $region3: #{seq2seq_forward.2} parent=1 // loop_header
      %s27 = sphi 0, %s31
      %p28 = scmp.ge.s32.totalorder %s27, 6
      %s34 = sphi 0, %s46
      %s35 = sphi 0, %s42
      %s36 = sphi 0, %s34
      %s37 = sphi 0, %s35
      %s38 = sphi 0, %s36
      %s39 = sphi 0, %s37
      %s49 = sphi 0, %s51
      %s52 = sphi 0, %s49
      %s53 = sphi 0, %s52
      %s69 = sphi 0, %s53
      %s75 = sphi 0, %s77
      %s78 = sphi 0, %s75
      %s79 = sphi 0, %s78
      %s95 = sphi 0, %s79
      %s101 = sphi 0, %s103
      %s104 = sphi 0, %s101
      %s105 = sphi 0, %s104
      %s121 = sphi 0, %s105
      %s127 = sphi 0, %s129
      %s130 = sphi 0, %s127
      %s131 = sphi 0, %s130
      %s147 = sphi 0, %s131
      %s153 = sphi 0, %s155
      %s156 = sphi 0, %s153
      %s157 = sphi 0, %s156
      %s173 = sphi 0, %s157
      %s179 = sphi 0, %s181
      %s182 = sphi 0, %s179
      %s183 = sphi 0, %s182
      %s199 = sphi 0, %s183
      %s205 = sphi 0, %s207
      %s208 = sphi 0, %s205
      %s209 = sphi 0, %s208
      %s225 = sphi 0, %s209
      %s231 = sphi 0, %s233
      %s234 = sphi 0, %s231
      %s235 = sphi 0, %s234
      %s251 = sphi 0, %s235
      %s257 = sphi 0, %s259
      %s260 = sphi 0, %s257
      %s261 = sphi 0, %s260
      %s277 = sphi 0, %s261
      %s283 = sphi 0, %s285
      %s286 = sphi 0, %s283
      %s287 = sphi 0, %s286
      %s303 = sphi 0, %s287
      %s309 = sphi 0, %s311
      %s312 = sphi 0, %s309
      %s313 = sphi 0, %s312
      %s329 = sphi 0, %s313
      %s335 = sphi 0, %s337
      %s338 = sphi 0, %s335
      %s339 = sphi 0, %s338
      %s355 = sphi 0, %s339
      %s361 = sphi 0, %s363
      %s364 = sphi 0, %s361
      %s365 = sphi 0, %s364
      %s381 = sphi 0, %s365
      %s385 = sphi 0, %s385
      %s387 = sphi 0, %s385
      %s388 = sphi 0, %s387
      %s402 = sphi 0, %s388
      %s406 = sphi 0, %s406
      %s408 = sphi 0, %s406
      %s409 = sphi 0, %s408
      %s423 = sphi 0, %s409
      %s429 = sphi 0, %s431
      %s432 = sphi 0, %s429
      %s433 = sphi 0, %s432
      %s449 = sphi 0, %s433
    $region4: #{seq2seq_forward.2} parent=1 // loop_header_branch
      %30 = sbr.rel (%p28) target = $region8
    $region5: #{seq2seq_forward.2} parent=1 // loop_body
      %s32 = ssub.s32 %s27, 1
      %s33 = ssub.s32 %s27, 2
      %s40 = sadd.s32 1, %s35
      %p41 = scmp.ge.s32.totalorder %s40, 2
      %s42 = scalar_select %p41, 0, %s40
      %s43 = sadd.s32 1, %s34
      %s44 = scalar_select %p41, %s43, %s34
      %p45 = scmp.ge.s32.totalorder %s44, 2
      %s46 = scalar_select %p45, 0, %s44
      %s47 = ssub.s32 %s34, %s46
      %p48 = scmp.eq.s32.totalorder %s47, 0
      %s50 = sadd.s32 %s49, 1
      %s51 = scalar_select %p48, %s49, %s50
      %p54 = pneg %p48
      %p55 = scmp.eq.s32.totalorder %s27, 3
      %p56 = por %p54, %p55
      %p57 = scmp.ne.s32.totalorder %s49, %s52
      %p58 = scmp.eq.s32.totalorder %s27, 0
      %p59 = por %p57, %p58
      %p60 = scmp.ne.s32.totalorder %s49, %s52
      %p61 = scmp.eq.s32.totalorder %s32, 3
      %p62 = por %p60, %p61
      %p63 = scmp.ne.s32.totalorder %s52, %s53
      %p64 = scmp.eq.s32.totalorder %s32, 0
      %p65 = por %p63, %p64
      %p66 = scmp.ne.s32.totalorder %s52, %s53
      %p67 = scmp.eq.s32.totalorder %s33, 3
      %p68 = por %p66, %p67
      %p70 = scmp.ne.s32.totalorder %s53, %s69
      %p71 = scmp.eq.s32.totalorder %s33, 0
      %p72 = por %p70, %p71
      %s73 = ssub.s32 %s35, %s42
      %p74 = scmp.eq.s32.totalorder %s73, 0
      %s76 = sadd.s32 %s75, 1
      %s77 = scalar_select %p74, %s75, %s76
      %p80 = pneg %p74
      %p81 = scmp.eq.s32.totalorder %s27, 3
      %p82 = por %p80, %p81
      %p83 = scmp.ne.s32.totalorder %s75, %s78
      %p84 = scmp.eq.s32.totalorder %s27, 0
      %p85 = por %p83, %p84
      %p86 = scmp.ne.s32.totalorder %s75, %s78
      %p87 = scmp.eq.s32.totalorder %s32, 3
      %p88 = por %p86, %p87
      %p89 = scmp.ne.s32.totalorder %s78, %s79
      %p90 = scmp.eq.s32.totalorder %s32, 0
      %p91 = por %p89, %p90
      %p92 = scmp.ne.s32.totalorder %s78, %s79
      %p93 = scmp.eq.s32.totalorder %s33, 3
      %p94 = por %p92, %p93
      %p96 = scmp.ne.s32.totalorder %s79, %s95
      %p97 = scmp.eq.s32.totalorder %s33, 0
      %p98 = por %p96, %p97
      %s99 = ssub.s32 %s35, %s42
      %p100 = scmp.eq.s32.totalorder %s99, 0
      %s102 = sadd.s32 %s101, 1
      %s103 = scalar_select %p100, %s101, %s102
      %p106 = pneg %p100
      %p107 = scmp.eq.s32.totalorder %s27, 3
      %p108 = por %p106, %p107
      %p109 = scmp.ne.s32.totalorder %s101, %s104
      %p110 = scmp.eq.s32.totalorder %s27, 0
      %p111 = por %p109, %p110
      %p112 = scmp.ne.s32.totalorder %s101, %s104
      %p113 = scmp.eq.s32.totalorder %s32, 3
      %p114 = por %p112, %p113
      %p115 = scmp.ne.s32.totalorder %s104, %s105
      %p116 = scmp.eq.s32.totalorder %s32, 0
      %p117 = por %p115, %p116
      %p118 = scmp.ne.s32.totalorder %s104, %s105
      %p119 = scmp.eq.s32.totalorder %s33, 3
      %p120 = por %p118, %p119
      %p122 = scmp.ne.s32.totalorder %s105, %s121
      %p123 = scmp.eq.s32.totalorder %s33, 0
      %p124 = por %p122, %p123
      %s125 = ssub.s32 %s35, %s42
      %p126 = scmp.eq.s32.totalorder %s125, 0
      %s128 = sadd.s32 %s127, 1
      %s129 = scalar_select %p126, %s127, %s128
      %p132 = pneg %p126
      %p133 = scmp.eq.s32.totalorder %s27, 3
      %p134 = por %p132, %p133
      %p135 = scmp.ne.s32.totalorder %s127, %s130
      %p136 = scmp.eq.s32.totalorder %s27, 0
      %p137 = por %p135, %p136
      %p138 = scmp.ne.s32.totalorder %s127, %s130
      %p139 = scmp.eq.s32.totalorder %s32, 3
      %p140 = por %p138, %p139
      %p141 = scmp.ne.s32.totalorder %s130, %s131
      %p142 = scmp.eq.s32.totalorder %s32, 0
      %p143 = por %p141, %p142
      %p144 = scmp.ne.s32.totalorder %s130, %s131
      %p145 = scmp.eq.s32.totalorder %s33, 3
      %p146 = por %p144, %p145
      %p148 = scmp.ne.s32.totalorder %s131, %s147
      %p149 = scmp.eq.s32.totalorder %s33, 0
      %p150 = por %p148, %p149
      %s151 = ssub.s32 %s35, %s42
      %p152 = scmp.eq.s32.totalorder %s151, 0
      %s154 = sadd.s32 %s153, 1
      %s155 = scalar_select %p152, %s153, %s154
      %p158 = pneg %p152
      %p159 = scmp.eq.s32.totalorder %s27, 3
      %p160 = por %p158, %p159
      %p161 = scmp.ne.s32.totalorder %s153, %s156
      %p162 = scmp.eq.s32.totalorder %s27, 0
      %p163 = por %p161, %p162
      %p164 = scmp.ne.s32.totalorder %s153, %s156
      %p165 = scmp.eq.s32.totalorder %s32, 3
      %p166 = por %p164, %p165
      %p167 = scmp.ne.s32.totalorder %s156, %s157
      %p168 = scmp.eq.s32.totalorder %s32, 0
      %p169 = por %p167, %p168
      %p170 = scmp.ne.s32.totalorder %s156, %s157
      %p171 = scmp.eq.s32.totalorder %s33, 3
      %p172 = por %p170, %p171
      %p174 = scmp.ne.s32.totalorder %s157, %s173
      %p175 = scmp.eq.s32.totalorder %s33, 0
      %p176 = por %p174, %p175
      %s177 = ssub.s32 %s35, %s42
      %p178 = scmp.eq.s32.totalorder %s177, 0
      %s180 = sadd.s32 %s179, 1
      %s181 = scalar_select %p178, %s179, %s180
      %p184 = pneg %p178
      %p185 = scmp.eq.s32.totalorder %s27, 3
      %p186 = por %p184, %p185
      %p187 = scmp.ne.s32.totalorder %s179, %s182
      %p188 = scmp.eq.s32.totalorder %s27, 0
      %p189 = por %p187, %p188
      %p190 = scmp.ne.s32.totalorder %s179, %s182
      %p191 = scmp.eq.s32.totalorder %s32, 3
      %p192 = por %p190, %p191
      %p193 = scmp.ne.s32.totalorder %s182, %s183
      %p194 = scmp.eq.s32.totalorder %s32, 0
      %p195 = por %p193, %p194
      %p196 = scmp.ne.s32.totalorder %s182, %s183
      %p197 = scmp.eq.s32.totalorder %s33, 3
      %p198 = por %p196, %p197
      %p200 = scmp.ne.s32.totalorder %s183, %s199
      %p201 = scmp.eq.s32.totalorder %s33, 0
      %p202 = por %p200, %p201
      %s203 = ssub.s32 %s35, %s42
      %p204 = scmp.eq.s32.totalorder %s203, 0
      %s206 = sadd.s32 %s205, 1
      %s207 = scalar_select %p204, %s205, %s206
      %p210 = pneg %p204
      %p211 = scmp.eq.s32.totalorder %s27, 3
      %p212 = por %p210, %p211
      %p213 = scmp.ne.s32.totalorder %s205, %s208
      %p214 = scmp.eq.s32.totalorder %s27, 0
      %p215 = por %p213, %p214
      %p216 = scmp.ne.s32.totalorder %s205, %s208
      %p217 = scmp.eq.s32.totalorder %s32, 3
      %p218 = por %p216, %p217
      %p219 = scmp.ne.s32.totalorder %s208, %s209
      %p220 = scmp.eq.s32.totalorder %s32, 0
      %p221 = por %p219, %p220
      %p222 = scmp.ne.s32.totalorder %s208, %s209
      %p223 = scmp.eq.s32.totalorder %s33, 3
      %p224 = por %p222, %p223
      %p226 = scmp.ne.s32.totalorder %s209, %s225
      %p227 = scmp.eq.s32.totalorder %s33, 0
      %p228 = por %p226, %p227
      %s229 = ssub.s32 %s35, %s42
      %p230 = scmp.eq.s32.totalorder %s229, 0
      %s232 = sadd.s32 %s231, 1
      %s233 = scalar_select %p230, %s231, %s232
      %p236 = pneg %p230
      %p237 = scmp.eq.s32.totalorder %s27, 3
      %p238 = por %p236, %p237
      %p239 = scmp.ne.s32.totalorder %s231, %s234
      %p240 = scmp.eq.s32.totalorder %s27, 0
      %p241 = por %p239, %p240
      %p242 = scmp.ne.s32.totalorder %s231, %s234
      %p243 = scmp.eq.s32.totalorder %s32, 3
      %p244 = por %p242, %p243
      %p245 = scmp.ne.s32.totalorder %s234, %s235
      %p246 = scmp.eq.s32.totalorder %s32, 0
      %p247 = por %p245, %p246
      %p248 = scmp.ne.s32.totalorder %s234, %s235
      %p249 = scmp.eq.s32.totalorder %s33, 3
      %p250 = por %p248, %p249
      %p252 = scmp.ne.s32.totalorder %s235, %s251
      %p253 = scmp.eq.s32.totalorder %s33, 0
      %p254 = por %p252, %p253
      %s255 = ssub.s32 %s35, %s42
      %p256 = scmp.eq.s32.totalorder %s255, 0
      %s258 = sadd.s32 %s257, 1
      %s259 = scalar_select %p256, %s257, %s258
      %p262 = pneg %p256
      %p263 = scmp.eq.s32.totalorder %s27, 3
      %p264 = por %p262, %p263
      %p265 = scmp.ne.s32.totalorder %s257, %s260
      %p266 = scmp.eq.s32.totalorder %s27, 0
      %p267 = por %p265, %p266
      %p268 = scmp.ne.s32.totalorder %s257, %s260
      %p269 = scmp.eq.s32.totalorder %s32, 3
      %p270 = por %p268, %p269
      %p271 = scmp.ne.s32.totalorder %s260, %s261
      %p272 = scmp.eq.s32.totalorder %s32, 0
      %p273 = por %p271, %p272
      %p274 = scmp.ne.s32.totalorder %s260, %s261
      %p275 = scmp.eq.s32.totalorder %s33, 3
      %p276 = por %p274, %p275
      %p278 = scmp.ne.s32.totalorder %s261, %s277
      %p279 = scmp.eq.s32.totalorder %s33, 0
      %p280 = por %p278, %p279
      %s281 = ssub.s32 %s35, %s42
      %p282 = scmp.eq.s32.totalorder %s281, 0
      %s284 = sadd.s32 %s283, 1
      %s285 = scalar_select %p282, %s283, %s284
      %p288 = pneg %p282
      %p289 = scmp.eq.s32.totalorder %s27, 3
      %p290 = por %p288, %p289
      %p291 = scmp.ne.s32.totalorder %s283, %s286
      %p292 = scmp.eq.s32.totalorder %s27, 0
      %p293 = por %p291, %p292
      %p294 = scmp.ne.s32.totalorder %s283, %s286
      %p295 = scmp.eq.s32.totalorder %s32, 3
      %p296 = por %p294, %p295
      %p297 = scmp.ne.s32.totalorder %s286, %s287
      %p298 = scmp.eq.s32.totalorder %s32, 0
      %p299 = por %p297, %p298
      %p300 = scmp.ne.s32.totalorder %s286, %s287
      %p301 = scmp.eq.s32.totalorder %s33, 3
      %p302 = por %p300, %p301
      %p304 = scmp.ne.s32.totalorder %s287, %s303
      %p305 = scmp.eq.s32.totalorder %s33, 0
      %p306 = por %p304, %p305
      %s307 = ssub.s32 %s35, %s42
      %p308 = scmp.eq.s32.totalorder %s307, 0
      %s310 = sadd.s32 %s309, 1
      %s311 = scalar_select %p308, %s309, %s310
      %p314 = pneg %p308
      %p315 = scmp.eq.s32.totalorder %s27, 3
      %p316 = por %p314, %p315
      %p317 = scmp.ne.s32.totalorder %s309, %s312
      %p318 = scmp.eq.s32.totalorder %s27, 0
      %p319 = por %p317, %p318
      %p320 = scmp.ne.s32.totalorder %s309, %s312
      %p321 = scmp.eq.s32.totalorder %s32, 3
      %p322 = por %p320, %p321
      %p323 = scmp.ne.s32.totalorder %s312, %s313
      %p324 = scmp.eq.s32.totalorder %s32, 0
      %p325 = por %p323, %p324
      %p326 = scmp.ne.s32.totalorder %s312, %s313
      %p327 = scmp.eq.s32.totalorder %s33, 3
      %p328 = por %p326, %p327
      %p330 = scmp.ne.s32.totalorder %s313, %s329
      %p331 = scmp.eq.s32.totalorder %s33, 0
      %p332 = por %p330, %p331
      %s333 = ssub.s32 %s35, %s42
      %p334 = scmp.eq.s32.totalorder %s333, 0
      %s336 = sadd.s32 %s335, 1
      %s337 = scalar_select %p334, %s335, %s336
      %p340 = pneg %p334
      %p341 = scmp.eq.s32.totalorder %s27, 3
      %p342 = por %p340, %p341
      %p343 = scmp.ne.s32.totalorder %s335, %s338
      %p344 = scmp.eq.s32.totalorder %s27, 0
      %p345 = por %p343, %p344
      %p346 = scmp.ne.s32.totalorder %s335, %s338
      %p347 = scmp.eq.s32.totalorder %s32, 3
      %p348 = por %p346, %p347
      %p349 = scmp.ne.s32.totalorder %s338, %s339
      %p350 = scmp.eq.s32.totalorder %s32, 0
      %p351 = por %p349, %p350
      %p352 = scmp.ne.s32.totalorder %s338, %s339
      %p353 = scmp.eq.s32.totalorder %s33, 3
      %p354 = por %p352, %p353
      %p356 = scmp.ne.s32.totalorder %s339, %s355
      %p357 = scmp.eq.s32.totalorder %s33, 0
      %p358 = por %p356, %p357
      %s359 = ssub.s32 %s35, %s42
      %p360 = scmp.eq.s32.totalorder %s359, 0
      %s362 = sadd.s32 %s361, 1
      %s363 = scalar_select %p360, %s361, %s362
      %p366 = pneg %p360
      %p367 = scmp.eq.s32.totalorder %s27, 3
      %p368 = por %p366, %p367
      %p369 = scmp.ne.s32.totalorder %s361, %s364
      %p370 = scmp.eq.s32.totalorder %s27, 0
      %p371 = por %p369, %p370
      %p372 = scmp.ne.s32.totalorder %s361, %s364
      %p373 = scmp.eq.s32.totalorder %s32, 3
      %p374 = por %p372, %p373
      %p375 = scmp.ne.s32.totalorder %s364, %s365
      %p376 = scmp.eq.s32.totalorder %s32, 0
      %p377 = por %p375, %p376
      %p378 = scmp.ne.s32.totalorder %s364, %s365
      %p379 = scmp.eq.s32.totalorder %s33, 3
      %p380 = por %p378, %p379
      %p382 = scmp.ne.s32.totalorder %s365, %s381
      %p383 = scmp.eq.s32.totalorder %s33, 0
      %p384 = por %p382, %p383
      %s386 = sadd.s32 %s385, 1
      %p389 = scmp.eq.s32.totalorder %s27, 3
      %p390 = scmp.ne.s32.totalorder %s385, %s387
      %p391 = scmp.eq.s32.totalorder %s27, 0
      %p392 = por %p390, %p391
      %p393 = scmp.ne.s32.totalorder %s385, %s387
      %p394 = scmp.eq.s32.totalorder %s32, 3
      %p395 = por %p393, %p394
      %p396 = scmp.ne.s32.totalorder %s387, %s388
      %p397 = scmp.eq.s32.totalorder %s32, 0
      %p398 = por %p396, %p397
      %p399 = scmp.ne.s32.totalorder %s387, %s388
      %p400 = scmp.eq.s32.totalorder %s33, 3
      %p401 = por %p399, %p400
      %p403 = scmp.ne.s32.totalorder %s388, %s402
      %p404 = scmp.eq.s32.totalorder %s33, 0
      %p405 = por %p403, %p404
      %s407 = sadd.s32 %s406, 1
      %p410 = scmp.eq.s32.totalorder %s27, 3
      %p411 = scmp.ne.s32.totalorder %s406, %s408
      %p412 = scmp.eq.s32.totalorder %s27, 0
      %p413 = por %p411, %p412
      %p414 = scmp.ne.s32.totalorder %s406, %s408
      %p415 = scmp.eq.s32.totalorder %s32, 3
      %p416 = por %p414, %p415
      %p417 = scmp.ne.s32.totalorder %s408, %s409
      %p418 = scmp.eq.s32.totalorder %s32, 0
      %p419 = por %p417, %p418
      %p420 = scmp.ne.s32.totalorder %s408, %s409
      %p421 = scmp.eq.s32.totalorder %s33, 3
      %p422 = por %p420, %p421
      %p424 = scmp.ne.s32.totalorder %s409, %s423
      %p425 = scmp.eq.s32.totalorder %s33, 0
      %p426 = por %p424, %p425
      %s427 = ssub.s32 %s34, %s46
      %p428 = scmp.eq.s32.totalorder %s427, 0
      %s430 = sadd.s32 %s429, 1
      %s431 = scalar_select %p428, %s429, %s430
      %p434 = pneg %p428
      %p435 = scmp.eq.s32.totalorder %s27, 3
      %p436 = por %p434, %p435
      %p437 = scmp.ne.s32.totalorder %s429, %s432
      %p438 = scmp.eq.s32.totalorder %s27, 0
      %p439 = por %p437, %p438
      %p440 = scmp.ne.s32.totalorder %s429, %s432
      %p441 = scmp.eq.s32.totalorder %s32, 3
      %p442 = por %p440, %p441
      %p443 = scmp.ne.s32.totalorder %s432, %s433
      %p444 = scmp.eq.s32.totalorder %s32, 0
      %p445 = por %p443, %p444
      %p446 = scmp.ne.s32.totalorder %s432, %s433
      %p447 = scmp.eq.s32.totalorder %s33, 3
      %p448 = por %p446, %p447
      %p450 = scmp.ne.s32.totalorder %s433, %s449
      %p451 = scmp.eq.s32.totalorder %s33, 0
      %p452 = por %p450, %p451
      %p453 = scmp.le.s32.totalorder 1, %s27
      %p454 = scmp.lt.s32.totalorder %s27, 5
      %p455 = pnand %p453, %p454
      %p456 = pneg %p455
      // Predicated region
      $region9: #{seq2seq_forward.2} parent=5 // pred_check
        _
      $region10: #{seq2seq_forward.2} parent=5 // pred_check_branch
        %458 = sbr.rel (%p455) target = $region12
      $region11: #{seq2seq_forward.2} parent=5 // pred_region
        %s459 = ssub.s32 %s27, 1
        // Predicated region
        $region13: #{seq2seq_forward.2} parent=11 // pred_check
          %p460 = pneg %p398
        $region14: #{seq2seq_forward.2} parent=11 // pred_check_branch
          %462 = sbr.rel (%p460) target = $region16
        $region15: #{seq2seq_forward.2} parent=11 // pred_region
          _
        $region16: #{seq2seq_forward.2} parent=11 // pred_fallthru
          _
        // Predicated region
        $region17: #{seq2seq_forward.2} parent=11 // pred_check
          %p463 = pneg %p419
        $region18: #{seq2seq_forward.2} parent=11 // pred_check_branch
          %465 = sbr.rel (%p463) target = $region20
        $region19: #{seq2seq_forward.2} parent=11 // pred_region
          _
        $region20: #{seq2seq_forward.2} parent=11 // pred_fallthru
          _
      $region12: #{seq2seq_forward.2} parent=5 // pred_fallthru
        _
      %p466 = scmp.lt.s32.totalorder %s27, 4
      // Predicated region
      $region21: #{seq2seq_forward.2} parent=5 // pred_check
        %p467 = pneg %p466
      $region22: #{seq2seq_forward.2} parent=5 // pred_check_branch
        %469 = sbr.rel (%p467) target = $region24
      $region23: #{seq2seq_forward.2} parent=5 // pred_region
        // Predicated region
        $region25: #{seq2seq_forward.2} parent=23 // pred_check
          %p470 = pneg %p59
        $region26: #{seq2seq_forward.2} parent=23 // pred_check_branch
          %472 = sbr.rel (%p470) target = $region28
        $region27: #{seq2seq_forward.2} parent=23 // pred_region
          %p473 = scmp.lt.s32.totalorder %s34, 1
          %s474 = scalar_select %p473, %s34, 1
          %s475 = smul.addr %s474, 8
          %s476 = scalar_lea.vmem %s0, %s475
        $region28: #{seq2seq_forward.2} parent=23 // pred_fallthru
          _
        // Predicated region
        $region29: #{seq2seq_forward.2} parent=23 // pred_check
          %p477 = pneg %p85
        $region30: #{seq2seq_forward.2} parent=23 // pred_check_branch
          %479 = sbr.rel (%p477) target = $region32
        $region31: #{seq2seq_forward.2} parent=23 // pred_region
          %p480 = scmp.lt.s32.totalorder %s35, 1
          %s481 = scalar_select %p480, %s35, 1
          %s482 = scalar_lea.vmem %s1, %s481
        $region32: #{seq2seq_forward.2} parent=23 // pred_fallthru
          _
        // Predicated region
        $region33: #{seq2seq_forward.2} parent=23 // pred_check
          %p483 = pneg %p111
        $region34: #{seq2seq_forward.2} parent=23 // pred_check_branch
          %485 = sbr.rel (%p483) target = $region36
        $region35: #{seq2seq_forward.2} parent=23 // pred_region
          %p486 = scmp.lt.s32.totalorder %s35, 1
          %s487 = scalar_select %p486, %s35, 1
          %s488 = scalar_lea.vmem %s2, %s487
        $region36: #{seq2seq_forward.2} parent=23 // pred_fallthru
          _
        // Predicated region
        $region37: #{seq2seq_forward.2} parent=23 // pred_check
          %p489 = pneg %p137
        $region38: #{seq2seq_forward.2} parent=23 // pred_check_branch
          %491 = sbr.rel (%p489) target = $region40
        $region39: #{seq2seq_forward.2} parent=23 // pred_region
          %s492 = sand.u32 %s127, 1
          %s493 = scalar_lea.sflag [#allocation4], %s492
          %s494 = sand.u32 %s127, 1
          %s495 = smul.addr %s494, 192
          %s496 = scalar_lea.vmem [#allocation3], %s495
          %498 = vsyncadd %s493, 0
          %s499 = smul.addr %s35, 48
          %s500 = smul.addr %s499, 4
          %s501 = scalar_lea.hbm %s3, %s500
          %s502 = sshll.u32 %s501, 4
          %s503 = int_to_ptr.hbm [resolvable:$true] %s502
          %s504 = sshll.u32 %s496, 4
          %s505 = int_to_ptr.vmem [resolvable:$true] %s504
          %510 = dma.hbm_to_vmem [thread:$0]  %s503, 3072, %s505, %s493, 64, 64, 4
        $region40: #{seq2seq_forward.2} parent=23 // pred_fallthru
          _
        // Predicated region
        $region41: #{seq2seq_forward.2} parent=23 // pred_check
          %p511 = pneg %p163
        $region42: #{seq2seq_forward.2} parent=23 // pred_check_branch
          %513 = sbr.rel (%p511) target = $region44
        $region43: #{seq2seq_forward.2} parent=23 // pred_region
          %p514 = scmp.lt.s32.totalorder %s35, 1
          %s515 = scalar_select %p514, %s35, 1
          %s516 = smul.addr %s515, 12
          %s517 = scalar_lea.vmem %s4, %s516
        $region44: #{seq2seq_forward.2} parent=23 // pred_fallthru
          _
        // Predicated region
        $region45: #{seq2seq_forward.2} parent=23 // pred_check
          %p518 = pneg %p189
        $region46: #{seq2seq_forward.2} parent=23 // pred_check_branch
          %520 = sbr.rel (%p518) target = $region48
        $region47: #{seq2seq_forward.2} parent=23 // pred_region
          %s521 = sand.u32 %s27, 1
          %s522 = scalar_lea.sflag [#allocation6], %s521
          %s523 = sand.u32 %s179, 1
          %s524 = smul.addr %s523, 64
          %s525 = scalar_lea.vmem [#allocation5], %s524
          %527 = vsyncadd %s522, 0
          %s528 = smul.addr %s35, 16
          %s529 = smul.addr %s528, 4
          %s530 = scalar_lea.hbm %s5, %s529
          %s531 = sshll.u32 %s530, 4
          %s532 = int_to_ptr.hbm [resolvable:$true] %s531
          %s533 = sshll.u32 %s525, 4
          %s534 = int_to_ptr.vmem [resolvable:$true] %s533
          %539 = dma.hbm_to_vmem [thread:$0]  %s532, 1024, %s534, %s522, 64, 64, 4
        $region48: #{seq2seq_forward.2} parent=23 // pred_fallthru
          _
        // Predicated region
        $region49: #{seq2seq_forward.2} parent=23 // pred_check
          %p540 = pneg %p215
        $region50: #{seq2seq_forward.2} parent=23 // pred_check_branch
          %542 = sbr.rel (%p540) target = $region52
        $region51: #{seq2seq_forward.2} parent=23 // pred_region
          %p543 = scmp.lt.s32.totalorder %s35, 1
          %s544 = scalar_select %p543, %s35, 1
          %s545 = scalar_lea.vmem %s6, %s544
        $region52: #{seq2seq_forward.2} parent=23 // pred_fallthru
          _
        // Predicated region
        $region53: #{seq2seq_forward.2} parent=23 // pred_check
          %p546 = pneg %p241
        $region54: #{seq2seq_forward.2} parent=23 // pred_check_branch
          %548 = sbr.rel (%p546) target = $region56
        $region55: #{seq2seq_forward.2} parent=23 // pred_region
          %p549 = scmp.lt.s32.totalorder %s35, 1
          %s550 = scalar_select %p549, %s35, 1
          %s551 = scalar_lea.vmem %s7, %s550
        $region56: #{seq2seq_forward.2} parent=23 // pred_fallthru
          _
        // Predicated region
        $region57: #{seq2seq_forward.2} parent=23 // pred_check
          %p552 = pneg %p267
        $region58: #{seq2seq_forward.2} parent=23 // pred_check_branch
          %554 = sbr.rel (%p552) target = $region60
        $region59: #{seq2seq_forward.2} parent=23 // pred_region
          %p555 = scmp.lt.s32.totalorder %s35, 1
          %s556 = scalar_select %p555, %s35, 1
          %s557 = scalar_lea.vmem %s8, %s556
        $region60: #{seq2seq_forward.2} parent=23 // pred_fallthru
          _
        // Predicated region
        $region61: #{seq2seq_forward.2} parent=23 // pred_check
          %p558 = pneg %p293
        $region62: #{seq2seq_forward.2} parent=23 // pred_check_branch
          %560 = sbr.rel (%p558) target = $region64
        $region63: #{seq2seq_forward.2} parent=23 // pred_region
          %p561 = scmp.lt.s32.totalorder %s35, 1
          %s562 = scalar_select %p561, %s35, 1
          %s563 = smul.addr %s562, 32
          %s564 = smul.addr %s563, 4
          %s565 = scalar_lea.vmem %s9, %s564
        $region64: #{seq2seq_forward.2} parent=23 // pred_fallthru
          _
        // Predicated region
        $region65: #{seq2seq_forward.2} parent=23 // pred_check
          %p566 = pneg %p319
        $region66: #{seq2seq_forward.2} parent=23 // pred_check_branch
          %568 = sbr.rel (%p566) target = $region68
        $region67: #{seq2seq_forward.2} parent=23 // pred_region
          %p569 = scmp.lt.s32.totalorder %s35, 1
          %s570 = scalar_select %p569, %s35, 1
          %s571 = smul.addr %s570, 2
          %s572 = scalar_lea.vmem %s10, %s571
        $region68: #{seq2seq_forward.2} parent=23 // pred_fallthru
          _
        // Predicated region
        $region69: #{seq2seq_forward.2} parent=23 // pred_check
          %p573 = pneg %p345
        $region70: #{seq2seq_forward.2} parent=23 // pred_check_branch
          %575 = sbr.rel (%p573) target = $region72
        $region71: #{seq2seq_forward.2} parent=23 // pred_region
          %s576 = sand.u32 %s27, 1
          %s577 = scalar_lea.sflag [#allocation6], %s576
          %s578 = sand.u32 %s335, 1
          %s579 = smul.addr %s578, 128
          %s580 = scalar_lea.vmem [#allocation7], %s579
          %582 = vsyncadd %s577, 0
          %s583 = smul.addr %s35, 32
          %s584 = smul.addr %s583, 4
          %s585 = scalar_lea.hbm %s11, %s584
          %s586 = sshll.u32 %s585, 4
          %s587 = int_to_ptr.hbm [resolvable:$true] %s586
          %s588 = sshll.u32 %s580, 4
          %s589 = int_to_ptr.vmem [resolvable:$true] %s588
          %594 = dma.hbm_to_vmem [thread:$0]  %s587, 2048, %s589, %s577, 64, 64, 4
        $region72: #{seq2seq_forward.2} parent=23 // pred_fallthru
          _
        // Predicated region
        $region73: #{seq2seq_forward.2} parent=23 // pred_check
          %p595 = pneg %p371
        $region74: #{seq2seq_forward.2} parent=23 // pred_check_branch
          %597 = sbr.rel (%p595) target = $region76
        $region75: #{seq2seq_forward.2} parent=23 // pred_region
          %p598 = scmp.lt.s32.totalorder %s35, 1
          %s599 = scalar_select %p598, %s35, 1
          %s600 = scalar_lea.vmem %s12, %s599
        $region76: #{seq2seq_forward.2} parent=23 // pred_fallthru
          _
      $region24: #{seq2seq_forward.2} parent=5 // pred_fallthru
        _
      %p601 = scmp.le.s32.totalorder 1, %s27
      %p602 = scmp.lt.s32.totalorder %s27, 5
      %p603 = pnand %p601, %p602
      %p604 = pneg %p603
      // Predicated region
      $region77: #{seq2seq_forward.2} parent=5 // pred_check
        _
      $region78: #{seq2seq_forward.2} parent=5 // pred_check_branch
        %606 = sbr.rel (%p603) target = $region80
      $region79: #{seq2seq_forward.2} parent=5 // pred_region
        %s607 = ssub.s32 %s27, 1
        %s608 = sand.u32 %s130, 1
        %s609 = scalar_lea.sflag [#allocation4], %s608
        %s610 = sand.u32 %s130, 1
        %s611 = smul.addr %s610, 192
        %s612 = scalar_lea.vmem [#allocation3], %s611
        // Predicated region
        $region81: #{seq2seq_forward.2} parent=79 // pred_check
          %p613 = pneg %p143
        $region82: #{seq2seq_forward.2} parent=79 // pred_check_branch
          %615 = sbr.rel (%p613) target = $region84
        $region83: #{seq2seq_forward.2} parent=79 // pred_region
          %617 = dma.done %s609, 3072
        $region84: #{seq2seq_forward.2} parent=79 // pred_fallthru
          _
        %s618 = sand.u32 %s32, 1
        %s619 = scalar_lea.sflag [#allocation6], %s618
        %s620 = sand.u32 %s182, 1
        %s621 = smul.addr %s620, 64
        %s622 = scalar_lea.vmem [#allocation5], %s621
        // Predicated region
        $region85: #{seq2seq_forward.2} parent=79 // pred_check
          %p623 = pneg %p195
        $region86: #{seq2seq_forward.2} parent=79 // pred_check_branch
          %625 = sbr.rel (%p623) target = $region88
        $region87: #{seq2seq_forward.2} parent=79 // pred_region
          %627 = dma.done %s619, 1024
        $region88: #{seq2seq_forward.2} parent=79 // pred_fallthru
          _
        %s628 = sand.u32 %s32, 1
        %s629 = scalar_lea.sflag [#allocation6], %s628
        %s630 = sand.u32 %s338, 1
        %s631 = smul.addr %s630, 128
        %s632 = scalar_lea.vmem [#allocation7], %s631
        // Predicated region
        $region89: #{seq2seq_forward.2} parent=79 // pred_check
          %p633 = pneg %p351
        $region90: #{seq2seq_forward.2} parent=79 // pred_check_branch
          %635 = sbr.rel (%p633) target = $region92
        $region91: #{seq2seq_forward.2} parent=79 // pred_region
          %637 = dma.done %s629, 2048
        $region92: #{seq2seq_forward.2} parent=79 // pred_fallthru
          _
        %p638 = scmp.lt.s32.totalorder %s36, 1
        %s639 = scalar_select %p638, %s36, 1
        %s640 = smul.addr %s639, 8
        %s641 = scalar_lea.vmem %s0, %s640
        %p642 = pneg %p65
        %p643 = pneg %p62
        %p644 = scmp.lt.s32.totalorder %s37, 1
        %s645 = scalar_select %p644, %s37, 1
        %s646 = scalar_lea.vmem %s1, %s645
        %p647 = pneg %p91
        %p648 = pneg %p88
        %p649 = scmp.lt.s32.totalorder %s37, 1
        %s650 = scalar_select %p649, %s37, 1
        %s651 = scalar_lea.vmem %s2, %s650
        %p652 = pneg %p117
        %p653 = pneg %p114
        %s654 = sand.u32 %s130, 1
        %s655 = scalar_lea.sflag [#allocation4], %s654
        %s656 = sand.u32 %s130, 1
        %s657 = smul.addr %s656, 192
        %s658 = scalar_lea.vmem [#allocation3], %s657
        %p659 = pneg %p143
        %p660 = pneg %p140
        %p661 = scmp.lt.s32.totalorder %s37, 1
        %s662 = scalar_select %p661, %s37, 1
        %s663 = smul.addr %s662, 12
        %s664 = scalar_lea.vmem %s4, %s663
        %p665 = pneg %p169
        %p666 = pneg %p166
        %s667 = sand.u32 %s32, 1
        %s668 = scalar_lea.sflag [#allocation6], %s667
        %s669 = sand.u32 %s182, 1
        %s670 = smul.addr %s669, 64
        %s671 = scalar_lea.vmem [#allocation5], %s670
        %p672 = pneg %p195
        %p673 = pneg %p192
        %p674 = scmp.lt.s32.totalorder %s37, 1
        %s675 = scalar_select %p674, %s37, 1
        %s676 = scalar_lea.vmem %s6, %s675
        %p677 = pneg %p221
        %p678 = pneg %p218
        %p679 = scmp.lt.s32.totalorder %s37, 1
        %s680 = scalar_select %p679, %s37, 1
        %s681 = scalar_lea.vmem %s7, %s680
        %p682 = pneg %p247
        %p683 = pneg %p244
        %p684 = scmp.lt.s32.totalorder %s37, 1
        %s685 = scalar_select %p684, %s37, 1
        %s686 = scalar_lea.vmem %s8, %s685
        %p687 = pneg %p273
        %p688 = pneg %p270
        %p689 = scmp.lt.s32.totalorder %s37, 1
        %s690 = scalar_select %p689, %s37, 1
        %s691 = smul.addr %s690, 32
        %s692 = smul.addr %s691, 4
        %s693 = scalar_lea.vmem %s9, %s692
        %p694 = pneg %p299
        %p695 = pneg %p296
        %p696 = scmp.lt.s32.totalorder %s37, 1
        %s697 = scalar_select %p696, %s37, 1
        %s698 = smul.addr %s697, 2
        %s699 = scalar_lea.vmem %s10, %s698
        %p700 = pneg %p325
        %p701 = pneg %p322
        %s702 = sand.u32 %s32, 1
        %s703 = scalar_lea.sflag [#allocation6], %s702
        %s704 = sand.u32 %s338, 1
        %s705 = smul.addr %s704, 128
        %s706 = scalar_lea.vmem [#allocation7], %s705
        %p707 = pneg %p351
        %p708 = pneg %p348
        %p709 = scmp.lt.s32.totalorder %s37, 1
        %s710 = scalar_select %p709, %s37, 1
        %s711 = scalar_lea.vmem %s12, %s710
        %p712 = pneg %p377
        %p713 = pneg %p374
        %p714 = pneg %p398
        %p715 = pneg %p395
        %p716 = pneg %p419
        %p717 = pneg %p416
        %p718 = pneg %p445
        %p719 = pneg %p442
        %p720 = scmp.lt.s32.totalorder %s36, 1
        %s721 = scalar_select %p720, %s36, 1
        %s722 = smul.addr %s721, 8
        %s723 = scalar_lea.vmem %s15, %s722
        %p724 = scmp.lt.s32.totalorder %s36, 1
        %s725 = scalar_select %p724, %s36, 1
        %s726 = smul.addr %s725, 8
        %s727 = scalar_lea.vmem %s0, %s726
        %p728 = scmp.lt.s32.totalorder %s37, 1
        %s729 = scalar_select %p728, %s37, 1
        %s730 = scalar_lea.vmem %s1, %s729
        %p731 = scmp.lt.s32.totalorder %s37, 1
        %s732 = scalar_select %p731, %s37, 1
        %s733 = scalar_lea.vmem %s2, %s732
        %p734 = scmp.lt.s32.totalorder %s37, 1
        %s735 = scalar_select %p734, %s37, 1
        %s736 = smul.addr %s735, 12
        %s737 = scalar_lea.vmem %s4, %s736
        %p738 = scmp.lt.s32.totalorder %s37, 1
        %s739 = scalar_select %p738, %s37, 1
        %s740 = scalar_lea.vmem %s6, %s739
        %p741 = scmp.lt.s32.totalorder %s37, 1
        %s742 = scalar_select %p741, %s37, 1
        %s743 = scalar_lea.vmem %s7, %s742
        %p744 = scmp.lt.s32.totalorder %s37, 1
        %s745 = scalar_select %p744, %s37, 1
        %s746 = scalar_lea.vmem %s8, %s745
        %p747 = scmp.lt.s32.totalorder %s37, 1
        %s748 = scalar_select %p747, %s37, 1
        %s749 = smul.addr %s748, 32
        %s750 = smul.addr %s749, 4
        %s751 = scalar_lea.vmem %s9, %s750
        %p752 = scmp.lt.s32.totalorder %s37, 1
        %s753 = scalar_select %p752, %s37, 1
        %s754 = smul.addr %s753, 2
        %s755 = scalar_lea.vmem %s10, %s754
        %p756 = scmp.lt.s32.totalorder %s37, 1
        %s757 = scalar_select %p756, %s37, 1
        %s758 = scalar_lea.vmem %s12, %s757
        %p759 = scmp.lt.s32.totalorder %s36, 1
        %s760 = scalar_select %p759, %s36, 1
        %s761 = smul.addr %s760, 8
        %s762 = scalar_lea.vmem %s15, %s761
        %p764 = scmp.eq.s32.totalorder %s37, 0
        // Predicated region
        $region93: #{seq2seq_forward.2} parent=79 // pred_check
          %p765 = pneg %p764
        $region94: #{seq2seq_forward.2} parent=79 // pred_check_branch
          %767 = sbr.rel (%p765) target = $region96
        $region95: #{seq2seq_forward.2} parent=79 // pred_region
          %v768 = vld [vmem:[%s727] sm:$0xff]
          %769 = vst [vmem:[#allocation2] sm:$0xff] %v768
        $region96: #{seq2seq_forward.2} parent=79 // pred_fallthru
          _
        %v770 = vld [vmem:[#allocation2] sm:$0xff]
        %v771 = vld [vmem:[%s730] sm:$0x1]
        %v772 = vld [vmem:[%s733] sm:$0x1]
        %773 = vadd.xlane.f32.xlu0 %v770
        %v774 = vpop.xlane.xlu0 %773
        %v775 = vrcp.pop 128.0
        %v776 = vmul.f32 128.0, %v775
        %v777 = vsub.f32 1.0, %v776
        %v778 = vmul.f32 %v775, %v777
        %v779 = vadd.f32 %v775, %v778
        %vm780 = vweird.f32 %v775
        %v781 = vsel %vm780, %v775, %v779
        %v782 = vmul.f32 %v774, %v781
        %v783 = vsub.f32 %v770, %v782
        %v784 = vmul.f32 %v783, %v783
        %785 = vadd.xlane.f32.xlu0 %v784
        %v786 = vpop.xlane.xlu0 %785
        %v787 = vmul.f32 %v786, %v781
        %v788 = vadd.f32 %v787, 1e-05
        %v789 = vrsqrt.pop %v788
        %v790 = vmul.f32 %v789, %v788
        %v791 = vmul.f32 %v790, %v789
        %v792 = vmul.f32 0.5, %v791
        %v793 = vsub.f32 1.5, %v792
        %v794 = vmul.f32 %v789, %v793
        %vm795 = vweird.f32 %v788
        %vm796 = vweird.f32 %v789
        %vm797 = vmor %vm795, %vm796
        %v798 = vsel %vm797, %v789, %v794
        %v799 = vmul.f32 %v783, %v798
        %v801 = vperm.slane %v771, 0
        %v803 = vmul.f32 %v799, %v801
        %v805 = vperm.slane %v772, 0
        %v807 = vadd.f32 %v803, %v805
        %v808 = vld [vmem:[%s612] sm:$0xf]
        %v809 = vld [vmem:[%s612 + $0x4] sm:$0xf]
        %v810 = vld [vmem:[%s612 + $0x8] sm:$0xf]
        %v811 = vld [vmem:[%s612 + $0xc] sm:$0xf]
        %v812 = vld [vmem:[%s737] sm:$0x1]
        %v813 = vpack.c.bf16 %v807, %v807
        %v815 = vperm.slane %v812, 0
        %v821 = vunpack.c.l.b16 %v808
        %v822 = vunpack.c.l.b16 %v809
        %v823 = vunpack.c.l.b16 %v810
        %v824 = vunpack.c.l.b16 %v811
        %v825 = vpack.c.b16 %v822, %v821
        %v826 = vpack.c.b16 %v824, %v823
        %829 = vmatpush.bf16.xpose.msra.mxu0 0
        %830 = vmatpush.bf16.xpose.msra.mxu0 0
        %831 = vmatpush.bf16.xpose.msra.mxu0 0
        %832 = vmatpush.bf16.xpose.msra.mxu0 0
        %833 = vmatpush.bf16.xpose.msra.mxu0 0
        %834 = vmatpush.bf16.xpose.msra.mxu0 0
        %835 = vmatpush.bf16.xpose.msra.mxu0 %v826
        %836 = vmatpush.bf16.xpose.msra.mxu0 %v825
        %837 = vmatmul.bf16.gmra.mxu0 %v813
        %v838 = vpop.f32.mrf.mxu0
        %v839 = vadd.f32 %v815, %v838
        %v840 = vpop.f32.mrf.mxu0
        %841 = vdwg.mxu0
        %s842 = scalar_lea.vmem %s612, 64 [#allocation3]
        %v843 = vld [vmem:[%s842] sm:$0xf]
        %v844 = vld [vmem:[%s842 + $0x4] sm:$0xf]
        %v845 = vld [vmem:[%s842 + $0x8] sm:$0xf]
        %v846 = vld [vmem:[%s842 + $0xc] sm:$0xf]
        %s847 = scalar_lea.vmem %s737, 4
        %v848 = vld [vmem:[%s847] sm:$0x1]
        %v850 = vperm.slane %v848, 0
        %v856 = vunpack.c.l.b16 %v843
        %v857 = vunpack.c.l.b16 %v844
        %v858 = vunpack.c.l.b16 %v845
        %v859 = vunpack.c.l.b16 %v846
        %v860 = vpack.c.b16 %v857, %v856
        %v861 = vpack.c.b16 %v859, %v858
        %864 = vmatpush.bf16.xpose.msra.mxu0 0
        %865 = vmatpush.bf16.xpose.msra.mxu0 0
        %866 = vmatpush.bf16.xpose.msra.mxu0 0
        %867 = vmatpush.bf16.xpose.msra.mxu0 0
        %868 = vmatpush.bf16.xpose.msra.mxu0 0
        %869 = vmatpush.bf16.xpose.msra.mxu0 0
        %870 = vmatpush.bf16.xpose.msra.mxu0 %v861
        %871 = vmatpush.bf16.xpose.msra.mxu0 %v860
        %872 = vmatmul.bf16.gmra.mxu0 %v813
        %v873 = vpop.f32.mrf.mxu0
        %v874 = vadd.f32 %v850, %v873
        %v875 = vpop.f32.mrf.mxu0
        %876 = vdwg.mxu0
        %s877 = scalar_lea.vmem %s612, 128 [#allocation3]
        %v878 = vld [vmem:[%s877] sm:$0xf]
        %v879 = vld [vmem:[%s877 + $0x4] sm:$0xf]
        %v880 = vld [vmem:[%s877 + $0x8] sm:$0xf]
        %v881 = vld [vmem:[%s877 + $0xc] sm:$0xf]
        %s882 = scalar_lea.vmem %s737, 8
        %v883 = vld [vmem:[%s882] sm:$0x1]
        %v885 = vperm.slane %v883, 0
        %v891 = vunpack.c.l.b16 %v878
        %v892 = vunpack.c.l.b16 %v879
        %v893 = vunpack.c.l.b16 %v880
        %v894 = vunpack.c.l.b16 %v881
        %v895 = vpack.c.b16 %v892, %v891
        %v896 = vpack.c.b16 %v894, %v893
        %899 = vmatpush.bf16.xpose.msra.mxu0 0
        %900 = vmatpush.bf16.xpose.msra.mxu0 0
        %901 = vmatpush.bf16.xpose.msra.mxu0 0
        %902 = vmatpush.bf16.xpose.msra.mxu0 0
        %903 = vmatpush.bf16.xpose.msra.mxu0 0
        %904 = vmatpush.bf16.xpose.msra.mxu0 0
        %905 = vmatpush.bf16.xpose.msra.mxu0 %v896
        %906 = vmatpush.bf16.xpose.msra.mxu0 %v895
        %907 = vmatmul.bf16.gmra.mxu0 %v813
        %v908 = vpop.f32.mrf.mxu0
        %v909 = vadd.f32 %v885, %v908
        %v910 = vpop.f32.mrf.mxu0
        %911 = vdwg.mxu0
        %v912 = vpack.c.bf16 %v839, %v839
        %v913 = vpack.c.bf16 %v874, %v874
        %vm914 = vcmask 261120
        %v916 = vsel %vm914, %v912, 0
        %v919 = vsel %vm914, %v913, 0
        %921 = vmatpush.bf16.xpose.msra.mxu0 0
        %922 = vmatpush.bf16.xpose.msra.mxu0 0
        %923 = vmatpush.bf16.xpose.msra.mxu0 0
        %924 = vmatpush.bf16.xpose.msra.mxu0 0
        %925 = vmatpush.bf16.xpose.msra.mxu0 0
        %926 = vmatpush.bf16.xpose.msra.mxu0 0
        %927 = vmatpush.bf16.xpose.msra.mxu0 0
        %928 = vmatpush.bf16.xpose.msra.mxu0 %v919
        %929 = vmatmul.bf16.gmra.mxu0 %v916
        %v930 = vpop.f32.mrf.mxu0
        %v931 = vadd.f32 0.0, %v930
        %v932 = vpop.f32.mrf.mxu0
        %933 = vdwg.mxu0
        %v934 = vmul.f32 %v931, 0.17677669
        %vm935 = vcmask 64512
        %v936 = vsel %vm935, %v934, -inf
        %937 = vmax.xlane.f32.xlu0 %v936
        %v938 = vpop.xlane.xlu0 %937
        %v939 = vsub.f32 %v934, %v938
        %v940 = vmul.f32 %v939, 1.442695
        %v941 = vpow.pop %v940
        %v942 = vsel %vm935, %v941, 0.0
        %943 = vadd.xlane.f32.xlu0 %v942
        %v944 = vpop.xlane.xlu0 %943
        %v945 = vrcp.pop %v944
        %v946 = vmul.f32 %v941, %v945
        %v947 = vpack.c.bf16 %v946, %v946
        %v948 = vpack.c.bf16 %v909, %v909
        %v950 = vsel %vm935, %v947, 0
        %vm952 = vcmask 1043456
        %v954 = vsel %vm952, %v948, 0
        %956 = vmatpush.bf16.msra.mxu0 0
        %957 = vmatpush.bf16.msra.mxu0 0
        %958 = vmatpush.bf16.msra.mxu0 0
        %959 = vmatpush.bf16.msra.mxu0 0
        %960 = vmatpush.bf16.msra.mxu0 0
        %961 = vmatpush.bf16.msra.mxu0 0
        %962 = vmatpush.bf16.msra.mxu0 0
        %963 = vmatpush.bf16.msra.mxu0 %v954
        %964 = vmatmul.bf16.gmra.mxu0 %v950
        %v965 = vpop.f32.mrf.mxu0
        %v966 = vadd.f32 0.0, %v965
        %v967 = vpop.f32.mrf.mxu0
        %968 = vdwg.mxu0
        %v969 = vld [vmem:[%s622] sm:$0xf]
        %v970 = vld [vmem:[%s622 + $0x4] sm:$0xf]
        %v971 = vld [vmem:[%s622 + $0x8] sm:$0xf]
        %v972 = vld [vmem:[%s622 + $0xc] sm:$0xf]
        %v973 = vpack.c.bf16 %v966, %v966
        %s974 = scalar_lea.vmem %s612, 16 [#allocation3]
        %v975 = vld [vmem:[%s974] sm:$0xf]
        %v976 = vld [vmem:[%s974 + $0x4] sm:$0xf]
        %v977 = vld [vmem:[%s974 + $0x8] sm:$0xf]
        %v978 = vld [vmem:[%s974 + $0xc] sm:$0xf]
        %s979 = scalar_lea.vmem %s737, 1
        %v980 = vld [vmem:[%s979] sm:$0x1]
        %v982 = vperm.slane %v980, 0
        %v988 = vunpack.c.l.b16 %v975
        %v989 = vunpack.c.l.b16 %v976
        %v990 = vunpack.c.l.b16 %v977
        %v991 = vunpack.c.l.b16 %v978
        %v992 = vpack.c.b16 %v989, %v988
        %v993 = vpack.c.b16 %v991, %v990
        %996 = vmatpush.bf16.xpose.msra.mxu0 0
        %997 = vmatpush.bf16.xpose.msra.mxu0 0
        %998 = vmatpush.bf16.xpose.msra.mxu0 0
        %999 = vmatpush.bf16.xpose.msra.mxu0 0
        %1000 = vmatpush.bf16.xpose.msra.mxu0 0
        %1001 = vmatpush.bf16.xpose.msra.mxu0 0
        %1002 = vmatpush.bf16.xpose.msra.mxu0 %v993
        %1003 = vmatpush.bf16.xpose.msra.mxu0 %v992
        %1004 = vmatmul.bf16.gmra.mxu0 %v813
        %v1005 = vpop.f32.mrf.mxu0
        %v1006 = vadd.f32 %v982, %v1005
        %v1007 = vpop.f32.mrf.mxu0
        %1008 = vdwg.mxu0
        %s1009 = scalar_lea.vmem %s612, 80 [#allocation3]
        %v1010 = vld [vmem:[%s1009] sm:$0xf]
        %v1011 = vld [vmem:[%s1009 + $0x4] sm:$0xf]
        %v1012 = vld [vmem:[%s1009 + $0x8] sm:$0xf]
        %v1013 = vld [vmem:[%s1009 + $0xc] sm:$0xf]
        %s1014 = scalar_lea.vmem %s737, 5
        %v1015 = vld [vmem:[%s1014] sm:$0x1]
        %v1017 = vperm.slane %v1015, 0
        %v1023 = vunpack.c.l.b16 %v1010
        %v1024 = vunpack.c.l.b16 %v1011
        %v1025 = vunpack.c.l.b16 %v1012
        %v1026 = vunpack.c.l.b16 %v1013
        %v1027 = vpack.c.b16 %v1024, %v1023
        %v1028 = vpack.c.b16 %v1026, %v1025
        %1031 = vmatpush.bf16.xpose.msra.mxu0 0
        %1032 = vmatpush.bf16.xpose.msra.mxu0 0
        %1033 = vmatpush.bf16.xpose.msra.mxu0 0
        %1034 = vmatpush.bf16.xpose.msra.mxu0 0
        %1035 = vmatpush.bf16.xpose.msra.mxu0 0
        %1036 = vmatpush.bf16.xpose.msra.mxu0 0
        %1037 = vmatpush.bf16.xpose.msra.mxu0 %v1028
        %1038 = vmatpush.bf16.xpose.msra.mxu0 %v1027
        %1039 = vmatmul.bf16.gmra.mxu0 %v813
        %v1040 = vpop.f32.mrf.mxu0
        %v1041 = vadd.f32 %v1017, %v1040
        %v1042 = vpop.f32.mrf.mxu0
        %1043 = vdwg.mxu0
        %s1044 = scalar_lea.vmem %s612, 144 [#allocation3]
        %v1045 = vld [vmem:[%s1044] sm:$0xf]
        %v1046 = vld [vmem:[%s1044 + $0x4] sm:$0xf]
        %v1047 = vld [vmem:[%s1044 + $0x8] sm:$0xf]
        %v1048 = vld [vmem:[%s1044 + $0xc] sm:$0xf]
        %s1049 = scalar_lea.vmem %s737, 9
        %v1050 = vld [vmem:[%s1049] sm:$0x1]
        %v1052 = vperm.slane %v1050, 0
        %v1058 = vunpack.c.l.b16 %v1045
        %v1059 = vunpack.c.l.b16 %v1046
        %v1060 = vunpack.c.l.b16 %v1047
        %v1061 = vunpack.c.l.b16 %v1048
        %v1062 = vpack.c.b16 %v1059, %v1058
        %v1063 = vpack.c.b16 %v1061, %v1060
        %1066 = vmatpush.bf16.xpose.msra.mxu0 0
        %1067 = vmatpush.bf16.xpose.msra.mxu0 0
        %1068 = vmatpush.bf16.xpose.msra.mxu0 0
        %1069 = vmatpush.bf16.xpose.msra.mxu0 0
        %1070 = vmatpush.bf16.xpose.msra.mxu0 0
        %1071 = vmatpush.bf16.xpose.msra.mxu0 0
        %1072 = vmatpush.bf16.xpose.msra.mxu0 %v1063
        %1073 = vmatpush.bf16.xpose.msra.mxu0 %v1062
        %1074 = vmatmul.bf16.gmra.mxu0 %v813
        %v1075 = vpop.f32.mrf.mxu0
        %v1076 = vadd.f32 %v1052, %v1075
        %v1077 = vpop.f32.mrf.mxu0
        %1078 = vdwg.mxu0
        %v1079 = vpack.c.bf16 %v1006, %v1006
        %v1080 = vpack.c.bf16 %v1041, %v1041
        %v1082 = vsel %vm914, %v1079, 0
        %v1085 = vsel %vm914, %v1080, 0
        %1087 = vmatpush.bf16.xpose.msra.mxu0 0
        %1088 = vmatpush.bf16.xpose.msra.mxu0 0
        %1089 = vmatpush.bf16.xpose.msra.mxu0 0
        %1090 = vmatpush.bf16.xpose.msra.mxu0 0
        %1091 = vmatpush.bf16.xpose.msra.mxu0 0
        %1092 = vmatpush.bf16.xpose.msra.mxu0 0
        %1093 = vmatpush.bf16.xpose.msra.mxu0 0
        %1094 = vmatpush.bf16.xpose.msra.mxu0 %v1085
        %1095 = vmatmul.bf16.gmra.mxu0 %v1082
        %v1096 = vpop.f32.mrf.mxu0
        %v1097 = vadd.f32 0.0, %v1096
        %v1098 = vpop.f32.mrf.mxu0
        %1099 = vdwg.mxu0
        %v1100 = vmul.f32 %v1097, 0.17677669
        %v1101 = vsel %vm935, %v1100, -inf
        %1102 = vmax.xlane.f32.xlu0 %v1101
        %v1103 = vpop.xlane.xlu0 %1102
        %v1104 = vsub.f32 %v1100, %v1103
        %v1105 = vmul.f32 %v1104, 1.442695
        %v1106 = vpow.pop %v1105
        %v1107 = vsel %vm935, %v1106, 0.0
        %1108 = vadd.xlane.f32.xlu0 %v1107
        %v1109 = vpop.xlane.xlu0 %1108
        %v1110 = vrcp.pop %v1109
        %v1111 = vmul.f32 %v1106, %v1110
        %v1112 = vpack.c.bf16 %v1111, %v1111
        %v1113 = vpack.c.bf16 %v1076, %v1076
        %v1115 = vsel %vm935, %v1112, 0
        %v1118 = vsel %vm952, %v1113, 0
        %1120 = vmatpush.bf16.msra.mxu0 0
        %1121 = vmatpush.bf16.msra.mxu0 0
        %1122 = vmatpush.bf16.msra.mxu0 0
        %1123 = vmatpush.bf16.msra.mxu0 0
        %1124 = vmatpush.bf16.msra.mxu0 0
        %1125 = vmatpush.bf16.msra.mxu0 0
        %1126 = vmatpush.bf16.msra.mxu0 0
        %1127 = vmatpush.bf16.msra.mxu0 %v1118
        %1128 = vmatmul.bf16.gmra.mxu0 %v1115
        %v1129 = vpop.f32.mrf.mxu0
        %v1130 = vadd.f32 0.0, %v1129
        %v1131 = vpop.f32.mrf.mxu0
        %1132 = vdwg.mxu0
        %s1133 = scalar_lea.vmem %s622, 16 [#allocation5]
        %v1134 = vld [vmem:[%s1133] sm:$0xf]
        %v1135 = vld [vmem:[%s1133 + $0x4] sm:$0xf]
        %v1136 = vld [vmem:[%s1133 + $0x8] sm:$0xf]
        %v1137 = vld [vmem:[%s1133 + $0xc] sm:$0xf]
        %v1138 = vpack.c.bf16 %v1130, %v1130
        %v1143 = vunpack.c.l.b16 %v1134
        %v1144 = vunpack.c.l.b16 %v1135
        %v1145 = vunpack.c.l.b16 %v1136
        %v1146 = vunpack.c.l.b16 %v1137
        %v1147 = vpack.c.b16 %v1144, %v1143
        %v1148 = vpack.c.b16 %v1146, %v1145
        %v1152 = vsel %vm914, %v1138, 0
        %1154 = vmatpush.bf16.msra.mxu0 0
        %1155 = vmatpush.bf16.msra.mxu0 0
        %1156 = vmatpush.bf16.msra.mxu0 0
        %1157 = vmatpush.bf16.msra.mxu0 0
        %1158 = vmatpush.bf16.msra.mxu0 0
        %1159 = vmatpush.bf16.msra.mxu0 0
        %1160 = vmatpush.bf16.msra.mxu0 %v1148
        %1161 = vmatpush.bf16.msra.mxu0 %v1147
        %1162 = vmatmul.bf16.gmra.mxu0 %v1152
        %v1163 = vpop.f32.mrf.mxu0
        %v1164 = vadd.f32 0.0, %v1163
        %v1165 = vpop.f32.mrf.mxu0
        %1166 = vdwg.mxu0
        %v1171 = vunpack.c.l.b16 %v969
        %v1172 = vunpack.c.l.b16 %v970
        %v1173 = vunpack.c.l.b16 %v971
        %v1174 = vunpack.c.l.b16 %v972
        %v1175 = vpack.c.b16 %v1172, %v1171
        %v1176 = vpack.c.b16 %v1174, %v1173
        %v1180 = vsel %vm914, %v973, 0
        %1182 = vmatpush.bf16.msra.mxu0 0
        %1183 = vmatpush.bf16.msra.mxu0 0
        %1184 = vmatpush.bf16.msra.mxu0 0
        %1185 = vmatpush.bf16.msra.mxu0 0
        %1186 = vmatpush.bf16.msra.mxu0 0
        %1187 = vmatpush.bf16.msra.mxu0 0
        %1188 = vmatpush.bf16.msra.mxu0 %v1176
        %1189 = vmatpush.bf16.msra.mxu0 %v1175
        %1190 = vmatmul.bf16.gmra.mxu0 %v1180
        %v1191 = vpop.f32.mrf.mxu0
        %v1192 = vadd.f32 %v1164, %v1191
        %v1193 = vpop.f32.mrf.mxu0
        %1194 = vdwg.mxu0
        %s1195 = scalar_lea.vmem %s612, 32 [#allocation3]
        %v1196 = vld [vmem:[%s1195] sm:$0xf]
        %v1197 = vld [vmem:[%s1195 + $0x4] sm:$0xf]
        %v1198 = vld [vmem:[%s1195 + $0x8] sm:$0xf]
        %v1199 = vld [vmem:[%s1195 + $0xc] sm:$0xf]
        %s1200 = scalar_lea.vmem %s737, 2
        %v1201 = vld [vmem:[%s1200] sm:$0x1]
        %v1203 = vperm.slane %v1201, 0
        %v1209 = vunpack.c.l.b16 %v1196
        %v1210 = vunpack.c.l.b16 %v1197
        %v1211 = vunpack.c.l.b16 %v1198
        %v1212 = vunpack.c.l.b16 %v1199
        %v1213 = vpack.c.b16 %v1210, %v1209
        %v1214 = vpack.c.b16 %v1212, %v1211
        %1217 = vmatpush.bf16.xpose.msra.mxu0 0
        %1218 = vmatpush.bf16.xpose.msra.mxu0 0
        %1219 = vmatpush.bf16.xpose.msra.mxu0 0
        %1220 = vmatpush.bf16.xpose.msra.mxu0 0
        %1221 = vmatpush.bf16.xpose.msra.mxu0 0
        %1222 = vmatpush.bf16.xpose.msra.mxu0 0
        %1223 = vmatpush.bf16.xpose.msra.mxu0 %v1214
        %1224 = vmatpush.bf16.xpose.msra.mxu0 %v1213
        %1225 = vmatmul.bf16.gmra.mxu0 %v813
        %v1226 = vpop.f32.mrf.mxu0
        %v1227 = vadd.f32 %v1203, %v1226
        %v1228 = vpop.f32.mrf.mxu0
        %1229 = vdwg.mxu0
        %s1230 = scalar_lea.vmem %s612, 96 [#allocation3]
        %v1231 = vld [vmem:[%s1230] sm:$0xf]
        %v1232 = vld [vmem:[%s1230 + $0x4] sm:$0xf]
        %v1233 = vld [vmem:[%s1230 + $0x8] sm:$0xf]
        %v1234 = vld [vmem:[%s1230 + $0xc] sm:$0xf]
        %s1235 = scalar_lea.vmem %s737, 6
        %v1236 = vld [vmem:[%s1235] sm:$0x1]
        %v1238 = vperm.slane %v1236, 0
        %v1244 = vunpack.c.l.b16 %v1231
        %v1245 = vunpack.c.l.b16 %v1232
        %v1246 = vunpack.c.l.b16 %v1233
        %v1247 = vunpack.c.l.b16 %v1234
        %v1248 = vpack.c.b16 %v1245, %v1244
        %v1249 = vpack.c.b16 %v1247, %v1246
        %1252 = vmatpush.bf16.xpose.msra.mxu0 0
        %1253 = vmatpush.bf16.xpose.msra.mxu0 0
        %1254 = vmatpush.bf16.xpose.msra.mxu0 0
        %1255 = vmatpush.bf16.xpose.msra.mxu0 0
        %1256 = vmatpush.bf16.xpose.msra.mxu0 0
        %1257 = vmatpush.bf16.xpose.msra.mxu0 0
        %1258 = vmatpush.bf16.xpose.msra.mxu0 %v1249
        %1259 = vmatpush.bf16.xpose.msra.mxu0 %v1248
        %1260 = vmatmul.bf16.gmra.mxu0 %v813
        %v1261 = vpop.f32.mrf.mxu0
        %v1262 = vadd.f32 %v1238, %v1261
        %v1263 = vpop.f32.mrf.mxu0
        %1264 = vdwg.mxu0
        %s1265 = scalar_lea.vmem %s612, 160 [#allocation3]
        %v1266 = vld [vmem:[%s1265] sm:$0xf]
        %v1267 = vld [vmem:[%s1265 + $0x4] sm:$0xf]
        %v1268 = vld [vmem:[%s1265 + $0x8] sm:$0xf]
        %v1269 = vld [vmem:[%s1265 + $0xc] sm:$0xf]
        %s1270 = scalar_lea.vmem %s737, 10
        %v1271 = vld [vmem:[%s1270] sm:$0x1]
        %v1273 = vperm.slane %v1271, 0
        %v1279 = vunpack.c.l.b16 %v1266
        %v1280 = vunpack.c.l.b16 %v1267
        %v1281 = vunpack.c.l.b16 %v1268
        %v1282 = vunpack.c.l.b16 %v1269
        %v1283 = vpack.c.b16 %v1280, %v1279
        %v1284 = vpack.c.b16 %v1282, %v1281
        %1287 = vmatpush.bf16.xpose.msra.mxu0 0
        %1288 = vmatpush.bf16.xpose.msra.mxu0 0
        %1289 = vmatpush.bf16.xpose.msra.mxu0 0
        %1290 = vmatpush.bf16.xpose.msra.mxu0 0
        %1291 = vmatpush.bf16.xpose.msra.mxu0 0
        %1292 = vmatpush.bf16.xpose.msra.mxu0 0
        %1293 = vmatpush.bf16.xpose.msra.mxu0 %v1284
        %1294 = vmatpush.bf16.xpose.msra.mxu0 %v1283
        %1295 = vmatmul.bf16.gmra.mxu0 %v813
        %v1296 = vpop.f32.mrf.mxu0
        %v1297 = vadd.f32 %v1273, %v1296
        %v1298 = vpop.f32.mrf.mxu0
        %1299 = vdwg.mxu0
        %v1300 = vpack.c.bf16 %v1227, %v1227
        %v1301 = vpack.c.bf16 %v1262, %v1262
        %v1303 = vsel %vm914, %v1300, 0
        %v1306 = vsel %vm914, %v1301, 0
        %1308 = vmatpush.bf16.xpose.msra.mxu0 0
        %1309 = vmatpush.bf16.xpose.msra.mxu0 0
        %1310 = vmatpush.bf16.xpose.msra.mxu0 0
        %1311 = vmatpush.bf16.xpose.msra.mxu0 0
        %1312 = vmatpush.bf16.xpose.msra.mxu0 0
        %1313 = vmatpush.bf16.xpose.msra.mxu0 0
        %1314 = vmatpush.bf16.xpose.msra.mxu0 0
        %1315 = vmatpush.bf16.xpose.msra.mxu0 %v1306
        %1316 = vmatmul.bf16.gmra.mxu0 %v1303
        %v1317 = vpop.f32.mrf.mxu0
        %v1318 = vadd.f32 0.0, %v1317
        %v1319 = vpop.f32.mrf.mxu0
        %1320 = vdwg.mxu0
        %v1321 = vmul.f32 %v1318, 0.17677669
        %v1322 = vsel %vm935, %v1321, -inf
        %1323 = vmax.xlane.f32.xlu0 %v1322
        %v1324 = vpop.xlane.xlu0 %1323
        %v1325 = vsub.f32 %v1321, %v1324
        %v1326 = vmul.f32 %v1325, 1.442695
        %v1327 = vpow.pop %v1326
        %v1328 = vsel %vm935, %v1327, 0.0
        %1329 = vadd.xlane.f32.xlu0 %v1328
        %v1330 = vpop.xlane.xlu0 %1329
        %v1331 = vrcp.pop %v1330
        %v1332 = vmul.f32 %v1327, %v1331
        %v1333 = vpack.c.bf16 %v1332, %v1332
        %v1334 = vpack.c.bf16 %v1297, %v1297
        %v1336 = vsel %vm935, %v1333, 0
        %v1339 = vsel %vm952, %v1334, 0
        %1341 = vmatpush.bf16.msra.mxu0 0
        %1342 = vmatpush.bf16.msra.mxu0 0
        %1343 = vmatpush.bf16.msra.mxu0 0
        %1344 = vmatpush.bf16.msra.mxu0 0
        %1345 = vmatpush.bf16.msra.mxu0 0
        %1346 = vmatpush.bf16.msra.mxu0 0
        %1347 = vmatpush.bf16.msra.mxu0 0
        %1348 = vmatpush.bf16.msra.mxu0 %v1339
        %1349 = vmatmul.bf16.gmra.mxu0 %v1336
        %v1350 = vpop.f32.mrf.mxu0
        %v1351 = vadd.f32 0.0, %v1350
        %v1352 = vpop.f32.mrf.mxu0
        %1353 = vdwg.mxu0
        %s1354 = scalar_lea.vmem %s622, 32 [#allocation5]
        %v1355 = vld [vmem:[%s1354] sm:$0xf]
        %v1356 = vld [vmem:[%s1354 + $0x4] sm:$0xf]
        %v1357 = vld [vmem:[%s1354 + $0x8] sm:$0xf]
        %v1358 = vld [vmem:[%s1354 + $0xc] sm:$0xf]
        %v1359 = vpack.c.bf16 %v1351, %v1351
        %v1364 = vunpack.c.l.b16 %v1355
        %v1365 = vunpack.c.l.b16 %v1356
        %v1366 = vunpack.c.l.b16 %v1357
        %v1367 = vunpack.c.l.b16 %v1358
        %v1368 = vpack.c.b16 %v1365, %v1364
        %v1369 = vpack.c.b16 %v1367, %v1366
        %v1373 = vsel %vm914, %v1359, 0
        %1375 = vmatpush.bf16.msra.mxu0 0
        %1376 = vmatpush.bf16.msra.mxu0 0
        %1377 = vmatpush.bf16.msra.mxu0 0
        %1378 = vmatpush.bf16.msra.mxu0 0
        %1379 = vmatpush.bf16.msra.mxu0 0
        %1380 = vmatpush.bf16.msra.mxu0 0
        %1381 = vmatpush.bf16.msra.mxu0 %v1369
        %1382 = vmatpush.bf16.msra.mxu0 %v1368
        %1383 = vmatmul.bf16.gmra.mxu0 %v1373
        %v1384 = vpop.f32.mrf.mxu0
        %v1385 = vadd.f32 0.0, %v1384
        %v1386 = vpop.f32.mrf.mxu0
        %1387 = vdwg.mxu0
        %v1388 = vadd.f32 %v1192, %v1385
        %s1389 = scalar_lea.vmem %s612, 48 [#allocation3]
        %v1390 = vld [vmem:[%s1389] sm:$0xf]
        %v1391 = vld [vmem:[%s1389 + $0x4] sm:$0xf]
        %v1392 = vld [vmem:[%s1389 + $0x8] sm:$0xf]
        %v1393 = vld [vmem:[%s1389 + $0xc] sm:$0xf]
        %s1394 = scalar_lea.vmem %s737, 3
        %v1395 = vld [vmem:[%s1394] sm:$0x1]
        %v1397 = vperm.slane %v1395, 0
        %v1403 = vunpack.c.l.b16 %v1390
        %v1404 = vunpack.c.l.b16 %v1391
        %v1405 = vunpack.c.l.b16 %v1392
        %v1406 = vunpack.c.l.b16 %v1393
        %v1407 = vpack.c.b16 %v1404, %v1403
        %v1408 = vpack.c.b16 %v1406, %v1405
        %1411 = vmatpush.bf16.xpose.msra.mxu0 0
        %1412 = vmatpush.bf16.xpose.msra.mxu0 0
        %1413 = vmatpush.bf16.xpose.msra.mxu0 0
        %1414 = vmatpush.bf16.xpose.msra.mxu0 0
        %1415 = vmatpush.bf16.xpose.msra.mxu0 0
        %1416 = vmatpush.bf16.xpose.msra.mxu0 0
        %1417 = vmatpush.bf16.xpose.msra.mxu0 %v1408
        %1418 = vmatpush.bf16.xpose.msra.mxu0 %v1407
        %1419 = vmatmul.bf16.gmra.mxu0 %v813
        %v1420 = vpop.f32.mrf.mxu0
        %v1421 = vadd.f32 %v1397, %v1420
        %v1422 = vpop.f32.mrf.mxu0
        %1423 = vdwg.mxu0
        %s1424 = scalar_lea.vmem %s612, 112 [#allocation3]
        %v1425 = vld [vmem:[%s1424] sm:$0xf]
        %v1426 = vld [vmem:[%s1424 + $0x4] sm:$0xf]
        %v1427 = vld [vmem:[%s1424 + $0x8] sm:$0xf]
        %v1428 = vld [vmem:[%s1424 + $0xc] sm:$0xf]
        %s1429 = scalar_lea.vmem %s737, 7
        %v1430 = vld [vmem:[%s1429] sm:$0x1]
        %v1432 = vperm.slane %v1430, 0
        %v1438 = vunpack.c.l.b16 %v1425
        %v1439 = vunpack.c.l.b16 %v1426
        %v1440 = vunpack.c.l.b16 %v1427
        %v1441 = vunpack.c.l.b16 %v1428
        %v1442 = vpack.c.b16 %v1439, %v1438
        %v1443 = vpack.c.b16 %v1441, %v1440
        %1446 = vmatpush.bf16.xpose.msra.mxu0 0
        %1447 = vmatpush.bf16.xpose.msra.mxu0 0
        %1448 = vmatpush.bf16.xpose.msra.mxu0 0
        %1449 = vmatpush.bf16.xpose.msra.mxu0 0
        %1450 = vmatpush.bf16.xpose.msra.mxu0 0
        %1451 = vmatpush.bf16.xpose.msra.mxu0 0
        %1452 = vmatpush.bf16.xpose.msra.mxu0 %v1443
        %1453 = vmatpush.bf16.xpose.msra.mxu0 %v1442
        %1454 = vmatmul.bf16.gmra.mxu0 %v813
        %v1455 = vpop.f32.mrf.mxu0
        %v1456 = vadd.f32 %v1432, %v1455
        %v1457 = vpop.f32.mrf.mxu0
        %1458 = vdwg.mxu0
        %s1459 = scalar_lea.vmem %s612, 176 [#allocation3]
        %v1460 = vld [vmem:[%s1459] sm:$0xf]
        %v1461 = vld [vmem:[%s1459 + $0x4] sm:$0xf]
        %v1462 = vld [vmem:[%s1459 + $0x8] sm:$0xf]
        %v1463 = vld [vmem:[%s1459 + $0xc] sm:$0xf]
        %s1464 = scalar_lea.vmem %s737, 11
        %v1465 = vld [vmem:[%s1464] sm:$0x1]
        %v1467 = vperm.slane %v1465, 0
        %v1473 = vunpack.c.l.b16 %v1460
        %v1474 = vunpack.c.l.b16 %v1461
        %v1475 = vunpack.c.l.b16 %v1462
        %v1476 = vunpack.c.l.b16 %v1463
        %v1477 = vpack.c.b16 %v1474, %v1473
        %v1478 = vpack.c.b16 %v1476, %v1475
        %1481 = vmatpush.bf16.xpose.msra.mxu0 0
        %1482 = vmatpush.bf16.xpose.msra.mxu0 0
        %1483 = vmatpush.bf16.xpose.msra.mxu0 0
        %1484 = vmatpush.bf16.xpose.msra.mxu0 0
        %1485 = vmatpush.bf16.xpose.msra.mxu0 0
        %1486 = vmatpush.bf16.xpose.msra.mxu0 0
        %1487 = vmatpush.bf16.xpose.msra.mxu0 %v1478
        %1488 = vmatpush.bf16.xpose.msra.mxu0 %v1477
        %1489 = vmatmul.bf16.gmra.mxu0 %v813
        %v1490 = vpop.f32.mrf.mxu0
        %v1491 = vadd.f32 %v1467, %v1490
        %v1492 = vpop.f32.mrf.mxu0
        %1493 = vdwg.mxu0
        %v1494 = vpack.c.bf16 %v1421, %v1421
        %v1495 = vpack.c.bf16 %v1456, %v1456
        %v1497 = vsel %vm914, %v1494, 0
        %v1500 = vsel %vm914, %v1495, 0
        %1502 = vmatpush.bf16.xpose.msra.mxu0 0
        %1503 = vmatpush.bf16.xpose.msra.mxu0 0
        %1504 = vmatpush.bf16.xpose.msra.mxu0 0
        %1505 = vmatpush.bf16.xpose.msra.mxu0 0
        %1506 = vmatpush.bf16.xpose.msra.mxu0 0
        %1507 = vmatpush.bf16.xpose.msra.mxu0 0
        %1508 = vmatpush.bf16.xpose.msra.mxu0 0
        %1509 = vmatpush.bf16.xpose.msra.mxu0 %v1500
        %1510 = vmatmul.bf16.gmra.mxu0 %v1497
        %v1511 = vpop.f32.mrf.mxu0
        %v1512 = vadd.f32 0.0, %v1511
        %v1513 = vpop.f32.mrf.mxu0
        %1514 = vdwg.mxu0
        %v1515 = vmul.f32 %v1512, 0.17677669
        %v1516 = vsel %vm935, %v1515, -inf
        %1517 = vmax.xlane.f32.xlu0 %v1516
        %v1518 = vpop.xlane.xlu0 %1517
        %v1519 = vsub.f32 %v1515, %v1518
        %v1520 = vmul.f32 %v1519, 1.442695
        %v1521 = vpow.pop %v1520
        %v1522 = vsel %vm935, %v1521, 0.0
        %1523 = vadd.xlane.f32.xlu0 %v1522
        %v1524 = vpop.xlane.xlu0 %1523
        %v1525 = vrcp.pop %v1524
        %v1526 = vmul.f32 %v1521, %v1525
        %v1527 = vpack.c.bf16 %v1526, %v1526
        %v1528 = vpack.c.bf16 %v1491, %v1491
        %v1530 = vsel %vm935, %v1527, 0
        %v1533 = vsel %vm952, %v1528, 0
        %1535 = vmatpush.bf16.msra.mxu0 0
        %1536 = vmatpush.bf16.msra.mxu0 0
        %1537 = vmatpush.bf16.msra.mxu0 0
        %1538 = vmatpush.bf16.msra.mxu0 0
        %1539 = vmatpush.bf16.msra.mxu0 0
        %1540 = vmatpush.bf16.msra.mxu0 0
        %1541 = vmatpush.bf16.msra.mxu0 0
        %1542 = vmatpush.bf16.msra.mxu0 %v1533
        %1543 = vmatmul.bf16.gmra.mxu0 %v1530
        %v1544 = vpop.f32.mrf.mxu0
        %v1545 = vadd.f32 0.0, %v1544
        %v1546 = vpop.f32.mrf.mxu0
        %1547 = vdwg.mxu0
        %s1548 = scalar_lea.vmem %s622, 48 [#allocation5]
        %v1549 = vld [vmem:[%s1548] sm:$0xf]
        %v1550 = vld [vmem:[%s1548 + $0x4] sm:$0xf]
        %v1551 = vld [vmem:[%s1548 + $0x8] sm:$0xf]
        %v1552 = vld [vmem:[%s1548 + $0xc] sm:$0xf]
        %v1553 = vpack.c.bf16 %v1545, %v1545
        %v1558 = vunpack.c.l.b16 %v1549
        %v1559 = vunpack.c.l.b16 %v1550
        %v1560 = vunpack.c.l.b16 %v1551
        %v1561 = vunpack.c.l.b16 %v1552
        %v1562 = vpack.c.b16 %v1559, %v1558
        %v1563 = vpack.c.b16 %v1561, %v1560
        %v1567 = vsel %vm914, %v1553, 0
        %1569 = vmatpush.bf16.msra.mxu0 0
        %1570 = vmatpush.bf16.msra.mxu0 0
        %1571 = vmatpush.bf16.msra.mxu0 0
        %1572 = vmatpush.bf16.msra.mxu0 0
        %1573 = vmatpush.bf16.msra.mxu0 0
        %1574 = vmatpush.bf16.msra.mxu0 0
        %1575 = vmatpush.bf16.msra.mxu0 %v1563
        %1576 = vmatpush.bf16.msra.mxu0 %v1562
        %1577 = vmatmul.bf16.gmra.mxu0 %v1567
        %v1578 = vpop.f32.mrf.mxu0
        %v1579 = vadd.f32 0.0, %v1578
        %v1580 = vpop.f32.mrf.mxu0
        %1581 = vdwg.mxu0
        %v1582 = vadd.f32 %v1388, %v1579
        %v1583 = vld [vmem:[%s740] sm:$0x1]
        %v1585 = vperm.slane %v1583, 0
        %v1587 = vadd.f32 %v1582, %v1585
        %v1588 = vadd.f32 %v770, %v1587
        %v1589 = vld [vmem:[%s743] sm:$0x1]
        %v1590 = vld [vmem:[%s746] sm:$0x1]
        %1591 = vadd.xlane.f32.xlu0 %v1588
        %v1592 = vpop.xlane.xlu0 %1591
        %v1593 = vmul.f32 %v1592, %v781
        %v1594 = vsub.f32 %v1588, %v1593
        %v1595 = vmul.f32 %v1594, %v1594
        %1596 = vadd.xlane.f32.xlu0 %v1595
        %v1597 = vpop.xlane.xlu0 %1596
        %v1598 = vmul.f32 %v1597, %v781
        %v1599 = vadd.f32 %v1598, 1e-05
        %v1600 = vrsqrt.pop %v1599
        %v1601 = vmul.f32 %v1600, %v1599
        %v1602 = vmul.f32 %v1601, %v1600
        %v1603 = vmul.f32 0.5, %v1602
        %v1604 = vsub.f32 1.5, %v1603
        %v1605 = vmul.f32 %v1600, %v1604
        %vm1606 = vweird.f32 %v1599
        %vm1607 = vweird.f32 %v1600
        %vm1608 = vmor %vm1606, %vm1607
        %v1609 = vsel %vm1608, %v1600, %v1605
        %v1610 = vmul.f32 %v1594, %v1609
        %v1612 = vperm.slane %v1589, 0
        %v1614 = vmul.f32 %v1610, %v1612
        %v1616 = vperm.slane %v1590, 0
        %v1618 = vadd.f32 %v1614, %v1616
        %v1619 = vld [vmem:[%s751] sm:$0xff]
        %v1620 = vld [vmem:[%s751 + $0x8] sm:$0xff]
        %v1621 = vld [vmem:[%s751 + $0x10] sm:$0xff]
        %v1622 = vld [vmem:[%s751 + $0x18] sm:$0xff]
        %v1623 = vld [vmem:[%s751 + $0x20] sm:$0xff]
        %v1624 = vld [vmem:[%s751 + $0x28] sm:$0xff]
        %v1625 = vld [vmem:[%s751 + $0x30] sm:$0xff]
        %v1626 = vld [vmem:[%s751 + $0x38] sm:$0xff]
        %v1627 = vld [vmem:[%s751 + $0x40] sm:$0xff]
        %v1628 = vld [vmem:[%s751 + $0x48] sm:$0xff]
        %v1629 = vld [vmem:[%s751 + $0x50] sm:$0xff]
        %v1630 = vld [vmem:[%s751 + $0x58] sm:$0xff]
        %v1631 = vld [vmem:[%s751 + $0x60] sm:$0xff]
        %v1632 = vld [vmem:[%s751 + $0x68] sm:$0xff]
        %v1633 = vld [vmem:[%s751 + $0x70] sm:$0xff]
        %v1634 = vld [vmem:[%s751 + $0x78] sm:$0xff]
        %v1635 = vld [vmem:[%s755] sm:$0x3]
        %v1636 = vpack.c.bf16 %v1618, %v1618
        %v1638 = vperm.slane %v1635, 0
        %v1639 = vperm.slane %v1635, 1
        %v1658 = vunpack.c.l.b16 %v1619
        %v1659 = vunpack.c.h.b16 %v1619
        %v1660 = vunpack.c.l.b16 %v1620
        %v1661 = vunpack.c.h.b16 %v1620
        %v1662 = vunpack.c.l.b16 %v1621
        %v1663 = vunpack.c.h.b16 %v1621
        %v1664 = vunpack.c.l.b16 %v1622
        %v1665 = vunpack.c.h.b16 %v1622
        %v1666 = vunpack.c.l.b16 %v1623
        %v1667 = vunpack.c.h.b16 %v1623
        %v1668 = vunpack.c.l.b16 %v1624
        %v1669 = vunpack.c.h.b16 %v1624
        %v1670 = vunpack.c.l.b16 %v1625
        %v1671 = vunpack.c.h.b16 %v1625
        %v1672 = vunpack.c.l.b16 %v1626
        %v1673 = vunpack.c.h.b16 %v1626
        %v1674 = vunpack.c.l.b16 %v1627
        %v1675 = vunpack.c.h.b16 %v1627
        %v1676 = vunpack.c.l.b16 %v1628
        %v1677 = vunpack.c.h.b16 %v1628
        %v1678 = vunpack.c.l.b16 %v1629
        %v1679 = vunpack.c.h.b16 %v1629
        %v1680 = vunpack.c.l.b16 %v1630
        %v1681 = vunpack.c.h.b16 %v1630
        %v1682 = vunpack.c.l.b16 %v1631
        %v1683 = vunpack.c.h.b16 %v1631
        %v1684 = vunpack.c.l.b16 %v1632
        %v1685 = vunpack.c.h.b16 %v1632
        %v1686 = vunpack.c.l.b16 %v1633
        %v1687 = vunpack.c.h.b16 %v1633
        %v1688 = vunpack.c.l.b16 %v1634
        %v1689 = vunpack.c.h.b16 %v1634
        %v1690 = vpack.c.b16 %v1660, %v1658
        %v1691 = vpack.c.b16 %v1661, %v1659
        %v1692 = vpack.c.b16 %v1664, %v1662
        %v1693 = vpack.c.b16 %v1665, %v1663
        %v1694 = vpack.c.b16 %v1668, %v1666
        %v1695 = vpack.c.b16 %v1669, %v1667
        %v1696 = vpack.c.b16 %v1672, %v1670
        %v1697 = vpack.c.b16 %v1673, %v1671
        %v1698 = vpack.c.b16 %v1676, %v1674
        %v1699 = vpack.c.b16 %v1677, %v1675
        %v1700 = vpack.c.b16 %v1680, %v1678
        %v1701 = vpack.c.b16 %v1681, %v1679
        %v1702 = vpack.c.b16 %v1684, %v1682
        %v1703 = vpack.c.b16 %v1685, %v1683
        %v1704 = vpack.c.b16 %v1688, %v1686
        %v1705 = vpack.c.b16 %v1689, %v1687
        %1722 = vmatpush.bf16.msra.mxu0 %v1704
        %1723 = vmatpush.bf16.msra.mxu0 %v1702
        %1724 = vmatpush.bf16.msra.mxu0 %v1700
        %1725 = vmatpush.bf16.msra.mxu0 %v1698
        %1726 = vmatpush.bf16.msra.mxu0 %v1696
        %1727 = vmatpush.bf16.msra.mxu0 %v1694
        %1728 = vmatpush.bf16.msra.mxu0 %v1692
        %1729 = vmatpush.bf16.msra.mxu0 %v1690
        %1730 = vmatmul.bf16.gmra.mxu0 %v1636
        %v1731 = vpop.f32.mrf.mxu0
        %v1732 = vadd.f32 %v1638, %v1731
        %v1733 = vpop.f32.mrf.mxu0
        %1734 = vdwg.mxu0
        %1735 = vmatpush.bf16.msra.mxu0 %v1705
        %1736 = vmatpush.bf16.msra.mxu0 %v1703
        %1737 = vmatpush.bf16.msra.mxu0 %v1701
        %1738 = vmatpush.bf16.msra.mxu0 %v1699
        %1739 = vmatpush.bf16.msra.mxu0 %v1697
        %1740 = vmatpush.bf16.msra.mxu0 %v1695
        %1741 = vmatpush.bf16.msra.mxu0 %v1693
        %1742 = vmatpush.bf16.msra.mxu0 %v1691
        %1743 = vmatmul.bf16.gmra.mxu0 %v1636
        %v1744 = vpop.f32.mrf.mxu0
        %v1745 = vadd.f32 %v1639, %v1744
        %v1746 = vpop.f32.mrf.mxu0
        %1747 = vdwg.mxu0
        %v1748 = vmax.f32 %v1732, 0.0
        %v1749 = vmax.f32 %v1745, 0.0
        %v1750 = vld [vmem:[%s632] sm:$0xf]
        %v1751 = vld [vmem:[%s632 + $0x4] sm:$0xf]
        %v1752 = vld [vmem:[%s632 + $0x8] sm:$0xf]
        %v1753 = vld [vmem:[%s632 + $0xc] sm:$0xf]
        %v1754 = vld [vmem:[%s632 + $0x10] sm:$0xf]
        %v1755 = vld [vmem:[%s632 + $0x14] sm:$0xf]
        %v1756 = vld [vmem:[%s632 + $0x18] sm:$0xf]
        %v1757 = vld [vmem:[%s632 + $0x1c] sm:$0xf]
        %v1758 = vld [vmem:[%s632 + $0x20] sm:$0xf]
        %v1759 = vld [vmem:[%s632 + $0x24] sm:$0xf]
        %v1760 = vld [vmem:[%s632 + $0x28] sm:$0xf]
        %v1761 = vld [vmem:[%s632 + $0x2c] sm:$0xf]
        %v1762 = vld [vmem:[%s632 + $0x30] sm:$0xf]
        %v1763 = vld [vmem:[%s632 + $0x34] sm:$0xf]
        %v1764 = vld [vmem:[%s632 + $0x38] sm:$0xf]
        %v1765 = vld [vmem:[%s632 + $0x3c] sm:$0xf]
        %v1766 = vld [vmem:[%s632 + $0x40] sm:$0xf]
        %v1767 = vld [vmem:[%s632 + $0x44] sm:$0xf]
        %v1768 = vld [vmem:[%s632 + $0x48] sm:$0xf]
        %v1769 = vld [vmem:[%s632 + $0x4c] sm:$0xf]
        %v1770 = vld [vmem:[%s632 + $0x50] sm:$0xf]
        %v1771 = vld [vmem:[%s632 + $0x54] sm:$0xf]
        %v1772 = vld [vmem:[%s632 + $0x58] sm:$0xf]
        %v1773 = vld [vmem:[%s632 + $0x5c] sm:$0xf]
        %v1774 = vld [vmem:[%s632 + $0x60] sm:$0xf]
        %v1775 = vld [vmem:[%s632 + $0x64] sm:$0xf]
        %v1776 = vld [vmem:[%s632 + $0x68] sm:$0xf]
        %v1777 = vld [vmem:[%s632 + $0x6c] sm:$0xf]
        %v1778 = vld [vmem:[%s632 + $0x70] sm:$0xf]
        %v1779 = vld [vmem:[%s632 + $0x74] sm:$0xf]
        %v1780 = vld [vmem:[%s632 + $0x78] sm:$0xf]
        %v1781 = vld [vmem:[%s632 + $0x7c] sm:$0xf]
        %v1782 = vld [vmem:[%s758] sm:$0x1]
        %v1783 = vpack.c.bf16 %v1748, %v1748
        %v1784 = vpack.c.bf16 %v1749, %v1749
        %v1786 = vperm.slane %v1782, 0
        %v1820 = vunpack.c.l.b16 %v1750
        %v1821 = vunpack.c.l.b16 %v1751
        %v1822 = vunpack.c.l.b16 %v1752
        %v1823 = vunpack.c.l.b16 %v1753
        %v1824 = vunpack.c.l.b16 %v1754
        %v1825 = vunpack.c.l.b16 %v1755
        %v1826 = vunpack.c.l.b16 %v1756
        %v1827 = vunpack.c.l.b16 %v1757
        %v1828 = vunpack.c.l.b16 %v1758
        %v1829 = vunpack.c.l.b16 %v1759
        %v1830 = vunpack.c.l.b16 %v1760
        %v1831 = vunpack.c.l.b16 %v1761
        %v1832 = vunpack.c.l.b16 %v1762
        %v1833 = vunpack.c.l.b16 %v1763
        %v1834 = vunpack.c.l.b16 %v1764
        %v1835 = vunpack.c.l.b16 %v1765
        %v1836 = vunpack.c.l.b16 %v1766
        %v1837 = vunpack.c.l.b16 %v1767
        %v1838 = vunpack.c.l.b16 %v1768
        %v1839 = vunpack.c.l.b16 %v1769
        %v1840 = vunpack.c.l.b16 %v1770
        %v1841 = vunpack.c.l.b16 %v1771
        %v1842 = vunpack.c.l.b16 %v1772
        %v1843 = vunpack.c.l.b16 %v1773
        %v1844 = vunpack.c.l.b16 %v1774
        %v1845 = vunpack.c.l.b16 %v1775
        %v1846 = vunpack.c.l.b16 %v1776
        %v1847 = vunpack.c.l.b16 %v1777
        %v1848 = vunpack.c.l.b16 %v1778
        %v1849 = vunpack.c.l.b16 %v1779
        %v1850 = vunpack.c.l.b16 %v1780
        %v1851 = vunpack.c.l.b16 %v1781
        %v1852 = vpack.c.b16 %v1821, %v1820
        %v1853 = vpack.c.b16 %v1823, %v1822
        %v1854 = vpack.c.b16 %v1825, %v1824
        %v1855 = vpack.c.b16 %v1827, %v1826
        %v1856 = vpack.c.b16 %v1829, %v1828
        %v1857 = vpack.c.b16 %v1831, %v1830
        %v1858 = vpack.c.b16 %v1833, %v1832
        %v1859 = vpack.c.b16 %v1835, %v1834
        %v1860 = vpack.c.b16 %v1837, %v1836
        %v1861 = vpack.c.b16 %v1839, %v1838
        %v1862 = vpack.c.b16 %v1841, %v1840
        %v1863 = vpack.c.b16 %v1843, %v1842
        %v1864 = vpack.c.b16 %v1845, %v1844
        %v1865 = vpack.c.b16 %v1847, %v1846
        %v1866 = vpack.c.b16 %v1849, %v1848
        %v1867 = vpack.c.b16 %v1851, %v1850
        %1884 = vmatpush.bf16.msra.mxu0 %v1859
        %1885 = vmatpush.bf16.msra.mxu0 %v1858
        %1886 = vmatpush.bf16.msra.mxu0 %v1857
        %1887 = vmatpush.bf16.msra.mxu0 %v1856
        %1888 = vmatpush.bf16.msra.mxu0 %v1855
        %1889 = vmatpush.bf16.msra.mxu0 %v1854
        %1890 = vmatpush.bf16.msra.mxu0 %v1853
        %1891 = vmatpush.bf16.msra.mxu0 %v1852
        %1892 = vmatmul.bf16.gmra.mxu0 %v1783
        %v1893 = vpop.f32.mrf.mxu0
        %v1894 = vadd.f32 %v1786, %v1893
        %v1895 = vpop.f32.mrf.mxu0
        %1896 = vdwg.mxu0
        %1897 = vmatpush.bf16.msra.mxu0 %v1867
        %1898 = vmatpush.bf16.msra.mxu0 %v1866
        %1899 = vmatpush.bf16.msra.mxu0 %v1865
        %1900 = vmatpush.bf16.msra.mxu0 %v1864
        %1901 = vmatpush.bf16.msra.mxu0 %v1863
        %1902 = vmatpush.bf16.msra.mxu0 %v1862
        %1903 = vmatpush.bf16.msra.mxu0 %v1861
        %1904 = vmatpush.bf16.msra.mxu0 %v1860
        %1905 = vmatmul.bf16.gmra.mxu0 %v1784
        %v1906 = vpop.f32.mrf.mxu0
        %v1907 = vadd.f32 %v1894, %v1906
        %v1908 = vpop.f32.mrf.mxu0
        %1909 = vdwg.mxu0
        %v1910 = vadd.f32 %v1588, %v1907
        %1911 = vst [vmem:[#allocation2] sm:$0xff] %v1910
        %p1912 = scmp.eq.s32.totalorder %s37, 1
        // Predicated region
        $region97: #{seq2seq_forward.2} parent=79 // pred_check
          %p1913 = pneg %p1912
        $region98: #{seq2seq_forward.2} parent=79 // pred_check_branch
          %1915 = sbr.rel (%p1913) target = $region100
        $region99: #{seq2seq_forward.2} parent=79 // pred_region
          %v1916 = vld [vmem:[%s13] sm:$0x1]
          %v1917 = vld [vmem:[%s14] sm:$0x1]
          %1918 = vadd.xlane.f32.xlu0 %v1910
          %v1919 = vpop.xlane.xlu0 %1918
          %v1920 = vmul.f32 %v1919, %v781
          %v1921 = vsub.f32 %v1910, %v1920
          %v1922 = vmul.f32 %v1921, %v1921
          %1923 = vadd.xlane.f32.xlu0 %v1922
          %v1924 = vpop.xlane.xlu0 %1923
          %v1925 = vmul.f32 %v1924, %v781
          %v1926 = vadd.f32 %v1925, 1e-05
          %v1927 = vrsqrt.pop %v1926
          %v1928 = vmul.f32 %v1927, %v1926
          %v1929 = vmul.f32 %v1928, %v1927
          %v1930 = vmul.f32 0.5, %v1929
          %v1931 = vsub.f32 1.5, %v1930
          %v1932 = vmul.f32 %v1927, %v1931
          %vm1933 = vweird.f32 %v1926
          %vm1934 = vweird.f32 %v1927
          %vm1935 = vmor %vm1933, %vm1934
          %v1936 = vsel %vm1935, %v1927, %v1932
          %v1937 = vmul.f32 %v1921, %v1936
          %v1939 = vperm.slane %v1916, 0
          %v1941 = vmul.f32 %v1937, %v1939
          %v1943 = vperm.slane %v1917, 0
          %v1945 = vadd.f32 %v1941, %v1943
          %1946 = vst [vmem:[%s762] sm:$0xff] %v1945
        $region100: #{seq2seq_forward.2} parent=79 // pred_fallthru
          _
        %p1947 = scmp.lt.s32.totalorder %s36, 1
        %s1948 = scalar_select %p1947, %s36, 1
        %s1949 = smul.addr %s1948, 8
        %s1950 = scalar_lea.vmem %s15, %s1949
        // Predicated region
        $region101: #{seq2seq_forward.2} parent=79 // pred_check
          %p1951 = pneg %p442
        $region102: #{seq2seq_forward.2} parent=79 // pred_check_branch
          %1953 = sbr.rel (%p1951) target = $region104
        $region103: #{seq2seq_forward.2} parent=79 // pred_region
          _
        $region104: #{seq2seq_forward.2} parent=79 // pred_fallthru
          _
      $region80: #{seq2seq_forward.2} parent=5 // pred_fallthru
        _
      %p1954 = scmp.le.s32.totalorder 2, %s27
      // Predicated region
      $region105: #{seq2seq_forward.2} parent=5 // pred_check
        %p1955 = pneg %p1954
      $region106: #{seq2seq_forward.2} parent=5 // pred_check_branch
        %1957 = sbr.rel (%p1955) target = $region108
      $region107: #{seq2seq_forward.2} parent=5 // pred_region
        %s1958 = ssub.s32 %s27, 2
        // Predicated region
        $region109: #{seq2seq_forward.2} parent=107 // pred_check
          %p1959 = pneg %p448
        $region110: #{seq2seq_forward.2} parent=107 // pred_check_branch
          %1961 = sbr.rel (%p1959) target = $region112
        $region111: #{seq2seq_forward.2} parent=107 // pred_region
          %p1962 = scmp.lt.s32.totalorder %s38, 1
          %s1963 = scalar_select %p1962, %s38, 1
          %s1964 = smul.addr %s1963, 8
          %s1965 = scalar_lea.vmem %s15, %s1964
        $region112: #{seq2seq_forward.2} parent=107 // pred_fallthru
          _
      $region108: #{seq2seq_forward.2} parent=5 // pred_fallthru
        _
    $region6: #{seq2seq_forward.2} parent=1 // loop_footer
      %s31 = sadd.s32 1, %s27
    $region7: #{seq2seq_forward.2} parent=1 // loop_footer_branch
      %26 = sbr.rel target = $region3
    $region8: #{seq2seq_forward.2} parent=1 // loop_exit
      _
    %1966 = vsyncpa [#allocation4], 1
    %s1967 = scalar_lea.sflag [#allocation4], 1
    %1968 = vsyncpa %s1967, 1
    %1969 = vsyncpa [#allocation6], 1
    %s1970 = scalar_lea.sflag [#allocation6], 1
    %1971 = vsyncpa %s1970, 1

// kernel: seq2seq_forward.3
$region0: #{seq2seq_forward.3}
  #allocation0 [shape = 'u32[]', space=smem, size = 0x4, offset = 0x4, fixed_abs, tag = 'smem constant byte address 0x4 - core index']
  #allocation1 [shape = 'u32[72,128]{1,0:T(1,128)}', space=vmem, size = 0x9000, scoped, tag = 'internal scratch']
  #allocation2 [shape = 'f32[8,128]{1,0:T(8,128)}', space=vmem, size = 0x1000, scoped, tag = 'scratch operand']
  #allocation3 [shape = 'f32[8,8]{1,0:T(8,128)}', space=vmem, size = 0x1000, scoped, tag = 'scratch operand']
  %s0 = inlined_call_operand.vmem [shape: f32[16,128], index: 0, kind: input, shape index: {}]
  %s1 = inlined_call_operand.vmem [shape: f32[16,128], index: 1, kind: input, shape index: {}]
  %s2 = inlined_call_operand.vmem [shape: f32[2,1,128], index: 2, kind: input, shape index: {}]
  %s3 = inlined_call_operand.vmem [shape: f32[2,1,128], index: 3, kind: input, shape index: {}]
  %s4 = inlined_call_operand.hbm [shape: bf16[2,3,4,32,128], index: 4, kind: input, shape index: {}]
  %s5 = inlined_call_operand.vmem [shape: f32[2,3,4,1,32], index: 5, kind: input, shape index: {}]
  %s6 = inlined_call_operand.hbm [shape: bf16[2,4,32,128], index: 6, kind: input, shape index: {}]
  %s7 = inlined_call_operand.vmem [shape: f32[2,1,128], index: 7, kind: input, shape index: {}]
  %s8 = inlined_call_operand.vmem [shape: f32[2,1,128], index: 8, kind: input, shape index: {}]
  %s9 = inlined_call_operand.vmem [shape: f32[2,1,128], index: 9, kind: input, shape index: {}]
  %s10 = inlined_call_operand.hbm [shape: bf16[2,3,4,32,128], index: 10, kind: input, shape index: {}]
  %s11 = inlined_call_operand.hbm [shape: f32[2,3,4,1,32], index: 11, kind: input, shape index: {}]
  %s12 = inlined_call_operand.hbm [shape: bf16[2,4,32,128], index: 12, kind: input, shape index: {}]
  %s13 = inlined_call_operand.vmem [shape: f32[2,1,128], index: 13, kind: input, shape index: {}]
  %s14 = inlined_call_operand.vmem [shape: f32[2,1,128], index: 14, kind: input, shape index: {}]
  %s15 = inlined_call_operand.vmem [shape: f32[2,1,128], index: 15, kind: input, shape index: {}]
  %s16 = inlined_call_operand.hbm [shape: bf16[2,128,256], index: 16, kind: input, shape index: {}]
  %s17 = inlined_call_operand.vmem [shape: f32[2,1,256], index: 17, kind: input, shape index: {}]
  %s18 = inlined_call_operand.hbm [shape: bf16[2,256,128], index: 18, kind: input, shape index: {}]
  %s19 = inlined_call_operand.hbm [shape: f32[2,1,128], index: 19, kind: input, shape index: {}]
  %s20 = inlined_call_operand.vmem [shape: f32[1,128], index: 20, kind: input, shape index: {}]
  %s21 = inlined_call_operand.vmem [shape: f32[1,128], index: 21, kind: input, shape index: {}]
  %s22 = inlined_call_operand.vmem [shape: bf16[128,128], index: 22, kind: input, shape index: {}]
  %s23 = inlined_call_operand.vmem [shape: f32[1,128], index: 23, kind: input, shape index: {}]
  %s24 = inlined_call_operand.hbm [shape: f32[16,128], index: 24, kind: output, shape index: {}]
  %s25 = sld [smem:[#allocation0]]
  $region169: #{seq2seq_forward.3} parent=0
    _
  %s27 = ssub.s32 1, %s25
  %s28 = scalar_select 0, %s27, %s25
  $region1: #{seq2seq_forward.3} parent=0
    #allocation4 [shape = 'u8[196608]{0}', space=vmem, size = 0x30000, scoped, tag = 'input window, operand 4']
    #allocation5 [shape = 's32[2]{0}', space=sflag, size = 0x8, scoped, tag = 'scoped memory for seq2seq_forward.3']
    #allocation6 [shape = 's32[2]{0}', space=sflag, size = 0x8, scoped, tag = 'scoped memory for seq2seq_forward.3']
    #allocation7 [shape = 'u8[65536]{0}', space=vmem, size = 0x10000, scoped, tag = 'input window, operand 6']
    #allocation8 [shape = 's32[2]{0}', space=sflag, size = 0x8, scoped, tag = 'scoped memory for seq2seq_forward.3']
    #allocation9 [shape = 'u8[196608]{0}', space=vmem, size = 0x30000, scoped, tag = 'input window, operand 10']
    #allocation10 [shape = 'u8[12288]{0}', space=vmem, size = 0x3000, scoped, tag = 'input window, operand 11']
    #allocation11 [shape = 's32[2]{0}', space=sflag, size = 0x8, scoped, tag = 'scoped memory for seq2seq_forward.3']
    #allocation12 [shape = 'u8[65536]{0}', space=vmem, size = 0x10000, scoped, tag = 'input window, operand 12']
    #allocation13 [shape = 'u8[131072]{0}', space=vmem, size = 0x20000, scoped, tag = 'input window, operand 16']
    #allocation14 [shape = 's32[2]{0}', space=sflag, size = 0x8, scoped, tag = 'scoped memory for seq2seq_forward.3']
    #allocation15 [shape = 'u8[131072]{0}', space=vmem, size = 0x20000, scoped, tag = 'input window, operand 18']
    #allocation16 [shape = 'u8[1024]{0}', space=vmem, size = 0x400, scoped, tag = 'input window, operand 19']
    #allocation17 [shape = 's32[2]{0}', space=sflag, size = 0x8, scoped, tag = 'scoped memory for seq2seq_forward.3']
    #allocation18 [shape = 'u8[8192]{0}', space=vmem, size = 0x2000, scoped, tag = 'output window, operand 0']
    %29 = vsyncpa [#allocation5], 0
    %s30 = scalar_lea.sflag [#allocation5], 1
    %31 = vsyncpa %s30, 0
    %32 = vsyncpa [#allocation8], 0
    %s33 = scalar_lea.sflag [#allocation8], 1
    %34 = vsyncpa %s33, 0
    %35 = vsyncpa [#allocation11], 0
    %s36 = scalar_lea.sflag [#allocation11], 1
    %37 = vsyncpa %s36, 0
    %38 = vsyncpa [#allocation14], 0
    %s39 = scalar_lea.sflag [#allocation14], 1
    %40 = vsyncpa %s39, 0
    %41 = vsyncpa [#allocation17], 0
    %s42 = scalar_lea.sflag [#allocation17], 1
    %43 = vsyncpa %s42, 0
    %44 = vsyncpa [#allocation6], 0
    %s45 = scalar_lea.sflag [#allocation6], 1
    %46 = vsyncpa %s45, 0
    loop: start=0, step=1, limit=6
    $region2: #{seq2seq_forward.3} parent=1 // loop_pre_header
      _
    $region3: #{seq2seq_forward.3} parent=1 // loop_header
      %s48 = sphi 0, %s52
      %p49 = scmp.ge.s32.totalorder %s48, 6
      %s55 = sphi 0, %s67
      %s56 = sphi 0, %s63
      %s57 = sphi 0, %s55
      %s58 = sphi 0, %s56
      %s59 = sphi 0, %s57
      %s60 = sphi 0, %s58
      %s70 = sphi 0, %s72
      %s73 = sphi 0, %s70
      %s74 = sphi 0, %s73
      %s90 = sphi 0, %s74
      %s96 = sphi 0, %s98
      %s99 = sphi 0, %s96
      %s100 = sphi 0, %s99
      %s116 = sphi 0, %s100
      %s122 = sphi 0, %s124
      %s125 = sphi 0, %s122
      %s126 = sphi 0, %s125
      %s142 = sphi 0, %s126
      %s148 = sphi 0, %s150
      %s151 = sphi 0, %s148
      %s152 = sphi 0, %s151
      %s168 = sphi 0, %s152
      %s174 = sphi 0, %s176
      %s177 = sphi 0, %s174
      %s178 = sphi 0, %s177
      %s194 = sphi 0, %s178
      %s200 = sphi 0, %s202
      %s203 = sphi 0, %s200
      %s204 = sphi 0, %s203
      %s220 = sphi 0, %s204
      %s226 = sphi 0, %s228
      %s229 = sphi 0, %s226
      %s230 = sphi 0, %s229
      %s246 = sphi 0, %s230
      %s252 = sphi 0, %s254
      %s255 = sphi 0, %s252
      %s256 = sphi 0, %s255
      %s272 = sphi 0, %s256
      %s278 = sphi 0, %s280
      %s281 = sphi 0, %s278
      %s282 = sphi 0, %s281
      %s298 = sphi 0, %s282
      %s304 = sphi 0, %s306
      %s307 = sphi 0, %s304
      %s308 = sphi 0, %s307
      %s324 = sphi 0, %s308
      %s330 = sphi 0, %s332
      %s333 = sphi 0, %s330
      %s334 = sphi 0, %s333
      %s350 = sphi 0, %s334
      %s356 = sphi 0, %s358
      %s359 = sphi 0, %s356
      %s360 = sphi 0, %s359
      %s376 = sphi 0, %s360
      %s382 = sphi 0, %s384
      %s385 = sphi 0, %s382
      %s386 = sphi 0, %s385
      %s402 = sphi 0, %s386
      %s408 = sphi 0, %s410
      %s411 = sphi 0, %s408
      %s412 = sphi 0, %s411
      %s428 = sphi 0, %s412
      %s434 = sphi 0, %s436
      %s437 = sphi 0, %s434
      %s438 = sphi 0, %s437
      %s454 = sphi 0, %s438
      %s460 = sphi 0, %s462
      %s463 = sphi 0, %s460
      %s464 = sphi 0, %s463
      %s480 = sphi 0, %s464
      %s486 = sphi 0, %s488
      %s489 = sphi 0, %s486
      %s490 = sphi 0, %s489
      %s506 = sphi 0, %s490
      %s512 = sphi 0, %s514
      %s515 = sphi 0, %s512
      %s516 = sphi 0, %s515
      %s532 = sphi 0, %s516
      %s538 = sphi 0, %s540
      %s541 = sphi 0, %s538
      %s542 = sphi 0, %s541
      %s558 = sphi 0, %s542
      %s564 = sphi 0, %s566
      %s567 = sphi 0, %s564
      %s568 = sphi 0, %s567
      %s584 = sphi 0, %s568
      %s588 = sphi 0, %s588
      %s590 = sphi 0, %s588
      %s591 = sphi 0, %s590
      %s605 = sphi 0, %s591
      %s609 = sphi 0, %s609
      %s611 = sphi 0, %s609
      %s612 = sphi 0, %s611
      %s626 = sphi 0, %s612
      %s630 = sphi 0, %s630
      %s632 = sphi 0, %s630
      %s633 = sphi 0, %s632
      %s647 = sphi 0, %s633
      %s651 = sphi 0, %s651
      %s653 = sphi 0, %s651
      %s654 = sphi 0, %s653
      %s668 = sphi 0, %s654
      %s674 = sphi 0, %s676
      %s677 = sphi 0, %s674
      %s678 = sphi 0, %s677
      %s694 = sphi 0, %s678
    $region4: #{seq2seq_forward.3} parent=1 // loop_header_branch
      %51 = sbr.rel (%p49) target = $region8
    $region5: #{seq2seq_forward.3} parent=1 // loop_body
      %s53 = ssub.s32 %s48, 1
      %s54 = ssub.s32 %s48, 2
      %s61 = sadd.s32 1, %s56
      %p62 = scmp.ge.s32.totalorder %s61, 2
      %s63 = scalar_select %p62, 0, %s61
      %s64 = sadd.s32 1, %s55
      %s65 = scalar_select %p62, %s64, %s55
      %p66 = scmp.ge.s32.totalorder %s65, 2
      %s67 = scalar_select %p66, 0, %s65
      %s68 = ssub.s32 %s55, %s67
      %p69 = scmp.eq.s32.totalorder %s68, 0
      %s71 = sadd.s32 %s70, 1
      %s72 = scalar_select %p69, %s70, %s71
      %p75 = pneg %p69
      %p76 = scmp.eq.s32.totalorder %s48, 3
      %p77 = por %p75, %p76
      %p78 = scmp.ne.s32.totalorder %s70, %s73
      %p79 = scmp.eq.s32.totalorder %s48, 0
      %p80 = por %p78, %p79
      %p81 = scmp.ne.s32.totalorder %s70, %s73
      %p82 = scmp.eq.s32.totalorder %s53, 3
      %p83 = por %p81, %p82
      %p84 = scmp.ne.s32.totalorder %s73, %s74
      %p85 = scmp.eq.s32.totalorder %s53, 0
      %p86 = por %p84, %p85
      %p87 = scmp.ne.s32.totalorder %s73, %s74
      %p88 = scmp.eq.s32.totalorder %s54, 3
      %p89 = por %p87, %p88
      %p91 = scmp.ne.s32.totalorder %s74, %s90
      %p92 = scmp.eq.s32.totalorder %s54, 0
      %p93 = por %p91, %p92
      %s94 = ssub.s32 %s55, %s67
      %p95 = scmp.eq.s32.totalorder %s94, 0
      %s97 = sadd.s32 %s96, 1
      %s98 = scalar_select %p95, %s96, %s97
      %p101 = pneg %p95
      %p102 = scmp.eq.s32.totalorder %s48, 3
      %p103 = por %p101, %p102
      %p104 = scmp.ne.s32.totalorder %s96, %s99
      %p105 = scmp.eq.s32.totalorder %s48, 0
      %p106 = por %p104, %p105
      %p107 = scmp.ne.s32.totalorder %s96, %s99
      %p108 = scmp.eq.s32.totalorder %s53, 3
      %p109 = por %p107, %p108
      %p110 = scmp.ne.s32.totalorder %s99, %s100
      %p111 = scmp.eq.s32.totalorder %s53, 0
      %p112 = por %p110, %p111
      %p113 = scmp.ne.s32.totalorder %s99, %s100
      %p114 = scmp.eq.s32.totalorder %s54, 3
      %p115 = por %p113, %p114
      %p117 = scmp.ne.s32.totalorder %s100, %s116
      %p118 = scmp.eq.s32.totalorder %s54, 0
      %p119 = por %p117, %p118
      %s120 = ssub.s32 %s56, %s63
      %p121 = scmp.eq.s32.totalorder %s120, 0
      %s123 = sadd.s32 %s122, 1
      %s124 = scalar_select %p121, %s122, %s123
      %p127 = pneg %p121
      %p128 = scmp.eq.s32.totalorder %s48, 3
      %p129 = por %p127, %p128
      %p130 = scmp.ne.s32.totalorder %s122, %s125
      %p131 = scmp.eq.s32.totalorder %s48, 0
      %p132 = por %p130, %p131
      %p133 = scmp.ne.s32.totalorder %s122, %s125
      %p134 = scmp.eq.s32.totalorder %s53, 3
      %p135 = por %p133, %p134
      %p136 = scmp.ne.s32.totalorder %s125, %s126
      %p137 = scmp.eq.s32.totalorder %s53, 0
      %p138 = por %p136, %p137
      %p139 = scmp.ne.s32.totalorder %s125, %s126
      %p140 = scmp.eq.s32.totalorder %s54, 3
      %p141 = por %p139, %p140
      %p143 = scmp.ne.s32.totalorder %s126, %s142
      %p144 = scmp.eq.s32.totalorder %s54, 0
      %p145 = por %p143, %p144
      %s146 = ssub.s32 %s56, %s63
      %p147 = scmp.eq.s32.totalorder %s146, 0
      %s149 = sadd.s32 %s148, 1
      %s150 = scalar_select %p147, %s148, %s149
      %p153 = pneg %p147
      %p154 = scmp.eq.s32.totalorder %s48, 3
      %p155 = por %p153, %p154
      %p156 = scmp.ne.s32.totalorder %s148, %s151
      %p157 = scmp.eq.s32.totalorder %s48, 0
      %p158 = por %p156, %p157
      %p159 = scmp.ne.s32.totalorder %s148, %s151
      %p160 = scmp.eq.s32.totalorder %s53, 3
      %p161 = por %p159, %p160
      %p162 = scmp.ne.s32.totalorder %s151, %s152
      %p163 = scmp.eq.s32.totalorder %s53, 0
      %p164 = por %p162, %p163
      %p165 = scmp.ne.s32.totalorder %s151, %s152
      %p166 = scmp.eq.s32.totalorder %s54, 3
      %p167 = por %p165, %p166
      %p169 = scmp.ne.s32.totalorder %s152, %s168
      %p170 = scmp.eq.s32.totalorder %s54, 0
      %p171 = por %p169, %p170
      %s172 = ssub.s32 %s56, %s63
      %p173 = scmp.eq.s32.totalorder %s172, 0
      %s175 = sadd.s32 %s174, 1
      %s176 = scalar_select %p173, %s174, %s175
      %p179 = pneg %p173
      %p180 = scmp.eq.s32.totalorder %s48, 3
      %p181 = por %p179, %p180
      %p182 = scmp.ne.s32.totalorder %s174, %s177
      %p183 = scmp.eq.s32.totalorder %s48, 0
      %p184 = por %p182, %p183
      %p185 = scmp.ne.s32.totalorder %s174, %s177
      %p186 = scmp.eq.s32.totalorder %s53, 3
      %p187 = por %p185, %p186
      %p188 = scmp.ne.s32.totalorder %s177, %s178
      %p189 = scmp.eq.s32.totalorder %s53, 0
      %p190 = por %p188, %p189
      %p191 = scmp.ne.s32.totalorder %s177, %s178
      %p192 = scmp.eq.s32.totalorder %s54, 3
      %p193 = por %p191, %p192
      %p195 = scmp.ne.s32.totalorder %s178, %s194
      %p196 = scmp.eq.s32.totalorder %s54, 0
      %p197 = por %p195, %p196
      %s198 = ssub.s32 %s56, %s63
      %p199 = scmp.eq.s32.totalorder %s198, 0
      %s201 = sadd.s32 %s200, 1
      %s202 = scalar_select %p199, %s200, %s201
      %p205 = pneg %p199
      %p206 = scmp.eq.s32.totalorder %s48, 3
      %p207 = por %p205, %p206
      %p208 = scmp.ne.s32.totalorder %s200, %s203
      %p209 = scmp.eq.s32.totalorder %s48, 0
      %p210 = por %p208, %p209
      %p211 = scmp.ne.s32.totalorder %s200, %s203
      %p212 = scmp.eq.s32.totalorder %s53, 3
      %p213 = por %p211, %p212
      %p214 = scmp.ne.s32.totalorder %s203, %s204
      %p215 = scmp.eq.s32.totalorder %s53, 0
      %p216 = por %p214, %p215
      %p217 = scmp.ne.s32.totalorder %s203, %s204
      %p218 = scmp.eq.s32.totalorder %s54, 3
      %p219 = por %p217, %p218
      %p221 = scmp.ne.s32.totalorder %s204, %s220
      %p222 = scmp.eq.s32.totalorder %s54, 0
      %p223 = por %p221, %p222
      %s224 = ssub.s32 %s56, %s63
      %p225 = scmp.eq.s32.totalorder %s224, 0
      %s227 = sadd.s32 %s226, 1
      %s228 = scalar_select %p225, %s226, %s227
      %p231 = pneg %p225
      %p232 = scmp.eq.s32.totalorder %s48, 3
      %p233 = por %p231, %p232
      %p234 = scmp.ne.s32.totalorder %s226, %s229
      %p235 = scmp.eq.s32.totalorder %s48, 0
      %p236 = por %p234, %p235
      %p237 = scmp.ne.s32.totalorder %s226, %s229
      %p238 = scmp.eq.s32.totalorder %s53, 3
      %p239 = por %p237, %p238
      %p240 = scmp.ne.s32.totalorder %s229, %s230
      %p241 = scmp.eq.s32.totalorder %s53, 0
      %p242 = por %p240, %p241
      %p243 = scmp.ne.s32.totalorder %s229, %s230
      %p244 = scmp.eq.s32.totalorder %s54, 3
      %p245 = por %p243, %p244
      %p247 = scmp.ne.s32.totalorder %s230, %s246
      %p248 = scmp.eq.s32.totalorder %s54, 0
      %p249 = por %p247, %p248
      %s250 = ssub.s32 %s56, %s63
      %p251 = scmp.eq.s32.totalorder %s250, 0
      %s253 = sadd.s32 %s252, 1
      %s254 = scalar_select %p251, %s252, %s253
      %p257 = pneg %p251
      %p258 = scmp.eq.s32.totalorder %s48, 3
      %p259 = por %p257, %p258
      %p260 = scmp.ne.s32.totalorder %s252, %s255
      %p261 = scmp.eq.s32.totalorder %s48, 0
      %p262 = por %p260, %p261
      %p263 = scmp.ne.s32.totalorder %s252, %s255
      %p264 = scmp.eq.s32.totalorder %s53, 3
      %p265 = por %p263, %p264
      %p266 = scmp.ne.s32.totalorder %s255, %s256
      %p267 = scmp.eq.s32.totalorder %s53, 0
      %p268 = por %p266, %p267
      %p269 = scmp.ne.s32.totalorder %s255, %s256
      %p270 = scmp.eq.s32.totalorder %s54, 3
      %p271 = por %p269, %p270
      %p273 = scmp.ne.s32.totalorder %s256, %s272
      %p274 = scmp.eq.s32.totalorder %s54, 0
      %p275 = por %p273, %p274
      %s276 = ssub.s32 %s56, %s63
      %p277 = scmp.eq.s32.totalorder %s276, 0
      %s279 = sadd.s32 %s278, 1
      %s280 = scalar_select %p277, %s278, %s279
      %p283 = pneg %p277
      %p284 = scmp.eq.s32.totalorder %s48, 3
      %p285 = por %p283, %p284
      %p286 = scmp.ne.s32.totalorder %s278, %s281
      %p287 = scmp.eq.s32.totalorder %s48, 0
      %p288 = por %p286, %p287
      %p289 = scmp.ne.s32.totalorder %s278, %s281
      %p290 = scmp.eq.s32.totalorder %s53, 3
      %p291 = por %p289, %p290
      %p292 = scmp.ne.s32.totalorder %s281, %s282
      %p293 = scmp.eq.s32.totalorder %s53, 0
      %p294 = por %p292, %p293
      %p295 = scmp.ne.s32.totalorder %s281, %s282
      %p296 = scmp.eq.s32.totalorder %s54, 3
      %p297 = por %p295, %p296
      %p299 = scmp.ne.s32.totalorder %s282, %s298
      %p300 = scmp.eq.s32.totalorder %s54, 0
      %p301 = por %p299, %p300
      %s302 = ssub.s32 %s56, %s63
      %p303 = scmp.eq.s32.totalorder %s302, 0
      %s305 = sadd.s32 %s304, 1
      %s306 = scalar_select %p303, %s304, %s305
      %p309 = pneg %p303
      %p310 = scmp.eq.s32.totalorder %s48, 3
      %p311 = por %p309, %p310
      %p312 = scmp.ne.s32.totalorder %s304, %s307
      %p313 = scmp.eq.s32.totalorder %s48, 0
      %p314 = por %p312, %p313
      %p315 = scmp.ne.s32.totalorder %s304, %s307
      %p316 = scmp.eq.s32.totalorder %s53, 3
      %p317 = por %p315, %p316
      %p318 = scmp.ne.s32.totalorder %s307, %s308
      %p319 = scmp.eq.s32.totalorder %s53, 0
      %p320 = por %p318, %p319
      %p321 = scmp.ne.s32.totalorder %s307, %s308
      %p322 = scmp.eq.s32.totalorder %s54, 3
      %p323 = por %p321, %p322
      %p325 = scmp.ne.s32.totalorder %s308, %s324
      %p326 = scmp.eq.s32.totalorder %s54, 0
      %p327 = por %p325, %p326
      %s328 = ssub.s32 %s56, %s63
      %p329 = scmp.eq.s32.totalorder %s328, 0
      %s331 = sadd.s32 %s330, 1
      %s332 = scalar_select %p329, %s330, %s331
      %p335 = pneg %p329
      %p336 = scmp.eq.s32.totalorder %s48, 3
      %p337 = por %p335, %p336
      %p338 = scmp.ne.s32.totalorder %s330, %s333
      %p339 = scmp.eq.s32.totalorder %s48, 0
      %p340 = por %p338, %p339
      %p341 = scmp.ne.s32.totalorder %s330, %s333
      %p342 = scmp.eq.s32.totalorder %s53, 3
      %p343 = por %p341, %p342
      %p344 = scmp.ne.s32.totalorder %s333, %s334
      %p345 = scmp.eq.s32.totalorder %s53, 0
      %p346 = por %p344, %p345
      %p347 = scmp.ne.s32.totalorder %s333, %s334
      %p348 = scmp.eq.s32.totalorder %s54, 3
      %p349 = por %p347, %p348
      %p351 = scmp.ne.s32.totalorder %s334, %s350
      %p352 = scmp.eq.s32.totalorder %s54, 0
      %p353 = por %p351, %p352
      %s354 = ssub.s32 %s56, %s63
      %p355 = scmp.eq.s32.totalorder %s354, 0
      %s357 = sadd.s32 %s356, 1
      %s358 = scalar_select %p355, %s356, %s357
      %p361 = pneg %p355
      %p362 = scmp.eq.s32.totalorder %s48, 3
      %p363 = por %p361, %p362
      %p364 = scmp.ne.s32.totalorder %s356, %s359
      %p365 = scmp.eq.s32.totalorder %s48, 0
      %p366 = por %p364, %p365
      %p367 = scmp.ne.s32.totalorder %s356, %s359
      %p368 = scmp.eq.s32.totalorder %s53, 3
      %p369 = por %p367, %p368
      %p370 = scmp.ne.s32.totalorder %s359, %s360
      %p371 = scmp.eq.s32.totalorder %s53, 0
      %p372 = por %p370, %p371
      %p373 = scmp.ne.s32.totalorder %s359, %s360
      %p374 = scmp.eq.s32.totalorder %s54, 3
      %p375 = por %p373, %p374
      %p377 = scmp.ne.s32.totalorder %s360, %s376
      %p378 = scmp.eq.s32.totalorder %s54, 0
      %p379 = por %p377, %p378
      %s380 = ssub.s32 %s56, %s63
      %p381 = scmp.eq.s32.totalorder %s380, 0
      %s383 = sadd.s32 %s382, 1
      %s384 = scalar_select %p381, %s382, %s383
      %p387 = pneg %p381
      %p388 = scmp.eq.s32.totalorder %s48, 3
      %p389 = por %p387, %p388
      %p390 = scmp.ne.s32.totalorder %s382, %s385
      %p391 = scmp.eq.s32.totalorder %s48, 0
      %p392 = por %p390, %p391
      %p393 = scmp.ne.s32.totalorder %s382, %s385
      %p394 = scmp.eq.s32.totalorder %s53, 3
      %p395 = por %p393, %p394
      %p396 = scmp.ne.s32.totalorder %s385, %s386
      %p397 = scmp.eq.s32.totalorder %s53, 0
      %p398 = por %p396, %p397
      %p399 = scmp.ne.s32.totalorder %s385, %s386
      %p400 = scmp.eq.s32.totalorder %s54, 3
      %p401 = por %p399, %p400
      %p403 = scmp.ne.s32.totalorder %s386, %s402
      %p404 = scmp.eq.s32.totalorder %s54, 0
      %p405 = por %p403, %p404
      %s406 = ssub.s32 %s56, %s63
      %p407 = scmp.eq.s32.totalorder %s406, 0
      %s409 = sadd.s32 %s408, 1
      %s410 = scalar_select %p407, %s408, %s409
      %p413 = pneg %p407
      %p414 = scmp.eq.s32.totalorder %s48, 3
      %p415 = por %p413, %p414
      %p416 = scmp.ne.s32.totalorder %s408, %s411
      %p417 = scmp.eq.s32.totalorder %s48, 0
      %p418 = por %p416, %p417
      %p419 = scmp.ne.s32.totalorder %s408, %s411
      %p420 = scmp.eq.s32.totalorder %s53, 3
      %p421 = por %p419, %p420
      %p422 = scmp.ne.s32.totalorder %s411, %s412
      %p423 = scmp.eq.s32.totalorder %s53, 0
      %p424 = por %p422, %p423
      %p425 = scmp.ne.s32.totalorder %s411, %s412
      %p426 = scmp.eq.s32.totalorder %s54, 3
      %p427 = por %p425, %p426
      %p429 = scmp.ne.s32.totalorder %s412, %s428
      %p430 = scmp.eq.s32.totalorder %s54, 0
      %p431 = por %p429, %p430
      %s432 = ssub.s32 %s56, %s63
      %p433 = scmp.eq.s32.totalorder %s432, 0
      %s435 = sadd.s32 %s434, 1
      %s436 = scalar_select %p433, %s434, %s435
      %p439 = pneg %p433
      %p440 = scmp.eq.s32.totalorder %s48, 3
      %p441 = por %p439, %p440
      %p442 = scmp.ne.s32.totalorder %s434, %s437
      %p443 = scmp.eq.s32.totalorder %s48, 0
      %p444 = por %p442, %p443
      %p445 = scmp.ne.s32.totalorder %s434, %s437
      %p446 = scmp.eq.s32.totalorder %s53, 3
      %p447 = por %p445, %p446
      %p448 = scmp.ne.s32.totalorder %s437, %s438
      %p449 = scmp.eq.s32.totalorder %s53, 0
      %p450 = por %p448, %p449
      %p451 = scmp.ne.s32.totalorder %s437, %s438
      %p452 = scmp.eq.s32.totalorder %s54, 3
      %p453 = por %p451, %p452
      %p455 = scmp.ne.s32.totalorder %s438, %s454
      %p456 = scmp.eq.s32.totalorder %s54, 0
      %p457 = por %p455, %p456
      %s458 = ssub.s32 %s56, %s63
      %p459 = scmp.eq.s32.totalorder %s458, 0
      %s461 = sadd.s32 %s460, 1
      %s462 = scalar_select %p459, %s460, %s461
      %p465 = pneg %p459
      %p466 = scmp.eq.s32.totalorder %s48, 3
      %p467 = por %p465, %p466
      %p468 = scmp.ne.s32.totalorder %s460, %s463
      %p469 = scmp.eq.s32.totalorder %s48, 0
      %p470 = por %p468, %p469
      %p471 = scmp.ne.s32.totalorder %s460, %s463
      %p472 = scmp.eq.s32.totalorder %s53, 3
      %p473 = por %p471, %p472
      %p474 = scmp.ne.s32.totalorder %s463, %s464
      %p475 = scmp.eq.s32.totalorder %s53, 0
      %p476 = por %p474, %p475
      %p477 = scmp.ne.s32.totalorder %s463, %s464
      %p478 = scmp.eq.s32.totalorder %s54, 3
      %p479 = por %p477, %p478
      %p481 = scmp.ne.s32.totalorder %s464, %s480
      %p482 = scmp.eq.s32.totalorder %s54, 0
      %p483 = por %p481, %p482
      %s484 = ssub.s32 %s56, %s63
      %p485 = scmp.eq.s32.totalorder %s484, 0
      %s487 = sadd.s32 %s486, 1
      %s488 = scalar_select %p485, %s486, %s487
      %p491 = pneg %p485
      %p492 = scmp.eq.s32.totalorder %s48, 3
      %p493 = por %p491, %p492
      %p494 = scmp.ne.s32.totalorder %s486, %s489
      %p495 = scmp.eq.s32.totalorder %s48, 0
      %p496 = por %p494, %p495
      %p497 = scmp.ne.s32.totalorder %s486, %s489
      %p498 = scmp.eq.s32.totalorder %s53, 3
      %p499 = por %p497, %p498
      %p500 = scmp.ne.s32.totalorder %s489, %s490
      %p501 = scmp.eq.s32.totalorder %s53, 0
      %p502 = por %p500, %p501
      %p503 = scmp.ne.s32.totalorder %s489, %s490
      %p504 = scmp.eq.s32.totalorder %s54, 3
      %p505 = por %p503, %p504
      %p507 = scmp.ne.s32.totalorder %s490, %s506
      %p508 = scmp.eq.s32.totalorder %s54, 0
      %p509 = por %p507, %p508
      %s510 = ssub.s32 %s56, %s63
      %p511 = scmp.eq.s32.totalorder %s510, 0
      %s513 = sadd.s32 %s512, 1
      %s514 = scalar_select %p511, %s512, %s513
      %p517 = pneg %p511
      %p518 = scmp.eq.s32.totalorder %s48, 3
      %p519 = por %p517, %p518
      %p520 = scmp.ne.s32.totalorder %s512, %s515
      %p521 = scmp.eq.s32.totalorder %s48, 0
      %p522 = por %p520, %p521
      %p523 = scmp.ne.s32.totalorder %s512, %s515
      %p524 = scmp.eq.s32.totalorder %s53, 3
      %p525 = por %p523, %p524
      %p526 = scmp.ne.s32.totalorder %s515, %s516
      %p527 = scmp.eq.s32.totalorder %s53, 0
      %p528 = por %p526, %p527
      %p529 = scmp.ne.s32.totalorder %s515, %s516
      %p530 = scmp.eq.s32.totalorder %s54, 3
      %p531 = por %p529, %p530
      %p533 = scmp.ne.s32.totalorder %s516, %s532
      %p534 = scmp.eq.s32.totalorder %s54, 0
      %p535 = por %p533, %p534
      %s536 = ssub.s32 %s56, %s63
      %p537 = scmp.eq.s32.totalorder %s536, 0
      %s539 = sadd.s32 %s538, 1
      %s540 = scalar_select %p537, %s538, %s539
      %p543 = pneg %p537
      %p544 = scmp.eq.s32.totalorder %s48, 3
      %p545 = por %p543, %p544
      %p546 = scmp.ne.s32.totalorder %s538, %s541
      %p547 = scmp.eq.s32.totalorder %s48, 0
      %p548 = por %p546, %p547
      %p549 = scmp.ne.s32.totalorder %s538, %s541
      %p550 = scmp.eq.s32.totalorder %s53, 3
      %p551 = por %p549, %p550
      %p552 = scmp.ne.s32.totalorder %s541, %s542
      %p553 = scmp.eq.s32.totalorder %s53, 0
      %p554 = por %p552, %p553
      %p555 = scmp.ne.s32.totalorder %s541, %s542
      %p556 = scmp.eq.s32.totalorder %s54, 3
      %p557 = por %p555, %p556
      %p559 = scmp.ne.s32.totalorder %s542, %s558
      %p560 = scmp.eq.s32.totalorder %s54, 0
      %p561 = por %p559, %p560
      %s562 = ssub.s32 %s56, %s63
      %p563 = scmp.eq.s32.totalorder %s562, 0
      %s565 = sadd.s32 %s564, 1
      %s566 = scalar_select %p563, %s564, %s565
      %p569 = pneg %p563
      %p570 = scmp.eq.s32.totalorder %s48, 3
      %p571 = por %p569, %p570
      %p572 = scmp.ne.s32.totalorder %s564, %s567
      %p573 = scmp.eq.s32.totalorder %s48, 0
      %p574 = por %p572, %p573
      %p575 = scmp.ne.s32.totalorder %s564, %s567
      %p576 = scmp.eq.s32.totalorder %s53, 3
      %p577 = por %p575, %p576
      %p578 = scmp.ne.s32.totalorder %s567, %s568
      %p579 = scmp.eq.s32.totalorder %s53, 0
      %p580 = por %p578, %p579
      %p581 = scmp.ne.s32.totalorder %s567, %s568
      %p582 = scmp.eq.s32.totalorder %s54, 3
      %p583 = por %p581, %p582
      %p585 = scmp.ne.s32.totalorder %s568, %s584
      %p586 = scmp.eq.s32.totalorder %s54, 0
      %p587 = por %p585, %p586
      %s589 = sadd.s32 %s588, 1
      %p592 = scmp.eq.s32.totalorder %s48, 3
      %p593 = scmp.ne.s32.totalorder %s588, %s590
      %p594 = scmp.eq.s32.totalorder %s48, 0
      %p595 = por %p593, %p594
      %p596 = scmp.ne.s32.totalorder %s588, %s590
      %p597 = scmp.eq.s32.totalorder %s53, 3
      %p598 = por %p596, %p597
      %p599 = scmp.ne.s32.totalorder %s590, %s591
      %p600 = scmp.eq.s32.totalorder %s53, 0
      %p601 = por %p599, %p600
      %p602 = scmp.ne.s32.totalorder %s590, %s591
      %p603 = scmp.eq.s32.totalorder %s54, 3
      %p604 = por %p602, %p603
      %p606 = scmp.ne.s32.totalorder %s591, %s605
      %p607 = scmp.eq.s32.totalorder %s54, 0
      %p608 = por %p606, %p607
      %s610 = sadd.s32 %s609, 1
      %p613 = scmp.eq.s32.totalorder %s48, 3
      %p614 = scmp.ne.s32.totalorder %s609, %s611
      %p615 = scmp.eq.s32.totalorder %s48, 0
      %p616 = por %p614, %p615
      %p617 = scmp.ne.s32.totalorder %s609, %s611
      %p618 = scmp.eq.s32.totalorder %s53, 3
      %p619 = por %p617, %p618
      %p620 = scmp.ne.s32.totalorder %s611, %s612
      %p621 = scmp.eq.s32.totalorder %s53, 0
      %p622 = por %p620, %p621
      %p623 = scmp.ne.s32.totalorder %s611, %s612
      %p624 = scmp.eq.s32.totalorder %s54, 3
      %p625 = por %p623, %p624
      %p627 = scmp.ne.s32.totalorder %s612, %s626
      %p628 = scmp.eq.s32.totalorder %s54, 0
      %p629 = por %p627, %p628
      %s631 = sadd.s32 %s630, 1
      %p634 = scmp.eq.s32.totalorder %s48, 3
      %p635 = scmp.ne.s32.totalorder %s630, %s632
      %p636 = scmp.eq.s32.totalorder %s48, 0
      %p637 = por %p635, %p636
      %p638 = scmp.ne.s32.totalorder %s630, %s632
      %p639 = scmp.eq.s32.totalorder %s53, 3
      %p640 = por %p638, %p639
      %p641 = scmp.ne.s32.totalorder %s632, %s633
      %p642 = scmp.eq.s32.totalorder %s53, 0
      %p643 = por %p641, %p642
      %p644 = scmp.ne.s32.totalorder %s632, %s633
      %p645 = scmp.eq.s32.totalorder %s54, 3
      %p646 = por %p644, %p645
      %p648 = scmp.ne.s32.totalorder %s633, %s647
      %p649 = scmp.eq.s32.totalorder %s54, 0
      %p650 = por %p648, %p649
      %s652 = sadd.s32 %s651, 1
      %p655 = scmp.eq.s32.totalorder %s48, 3
      %p656 = scmp.ne.s32.totalorder %s651, %s653
      %p657 = scmp.eq.s32.totalorder %s48, 0
      %p658 = por %p656, %p657
      %p659 = scmp.ne.s32.totalorder %s651, %s653
      %p660 = scmp.eq.s32.totalorder %s53, 3
      %p661 = por %p659, %p660
      %p662 = scmp.ne.s32.totalorder %s653, %s654
      %p663 = scmp.eq.s32.totalorder %s53, 0
      %p664 = por %p662, %p663
      %p665 = scmp.ne.s32.totalorder %s653, %s654
      %p666 = scmp.eq.s32.totalorder %s54, 3
      %p667 = por %p665, %p666
      %p669 = scmp.ne.s32.totalorder %s654, %s668
      %p670 = scmp.eq.s32.totalorder %s54, 0
      %p671 = por %p669, %p670
      %s672 = ssub.s32 %s55, %s67
      %p673 = scmp.eq.s32.totalorder %s672, 0
      %s675 = sadd.s32 %s674, 1
      %s676 = scalar_select %p673, %s674, %s675
      %p679 = pneg %p673
      %p680 = scmp.eq.s32.totalorder %s48, 3
      %p681 = por %p679, %p680
      %p682 = scmp.ne.s32.totalorder %s674, %s677
      %p683 = scmp.eq.s32.totalorder %s48, 0
      %p684 = por %p682, %p683
      %p685 = scmp.ne.s32.totalorder %s674, %s677
      %p686 = scmp.eq.s32.totalorder %s53, 3
      %p687 = por %p685, %p686
      %p688 = scmp.ne.s32.totalorder %s677, %s678
      %p689 = scmp.eq.s32.totalorder %s53, 0
      %p690 = por %p688, %p689
      %p691 = scmp.ne.s32.totalorder %s677, %s678
      %p692 = scmp.eq.s32.totalorder %s54, 3
      %p693 = por %p691, %p692
      %p695 = scmp.ne.s32.totalorder %s678, %s694
      %p696 = scmp.eq.s32.totalorder %s54, 0
      %p697 = por %p695, %p696
      %p698 = scmp.le.s32.totalorder 1, %s48
      %p699 = scmp.lt.s32.totalorder %s48, 5
      %p700 = pnand %p698, %p699
      %p701 = pneg %p700
      // Predicated region
      $region9: #{seq2seq_forward.3} parent=5 // pred_check
        _
      $region10: #{seq2seq_forward.3} parent=5 // pred_check_branch
        %703 = sbr.rel (%p700) target = $region12
      $region11: #{seq2seq_forward.3} parent=5 // pred_region
        %s704 = ssub.s32 %s48, 1
        // Predicated region
        $region13: #{seq2seq_forward.3} parent=11 // pred_check
          %p705 = pneg %p601
        $region14: #{seq2seq_forward.3} parent=11 // pred_check_branch
          %707 = sbr.rel (%p705) target = $region16
        $region15: #{seq2seq_forward.3} parent=11 // pred_region
          _
        $region16: #{seq2seq_forward.3} parent=11 // pred_fallthru
          _
        // Predicated region
        $region17: #{seq2seq_forward.3} parent=11 // pred_check
          %p708 = pneg %p622
        $region18: #{seq2seq_forward.3} parent=11 // pred_check_branch
          %710 = sbr.rel (%p708) target = $region20
        $region19: #{seq2seq_forward.3} parent=11 // pred_region
          _
        $region20: #{seq2seq_forward.3} parent=11 // pred_fallthru
          _
        // Predicated region
        $region21: #{seq2seq_forward.3} parent=11 // pred_check
          %p711 = pneg %p643
        $region22: #{seq2seq_forward.3} parent=11 // pred_check_branch
          %713 = sbr.rel (%p711) target = $region24
        $region23: #{seq2seq_forward.3} parent=11 // pred_region
          _
        $region24: #{seq2seq_forward.3} parent=11 // pred_fallthru
          _
        // Predicated region
        $region25: #{seq2seq_forward.3} parent=11 // pred_check
          %p714 = pneg %p664
        $region26: #{seq2seq_forward.3} parent=11 // pred_check_branch
          %716 = sbr.rel (%p714) target = $region28
        $region27: #{seq2seq_forward.3} parent=11 // pred_region
          _
        $region28: #{seq2seq_forward.3} parent=11 // pred_fallthru
          _
      $region12: #{seq2seq_forward.3} parent=5 // pred_fallthru
        _
      %p717 = scmp.lt.s32.totalorder %s48, 4
      // Predicated region
      $region29: #{seq2seq_forward.3} parent=5 // pred_check
        %p718 = pneg %p717
      $region30: #{seq2seq_forward.3} parent=5 // pred_check_branch
        %720 = sbr.rel (%p718) target = $region32
      $region31: #{seq2seq_forward.3} parent=5 // pred_region
        // Predicated region
        $region33: #{seq2seq_forward.3} parent=31 // pred_check
          %p721 = pneg %p80
        $region34: #{seq2seq_forward.3} parent=31 // pred_check_branch
          %723 = sbr.rel (%p721) target = $region36
        $region35: #{seq2seq_forward.3} parent=31 // pred_region
          %p724 = scmp.lt.s32.totalorder %s55, 1
          %s725 = scalar_select %p724, %s55, 1
          %s726 = smul.addr %s725, 8
          %s727 = scalar_lea.vmem %s0, %s726
        $region36: #{seq2seq_forward.3} parent=31 // pred_fallthru
          _
        // Predicated region
        $region37: #{seq2seq_forward.3} parent=31 // pred_check
          %p728 = pneg %p106
        $region38: #{seq2seq_forward.3} parent=31 // pred_check_branch
          %730 = sbr.rel (%p728) target = $region40
        $region39: #{seq2seq_forward.3} parent=31 // pred_region
          %p731 = scmp.lt.s32.totalorder %s55, 1
          %s732 = scalar_select %p731, %s55, 1
          %s733 = smul.addr %s732, 8
          %s734 = scalar_lea.vmem %s1, %s733
        $region40: #{seq2seq_forward.3} parent=31 // pred_fallthru
          _
        // Predicated region
        $region41: #{seq2seq_forward.3} parent=31 // pred_check
          %p735 = pneg %p132
        $region42: #{seq2seq_forward.3} parent=31 // pred_check_branch
          %737 = sbr.rel (%p735) target = $region44
        $region43: #{seq2seq_forward.3} parent=31 // pred_region
          %p738 = scmp.lt.s32.totalorder %s56, 1
          %s739 = scalar_select %p738, %s56, 1
          %s740 = scalar_lea.vmem %s2, %s739
        $region44: #{seq2seq_forward.3} parent=31 // pred_fallthru
          _
        // Predicated region
        $region45: #{seq2seq_forward.3} parent=31 // pred_check
          %p741 = pneg %p158
        $region46: #{seq2seq_forward.3} parent=31 // pred_check_branch
          %743 = sbr.rel (%p741) target = $region48
        $region47: #{seq2seq_forward.3} parent=31 // pred_region
          %p744 = scmp.lt.s32.totalorder %s56, 1
          %s745 = scalar_select %p744, %s56, 1
          %s746 = scalar_lea.vmem %s3, %s745
        $region48: #{seq2seq_forward.3} parent=31 // pred_fallthru
          _
        // Predicated region
        $region49: #{seq2seq_forward.3} parent=31 // pred_check
          %p747 = pneg %p184
        $region50: #{seq2seq_forward.3} parent=31 // pred_check_branch
          %749 = sbr.rel (%p747) target = $region52
        $region51: #{seq2seq_forward.3} parent=31 // pred_region
          %s750 = sand.u32 %s174, 1
          %s751 = scalar_lea.sflag [#allocation5], %s750
          %s752 = sand.u32 %s174, 1
          %s753 = smul.addr %s752, 192
          %s754 = scalar_lea.vmem [#allocation4], %s753
          %756 = vsyncadd %s751, 0
          %s757 = smul.addr %s56, 48
          %s758 = smul.addr %s757, 4
          %s759 = scalar_lea.hbm %s4, %s758
          %s760 = sshll.u32 %s759, 4
          %s761 = int_to_ptr.hbm [resolvable:$true] %s760
          %s762 = sshll.u32 %s754, 4
          %s763 = int_to_ptr.vmem [resolvable:$true] %s762
          %768 = dma.hbm_to_vmem [thread:$0]  %s761, 3072, %s763, %s751, 64, 64, 4
        $region52: #{seq2seq_forward.3} parent=31 // pred_fallthru
          _
        // Predicated region
        $region53: #{seq2seq_forward.3} parent=31 // pred_check
          %p769 = pneg %p210
        $region54: #{seq2seq_forward.3} parent=31 // pred_check_branch
          %771 = sbr.rel (%p769) target = $region56
        $region55: #{seq2seq_forward.3} parent=31 // pred_region
          %p772 = scmp.lt.s32.totalorder %s56, 1
          %s773 = scalar_select %p772, %s56, 1
          %s774 = smul.addr %s773, 12
          %s775 = scalar_lea.vmem %s5, %s774
        $region56: #{seq2seq_forward.3} parent=31 // pred_fallthru
          _
        // Predicated region
        $region57: #{seq2seq_forward.3} parent=31 // pred_check
          %p776 = pneg %p236
        $region58: #{seq2seq_forward.3} parent=31 // pred_check_branch
          %778 = sbr.rel (%p776) target = $region60
        $region59: #{seq2seq_forward.3} parent=31 // pred_region
          %s779 = sand.u32 %s48, 1
          %s780 = scalar_lea.sflag [#allocation8], %s779
          %s781 = sand.u32 %s226, 1
          %s782 = smul.addr %s781, 64
          %s783 = scalar_lea.vmem [#allocation7], %s782
          %785 = vsyncadd %s780, 0
          %s786 = smul.addr %s56, 16
          %s787 = smul.addr %s786, 4
          %s788 = scalar_lea.hbm %s6, %s787
          %s789 = sshll.u32 %s788, 4
          %s790 = int_to_ptr.hbm [resolvable:$true] %s789
          %s791 = sshll.u32 %s783, 4
          %s792 = int_to_ptr.vmem [resolvable:$true] %s791
          %797 = dma.hbm_to_vmem [thread:$0]  %s790, 1024, %s792, %s780, 64, 64, 4
        $region60: #{seq2seq_forward.3} parent=31 // pred_fallthru
          _
        // Predicated region
        $region61: #{seq2seq_forward.3} parent=31 // pred_check
          %p798 = pneg %p262
        $region62: #{seq2seq_forward.3} parent=31 // pred_check_branch
          %800 = sbr.rel (%p798) target = $region64
        $region63: #{seq2seq_forward.3} parent=31 // pred_region
          %p801 = scmp.lt.s32.totalorder %s56, 1
          %s802 = scalar_select %p801, %s56, 1
          %s803 = scalar_lea.vmem %s7, %s802
        $region64: #{seq2seq_forward.3} parent=31 // pred_fallthru
          _
        // Predicated region
        $region65: #{seq2seq_forward.3} parent=31 // pred_check
          %p804 = pneg %p288
        $region66: #{seq2seq_forward.3} parent=31 // pred_check_branch
          %806 = sbr.rel (%p804) target = $region68
        $region67: #{seq2seq_forward.3} parent=31 // pred_region
          %p807 = scmp.lt.s32.totalorder %s56, 1
          %s808 = scalar_select %p807, %s56, 1
          %s809 = scalar_lea.vmem %s8, %s808
        $region68: #{seq2seq_forward.3} parent=31 // pred_fallthru
          _
        // Predicated region
        $region69: #{seq2seq_forward.3} parent=31 // pred_check
          %p810 = pneg %p314
        $region70: #{seq2seq_forward.3} parent=31 // pred_check_branch
          %812 = sbr.rel (%p810) target = $region72
        $region71: #{seq2seq_forward.3} parent=31 // pred_region
          %p813 = scmp.lt.s32.totalorder %s56, 1
          %s814 = scalar_select %p813, %s56, 1
          %s815 = scalar_lea.vmem %s9, %s814
        $region72: #{seq2seq_forward.3} parent=31 // pred_fallthru
          _
        // Predicated region
        $region73: #{seq2seq_forward.3} parent=31 // pred_check
          %p816 = pneg %p340
        $region74: #{seq2seq_forward.3} parent=31 // pred_check_branch
          %818 = sbr.rel (%p816) target = $region76
        $region75: #{seq2seq_forward.3} parent=31 // pred_region
          %s819 = sand.u32 %s48, 1
          %s820 = scalar_lea.sflag [#allocation8], %s819
          %s821 = sand.u32 %s330, 1
          %s822 = smul.addr %s821, 192
          %s823 = scalar_lea.vmem [#allocation9], %s822
          %825 = vsyncadd %s820, 0
          %s826 = smul.addr %s56, 48
          %s827 = smul.addr %s826, 4
          %s828 = scalar_lea.hbm %s10, %s827
          %s829 = sshll.u32 %s828, 4
          %s830 = int_to_ptr.hbm [resolvable:$true] %s829
          %s831 = sshll.u32 %s823, 4
          %s832 = int_to_ptr.vmem [resolvable:$true] %s831
          %837 = dma.hbm_to_vmem [thread:$0]  %s830, 3072, %s832, %s820, 64, 64, 4
        $region76: #{seq2seq_forward.3} parent=31 // pred_fallthru
          _
        // Predicated region
        $region77: #{seq2seq_forward.3} parent=31 // pred_check
          %p838 = pneg %p366
        $region78: #{seq2seq_forward.3} parent=31 // pred_check_branch
          %840 = sbr.rel (%p838) target = $region80
        $region79: #{seq2seq_forward.3} parent=31 // pred_region
          %s841 = sand.u32 %s48, 1
          %s842 = scalar_lea.sflag [#allocation11], %s841
          %s843 = sand.u32 %s356, 1
          %s844 = smul.addr %s843, 12
          %s845 = scalar_lea.vmem [#allocation10], %s844
          %847 = vsyncadd %s842, 0
          %s848 = smul.addr %s56, 12
          %s849 = scalar_lea.hbm %s11, %s848
          %s850 = sshll.u32 %s849, 4
          %s851 = int_to_ptr.hbm [resolvable:$true] %s850
          %s852 = sshll.u32 %s845, 4
          %s853 = int_to_ptr.vmem [resolvable:$true] %s852
          %858 = dma.hbm_to_vmem [thread:$0]  %s851, 192, %s853, %s842, 16, 16, 1
        $region80: #{seq2seq_forward.3} parent=31 // pred_fallthru
          _
        // Predicated region
        $region81: #{seq2seq_forward.3} parent=31 // pred_check
          %p859 = pneg %p392
        $region82: #{seq2seq_forward.3} parent=31 // pred_check_branch
          %861 = sbr.rel (%p859) target = $region84
        $region83: #{seq2seq_forward.3} parent=31 // pred_region
          %s862 = sand.u32 %s48, 1
          %s863 = scalar_lea.sflag [#allocation11], %s862
          %s864 = sand.u32 %s382, 1
          %s865 = smul.addr %s864, 64
          %s866 = scalar_lea.vmem [#allocation12], %s865
          %868 = vsyncadd %s863, 0
          %s869 = smul.addr %s56, 16
          %s870 = smul.addr %s869, 4
          %s871 = scalar_lea.hbm %s12, %s870
          %s872 = sshll.u32 %s871, 4
          %s873 = int_to_ptr.hbm [resolvable:$true] %s872
          %s874 = sshll.u32 %s866, 4
          %s875 = int_to_ptr.vmem [resolvable:$true] %s874
          %880 = dma.hbm_to_vmem [thread:$0]  %s873, 1024, %s875, %s863, 64, 64, 4
        $region84: #{seq2seq_forward.3} parent=31 // pred_fallthru
          _
        // Predicated region
        $region85: #{seq2seq_forward.3} parent=31 // pred_check
          %p881 = pneg %p418
        $region86: #{seq2seq_forward.3} parent=31 // pred_check_branch
          %883 = sbr.rel (%p881) target = $region88
        $region87: #{seq2seq_forward.3} parent=31 // pred_region
          %p884 = scmp.lt.s32.totalorder %s56, 1
          %s885 = scalar_select %p884, %s56, 1
          %s886 = scalar_lea.vmem %s13, %s885
        $region88: #{seq2seq_forward.3} parent=31 // pred_fallthru
          _
        // Predicated region
        $region89: #{seq2seq_forward.3} parent=31 // pred_check
          %p887 = pneg %p444
        $region90: #{seq2seq_forward.3} parent=31 // pred_check_branch
          %889 = sbr.rel (%p887) target = $region92
        $region91: #{seq2seq_forward.3} parent=31 // pred_region
          %p890 = scmp.lt.s32.totalorder %s56, 1
          %s891 = scalar_select %p890, %s56, 1
          %s892 = scalar_lea.vmem %s14, %s891
        $region92: #{seq2seq_forward.3} parent=31 // pred_fallthru
          _
        // Predicated region
        $region93: #{seq2seq_forward.3} parent=31 // pred_check
          %p893 = pneg %p470
        $region94: #{seq2seq_forward.3} parent=31 // pred_check_branch
          %895 = sbr.rel (%p893) target = $region96
        $region95: #{seq2seq_forward.3} parent=31 // pred_region
          %p896 = scmp.lt.s32.totalorder %s56, 1
          %s897 = scalar_select %p896, %s56, 1
          %s898 = scalar_lea.vmem %s15, %s897
        $region96: #{seq2seq_forward.3} parent=31 // pred_fallthru
          _
        // Predicated region
        $region97: #{seq2seq_forward.3} parent=31 // pred_check
          %p899 = pneg %p496
        $region98: #{seq2seq_forward.3} parent=31 // pred_check_branch
          %901 = sbr.rel (%p899) target = $region100
        $region99: #{seq2seq_forward.3} parent=31 // pred_region
          %s902 = sand.u32 %s48, 1
          %s903 = scalar_lea.sflag [#allocation14], %s902
          %s904 = sand.u32 %s486, 1
          %s905 = smul.addr %s904, 128
          %s906 = scalar_lea.vmem [#allocation13], %s905
          %908 = vsyncadd %s903, 0
          %s909 = smul.addr %s56, 32
          %s910 = smul.addr %s909, 4
          %s911 = scalar_lea.hbm %s16, %s910
          %s912 = sshll.u32 %s911, 4
          %s913 = int_to_ptr.hbm [resolvable:$true] %s912
          %s914 = sshll.u32 %s906, 4
          %s915 = int_to_ptr.vmem [resolvable:$true] %s914
          %920 = dma.hbm_to_vmem [thread:$0]  %s913, 2048, %s915, %s903, 128, 128, 8
        $region100: #{seq2seq_forward.3} parent=31 // pred_fallthru
          _
        // Predicated region
        $region101: #{seq2seq_forward.3} parent=31 // pred_check
          %p921 = pneg %p522
        $region102: #{seq2seq_forward.3} parent=31 // pred_check_branch
          %923 = sbr.rel (%p921) target = $region104
        $region103: #{seq2seq_forward.3} parent=31 // pred_region
          %p924 = scmp.lt.s32.totalorder %s56, 1
          %s925 = scalar_select %p924, %s56, 1
          %s926 = smul.addr %s925, 2
          %s927 = scalar_lea.vmem %s17, %s926
        $region104: #{seq2seq_forward.3} parent=31 // pred_fallthru
          _
        // Predicated region
        $region105: #{seq2seq_forward.3} parent=31 // pred_check
          %p928 = pneg %p548
        $region106: #{seq2seq_forward.3} parent=31 // pred_check_branch
          %930 = sbr.rel (%p928) target = $region108
        $region107: #{seq2seq_forward.3} parent=31 // pred_region
          %s931 = sand.u32 %s48, 1
          %s932 = scalar_lea.sflag [#allocation14], %s931
          %s933 = sand.u32 %s538, 1
          %s934 = smul.addr %s933, 128
          %s935 = scalar_lea.vmem [#allocation15], %s934
          %937 = vsyncadd %s932, 0
          %s938 = smul.addr %s56, 32
          %s939 = smul.addr %s938, 4
          %s940 = scalar_lea.hbm %s18, %s939
          %s941 = sshll.u32 %s940, 4
          %s942 = int_to_ptr.hbm [resolvable:$true] %s941
          %s943 = sshll.u32 %s935, 4
          %s944 = int_to_ptr.vmem [resolvable:$true] %s943
          %949 = dma.hbm_to_vmem [thread:$0]  %s942, 2048, %s944, %s932, 64, 64, 4
        $region108: #{seq2seq_forward.3} parent=31 // pred_fallthru
          _
        // Predicated region
        $region109: #{seq2seq_forward.3} parent=31 // pred_check
          %p950 = pneg %p574
        $region110: #{seq2seq_forward.3} parent=31 // pred_check_branch
          %952 = sbr.rel (%p950) target = $region112
        $region111: #{seq2seq_forward.3} parent=31 // pred_region
          %s953 = sand.u32 %s564, 1
          %s954 = scalar_lea.sflag [#allocation17], %s953
          %s955 = sand.u32 %s564, 1
          %s956 = scalar_lea.vmem [#allocation16], %s955
          %958 = vsyncadd %s954, 0
          %s959 = scalar_lea.hbm %s19, %s56
          %s961 = sshll.u32 %s959, 4
          %s962 = int_to_ptr.hbm [resolvable:$true] %s961
          %s963 = sshll.u32 %s956, 4
          %s964 = int_to_ptr.vmem [resolvable:$true] %s963
          %966 = dma.hbm_to_vmem [thread:$0]  %s962, 16, %s964, %s954
        $region112: #{seq2seq_forward.3} parent=31 // pred_fallthru
          _
      $region32: #{seq2seq_forward.3} parent=5 // pred_fallthru
        _
      %p967 = scmp.le.s32.totalorder 1, %s48
      %p968 = scmp.lt.s32.totalorder %s48, 5
      %p969 = pnand %p967, %p968
      %p970 = pneg %p969
      // Predicated region
      $region113: #{seq2seq_forward.3} parent=5 // pred_check
        _
      $region114: #{seq2seq_forward.3} parent=5 // pred_check_branch
        %972 = sbr.rel (%p969) target = $region116
      $region115: #{seq2seq_forward.3} parent=5 // pred_region
        %s973 = ssub.s32 %s48, 1
        %s974 = sand.u32 %s177, 1
        %s975 = scalar_lea.sflag [#allocation5], %s974
        %s976 = sand.u32 %s177, 1
        %s977 = smul.addr %s976, 192
        %s978 = scalar_lea.vmem [#allocation4], %s977
        // Predicated region
        $region117: #{seq2seq_forward.3} parent=115 // pred_check
          %p979 = pneg %p190
        $region118: #{seq2seq_forward.3} parent=115 // pred_check_branch
          %981 = sbr.rel (%p979) target = $region120
        $region119: #{seq2seq_forward.3} parent=115 // pred_region
          %983 = dma.done %s975, 3072
        $region120: #{seq2seq_forward.3} parent=115 // pred_fallthru
          _
        %s984 = sand.u32 %s53, 1
        %s985 = scalar_lea.sflag [#allocation8], %s984
        %s986 = sand.u32 %s229, 1
        %s987 = smul.addr %s986, 64
        %s988 = scalar_lea.vmem [#allocation7], %s987
        // Predicated region
        $region121: #{seq2seq_forward.3} parent=115 // pred_check
          %p989 = pneg %p242
        $region122: #{seq2seq_forward.3} parent=115 // pred_check_branch
          %991 = sbr.rel (%p989) target = $region124
        $region123: #{seq2seq_forward.3} parent=115 // pred_region
          %993 = dma.done %s985, 1024
        $region124: #{seq2seq_forward.3} parent=115 // pred_fallthru
          _
        %s994 = sand.u32 %s53, 1
        %s995 = scalar_lea.sflag [#allocation8], %s994
        %s996 = sand.u32 %s333, 1
        %s997 = smul.addr %s996, 192
        %s998 = scalar_lea.vmem [#allocation9], %s997
        // Predicated region
        $region125: #{seq2seq_forward.3} parent=115 // pred_check
          %p999 = pneg %p346
        $region126: #{seq2seq_forward.3} parent=115 // pred_check_branch
          %1001 = sbr.rel (%p999) target = $region128
        $region127: #{seq2seq_forward.3} parent=115 // pred_region
          %1003 = dma.done %s995, 3072
        $region128: #{seq2seq_forward.3} parent=115 // pred_fallthru
          _
        %s1004 = sand.u32 %s53, 1
        %s1005 = scalar_lea.sflag [#allocation11], %s1004
        %s1006 = sand.u32 %s359, 1
        %s1007 = smul.addr %s1006, 12
        %s1008 = scalar_lea.vmem [#allocation10], %s1007
        // Predicated region
        $region129: #{seq2seq_forward.3} parent=115 // pred_check
          %p1009 = pneg %p372
        $region130: #{seq2seq_forward.3} parent=115 // pred_check_branch
          %1011 = sbr.rel (%p1009) target = $region132
        $region131: #{seq2seq_forward.3} parent=115 // pred_region
          %1013 = dma.done %s1005, 192
        $region132: #{seq2seq_forward.3} parent=115 // pred_fallthru
          _
        %s1014 = sand.u32 %s53, 1
        %s1015 = scalar_lea.sflag [#allocation11], %s1014
        %s1016 = sand.u32 %s385, 1
        %s1017 = smul.addr %s1016, 64
        %s1018 = scalar_lea.vmem [#allocation12], %s1017
        // Predicated region
        $region133: #{seq2seq_forward.3} parent=115 // pred_check
          %p1019 = pneg %p398
        $region134: #{seq2seq_forward.3} parent=115 // pred_check_branch
          %1021 = sbr.rel (%p1019) target = $region136
        $region135: #{seq2seq_forward.3} parent=115 // pred_region
          %1023 = dma.done %s1015, 1024
        $region136: #{seq2seq_forward.3} parent=115 // pred_fallthru
          _
        %s1024 = sand.u32 %s53, 1
        %s1025 = scalar_lea.sflag [#allocation14], %s1024
        %s1026 = sand.u32 %s489, 1
        %s1027 = smul.addr %s1026, 128
        %s1028 = scalar_lea.vmem [#allocation13], %s1027
        // Predicated region
        $region137: #{seq2seq_forward.3} parent=115 // pred_check
          %p1029 = pneg %p502
        $region138: #{seq2seq_forward.3} parent=115 // pred_check_branch
          %1031 = sbr.rel (%p1029) target = $region140
        $region139: #{seq2seq_forward.3} parent=115 // pred_region
          %1033 = dma.done %s1025, 2048
        $region140: #{seq2seq_forward.3} parent=115 // pred_fallthru
          _
        %s1034 = sand.u32 %s53, 1
        %s1035 = scalar_lea.sflag [#allocation14], %s1034
        %s1036 = sand.u32 %s541, 1
        %s1037 = smul.addr %s1036, 128
        %s1038 = scalar_lea.vmem [#allocation15], %s1037
        // Predicated region
        $region141: #{seq2seq_forward.3} parent=115 // pred_check
          %p1039 = pneg %p554
        $region142: #{seq2seq_forward.3} parent=115 // pred_check_branch
          %1041 = sbr.rel (%p1039) target = $region144
        $region143: #{seq2seq_forward.3} parent=115 // pred_region
          %1043 = dma.done %s1035, 2048
        $region144: #{seq2seq_forward.3} parent=115 // pred_fallthru
          _
        %s1044 = sand.u32 %s567, 1
        %s1045 = scalar_lea.sflag [#allocation17], %s1044
        %s1046 = sand.u32 %s567, 1
        %s1047 = scalar_lea.vmem [#allocation16], %s1046
        // Predicated region
        $region145: #{seq2seq_forward.3} parent=115 // pred_check
          %p1048 = pneg %p580
        $region146: #{seq2seq_forward.3} parent=115 // pred_check_branch
          %1050 = sbr.rel (%p1048) target = $region148
        $region147: #{seq2seq_forward.3} parent=115 // pred_region
          %1052 = dma.done %s1045, 16
        $region148: #{seq2seq_forward.3} parent=115 // pred_fallthru
          _
        %p1053 = scmp.lt.s32.totalorder %s57, 1
        %s1054 = scalar_select %p1053, %s57, 1
        %s1055 = smul.addr %s1054, 8
        %s1056 = scalar_lea.vmem %s0, %s1055
        %p1057 = pneg %p86
        %p1058 = pneg %p83
        %p1059 = scmp.lt.s32.totalorder %s57, 1
        %s1060 = scalar_select %p1059, %s57, 1
        %s1061 = smul.addr %s1060, 8
        %s1062 = scalar_lea.vmem %s1, %s1061
        %p1063 = pneg %p112
        %p1064 = pneg %p109
        %p1065 = scmp.lt.s32.totalorder %s58, 1
        %s1066 = scalar_select %p1065, %s58, 1
        %s1067 = scalar_lea.vmem %s2, %s1066
        %p1068 = pneg %p138
        %p1069 = pneg %p135
        %p1070 = scmp.lt.s32.totalorder %s58, 1
        %s1071 = scalar_select %p1070, %s58, 1
        %s1072 = scalar_lea.vmem %s3, %s1071
        %p1073 = pneg %p164
        %p1074 = pneg %p161
        %s1075 = sand.u32 %s177, 1
        %s1076 = scalar_lea.sflag [#allocation5], %s1075
        %s1077 = sand.u32 %s177, 1
        %s1078 = smul.addr %s1077, 192
        %s1079 = scalar_lea.vmem [#allocation4], %s1078
        %p1080 = pneg %p190
        %p1081 = pneg %p187
        %p1082 = scmp.lt.s32.totalorder %s58, 1
        %s1083 = scalar_select %p1082, %s58, 1
        %s1084 = smul.addr %s1083, 12
        %s1085 = scalar_lea.vmem %s5, %s1084
        %p1086 = pneg %p216
        %p1087 = pneg %p213
        %s1088 = sand.u32 %s53, 1
        %s1089 = scalar_lea.sflag [#allocation8], %s1088
        %s1090 = sand.u32 %s229, 1
        %s1091 = smul.addr %s1090, 64
        %s1092 = scalar_lea.vmem [#allocation7], %s1091
        %p1093 = pneg %p242
        %p1094 = pneg %p239
        %p1095 = scmp.lt.s32.totalorder %s58, 1
        %s1096 = scalar_select %p1095, %s58, 1
        %s1097 = scalar_lea.vmem %s7, %s1096
        %p1098 = pneg %p268
        %p1099 = pneg %p265
        %p1100 = scmp.lt.s32.totalorder %s58, 1
        %s1101 = scalar_select %p1100, %s58, 1
        %s1102 = scalar_lea.vmem %s8, %s1101
        %p1103 = pneg %p294
        %p1104 = pneg %p291
        %p1105 = scmp.lt.s32.totalorder %s58, 1
        %s1106 = scalar_select %p1105, %s58, 1
        %s1107 = scalar_lea.vmem %s9, %s1106
        %p1108 = pneg %p320
        %p1109 = pneg %p317
        %s1110 = sand.u32 %s53, 1
        %s1111 = scalar_lea.sflag [#allocation8], %s1110
        %s1112 = sand.u32 %s333, 1
        %s1113 = smul.addr %s1112, 192
        %s1114 = scalar_lea.vmem [#allocation9], %s1113
        %p1115 = pneg %p346
        %p1116 = pneg %p343
        %s1117 = sand.u32 %s53, 1
        %s1118 = scalar_lea.sflag [#allocation11], %s1117
        %s1119 = sand.u32 %s359, 1
        %s1120 = smul.addr %s1119, 12
        %s1121 = scalar_lea.vmem [#allocation10], %s1120
        %p1122 = pneg %p372
        %p1123 = pneg %p369
        %s1124 = sand.u32 %s53, 1
        %s1125 = scalar_lea.sflag [#allocation11], %s1124
        %s1126 = sand.u32 %s385, 1
        %s1127 = smul.addr %s1126, 64
        %s1128 = scalar_lea.vmem [#allocation12], %s1127
        %p1129 = pneg %p398
        %p1130 = pneg %p395
        %p1131 = scmp.lt.s32.totalorder %s58, 1
        %s1132 = scalar_select %p1131, %s58, 1
        %s1133 = scalar_lea.vmem %s13, %s1132
        %p1134 = pneg %p424
        %p1135 = pneg %p421
        %p1136 = scmp.lt.s32.totalorder %s58, 1
        %s1137 = scalar_select %p1136, %s58, 1
        %s1138 = scalar_lea.vmem %s14, %s1137
        %p1139 = pneg %p450
        %p1140 = pneg %p447
        %p1141 = scmp.lt.s32.totalorder %s58, 1
        %s1142 = scalar_select %p1141, %s58, 1
        %s1143 = scalar_lea.vmem %s15, %s1142
        %p1144 = pneg %p476
        %p1145 = pneg %p473
        %s1146 = sand.u32 %s53, 1
        %s1147 = scalar_lea.sflag [#allocation14], %s1146
        %s1148 = sand.u32 %s489, 1
        %s1149 = smul.addr %s1148, 128
        %s1150 = scalar_lea.vmem [#allocation13], %s1149
        %p1151 = pneg %p502
        %p1152 = pneg %p499
        %p1153 = scmp.lt.s32.totalorder %s58, 1
        %s1154 = scalar_select %p1153, %s58, 1
        %s1155 = smul.addr %s1154, 2
        %s1156 = scalar_lea.vmem %s17, %s1155
        %p1157 = pneg %p528
        %p1158 = pneg %p525
        %s1159 = sand.u32 %s53, 1
        %s1160 = scalar_lea.sflag [#allocation14], %s1159
        %s1161 = sand.u32 %s541, 1
        %s1162 = smul.addr %s1161, 128
        %s1163 = scalar_lea.vmem [#allocation15], %s1162
        %p1164 = pneg %p554
        %p1165 = pneg %p551
        %s1166 = sand.u32 %s567, 1
        %s1167 = scalar_lea.sflag [#allocation17], %s1166
        %s1168 = sand.u32 %s567, 1
        %s1169 = scalar_lea.vmem [#allocation16], %s1168
        %p1170 = pneg %p580
        %p1171 = pneg %p577
        %p1172 = pneg %p601
        %p1173 = pneg %p598
        %p1174 = pneg %p622
        %p1175 = pneg %p619
        %p1176 = pneg %p643
        %p1177 = pneg %p640
        %p1178 = pneg %p664
        %p1179 = pneg %p661
        %p1180 = pneg %p690
        %p1181 = pneg %p687
        %s1182 = sand.u32 %s677, 1
        %s1183 = scalar_lea.sflag [#allocation6], %s1182
        %s1184 = sand.u32 %s677, 1
        %s1185 = smul.addr %s1184, 8
        %s1186 = scalar_lea.vmem [#allocation18], %s1185
        %p1187 = scmp.lt.s32.totalorder %s57, 1
        %s1188 = scalar_select %p1187, %s57, 1
        %s1189 = smul.addr %s1188, 8
        %s1190 = scalar_lea.vmem %s0, %s1189
        %p1191 = scmp.lt.s32.totalorder %s57, 1
        %s1192 = scalar_select %p1191, %s57, 1
        %s1193 = smul.addr %s1192, 8
        %s1194 = scalar_lea.vmem %s1, %s1193
        %p1195 = scmp.lt.s32.totalorder %s58, 1
        %s1196 = scalar_select %p1195, %s58, 1
        %s1197 = scalar_lea.vmem %s2, %s1196
        %p1198 = scmp.lt.s32.totalorder %s58, 1
        %s1199 = scalar_select %p1198, %s58, 1
        %s1200 = scalar_lea.vmem %s3, %s1199
        %p1201 = scmp.lt.s32.totalorder %s58, 1
        %s1202 = scalar_select %p1201, %s58, 1
        %s1203 = smul.addr %s1202, 12
        %s1204 = scalar_lea.vmem %s5, %s1203
        %p1205 = scmp.lt.s32.totalorder %s58, 1
        %s1206 = scalar_select %p1205, %s58, 1
        %s1207 = scalar_lea.vmem %s7, %s1206
        %p1208 = scmp.lt.s32.totalorder %s58, 1
        %s1209 = scalar_select %p1208, %s58, 1
        %s1210 = scalar_lea.vmem %s8, %s1209
        %p1211 = scmp.lt.s32.totalorder %s58, 1
        %s1212 = scalar_select %p1211, %s58, 1
        %s1213 = scalar_lea.vmem %s9, %s1212
        %p1214 = scmp.lt.s32.totalorder %s58, 1
        %s1215 = scalar_select %p1214, %s58, 1
        %s1216 = scalar_lea.vmem %s13, %s1215
        %p1217 = scmp.lt.s32.totalorder %s58, 1
        %s1218 = scalar_select %p1217, %s58, 1
        %s1219 = scalar_lea.vmem %s14, %s1218
        %p1220 = scmp.lt.s32.totalorder %s58, 1
        %s1221 = scalar_select %p1220, %s58, 1
        %s1222 = scalar_lea.vmem %s15, %s1221
        %p1223 = scmp.lt.s32.totalorder %s58, 1
        %s1224 = scalar_select %p1223, %s58, 1
        %s1225 = smul.addr %s1224, 2
        %s1226 = scalar_lea.vmem %s17, %s1225
        %p1228 = scmp.eq.s32.totalorder %s58, 0
        // Predicated region
        $region149: #{seq2seq_forward.3} parent=115 // pred_check
          %p1229 = pneg %p1228
        $region150: #{seq2seq_forward.3} parent=115 // pred_check_branch
          %1231 = sbr.rel (%p1229) target = $region152
        $region151: #{seq2seq_forward.3} parent=115 // pred_region
          %v1232 = vld [vmem:[%s1190] sm:$0xff]
          %1233 = vst [vmem:[#allocation2] sm:$0xff] %v1232
          %v1234 = vlaneseq
          %v1235 = vshrl.u32 %v1234, 7
          %v1236 = vlaneseq
          %v1237 = vand.u32 %v1236, 127
          %vm1238 = vcmp.gt.s32.totalorder %v1237, %v1235
          %v1239 = vsel %vm1238, -1e+30, 0.0
          %vm1240 = vcmask 64512
          %1241 = vst.msk [vmem:[#allocation3] sm:$0xff] %vm1240, %v1239
        $region152: #{seq2seq_forward.3} parent=115 // pred_fallthru
          _
        %v1242 = vld [vmem:[#allocation2] sm:$0xff]
        %v1243 = vld [vmem:[%s1197] sm:$0x1]
        %v1244 = vld [vmem:[%s1200] sm:$0x1]
        %1245 = vadd.xlane.f32.xlu0 %v1242
        %v1246 = vpop.xlane.xlu0 %1245
        %v1247 = vrcp.pop 128.0
        %v1248 = vmul.f32 128.0, %v1247
        %v1249 = vsub.f32 1.0, %v1248
        %v1250 = vmul.f32 %v1247, %v1249
        %v1251 = vadd.f32 %v1247, %v1250
        %vm1252 = vweird.f32 %v1247
        %v1253 = vsel %vm1252, %v1247, %v1251
        %v1254 = vmul.f32 %v1246, %v1253
        %v1255 = vsub.f32 %v1242, %v1254
        %v1256 = vmul.f32 %v1255, %v1255
        %1257 = vadd.xlane.f32.xlu0 %v1256
        %v1258 = vpop.xlane.xlu0 %1257
        %v1259 = vmul.f32 %v1258, %v1253
        %v1260 = vadd.f32 %v1259, 1e-05
        %v1261 = vrsqrt.pop %v1260
        %v1262 = vmul.f32 %v1261, %v1260
        %v1263 = vmul.f32 %v1262, %v1261
        %v1264 = vmul.f32 0.5, %v1263
        %v1265 = vsub.f32 1.5, %v1264
        %v1266 = vmul.f32 %v1261, %v1265
        %vm1267 = vweird.f32 %v1260
        %vm1268 = vweird.f32 %v1261
        %vm1269 = vmor %vm1267, %vm1268
        %v1270 = vsel %vm1269, %v1261, %v1266
        %v1271 = vmul.f32 %v1255, %v1270
        %v1273 = vperm.slane %v1243, 0
        %v1275 = vmul.f32 %v1271, %v1273
        %v1277 = vperm.slane %v1244, 0
        %v1279 = vadd.f32 %v1275, %v1277
        %v1280 = vld [vmem:[#allocation3] sm:$0xff]
        %v1281 = vld [vmem:[%s978] sm:$0xf]
        %v1282 = vld [vmem:[%s978 + $0x4] sm:$0xf]
        %v1283 = vld [vmem:[%s978 + $0x8] sm:$0xf]
        %v1284 = vld [vmem:[%s978 + $0xc] sm:$0xf]
        %v1285 = vld [vmem:[%s1204] sm:$0x1]
        %v1286 = vpack.c.bf16 %v1279, %v1279
        %v1288 = vperm.slane %v1285, 0
        %v1294 = vunpack.c.l.b16 %v1281
        %v1295 = vunpack.c.l.b16 %v1282
        %v1296 = vunpack.c.l.b16 %v1283
        %v1297 = vunpack.c.l.b16 %v1284
        %v1298 = vpack.c.b16 %v1295, %v1294
        %v1299 = vpack.c.b16 %v1297, %v1296
        %1302 = vmatpush.bf16.xpose.msra.mxu0 0
        %1303 = vmatpush.bf16.xpose.msra.mxu0 0
        %1304 = vmatpush.bf16.xpose.msra.mxu0 0
        %1305 = vmatpush.bf16.xpose.msra.mxu0 0
        %1306 = vmatpush.bf16.xpose.msra.mxu0 0
        %1307 = vmatpush.bf16.xpose.msra.mxu0 0
        %1308 = vmatpush.bf16.xpose.msra.mxu0 %v1299
        %1309 = vmatpush.bf16.xpose.msra.mxu0 %v1298
        %1310 = vmatmul.bf16.gmra.mxu0 %v1286
        %v1311 = vpop.f32.mrf.mxu0
        %v1312 = vadd.f32 %v1288, %v1311
        %v1313 = vpop.f32.mrf.mxu0
        %1314 = vdwg.mxu0
        %s1315 = scalar_lea.vmem %s978, 64 [#allocation4]
        %v1316 = vld [vmem:[%s1315] sm:$0xf]
        %v1317 = vld [vmem:[%s1315 + $0x4] sm:$0xf]
        %v1318 = vld [vmem:[%s1315 + $0x8] sm:$0xf]
        %v1319 = vld [vmem:[%s1315 + $0xc] sm:$0xf]
        %s1320 = scalar_lea.vmem %s1204, 4
        %v1321 = vld [vmem:[%s1320] sm:$0x1]
        %v1323 = vperm.slane %v1321, 0
        %v1329 = vunpack.c.l.b16 %v1316
        %v1330 = vunpack.c.l.b16 %v1317
        %v1331 = vunpack.c.l.b16 %v1318
        %v1332 = vunpack.c.l.b16 %v1319
        %v1333 = vpack.c.b16 %v1330, %v1329
        %v1334 = vpack.c.b16 %v1332, %v1331
        %1337 = vmatpush.bf16.xpose.msra.mxu0 0
        %1338 = vmatpush.bf16.xpose.msra.mxu0 0
        %1339 = vmatpush.bf16.xpose.msra.mxu0 0
        %1340 = vmatpush.bf16.xpose.msra.mxu0 0
        %1341 = vmatpush.bf16.xpose.msra.mxu0 0
        %1342 = vmatpush.bf16.xpose.msra.mxu0 0
        %1343 = vmatpush.bf16.xpose.msra.mxu0 %v1334
        %1344 = vmatpush.bf16.xpose.msra.mxu0 %v1333
        %1345 = vmatmul.bf16.gmra.mxu0 %v1286
        %v1346 = vpop.f32.mrf.mxu0
        %v1347 = vadd.f32 %v1323, %v1346
        %v1348 = vpop.f32.mrf.mxu0
        %1349 = vdwg.mxu0
        %s1350 = scalar_lea.vmem %s978, 128 [#allocation4]
        %v1351 = vld [vmem:[%s1350] sm:$0xf]
        %v1352 = vld [vmem:[%s1350 + $0x4] sm:$0xf]
        %v1353 = vld [vmem:[%s1350 + $0x8] sm:$0xf]
        %v1354 = vld [vmem:[%s1350 + $0xc] sm:$0xf]
        %s1355 = scalar_lea.vmem %s1204, 8
        %v1356 = vld [vmem:[%s1355] sm:$0x1]
        %v1358 = vperm.slane %v1356, 0
        %v1364 = vunpack.c.l.b16 %v1351
        %v1365 = vunpack.c.l.b16 %v1352
        %v1366 = vunpack.c.l.b16 %v1353
        %v1367 = vunpack.c.l.b16 %v1354
        %v1368 = vpack.c.b16 %v1365, %v1364
        %v1369 = vpack.c.b16 %v1367, %v1366
        %1372 = vmatpush.bf16.xpose.msra.mxu0 0
        %1373 = vmatpush.bf16.xpose.msra.mxu0 0
        %1374 = vmatpush.bf16.xpose.msra.mxu0 0
        %1375 = vmatpush.bf16.xpose.msra.mxu0 0
        %1376 = vmatpush.bf16.xpose.msra.mxu0 0
        %1377 = vmatpush.bf16.xpose.msra.mxu0 0
        %1378 = vmatpush.bf16.xpose.msra.mxu0 %v1369
        %1379 = vmatpush.bf16.xpose.msra.mxu0 %v1368
        %1380 = vmatmul.bf16.gmra.mxu0 %v1286
        %v1381 = vpop.f32.mrf.mxu0
        %v1382 = vadd.f32 %v1358, %v1381
        %v1383 = vpop.f32.mrf.mxu0
        %1384 = vdwg.mxu0
        %v1385 = vpack.c.bf16 %v1312, %v1312
        %v1386 = vpack.c.bf16 %v1347, %v1347
        %vm1387 = vcmask 261120
        %v1389 = vsel %vm1387, %v1385, 0
        %v1392 = vsel %vm1387, %v1386, 0
        %1394 = vmatpush.bf16.xpose.msra.mxu0 0
        %1395 = vmatpush.bf16.xpose.msra.mxu0 0
        %1396 = vmatpush.bf16.xpose.msra.mxu0 0
        %1397 = vmatpush.bf16.xpose.msra.mxu0 0
        %1398 = vmatpush.bf16.xpose.msra.mxu0 0
        %1399 = vmatpush.bf16.xpose.msra.mxu0 0
        %1400 = vmatpush.bf16.xpose.msra.mxu0 0
        %1401 = vmatpush.bf16.xpose.msra.mxu0 %v1392
        %1402 = vmatmul.bf16.gmra.mxu0 %v1389
        %v1403 = vpop.f32.mrf.mxu0
        %v1404 = vadd.f32 0.0, %v1403
        %v1405 = vpop.f32.mrf.mxu0
        %1406 = vdwg.mxu0
        %v1407 = vmul.f32 %v1404, 0.17677669
        %v1408 = vadd.f32 %v1407, %v1280
        %vm1409 = vcmask 64512
        %v1410 = vsel %vm1409, %v1408, -inf
        %1411 = vmax.xlane.f32.xlu0 %v1410
        %v1412 = vpop.xlane.xlu0 %1411
        %v1413 = vsub.f32 %v1408, %v1412
        %v1414 = vmul.f32 %v1413, 1.442695
        %v1415 = vpow.pop %v1414
        %v1416 = vsel %vm1409, %v1415, 0.0
        %1417 = vadd.xlane.f32.xlu0 %v1416
        %v1418 = vpop.xlane.xlu0 %1417
        %v1419 = vrcp.pop %v1418
        %v1420 = vmul.f32 %v1415, %v1419
        %v1421 = vpack.c.bf16 %v1420, %v1420
        %v1422 = vpack.c.bf16 %v1382, %v1382
        %v1424 = vsel %vm1409, %v1421, 0
        %vm1426 = vcmask 1043456
        %v1428 = vsel %vm1426, %v1422, 0
        %1430 = vmatpush.bf16.msra.mxu0 0
        %1431 = vmatpush.bf16.msra.mxu0 0
        %1432 = vmatpush.bf16.msra.mxu0 0
        %1433 = vmatpush.bf16.msra.mxu0 0
        %1434 = vmatpush.bf16.msra.mxu0 0
        %1435 = vmatpush.bf16.msra.mxu0 0
        %1436 = vmatpush.bf16.msra.mxu0 0
        %1437 = vmatpush.bf16.msra.mxu0 %v1428
        %1438 = vmatmul.bf16.gmra.mxu0 %v1424
        %v1439 = vpop.f32.mrf.mxu0
        %v1440 = vadd.f32 0.0, %v1439
        %v1441 = vpop.f32.mrf.mxu0
        %1442 = vdwg.mxu0
        %v1443 = vld [vmem:[%s988] sm:$0xf]
        %v1444 = vld [vmem:[%s988 + $0x4] sm:$0xf]
        %v1445 = vld [vmem:[%s988 + $0x8] sm:$0xf]
        %v1446 = vld [vmem:[%s988 + $0xc] sm:$0xf]
        %v1447 = vpack.c.bf16 %v1440, %v1440
        %s1448 = scalar_lea.vmem %s978, 16 [#allocation4]
        %v1449 = vld [vmem:[%s1448] sm:$0xf]
        %v1450 = vld [vmem:[%s1448 + $0x4] sm:$0xf]
        %v1451 = vld [vmem:[%s1448 + $0x8] sm:$0xf]
        %v1452 = vld [vmem:[%s1448 + $0xc] sm:$0xf]
        %s1453 = scalar_lea.vmem %s1204, 1
        %v1454 = vld [vmem:[%s1453] sm:$0x1]
        %v1456 = vperm.slane %v1454, 0
        %v1462 = vunpack.c.l.b16 %v1449
        %v1463 = vunpack.c.l.b16 %v1450
        %v1464 = vunpack.c.l.b16 %v1451
        %v1465 = vunpack.c.l.b16 %v1452
        %v1466 = vpack.c.b16 %v1463, %v1462
        %v1467 = vpack.c.b16 %v1465, %v1464
        %1470 = vmatpush.bf16.xpose.msra.mxu0 0
        %1471 = vmatpush.bf16.xpose.msra.mxu0 0
        %1472 = vmatpush.bf16.xpose.msra.mxu0 0
        %1473 = vmatpush.bf16.xpose.msra.mxu0 0
        %1474 = vmatpush.bf16.xpose.msra.mxu0 0
        %1475 = vmatpush.bf16.xpose.msra.mxu0 0
        %1476 = vmatpush.bf16.xpose.msra.mxu0 %v1467
        %1477 = vmatpush.bf16.xpose.msra.mxu0 %v1466
        %1478 = vmatmul.bf16.gmra.mxu0 %v1286
        %v1479 = vpop.f32.mrf.mxu0
        %v1480 = vadd.f32 %v1456, %v1479
        %v1481 = vpop.f32.mrf.mxu0
        %1482 = vdwg.mxu0
        %s1483 = scalar_lea.vmem %s978, 80 [#allocation4]
        %v1484 = vld [vmem:[%s1483] sm:$0xf]
        %v1485 = vld [vmem:[%s1483 + $0x4] sm:$0xf]
        %v1486 = vld [vmem:[%s1483 + $0x8] sm:$0xf]
        %v1487 = vld [vmem:[%s1483 + $0xc] sm:$0xf]
        %s1488 = scalar_lea.vmem %s1204, 5
        %v1489 = vld [vmem:[%s1488] sm:$0x1]
        %v1491 = vperm.slane %v1489, 0
        %v1497 = vunpack.c.l.b16 %v1484
        %v1498 = vunpack.c.l.b16 %v1485
        %v1499 = vunpack.c.l.b16 %v1486
        %v1500 = vunpack.c.l.b16 %v1487
        %v1501 = vpack.c.b16 %v1498, %v1497
        %v1502 = vpack.c.b16 %v1500, %v1499
        %1505 = vmatpush.bf16.xpose.msra.mxu0 0
        %1506 = vmatpush.bf16.xpose.msra.mxu0 0
        %1507 = vmatpush.bf16.xpose.msra.mxu0 0
        %1508 = vmatpush.bf16.xpose.msra.mxu0 0
        %1509 = vmatpush.bf16.xpose.msra.mxu0 0
        %1510 = vmatpush.bf16.xpose.msra.mxu0 0
        %1511 = vmatpush.bf16.xpose.msra.mxu0 %v1502
        %1512 = vmatpush.bf16.xpose.msra.mxu0 %v1501
        %1513 = vmatmul.bf16.gmra.mxu0 %v1286
        %v1514 = vpop.f32.mrf.mxu0
        %v1515 = vadd.f32 %v1491, %v1514
        %v1516 = vpop.f32.mrf.mxu0
        %1517 = vdwg.mxu0
        %s1518 = scalar_lea.vmem %s978, 144 [#allocation4]
        %v1519 = vld [vmem:[%s1518] sm:$0xf]
        %v1520 = vld [vmem:[%s1518 + $0x4] sm:$0xf]
        %v1521 = vld [vmem:[%s1518 + $0x8] sm:$0xf]
        %v1522 = vld [vmem:[%s1518 + $0xc] sm:$0xf]
        %s1523 = scalar_lea.vmem %s1204, 9
        %v1524 = vld [vmem:[%s1523] sm:$0x1]
        %v1526 = vperm.slane %v1524, 0
        %v1532 = vunpack.c.l.b16 %v1519
        %v1533 = vunpack.c.l.b16 %v1520
        %v1534 = vunpack.c.l.b16 %v1521
        %v1535 = vunpack.c.l.b16 %v1522
        %v1536 = vpack.c.b16 %v1533, %v1532
        %v1537 = vpack.c.b16 %v1535, %v1534
        %1540 = vmatpush.bf16.xpose.msra.mxu0 0
        %1541 = vmatpush.bf16.xpose.msra.mxu0 0
        %1542 = vmatpush.bf16.xpose.msra.mxu0 0
        %1543 = vmatpush.bf16.xpose.msra.mxu0 0
        %1544 = vmatpush.bf16.xpose.msra.mxu0 0
        %1545 = vmatpush.bf16.xpose.msra.mxu0 0
        %1546 = vmatpush.bf16.xpose.msra.mxu0 %v1537
        %1547 = vmatpush.bf16.xpose.msra.mxu0 %v1536
        %1548 = vmatmul.bf16.gmra.mxu0 %v1286
        %v1549 = vpop.f32.mrf.mxu0
        %v1550 = vadd.f32 %v1526, %v1549
        %v1551 = vpop.f32.mrf.mxu0
        %1552 = vdwg.mxu0
        %v1553 = vpack.c.bf16 %v1480, %v1480
        %v1554 = vpack.c.bf16 %v1515, %v1515
        %v1556 = vsel %vm1387, %v1553, 0
        %v1559 = vsel %vm1387, %v1554, 0
        %1561 = vmatpush.bf16.xpose.msra.mxu0 0
        %1562 = vmatpush.bf16.xpose.msra.mxu0 0
        %1563 = vmatpush.bf16.xpose.msra.mxu0 0
        %1564 = vmatpush.bf16.xpose.msra.mxu0 0
        %1565 = vmatpush.bf16.xpose.msra.mxu0 0
        %1566 = vmatpush.bf16.xpose.msra.mxu0 0
        %1567 = vmatpush.bf16.xpose.msra.mxu0 0
        %1568 = vmatpush.bf16.xpose.msra.mxu0 %v1559
        %1569 = vmatmul.bf16.gmra.mxu0 %v1556
        %v1570 = vpop.f32.mrf.mxu0
        %v1571 = vadd.f32 0.0, %v1570
        %v1572 = vpop.f32.mrf.mxu0
        %1573 = vdwg.mxu0
        %v1574 = vmul.f32 %v1571, 0.17677669
        %v1575 = vadd.f32 %v1574, %v1280
        %v1576 = vsel %vm1409, %v1575, -inf
        %1577 = vmax.xlane.f32.xlu0 %v1576
        %v1578 = vpop.xlane.xlu0 %1577
        %v1579 = vsub.f32 %v1575, %v1578
        %v1580 = vmul.f32 %v1579, 1.442695
        %v1581 = vpow.pop %v1580
        %v1582 = vsel %vm1409, %v1581, 0.0
        %1583 = vadd.xlane.f32.xlu0 %v1582
        %v1584 = vpop.xlane.xlu0 %1583
        %v1585 = vrcp.pop %v1584
        %v1586 = vmul.f32 %v1581, %v1585
        %v1587 = vpack.c.bf16 %v1586, %v1586
        %v1588 = vpack.c.bf16 %v1550, %v1550
        %v1590 = vsel %vm1409, %v1587, 0
        %v1593 = vsel %vm1426, %v1588, 0
        %1595 = vmatpush.bf16.msra.mxu0 0
        %1596 = vmatpush.bf16.msra.mxu0 0
        %1597 = vmatpush.bf16.msra.mxu0 0
        %1598 = vmatpush.bf16.msra.mxu0 0
        %1599 = vmatpush.bf16.msra.mxu0 0
        %1600 = vmatpush.bf16.msra.mxu0 0
        %1601 = vmatpush.bf16.msra.mxu0 0
        %1602 = vmatpush.bf16.msra.mxu0 %v1593
        %1603 = vmatmul.bf16.gmra.mxu0 %v1590
        %v1604 = vpop.f32.mrf.mxu0
        %v1605 = vadd.f32 0.0, %v1604
        %v1606 = vpop.f32.mrf.mxu0
        %1607 = vdwg.mxu0
        %s1608 = scalar_lea.vmem %s988, 16 [#allocation7]
        %v1609 = vld [vmem:[%s1608] sm:$0xf]
        %v1610 = vld [vmem:[%s1608 + $0x4] sm:$0xf]
        %v1611 = vld [vmem:[%s1608 + $0x8] sm:$0xf]
        %v1612 = vld [vmem:[%s1608 + $0xc] sm:$0xf]
        %v1613 = vpack.c.bf16 %v1605, %v1605
        %v1618 = vunpack.c.l.b16 %v1609
        %v1619 = vunpack.c.l.b16 %v1610
        %v1620 = vunpack.c.l.b16 %v1611
        %v1621 = vunpack.c.l.b16 %v1612
        %v1622 = vpack.c.b16 %v1619, %v1618
        %v1623 = vpack.c.b16 %v1621, %v1620
        %v1627 = vsel %vm1387, %v1613, 0
        %1629 = vmatpush.bf16.msra.mxu0 0
        %1630 = vmatpush.bf16.msra.mxu0 0
        %1631 = vmatpush.bf16.msra.mxu0 0
        %1632 = vmatpush.bf16.msra.mxu0 0
        %1633 = vmatpush.bf16.msra.mxu0 0
        %1634 = vmatpush.bf16.msra.mxu0 0
        %1635 = vmatpush.bf16.msra.mxu0 %v1623
        %1636 = vmatpush.bf16.msra.mxu0 %v1622
        %1637 = vmatmul.bf16.gmra.mxu0 %v1627
        %v1638 = vpop.f32.mrf.mxu0
        %v1639 = vadd.f32 0.0, %v1638
        %v1640 = vpop.f32.mrf.mxu0
        %1641 = vdwg.mxu0
        %v1646 = vunpack.c.l.b16 %v1443
        %v1647 = vunpack.c.l.b16 %v1444
        %v1648 = vunpack.c.l.b16 %v1445
        %v1649 = vunpack.c.l.b16 %v1446
        %v1650 = vpack.c.b16 %v1647, %v1646
        %v1651 = vpack.c.b16 %v1649, %v1648
        %v1655 = vsel %vm1387, %v1447, 0
        %1657 = vmatpush.bf16.msra.mxu0 0
        %1658 = vmatpush.bf16.msra.mxu0 0
        %1659 = vmatpush.bf16.msra.mxu0 0
        %1660 = vmatpush.bf16.msra.mxu0 0
        %1661 = vmatpush.bf16.msra.mxu0 0
        %1662 = vmatpush.bf16.msra.mxu0 0
        %1663 = vmatpush.bf16.msra.mxu0 %v1651
        %1664 = vmatpush.bf16.msra.mxu0 %v1650
        %1665 = vmatmul.bf16.gmra.mxu0 %v1655
        %v1666 = vpop.f32.mrf.mxu0
        %v1667 = vadd.f32 %v1639, %v1666
        %v1668 = vpop.f32.mrf.mxu0
        %1669 = vdwg.mxu0
        %s1670 = scalar_lea.vmem %s978, 32 [#allocation4]
        %v1671 = vld [vmem:[%s1670] sm:$0xf]
        %v1672 = vld [vmem:[%s1670 + $0x4] sm:$0xf]
        %v1673 = vld [vmem:[%s1670 + $0x8] sm:$0xf]
        %v1674 = vld [vmem:[%s1670 + $0xc] sm:$0xf]
        %s1675 = scalar_lea.vmem %s1204, 2
        %v1676 = vld [vmem:[%s1675] sm:$0x1]
        %v1678 = vperm.slane %v1676, 0
        %v1684 = vunpack.c.l.b16 %v1671
        %v1685 = vunpack.c.l.b16 %v1672
        %v1686 = vunpack.c.l.b16 %v1673
        %v1687 = vunpack.c.l.b16 %v1674
        %v1688 = vpack.c.b16 %v1685, %v1684
        %v1689 = vpack.c.b16 %v1687, %v1686
        %1692 = vmatpush.bf16.xpose.msra.mxu0 0
        %1693 = vmatpush.bf16.xpose.msra.mxu0 0
        %1694 = vmatpush.bf16.xpose.msra.mxu0 0
        %1695 = vmatpush.bf16.xpose.msra.mxu0 0
        %1696 = vmatpush.bf16.xpose.msra.mxu0 0
        %1697 = vmatpush.bf16.xpose.msra.mxu0 0
        %1698 = vmatpush.bf16.xpose.msra.mxu0 %v1689
        %1699 = vmatpush.bf16.xpose.msra.mxu0 %v1688
        %1700 = vmatmul.bf16.gmra.mxu0 %v1286
        %v1701 = vpop.f32.mrf.mxu0
        %v1702 = vadd.f32 %v1678, %v1701
        %v1703 = vpop.f32.mrf.mxu0
        %1704 = vdwg.mxu0
        %s1705 = scalar_lea.vmem %s978, 96 [#allocation4]
        %v1706 = vld [vmem:[%s1705] sm:$0xf]
        %v1707 = vld [vmem:[%s1705 + $0x4] sm:$0xf]
        %v1708 = vld [vmem:[%s1705 + $0x8] sm:$0xf]
        %v1709 = vld [vmem:[%s1705 + $0xc] sm:$0xf]
        %s1710 = scalar_lea.vmem %s1204, 6
        %v1711 = vld [vmem:[%s1710] sm:$0x1]
        %v1713 = vperm.slane %v1711, 0
        %v1719 = vunpack.c.l.b16 %v1706
        %v1720 = vunpack.c.l.b16 %v1707
        %v1721 = vunpack.c.l.b16 %v1708
        %v1722 = vunpack.c.l.b16 %v1709
        %v1723 = vpack.c.b16 %v1720, %v1719
        %v1724 = vpack.c.b16 %v1722, %v1721
        %1727 = vmatpush.bf16.xpose.msra.mxu0 0
        %1728 = vmatpush.bf16.xpose.msra.mxu0 0
        %1729 = vmatpush.bf16.xpose.msra.mxu0 0
        %1730 = vmatpush.bf16.xpose.msra.mxu0 0
        %1731 = vmatpush.bf16.xpose.msra.mxu0 0
        %1732 = vmatpush.bf16.xpose.msra.mxu0 0
        %1733 = vmatpush.bf16.xpose.msra.mxu0 %v1724
        %1734 = vmatpush.bf16.xpose.msra.mxu0 %v1723
        %1735 = vmatmul.bf16.gmra.mxu0 %v1286
        %v1736 = vpop.f32.mrf.mxu0
        %v1737 = vadd.f32 %v1713, %v1736
        %v1738 = vpop.f32.mrf.mxu0
        %1739 = vdwg.mxu0
        %s1740 = scalar_lea.vmem %s978, 160 [#allocation4]
        %v1741 = vld [vmem:[%s1740] sm:$0xf]
        %v1742 = vld [vmem:[%s1740 + $0x4] sm:$0xf]
        %v1743 = vld [vmem:[%s1740 + $0x8] sm:$0xf]
        %v1744 = vld [vmem:[%s1740 + $0xc] sm:$0xf]
        %s1745 = scalar_lea.vmem %s1204, 10
        %v1746 = vld [vmem:[%s1745] sm:$0x1]
        %v1748 = vperm.slane %v1746, 0
        %v1754 = vunpack.c.l.b16 %v1741
        %v1755 = vunpack.c.l.b16 %v1742
        %v1756 = vunpack.c.l.b16 %v1743
        %v1757 = vunpack.c.l.b16 %v1744
        %v1758 = vpack.c.b16 %v1755, %v1754
        %v1759 = vpack.c.b16 %v1757, %v1756
        %1762 = vmatpush.bf16.xpose.msra.mxu0 0
        %1763 = vmatpush.bf16.xpose.msra.mxu0 0
        %1764 = vmatpush.bf16.xpose.msra.mxu0 0
        %1765 = vmatpush.bf16.xpose.msra.mxu0 0
        %1766 = vmatpush.bf16.xpose.msra.mxu0 0
        %1767 = vmatpush.bf16.xpose.msra.mxu0 0
        %1768 = vmatpush.bf16.xpose.msra.mxu0 %v1759
        %1769 = vmatpush.bf16.xpose.msra.mxu0 %v1758
        %1770 = vmatmul.bf16.gmra.mxu0 %v1286
        %v1771 = vpop.f32.mrf.mxu0
        %v1772 = vadd.f32 %v1748, %v1771
        %v1773 = vpop.f32.mrf.mxu0
        %1774 = vdwg.mxu0
        %v1775 = vpack.c.bf16 %v1702, %v1702
        %v1776 = vpack.c.bf16 %v1737, %v1737
        %v1778 = vsel %vm1387, %v1775, 0
        %v1781 = vsel %vm1387, %v1776, 0
        %1783 = vmatpush.bf16.xpose.msra.mxu0 0
        %1784 = vmatpush.bf16.xpose.msra.mxu0 0
        %1785 = vmatpush.bf16.xpose.msra.mxu0 0
        %1786 = vmatpush.bf16.xpose.msra.mxu0 0
        %1787 = vmatpush.bf16.xpose.msra.mxu0 0
        %1788 = vmatpush.bf16.xpose.msra.mxu0 0
        %1789 = vmatpush.bf16.xpose.msra.mxu0 0
        %1790 = vmatpush.bf16.xpose.msra.mxu0 %v1781
        %1791 = vmatmul.bf16.gmra.mxu0 %v1778
        %v1792 = vpop.f32.mrf.mxu0
        %v1793 = vadd.f32 0.0, %v1792
        %v1794 = vpop.f32.mrf.mxu0
        %1795 = vdwg.mxu0
        %v1796 = vmul.f32 %v1793, 0.17677669
        %v1797 = vadd.f32 %v1796, %v1280
        %v1798 = vsel %vm1409, %v1797, -inf
        %1799 = vmax.xlane.f32.xlu0 %v1798
        %v1800 = vpop.xlane.xlu0 %1799
        %v1801 = vsub.f32 %v1797, %v1800
        %v1802 = vmul.f32 %v1801, 1.442695
        %v1803 = vpow.pop %v1802
        %v1804 = vsel %vm1409, %v1803, 0.0
        %1805 = vadd.xlane.f32.xlu0 %v1804
        %v1806 = vpop.xlane.xlu0 %1805
        %v1807 = vrcp.pop %v1806
        %v1808 = vmul.f32 %v1803, %v1807
        %v1809 = vpack.c.bf16 %v1808, %v1808
        %v1810 = vpack.c.bf16 %v1772, %v1772
        %v1812 = vsel %vm1409, %v1809, 0
        %v1815 = vsel %vm1426, %v1810, 0
        %1817 = vmatpush.bf16.msra.mxu0 0
        %1818 = vmatpush.bf16.msra.mxu0 0
        %1819 = vmatpush.bf16.msra.mxu0 0
        %1820 = vmatpush.bf16.msra.mxu0 0
        %1821 = vmatpush.bf16.msra.mxu0 0
        %1822 = vmatpush.bf16.msra.mxu0 0
        %1823 = vmatpush.bf16.msra.mxu0 0
        %1824 = vmatpush.bf16.msra.mxu0 %v1815
        %1825 = vmatmul.bf16.gmra.mxu0 %v1812
        %v1826 = vpop.f32.mrf.mxu0
        %v1827 = vadd.f32 0.0, %v1826
        %v1828 = vpop.f32.mrf.mxu0
        %1829 = vdwg.mxu0
        %s1830 = scalar_lea.vmem %s988, 32 [#allocation7]
        %v1831 = vld [vmem:[%s1830] sm:$0xf]
        %v1832 = vld [vmem:[%s1830 + $0x4] sm:$0xf]
        %v1833 = vld [vmem:[%s1830 + $0x8] sm:$0xf]
        %v1834 = vld [vmem:[%s1830 + $0xc] sm:$0xf]
        %v1835 = vpack.c.bf16 %v1827, %v1827
        %v1840 = vunpack.c.l.b16 %v1831
        %v1841 = vunpack.c.l.b16 %v1832
        %v1842 = vunpack.c.l.b16 %v1833
        %v1843 = vunpack.c.l.b16 %v1834
        %v1844 = vpack.c.b16 %v1841, %v1840
        %v1845 = vpack.c.b16 %v1843, %v1842
        %v1849 = vsel %vm1387, %v1835, 0
        %1851 = vmatpush.bf16.msra.mxu0 0
        %1852 = vmatpush.bf16.msra.mxu0 0
        %1853 = vmatpush.bf16.msra.mxu0 0
        %1854 = vmatpush.bf16.msra.mxu0 0
        %1855 = vmatpush.bf16.msra.mxu0 0
        %1856 = vmatpush.bf16.msra.mxu0 0
        %1857 = vmatpush.bf16.msra.mxu0 %v1845
        %1858 = vmatpush.bf16.msra.mxu0 %v1844
        %1859 = vmatmul.bf16.gmra.mxu0 %v1849
        %v1860 = vpop.f32.mrf.mxu0
        %v1861 = vadd.f32 0.0, %v1860
        %v1862 = vpop.f32.mrf.mxu0
        %1863 = vdwg.mxu0
        %v1864 = vadd.f32 %v1667, %v1861
        %s1865 = scalar_lea.vmem %s978, 48 [#allocation4]
        %v1866 = vld [vmem:[%s1865] sm:$0xf]
        %v1867 = vld [vmem:[%s1865 + $0x4] sm:$0xf]
        %v1868 = vld [vmem:[%s1865 + $0x8] sm:$0xf]
        %v1869 = vld [vmem:[%s1865 + $0xc] sm:$0xf]
        %s1870 = scalar_lea.vmem %s1204, 3
        %v1871 = vld [vmem:[%s1870] sm:$0x1]
        %v1873 = vperm.slane %v1871, 0
        %v1879 = vunpack.c.l.b16 %v1866
        %v1880 = vunpack.c.l.b16 %v1867
        %v1881 = vunpack.c.l.b16 %v1868
        %v1882 = vunpack.c.l.b16 %v1869
        %v1883 = vpack.c.b16 %v1880, %v1879
        %v1884 = vpack.c.b16 %v1882, %v1881
        %1887 = vmatpush.bf16.xpose.msra.mxu0 0
        %1888 = vmatpush.bf16.xpose.msra.mxu0 0
        %1889 = vmatpush.bf16.xpose.msra.mxu0 0
        %1890 = vmatpush.bf16.xpose.msra.mxu0 0
        %1891 = vmatpush.bf16.xpose.msra.mxu0 0
        %1892 = vmatpush.bf16.xpose.msra.mxu0 0
        %1893 = vmatpush.bf16.xpose.msra.mxu0 %v1884
        %1894 = vmatpush.bf16.xpose.msra.mxu0 %v1883
        %1895 = vmatmul.bf16.gmra.mxu0 %v1286
        %v1896 = vpop.f32.mrf.mxu0
        %v1897 = vadd.f32 %v1873, %v1896
        %v1898 = vpop.f32.mrf.mxu0
        %1899 = vdwg.mxu0
        %s1900 = scalar_lea.vmem %s978, 112 [#allocation4]
        %v1901 = vld [vmem:[%s1900] sm:$0xf]
        %v1902 = vld [vmem:[%s1900 + $0x4] sm:$0xf]
        %v1903 = vld [vmem:[%s1900 + $0x8] sm:$0xf]
        %v1904 = vld [vmem:[%s1900 + $0xc] sm:$0xf]
        %s1905 = scalar_lea.vmem %s1204, 7
        %v1906 = vld [vmem:[%s1905] sm:$0x1]
        %v1908 = vperm.slane %v1906, 0
        %v1914 = vunpack.c.l.b16 %v1901
        %v1915 = vunpack.c.l.b16 %v1902
        %v1916 = vunpack.c.l.b16 %v1903
        %v1917 = vunpack.c.l.b16 %v1904
        %v1918 = vpack.c.b16 %v1915, %v1914
        %v1919 = vpack.c.b16 %v1917, %v1916
        %1922 = vmatpush.bf16.xpose.msra.mxu0 0
        %1923 = vmatpush.bf16.xpose.msra.mxu0 0
        %1924 = vmatpush.bf16.xpose.msra.mxu0 0
        %1925 = vmatpush.bf16.xpose.msra.mxu0 0
        %1926 = vmatpush.bf16.xpose.msra.mxu0 0
        %1927 = vmatpush.bf16.xpose.msra.mxu0 0
        %1928 = vmatpush.bf16.xpose.msra.mxu0 %v1919
        %1929 = vmatpush.bf16.xpose.msra.mxu0 %v1918
        %1930 = vmatmul.bf16.gmra.mxu0 %v1286
        %v1931 = vpop.f32.mrf.mxu0
        %v1932 = vadd.f32 %v1908, %v1931
        %v1933 = vpop.f32.mrf.mxu0
        %1934 = vdwg.mxu0
        %s1935 = scalar_lea.vmem %s978, 176 [#allocation4]
        %v1936 = vld [vmem:[%s1935] sm:$0xf]
        %v1937 = vld [vmem:[%s1935 + $0x4] sm:$0xf]
        %v1938 = vld [vmem:[%s1935 + $0x8] sm:$0xf]
        %v1939 = vld [vmem:[%s1935 + $0xc] sm:$0xf]
        %s1940 = scalar_lea.vmem %s1204, 11
        %v1941 = vld [vmem:[%s1940] sm:$0x1]
        %v1943 = vperm.slane %v1941, 0
        %v1949 = vunpack.c.l.b16 %v1936
        %v1950 = vunpack.c.l.b16 %v1937
        %v1951 = vunpack.c.l.b16 %v1938
        %v1952 = vunpack.c.l.b16 %v1939
        %v1953 = vpack.c.b16 %v1950, %v1949
        %v1954 = vpack.c.b16 %v1952, %v1951
        %1957 = vmatpush.bf16.xpose.msra.mxu0 0
        %1958 = vmatpush.bf16.xpose.msra.mxu0 0
        %1959 = vmatpush.bf16.xpose.msra.mxu0 0
        %1960 = vmatpush.bf16.xpose.msra.mxu0 0
        %1961 = vmatpush.bf16.xpose.msra.mxu0 0
        %1962 = vmatpush.bf16.xpose.msra.mxu0 0
        %1963 = vmatpush.bf16.xpose.msra.mxu0 %v1954
        %1964 = vmatpush.bf16.xpose.msra.mxu0 %v1953
        %1965 = vmatmul.bf16.gmra.mxu0 %v1286
        %v1966 = vpop.f32.mrf.mxu0
        %v1967 = vadd.f32 %v1943, %v1966
        %v1968 = vpop.f32.mrf.mxu0
        %1969 = vdwg.mxu0
        %v1970 = vpack.c.bf16 %v1897, %v1897
        %v1971 = vpack.c.bf16 %v1932, %v1932
        %v1973 = vsel %vm1387, %v1970, 0
        %v1976 = vsel %vm1387, %v1971, 0
        %1978 = vmatpush.bf16.xpose.msra.mxu0 0
        %1979 = vmatpush.bf16.xpose.msra.mxu0 0
        %1980 = vmatpush.bf16.xpose.msra.mxu0 0
        %1981 = vmatpush.bf16.xpose.msra.mxu0 0
        %1982 = vmatpush.bf16.xpose.msra.mxu0 0
        %1983 = vmatpush.bf16.xpose.msra.mxu0 0
        %1984 = vmatpush.bf16.xpose.msra.mxu0 0
        %1985 = vmatpush.bf16.xpose.msra.mxu0 %v1976
        %1986 = vmatmul.bf16.gmra.mxu0 %v1973
        %v1987 = vpop.f32.mrf.mxu0
        %v1988 = vadd.f32 0.0, %v1987
        %v1989 = vpop.f32.mrf.mxu0
        %1990 = vdwg.mxu0
        %v1991 = vmul.f32 %v1988, 0.17677669
        %v1992 = vadd.f32 %v1991, %v1280
        %v1993 = vsel %vm1409, %v1992, -inf
        %1994 = vmax.xlane.f32.xlu0 %v1993
        %v1995 = vpop.xlane.xlu0 %1994
        %v1996 = vsub.f32 %v1992, %v1995
        %v1997 = vmul.f32 %v1996, 1.442695
        %v1998 = vpow.pop %v1997
        %v1999 = vsel %vm1409, %v1998, 0.0
        %2000 = vadd.xlane.f32.xlu0 %v1999
        %v2001 = vpop.xlane.xlu0 %2000
        %v2002 = vrcp.pop %v2001
        %v2003 = vmul.f32 %v1998, %v2002
        %v2004 = vpack.c.bf16 %v2003, %v2003
        %v2005 = vpack.c.bf16 %v1967, %v1967
        %v2007 = vsel %vm1409, %v2004, 0
        %v2010 = vsel %vm1426, %v2005, 0
        %2012 = vmatpush.bf16.msra.mxu0 0
        %2013 = vmatpush.bf16.msra.mxu0 0
        %2014 = vmatpush.bf16.msra.mxu0 0
        %2015 = vmatpush.bf16.msra.mxu0 0
        %2016 = vmatpush.bf16.msra.mxu0 0
        %2017 = vmatpush.bf16.msra.mxu0 0
        %2018 = vmatpush.bf16.msra.mxu0 0
        %2019 = vmatpush.bf16.msra.mxu0 %v2010
        %2020 = vmatmul.bf16.gmra.mxu0 %v2007
        %v2021 = vpop.f32.mrf.mxu0
        %v2022 = vadd.f32 0.0, %v2021
        %v2023 = vpop.f32.mrf.mxu0
        %2024 = vdwg.mxu0
        %s2025 = scalar_lea.vmem %s988, 48 [#allocation7]
        %v2026 = vld [vmem:[%s2025] sm:$0xf]
        %v2027 = vld [vmem:[%s2025 + $0x4] sm:$0xf]
        %v2028 = vld [vmem:[%s2025 + $0x8] sm:$0xf]
        %v2029 = vld [vmem:[%s2025 + $0xc] sm:$0xf]
        %v2030 = vpack.c.bf16 %v2022, %v2022
        %v2035 = vunpack.c.l.b16 %v2026
        %v2036 = vunpack.c.l.b16 %v2027
        %v2037 = vunpack.c.l.b16 %v2028
        %v2038 = vunpack.c.l.b16 %v2029
        %v2039 = vpack.c.b16 %v2036, %v2035
        %v2040 = vpack.c.b16 %v2038, %v2037
        %v2044 = vsel %vm1387, %v2030, 0
        %2046 = vmatpush.bf16.msra.mxu0 0
        %2047 = vmatpush.bf16.msra.mxu0 0
        %2048 = vmatpush.bf16.msra.mxu0 0
        %2049 = vmatpush.bf16.msra.mxu0 0
        %2050 = vmatpush.bf16.msra.mxu0 0
        %2051 = vmatpush.bf16.msra.mxu0 0
        %2052 = vmatpush.bf16.msra.mxu0 %v2040
        %2053 = vmatpush.bf16.msra.mxu0 %v2039
        %2054 = vmatmul.bf16.gmra.mxu0 %v2044
        %v2055 = vpop.f32.mrf.mxu0
        %v2056 = vadd.f32 0.0, %v2055
        %v2057 = vpop.f32.mrf.mxu0
        %2058 = vdwg.mxu0
        %v2059 = vadd.f32 %v1864, %v2056
        %v2060 = vld [vmem:[%s1207] sm:$0x1]
        %v2062 = vperm.slane %v2060, 0
        %v2064 = vadd.f32 %v2059, %v2062
        %v2065 = vadd.f32 %v1242, %v2064
        %v2066 = vld [vmem:[%s1210] sm:$0x1]
        %v2067 = vld [vmem:[%s1213] sm:$0x1]
        %2068 = vadd.xlane.f32.xlu0 %v2065
        %v2069 = vpop.xlane.xlu0 %2068
        %v2070 = vmul.f32 %v2069, %v1253
        %v2071 = vsub.f32 %v2065, %v2070
        %v2072 = vmul.f32 %v2071, %v2071
        %2073 = vadd.xlane.f32.xlu0 %v2072
        %v2074 = vpop.xlane.xlu0 %2073
        %v2075 = vmul.f32 %v2074, %v1253
        %v2076 = vadd.f32 %v2075, 1e-05
        %v2077 = vrsqrt.pop %v2076
        %v2078 = vmul.f32 %v2077, %v2076
        %v2079 = vmul.f32 %v2078, %v2077
        %v2080 = vmul.f32 0.5, %v2079
        %v2081 = vsub.f32 1.5, %v2080
        %v2082 = vmul.f32 %v2077, %v2081
        %vm2083 = vweird.f32 %v2076
        %vm2084 = vweird.f32 %v2077
        %vm2085 = vmor %vm2083, %vm2084
        %v2086 = vsel %vm2085, %v2077, %v2082
        %v2087 = vmul.f32 %v2071, %v2086
        %v2089 = vperm.slane %v2066, 0
        %v2091 = vmul.f32 %v2087, %v2089
        %v2093 = vperm.slane %v2067, 0
        %v2095 = vadd.f32 %v2091, %v2093
        %v2096 = vld [vmem:[%s1194] sm:$0xff]
        %v2097 = vld [vmem:[%s998] sm:$0xf]
        %v2098 = vld [vmem:[%s998 + $0x4] sm:$0xf]
        %v2099 = vld [vmem:[%s998 + $0x8] sm:$0xf]
        %v2100 = vld [vmem:[%s998 + $0xc] sm:$0xf]
        %v2101 = vld [vmem:[%s1008] sm:$0x1]
        %v2102 = vpack.c.bf16 %v2095, %v2095
        %v2104 = vperm.slane %v2101, 0
        %v2110 = vunpack.c.l.b16 %v2097
        %v2111 = vunpack.c.l.b16 %v2098
        %v2112 = vunpack.c.l.b16 %v2099
        %v2113 = vunpack.c.l.b16 %v2100
        %v2114 = vpack.c.b16 %v2111, %v2110
        %v2115 = vpack.c.b16 %v2113, %v2112
        %2118 = vmatpush.bf16.xpose.msra.mxu0 0
        %2119 = vmatpush.bf16.xpose.msra.mxu0 0
        %2120 = vmatpush.bf16.xpose.msra.mxu0 0
        %2121 = vmatpush.bf16.xpose.msra.mxu0 0
        %2122 = vmatpush.bf16.xpose.msra.mxu0 0
        %2123 = vmatpush.bf16.xpose.msra.mxu0 0
        %2124 = vmatpush.bf16.xpose.msra.mxu0 %v2115
        %2125 = vmatpush.bf16.xpose.msra.mxu0 %v2114
        %2126 = vmatmul.bf16.gmra.mxu0 %v2102
        %v2127 = vpop.f32.mrf.mxu0
        %v2128 = vadd.f32 %v2104, %v2127
        %v2129 = vpop.f32.mrf.mxu0
        %2130 = vdwg.mxu0
        %s2131 = scalar_lea.vmem %s998, 64 [#allocation9]
        %v2132 = vld [vmem:[%s2131] sm:$0xf]
        %v2133 = vld [vmem:[%s2131 + $0x4] sm:$0xf]
        %v2134 = vld [vmem:[%s2131 + $0x8] sm:$0xf]
        %v2135 = vld [vmem:[%s2131 + $0xc] sm:$0xf]
        %s2136 = scalar_lea.vmem %s1008, 4 [#allocation10]
        %v2137 = vld [vmem:[%s2136] sm:$0x1]
        %v2138 = vpack.c.bf16 %v2096, %v2096
        %v2140 = vperm.slane %v2137, 0
        %v2146 = vunpack.c.l.b16 %v2132
        %v2147 = vunpack.c.l.b16 %v2133
        %v2148 = vunpack.c.l.b16 %v2134
        %v2149 = vunpack.c.l.b16 %v2135
        %v2150 = vpack.c.b16 %v2147, %v2146
        %v2151 = vpack.c.b16 %v2149, %v2148
        %2154 = vmatpush.bf16.xpose.msra.mxu0 0
        %2155 = vmatpush.bf16.xpose.msra.mxu0 0
        %2156 = vmatpush.bf16.xpose.msra.mxu0 0
        %2157 = vmatpush.bf16.xpose.msra.mxu0 0
        %2158 = vmatpush.bf16.xpose.msra.mxu0 0
        %2159 = vmatpush.bf16.xpose.msra.mxu0 0
        %2160 = vmatpush.bf16.xpose.msra.mxu0 %v2151
        %2161 = vmatpush.bf16.xpose.msra.mxu0 %v2150
        %2162 = vmatmul.bf16.gmra.mxu0 %v2138
        %v2163 = vpop.f32.mrf.mxu0
        %v2164 = vadd.f32 %v2140, %v2163
        %v2165 = vpop.f32.mrf.mxu0
        %2166 = vdwg.mxu0
        %s2167 = scalar_lea.vmem %s998, 128 [#allocation9]
        %v2168 = vld [vmem:[%s2167] sm:$0xf]
        %v2169 = vld [vmem:[%s2167 + $0x4] sm:$0xf]
        %v2170 = vld [vmem:[%s2167 + $0x8] sm:$0xf]
        %v2171 = vld [vmem:[%s2167 + $0xc] sm:$0xf]
        %s2172 = scalar_lea.vmem %s1008, 8 [#allocation10]
        %v2173 = vld [vmem:[%s2172] sm:$0x1]
        %v2175 = vperm.slane %v2173, 0
        %v2181 = vunpack.c.l.b16 %v2168
        %v2182 = vunpack.c.l.b16 %v2169
        %v2183 = vunpack.c.l.b16 %v2170
        %v2184 = vunpack.c.l.b16 %v2171
        %v2185 = vpack.c.b16 %v2182, %v2181
        %v2186 = vpack.c.b16 %v2184, %v2183
        %2189 = vmatpush.bf16.xpose.msra.mxu0 0
        %2190 = vmatpush.bf16.xpose.msra.mxu0 0
        %2191 = vmatpush.bf16.xpose.msra.mxu0 0
        %2192 = vmatpush.bf16.xpose.msra.mxu0 0
        %2193 = vmatpush.bf16.xpose.msra.mxu0 0
        %2194 = vmatpush.bf16.xpose.msra.mxu0 0
        %2195 = vmatpush.bf16.xpose.msra.mxu0 %v2186
        %2196 = vmatpush.bf16.xpose.msra.mxu0 %v2185
        %2197 = vmatmul.bf16.gmra.mxu0 %v2138
        %v2198 = vpop.f32.mrf.mxu0
        %v2199 = vadd.f32 %v2175, %v2198
        %v2200 = vpop.f32.mrf.mxu0
        %2201 = vdwg.mxu0
        %v2202 = vpack.c.bf16 %v2128, %v2128
        %v2203 = vpack.c.bf16 %v2164, %v2164
        %v2205 = vsel %vm1387, %v2202, 0
        %v2208 = vsel %vm1387, %v2203, 0
        %2210 = vmatpush.bf16.xpose.msra.mxu0 0
        %2211 = vmatpush.bf16.xpose.msra.mxu0 0
        %2212 = vmatpush.bf16.xpose.msra.mxu0 0
        %2213 = vmatpush.bf16.xpose.msra.mxu0 0
        %2214 = vmatpush.bf16.xpose.msra.mxu0 0
        %2215 = vmatpush.bf16.xpose.msra.mxu0 0
        %2216 = vmatpush.bf16.xpose.msra.mxu0 0
        %2217 = vmatpush.bf16.xpose.msra.mxu0 %v2208
        %2218 = vmatmul.bf16.gmra.mxu0 %v2205
        %v2219 = vpop.f32.mrf.mxu0
        %v2220 = vadd.f32 0.0, %v2219
        %v2221 = vpop.f32.mrf.mxu0
        %2222 = vdwg.mxu0
        %v2223 = vmul.f32 %v2220, 0.17677669
        %v2224 = vsel %vm1409, %v2223, -inf
        %2225 = vmax.xlane.f32.xlu0 %v2224
        %v2226 = vpop.xlane.xlu0 %2225
        %v2227 = vsub.f32 %v2223, %v2226
        %v2228 = vmul.f32 %v2227, 1.442695
        %v2229 = vpow.pop %v2228
        %v2230 = vsel %vm1409, %v2229, 0.0
        %2231 = vadd.xlane.f32.xlu0 %v2230
        %v2232 = vpop.xlane.xlu0 %2231
        %v2233 = vrcp.pop %v2232
        %v2234 = vmul.f32 %v2229, %v2233
        %v2235 = vpack.c.bf16 %v2234, %v2234
        %v2236 = vpack.c.bf16 %v2199, %v2199
        %v2238 = vsel %vm1409, %v2235, 0
        %v2241 = vsel %vm1426, %v2236, 0
        %2243 = vmatpush.bf16.msra.mxu0 0
        %2244 = vmatpush.bf16.msra.mxu0 0
        %2245 = vmatpush.bf16.msra.mxu0 0
        %2246 = vmatpush.bf16.msra.mxu0 0
        %2247 = vmatpush.bf16.msra.mxu0 0
        %2248 = vmatpush.bf16.msra.mxu0 0
        %2249 = vmatpush.bf16.msra.mxu0 0
        %2250 = vmatpush.bf16.msra.mxu0 %v2241
        %2251 = vmatmul.bf16.gmra.mxu0 %v2238
        %v2252 = vpop.f32.mrf.mxu0
        %v2253 = vadd.f32 0.0, %v2252
        %v2254 = vpop.f32.mrf.mxu0
        %2255 = vdwg.mxu0
        %v2256 = vld [vmem:[%s1018] sm:$0xf]
        %v2257 = vld [vmem:[%s1018 + $0x4] sm:$0xf]
        %v2258 = vld [vmem:[%s1018 + $0x8] sm:$0xf]
        %v2259 = vld [vmem:[%s1018 + $0xc] sm:$0xf]
        %v2260 = vpack.c.bf16 %v2253, %v2253
        %s2261 = scalar_lea.vmem %s998, 16 [#allocation9]
        %v2262 = vld [vmem:[%s2261] sm:$0xf]
        %v2263 = vld [vmem:[%s2261 + $0x4] sm:$0xf]
        %v2264 = vld [vmem:[%s2261 + $0x8] sm:$0xf]
        %v2265 = vld [vmem:[%s2261 + $0xc] sm:$0xf]
        %s2266 = scalar_lea.vmem %s1008, 1 [#allocation10]
        %v2267 = vld [vmem:[%s2266] sm:$0x1]
        %v2269 = vperm.slane %v2267, 0
        %v2275 = vunpack.c.l.b16 %v2262
        %v2276 = vunpack.c.l.b16 %v2263
        %v2277 = vunpack.c.l.b16 %v2264
        %v2278 = vunpack.c.l.b16 %v2265
        %v2279 = vpack.c.b16 %v2276, %v2275
        %v2280 = vpack.c.b16 %v2278, %v2277
        %2283 = vmatpush.bf16.xpose.msra.mxu0 0
        %2284 = vmatpush.bf16.xpose.msra.mxu0 0
        %2285 = vmatpush.bf16.xpose.msra.mxu0 0
        %2286 = vmatpush.bf16.xpose.msra.mxu0 0
        %2287 = vmatpush.bf16.xpose.msra.mxu0 0
        %2288 = vmatpush.bf16.xpose.msra.mxu0 0
        %2289 = vmatpush.bf16.xpose.msra.mxu0 %v2280
        %2290 = vmatpush.bf16.xpose.msra.mxu0 %v2279
        %2291 = vmatmul.bf16.gmra.mxu0 %v2102
        %v2292 = vpop.f32.mrf.mxu0
        %v2293 = vadd.f32 %v2269, %v2292
        %v2294 = vpop.f32.mrf.mxu0
        %2295 = vdwg.mxu0
        %s2296 = scalar_lea.vmem %s998, 80 [#allocation9]
        %v2297 = vld [vmem:[%s2296] sm:$0xf]
        %v2298 = vld [vmem:[%s2296 + $0x4] sm:$0xf]
        %v2299 = vld [vmem:[%s2296 + $0x8] sm:$0xf]
        %v2300 = vld [vmem:[%s2296 + $0xc] sm:$0xf]
        %s2301 = scalar_lea.vmem %s1008, 5 [#allocation10]
        %v2302 = vld [vmem:[%s2301] sm:$0x1]
        %v2304 = vperm.slane %v2302, 0
        %v2310 = vunpack.c.l.b16 %v2297
        %v2311 = vunpack.c.l.b16 %v2298
        %v2312 = vunpack.c.l.b16 %v2299
        %v2313 = vunpack.c.l.b16 %v2300
        %v2314 = vpack.c.b16 %v2311, %v2310
        %v2315 = vpack.c.b16 %v2313, %v2312
        %2318 = vmatpush.bf16.xpose.msra.mxu0 0
        %2319 = vmatpush.bf16.xpose.msra.mxu0 0
        %2320 = vmatpush.bf16.xpose.msra.mxu0 0
        %2321 = vmatpush.bf16.xpose.msra.mxu0 0
        %2322 = vmatpush.bf16.xpose.msra.mxu0 0
        %2323 = vmatpush.bf16.xpose.msra.mxu0 0
        %2324 = vmatpush.bf16.xpose.msra.mxu0 %v2315
        %2325 = vmatpush.bf16.xpose.msra.mxu0 %v2314
        %2326 = vmatmul.bf16.gmra.mxu0 %v2138
        %v2327 = vpop.f32.mrf.mxu0
        %v2328 = vadd.f32 %v2304, %v2327
        %v2329 = vpop.f32.mrf.mxu0
        %2330 = vdwg.mxu0
        %s2331 = scalar_lea.vmem %s998, 144 [#allocation9]
        %v2332 = vld [vmem:[%s2331] sm:$0xf]
        %v2333 = vld [vmem:[%s2331 + $0x4] sm:$0xf]
        %v2334 = vld [vmem:[%s2331 + $0x8] sm:$0xf]
        %v2335 = vld [vmem:[%s2331 + $0xc] sm:$0xf]
        %s2336 = scalar_lea.vmem %s1008, 9 [#allocation10]
        %v2337 = vld [vmem:[%s2336] sm:$0x1]
        %v2339 = vperm.slane %v2337, 0
        %v2345 = vunpack.c.l.b16 %v2332
        %v2346 = vunpack.c.l.b16 %v2333
        %v2347 = vunpack.c.l.b16 %v2334
        %v2348 = vunpack.c.l.b16 %v2335
        %v2349 = vpack.c.b16 %v2346, %v2345
        %v2350 = vpack.c.b16 %v2348, %v2347
        %2353 = vmatpush.bf16.xpose.msra.mxu0 0
        %2354 = vmatpush.bf16.xpose.msra.mxu0 0
        %2355 = vmatpush.bf16.xpose.msra.mxu0 0
        %2356 = vmatpush.bf16.xpose.msra.mxu0 0
        %2357 = vmatpush.bf16.xpose.msra.mxu0 0
        %2358 = vmatpush.bf16.xpose.msra.mxu0 0
        %2359 = vmatpush.bf16.xpose.msra.mxu0 %v2350
        %2360 = vmatpush.bf16.xpose.msra.mxu0 %v2349
        %2361 = vmatmul.bf16.gmra.mxu0 %v2138
        %v2362 = vpop.f32.mrf.mxu0
        %v2363 = vadd.f32 %v2339, %v2362
        %v2364 = vpop.f32.mrf.mxu0
        %2365 = vdwg.mxu0
        %v2366 = vpack.c.bf16 %v2293, %v2293
        %v2367 = vpack.c.bf16 %v2328, %v2328
        %v2369 = vsel %vm1387, %v2366, 0
        %v2372 = vsel %vm1387, %v2367, 0
        %2374 = vmatpush.bf16.xpose.msra.mxu0 0
        %2375 = vmatpush.bf16.xpose.msra.mxu0 0
        %2376 = vmatpush.bf16.xpose.msra.mxu0 0
        %2377 = vmatpush.bf16.xpose.msra.mxu0 0
        %2378 = vmatpush.bf16.xpose.msra.mxu0 0
        %2379 = vmatpush.bf16.xpose.msra.mxu0 0
        %2380 = vmatpush.bf16.xpose.msra.mxu0 0
        %2381 = vmatpush.bf16.xpose.msra.mxu0 %v2372
        %2382 = vmatmul.bf16.gmra.mxu0 %v2369
        %v2383 = vpop.f32.mrf.mxu0
        %v2384 = vadd.f32 0.0, %v2383
        %v2385 = vpop.f32.mrf.mxu0
        %2386 = vdwg.mxu0
        %v2387 = vmul.f32 %v2384, 0.17677669
        %v2388 = vsel %vm1409, %v2387, -inf
        %2389 = vmax.xlane.f32.xlu0 %v2388
        %v2390 = vpop.xlane.xlu0 %2389
        %v2391 = vsub.f32 %v2387, %v2390
        %v2392 = vmul.f32 %v2391, 1.442695
        %v2393 = vpow.pop %v2392
        %v2394 = vsel %vm1409, %v2393, 0.0
        %2395 = vadd.xlane.f32.xlu0 %v2394
        %v2396 = vpop.xlane.xlu0 %2395
        %v2397 = vrcp.pop %v2396
        %v2398 = vmul.f32 %v2393, %v2397
        %v2399 = vpack.c.bf16 %v2398, %v2398
        %v2400 = vpack.c.bf16 %v2363, %v2363
        %v2402 = vsel %vm1409, %v2399, 0
        %v2405 = vsel %vm1426, %v2400, 0
        %2407 = vmatpush.bf16.msra.mxu0 0
        %2408 = vmatpush.bf16.msra.mxu0 0
        %2409 = vmatpush.bf16.msra.mxu0 0
        %2410 = vmatpush.bf16.msra.mxu0 0
        %2411 = vmatpush.bf16.msra.mxu0 0
        %2412 = vmatpush.bf16.msra.mxu0 0
        %2413 = vmatpush.bf16.msra.mxu0 0
        %2414 = vmatpush.bf16.msra.mxu0 %v2405
        %2415 = vmatmul.bf16.gmra.mxu0 %v2402
        %v2416 = vpop.f32.mrf.mxu0
        %v2417 = vadd.f32 0.0, %v2416
        %v2418 = vpop.f32.mrf.mxu0
        %2419 = vdwg.mxu0
        %s2420 = scalar_lea.vmem %s1018, 16 [#allocation12]
        %v2421 = vld [vmem:[%s2420] sm:$0xf]
        %v2422 = vld [vmem:[%s2420 + $0x4] sm:$0xf]
        %v2423 = vld [vmem:[%s2420 + $0x8] sm:$0xf]
        %v2424 = vld [vmem:[%s2420 + $0xc] sm:$0xf]
        %v2425 = vpack.c.bf16 %v2417, %v2417
        %v2430 = vunpack.c.l.b16 %v2421
        %v2431 = vunpack.c.l.b16 %v2422
        %v2432 = vunpack.c.l.b16 %v2423
        %v2433 = vunpack.c.l.b16 %v2424
        %v2434 = vpack.c.b16 %v2431, %v2430
        %v2435 = vpack.c.b16 %v2433, %v2432
        %v2439 = vsel %vm1387, %v2425, 0
        %2441 = vmatpush.bf16.msra.mxu0 0
        %2442 = vmatpush.bf16.msra.mxu0 0
        %2443 = vmatpush.bf16.msra.mxu0 0
        %2444 = vmatpush.bf16.msra.mxu0 0
        %2445 = vmatpush.bf16.msra.mxu0 0
        %2446 = vmatpush.bf16.msra.mxu0 0
        %2447 = vmatpush.bf16.msra.mxu0 %v2435
        %2448 = vmatpush.bf16.msra.mxu0 %v2434
        %2449 = vmatmul.bf16.gmra.mxu0 %v2439
        %v2450 = vpop.f32.mrf.mxu0
        %v2451 = vadd.f32 0.0, %v2450
        %v2452 = vpop.f32.mrf.mxu0
        %2453 = vdwg.mxu0
        %v2458 = vunpack.c.l.b16 %v2256
        %v2459 = vunpack.c.l.b16 %v2257
        %v2460 = vunpack.c.l.b16 %v2258
        %v2461 = vunpack.c.l.b16 %v2259
        %v2462 = vpack.c.b16 %v2459, %v2458
        %v2463 = vpack.c.b16 %v2461, %v2460
        %v2467 = vsel %vm1387, %v2260, 0
        %2469 = vmatpush.bf16.msra.mxu0 0
        %2470 = vmatpush.bf16.msra.mxu0 0
        %2471 = vmatpush.bf16.msra.mxu0 0
        %2472 = vmatpush.bf16.msra.mxu0 0
        %2473 = vmatpush.bf16.msra.mxu0 0
        %2474 = vmatpush.bf16.msra.mxu0 0
        %2475 = vmatpush.bf16.msra.mxu0 %v2463
        %2476 = vmatpush.bf16.msra.mxu0 %v2462
        %2477 = vmatmul.bf16.gmra.mxu0 %v2467
        %v2478 = vpop.f32.mrf.mxu0
        %v2479 = vadd.f32 %v2451, %v2478
        %v2480 = vpop.f32.mrf.mxu0
        %2481 = vdwg.mxu0
        %s2482 = scalar_lea.vmem %s998, 32 [#allocation9]
        %v2483 = vld [vmem:[%s2482] sm:$0xf]
        %v2484 = vld [vmem:[%s2482 + $0x4] sm:$0xf]
        %v2485 = vld [vmem:[%s2482 + $0x8] sm:$0xf]
        %v2486 = vld [vmem:[%s2482 + $0xc] sm:$0xf]
        %s2487 = scalar_lea.vmem %s1008, 2 [#allocation10]
        %v2488 = vld [vmem:[%s2487] sm:$0x1]
        %v2490 = vperm.slane %v2488, 0
        %v2496 = vunpack.c.l.b16 %v2483
        %v2497 = vunpack.c.l.b16 %v2484
        %v2498 = vunpack.c.l.b16 %v2485
        %v2499 = vunpack.c.l.b16 %v2486
        %v2500 = vpack.c.b16 %v2497, %v2496
        %v2501 = vpack.c.b16 %v2499, %v2498
        %2504 = vmatpush.bf16.xpose.msra.mxu0 0
        %2505 = vmatpush.bf16.xpose.msra.mxu0 0
        %2506 = vmatpush.bf16.xpose.msra.mxu0 0
        %2507 = vmatpush.bf16.xpose.msra.mxu0 0
        %2508 = vmatpush.bf16.xpose.msra.mxu0 0
        %2509 = vmatpush.bf16.xpose.msra.mxu0 0
        %2510 = vmatpush.bf16.xpose.msra.mxu0 %v2501
        %2511 = vmatpush.bf16.xpose.msra.mxu0 %v2500
        %2512 = vmatmul.bf16.gmra.mxu0 %v2102
        %v2513 = vpop.f32.mrf.mxu0
        %v2514 = vadd.f32 %v2490, %v2513
        %v2515 = vpop.f32.mrf.mxu0
        %2516 = vdwg.mxu0
        %s2517 = scalar_lea.vmem %s998, 96 [#allocation9]
        %v2518 = vld [vmem:[%s2517] sm:$0xf]
        %v2519 = vld [vmem:[%s2517 + $0x4] sm:$0xf]
        %v2520 = vld [vmem:[%s2517 + $0x8] sm:$0xf]
        %v2521 = vld [vmem:[%s2517 + $0xc] sm:$0xf]
        %s2522 = scalar_lea.vmem %s1008, 6 [#allocation10]
        %v2523 = vld [vmem:[%s2522] sm:$0x1]
        %v2525 = vperm.slane %v2523, 0
        %v2531 = vunpack.c.l.b16 %v2518
        %v2532 = vunpack.c.l.b16 %v2519
        %v2533 = vunpack.c.l.b16 %v2520
        %v2534 = vunpack.c.l.b16 %v2521
        %v2535 = vpack.c.b16 %v2532, %v2531
        %v2536 = vpack.c.b16 %v2534, %v2533
        %2539 = vmatpush.bf16.xpose.msra.mxu0 0
        %2540 = vmatpush.bf16.xpose.msra.mxu0 0
        %2541 = vmatpush.bf16.xpose.msra.mxu0 0
        %2542 = vmatpush.bf16.xpose.msra.mxu0 0
        %2543 = vmatpush.bf16.xpose.msra.mxu0 0
        %2544 = vmatpush.bf16.xpose.msra.mxu0 0
        %2545 = vmatpush.bf16.xpose.msra.mxu0 %v2536
        %2546 = vmatpush.bf16.xpose.msra.mxu0 %v2535
        %2547 = vmatmul.bf16.gmra.mxu0 %v2138
        %v2548 = vpop.f32.mrf.mxu0
        %v2549 = vadd.f32 %v2525, %v2548
        %v2550 = vpop.f32.mrf.mxu0
        %2551 = vdwg.mxu0
        %s2552 = scalar_lea.vmem %s998, 160 [#allocation9]
        %v2553 = vld [vmem:[%s2552] sm:$0xf]
        %v2554 = vld [vmem:[%s2552 + $0x4] sm:$0xf]
        %v2555 = vld [vmem:[%s2552 + $0x8] sm:$0xf]
        %v2556 = vld [vmem:[%s2552 + $0xc] sm:$0xf]
        %s2557 = scalar_lea.vmem %s1008, 10 [#allocation10]
        %v2558 = vld [vmem:[%s2557] sm:$0x1]
        %v2560 = vperm.slane %v2558, 0
        %v2566 = vunpack.c.l.b16 %v2553
        %v2567 = vunpack.c.l.b16 %v2554
        %v2568 = vunpack.c.l.b16 %v2555
        %v2569 = vunpack.c.l.b16 %v2556
        %v2570 = vpack.c.b16 %v2567, %v2566
        %v2571 = vpack.c.b16 %v2569, %v2568
        %2574 = vmatpush.bf16.xpose.msra.mxu0 0
        %2575 = vmatpush.bf16.xpose.msra.mxu0 0
        %2576 = vmatpush.bf16.xpose.msra.mxu0 0
        %2577 = vmatpush.bf16.xpose.msra.mxu0 0
        %2578 = vmatpush.bf16.xpose.msra.mxu0 0
        %2579 = vmatpush.bf16.xpose.msra.mxu0 0
        %2580 = vmatpush.bf16.xpose.msra.mxu0 %v2571
        %2581 = vmatpush.bf16.xpose.msra.mxu0 %v2570
        %2582 = vmatmul.bf16.gmra.mxu0 %v2138
        %v2583 = vpop.f32.mrf.mxu0
        %v2584 = vadd.f32 %v2560, %v2583
        %v2585 = vpop.f32.mrf.mxu0
        %2586 = vdwg.mxu0
        %v2587 = vpack.c.bf16 %v2514, %v2514
        %v2588 = vpack.c.bf16 %v2549, %v2549
        %v2590 = vsel %vm1387, %v2587, 0
        %v2593 = vsel %vm1387, %v2588, 0
        %2595 = vmatpush.bf16.xpose.msra.mxu0 0
        %2596 = vmatpush.bf16.xpose.msra.mxu0 0
        %2597 = vmatpush.bf16.xpose.msra.mxu0 0
        %2598 = vmatpush.bf16.xpose.msra.mxu0 0
        %2599 = vmatpush.bf16.xpose.msra.mxu0 0
        %2600 = vmatpush.bf16.xpose.msra.mxu0 0
        %2601 = vmatpush.bf16.xpose.msra.mxu0 0
        %2602 = vmatpush.bf16.xpose.msra.mxu0 %v2593
        %2603 = vmatmul.bf16.gmra.mxu0 %v2590
        %v2604 = vpop.f32.mrf.mxu0
        %v2605 = vadd.f32 0.0, %v2604
        %v2606 = vpop.f32.mrf.mxu0
        %2607 = vdwg.mxu0
        %v2608 = vmul.f32 %v2605, 0.17677669
        %v2609 = vsel %vm1409, %v2608, -inf
        %2610 = vmax.xlane.f32.xlu0 %v2609
        %v2611 = vpop.xlane.xlu0 %2610
        %v2612 = vsub.f32 %v2608, %v2611
        %v2613 = vmul.f32 %v2612, 1.442695
        %v2614 = vpow.pop %v2613
        %v2615 = vsel %vm1409, %v2614, 0.0
        %2616 = vadd.xlane.f32.xlu0 %v2615
        %v2617 = vpop.xlane.xlu0 %2616
        %v2618 = vrcp.pop %v2617
        %v2619 = vmul.f32 %v2614, %v2618
        %v2620 = vpack.c.bf16 %v2619, %v2619
        %v2621 = vpack.c.bf16 %v2584, %v2584
        %v2623 = vsel %vm1409, %v2620, 0
        %v2626 = vsel %vm1426, %v2621, 0
        %2628 = vmatpush.bf16.msra.mxu0 0
        %2629 = vmatpush.bf16.msra.mxu0 0
        %2630 = vmatpush.bf16.msra.mxu0 0
        %2631 = vmatpush.bf16.msra.mxu0 0
        %2632 = vmatpush.bf16.msra.mxu0 0
        %2633 = vmatpush.bf16.msra.mxu0 0
        %2634 = vmatpush.bf16.msra.mxu0 0
        %2635 = vmatpush.bf16.msra.mxu0 %v2626
        %2636 = vmatmul.bf16.gmra.mxu0 %v2623
        %v2637 = vpop.f32.mrf.mxu0
        %v2638 = vadd.f32 0.0, %v2637
        %v2639 = vpop.f32.mrf.mxu0
        %2640 = vdwg.mxu0
        %s2641 = scalar_lea.vmem %s1018, 32 [#allocation12]
        %v2642 = vld [vmem:[%s2641] sm:$0xf]
        %v2643 = vld [vmem:[%s2641 + $0x4] sm:$0xf]
        %v2644 = vld [vmem:[%s2641 + $0x8] sm:$0xf]
        %v2645 = vld [vmem:[%s2641 + $0xc] sm:$0xf]
        %v2646 = vpack.c.bf16 %v2638, %v2638
        %v2651 = vunpack.c.l.b16 %v2642
        %v2652 = vunpack.c.l.b16 %v2643
        %v2653 = vunpack.c.l.b16 %v2644
        %v2654 = vunpack.c.l.b16 %v2645
        %v2655 = vpack.c.b16 %v2652, %v2651
        %v2656 = vpack.c.b16 %v2654, %v2653
        %v2660 = vsel %vm1387, %v2646, 0
        %2662 = vmatpush.bf16.msra.mxu0 0
        %2663 = vmatpush.bf16.msra.mxu0 0
        %2664 = vmatpush.bf16.msra.mxu0 0
        %2665 = vmatpush.bf16.msra.mxu0 0
        %2666 = vmatpush.bf16.msra.mxu0 0
        %2667 = vmatpush.bf16.msra.mxu0 0
        %2668 = vmatpush.bf16.msra.mxu0 %v2656
        %2669 = vmatpush.bf16.msra.mxu0 %v2655
        %2670 = vmatmul.bf16.gmra.mxu0 %v2660
        %v2671 = vpop.f32.mrf.mxu0
        %v2672 = vadd.f32 0.0, %v2671
        %v2673 = vpop.f32.mrf.mxu0
        %2674 = vdwg.mxu0
        %v2675 = vadd.f32 %v2479, %v2672
        %s2676 = scalar_lea.vmem %s998, 48 [#allocation9]
        %v2677 = vld [vmem:[%s2676] sm:$0xf]
        %v2678 = vld [vmem:[%s2676 + $0x4] sm:$0xf]
        %v2679 = vld [vmem:[%s2676 + $0x8] sm:$0xf]
        %v2680 = vld [vmem:[%s2676 + $0xc] sm:$0xf]
        %s2681 = scalar_lea.vmem %s1008, 3 [#allocation10]
        %v2682 = vld [vmem:[%s2681] sm:$0x1]
        %v2684 = vperm.slane %v2682, 0
        %v2690 = vunpack.c.l.b16 %v2677
        %v2691 = vunpack.c.l.b16 %v2678
        %v2692 = vunpack.c.l.b16 %v2679
        %v2693 = vunpack.c.l.b16 %v2680
        %v2694 = vpack.c.b16 %v2691, %v2690
        %v2695 = vpack.c.b16 %v2693, %v2692
        %2698 = vmatpush.bf16.xpose.msra.mxu0 0
        %2699 = vmatpush.bf16.xpose.msra.mxu0 0
        %2700 = vmatpush.bf16.xpose.msra.mxu0 0
        %2701 = vmatpush.bf16.xpose.msra.mxu0 0
        %2702 = vmatpush.bf16.xpose.msra.mxu0 0
        %2703 = vmatpush.bf16.xpose.msra.mxu0 0
        %2704 = vmatpush.bf16.xpose.msra.mxu0 %v2695
        %2705 = vmatpush.bf16.xpose.msra.mxu0 %v2694
        %2706 = vmatmul.bf16.gmra.mxu0 %v2102
        %v2707 = vpop.f32.mrf.mxu0
        %v2708 = vadd.f32 %v2684, %v2707
        %v2709 = vpop.f32.mrf.mxu0
        %2710 = vdwg.mxu0
        %s2711 = scalar_lea.vmem %s998, 112 [#allocation9]
        %v2712 = vld [vmem:[%s2711] sm:$0xf]
        %v2713 = vld [vmem:[%s2711 + $0x4] sm:$0xf]
        %v2714 = vld [vmem:[%s2711 + $0x8] sm:$0xf]
        %v2715 = vld [vmem:[%s2711 + $0xc] sm:$0xf]
        %s2716 = scalar_lea.vmem %s1008, 7 [#allocation10]
        %v2717 = vld [vmem:[%s2716] sm:$0x1]
        %v2719 = vperm.slane %v2717, 0
        %v2725 = vunpack.c.l.b16 %v2712
        %v2726 = vunpack.c.l.b16 %v2713
        %v2727 = vunpack.c.l.b16 %v2714
        %v2728 = vunpack.c.l.b16 %v2715
        %v2729 = vpack.c.b16 %v2726, %v2725
        %v2730 = vpack.c.b16 %v2728, %v2727
        %2733 = vmatpush.bf16.xpose.msra.mxu0 0
        %2734 = vmatpush.bf16.xpose.msra.mxu0 0
        %2735 = vmatpush.bf16.xpose.msra.mxu0 0
        %2736 = vmatpush.bf16.xpose.msra.mxu0 0
        %2737 = vmatpush.bf16.xpose.msra.mxu0 0
        %2738 = vmatpush.bf16.xpose.msra.mxu0 0
        %2739 = vmatpush.bf16.xpose.msra.mxu0 %v2730
        %2740 = vmatpush.bf16.xpose.msra.mxu0 %v2729
        %2741 = vmatmul.bf16.gmra.mxu0 %v2138
        %v2742 = vpop.f32.mrf.mxu0
        %v2743 = vadd.f32 %v2719, %v2742
        %v2744 = vpop.f32.mrf.mxu0
        %2745 = vdwg.mxu0
        %s2746 = scalar_lea.vmem %s998, 176 [#allocation9]
        %v2747 = vld [vmem:[%s2746] sm:$0xf]
        %v2748 = vld [vmem:[%s2746 + $0x4] sm:$0xf]
        %v2749 = vld [vmem:[%s2746 + $0x8] sm:$0xf]
        %v2750 = vld [vmem:[%s2746 + $0xc] sm:$0xf]
        %s2751 = scalar_lea.vmem %s1008, 11 [#allocation10]
        %v2752 = vld [vmem:[%s2751] sm:$0x1]
        %v2754 = vperm.slane %v2752, 0
        %v2760 = vunpack.c.l.b16 %v2747
        %v2761 = vunpack.c.l.b16 %v2748
        %v2762 = vunpack.c.l.b16 %v2749
        %v2763 = vunpack.c.l.b16 %v2750
        %v2764 = vpack.c.b16 %v2761, %v2760
        %v2765 = vpack.c.b16 %v2763, %v2762
        %2768 = vmatpush.bf16.xpose.msra.mxu0 0
        %2769 = vmatpush.bf16.xpose.msra.mxu0 0
        %2770 = vmatpush.bf16.xpose.msra.mxu0 0
        %2771 = vmatpush.bf16.xpose.msra.mxu0 0
        %2772 = vmatpush.bf16.xpose.msra.mxu0 0
        %2773 = vmatpush.bf16.xpose.msra.mxu0 0
        %2774 = vmatpush.bf16.xpose.msra.mxu0 %v2765
        %2775 = vmatpush.bf16.xpose.msra.mxu0 %v2764
        %2776 = vmatmul.bf16.gmra.mxu0 %v2138
        %v2777 = vpop.f32.mrf.mxu0
        %v2778 = vadd.f32 %v2754, %v2777
        %v2779 = vpop.f32.mrf.mxu0
        %2780 = vdwg.mxu0
        %v2781 = vpack.c.bf16 %v2708, %v2708
        %v2782 = vpack.c.bf16 %v2743, %v2743
        %v2784 = vsel %vm1387, %v2781, 0
        %v2787 = vsel %vm1387, %v2782, 0
        %2789 = vmatpush.bf16.xpose.msra.mxu0 0
        %2790 = vmatpush.bf16.xpose.msra.mxu0 0
        %2791 = vmatpush.bf16.xpose.msra.mxu0 0
        %2792 = vmatpush.bf16.xpose.msra.mxu0 0
        %2793 = vmatpush.bf16.xpose.msra.mxu0 0
        %2794 = vmatpush.bf16.xpose.msra.mxu0 0
        %2795 = vmatpush.bf16.xpose.msra.mxu0 0
        %2796 = vmatpush.bf16.xpose.msra.mxu0 %v2787
        %2797 = vmatmul.bf16.gmra.mxu0 %v2784
        %v2798 = vpop.f32.mrf.mxu0
        %v2799 = vadd.f32 0.0, %v2798
        %v2800 = vpop.f32.mrf.mxu0
        %2801 = vdwg.mxu0
        %v2802 = vmul.f32 %v2799, 0.17677669
        %v2803 = vsel %vm1409, %v2802, -inf
        %2804 = vmax.xlane.f32.xlu0 %v2803
        %v2805 = vpop.xlane.xlu0 %2804
        %v2806 = vsub.f32 %v2802, %v2805
        %v2807 = vmul.f32 %v2806, 1.442695
        %v2808 = vpow.pop %v2807
        %v2809 = vsel %vm1409, %v2808, 0.0
        %2810 = vadd.xlane.f32.xlu0 %v2809
        %v2811 = vpop.xlane.xlu0 %2810
        %v2812 = vrcp.pop %v2811
        %v2813 = vmul.f32 %v2808, %v2812
        %v2814 = vpack.c.bf16 %v2813, %v2813
        %v2815 = vpack.c.bf16 %v2778, %v2778
        %v2817 = vsel %vm1409, %v2814, 0
        %v2820 = vsel %vm1426, %v2815, 0
        %2822 = vmatpush.bf16.msra.mxu0 0
        %2823 = vmatpush.bf16.msra.mxu0 0
        %2824 = vmatpush.bf16.msra.mxu0 0
        %2825 = vmatpush.bf16.msra.mxu0 0
        %2826 = vmatpush.bf16.msra.mxu0 0
        %2827 = vmatpush.bf16.msra.mxu0 0
        %2828 = vmatpush.bf16.msra.mxu0 0
        %2829 = vmatpush.bf16.msra.mxu0 %v2820
        %2830 = vmatmul.bf16.gmra.mxu0 %v2817
        %v2831 = vpop.f32.mrf.mxu0
        %v2832 = vadd.f32 0.0, %v2831
        %v2833 = vpop.f32.mrf.mxu0
        %2834 = vdwg.mxu0
        %s2835 = scalar_lea.vmem %s1018, 48 [#allocation12]
        %v2836 = vld [vmem:[%s2835] sm:$0xf]
        %v2837 = vld [vmem:[%s2835 + $0x4] sm:$0xf]
        %v2838 = vld [vmem:[%s2835 + $0x8] sm:$0xf]
        %v2839 = vld [vmem:[%s2835 + $0xc] sm:$0xf]
        %v2840 = vpack.c.bf16 %v2832, %v2832
        %v2845 = vunpack.c.l.b16 %v2836
        %v2846 = vunpack.c.l.b16 %v2837
        %v2847 = vunpack.c.l.b16 %v2838
        %v2848 = vunpack.c.l.b16 %v2839
        %v2849 = vpack.c.b16 %v2846, %v2845
        %v2850 = vpack.c.b16 %v2848, %v2847
        %v2854 = vsel %vm1387, %v2840, 0
        %2856 = vmatpush.bf16.msra.mxu0 0
        %2857 = vmatpush.bf16.msra.mxu0 0
        %2858 = vmatpush.bf16.msra.mxu0 0
        %2859 = vmatpush.bf16.msra.mxu0 0
        %2860 = vmatpush.bf16.msra.mxu0 0
        %2861 = vmatpush.bf16.msra.mxu0 0
        %2862 = vmatpush.bf16.msra.mxu0 %v2850
        %2863 = vmatpush.bf16.msra.mxu0 %v2849
        %2864 = vmatmul.bf16.gmra.mxu0 %v2854
        %v2865 = vpop.f32.mrf.mxu0
        %v2866 = vadd.f32 0.0, %v2865
        %v2867 = vpop.f32.mrf.mxu0
        %2868 = vdwg.mxu0
        %v2869 = vadd.f32 %v2675, %v2866
        %v2870 = vld [vmem:[%s1216] sm:$0x1]
        %v2872 = vperm.slane %v2870, 0
        %v2874 = vadd.f32 %v2869, %v2872
        %v2875 = vadd.f32 %v2065, %v2874
        %v2876 = vld [vmem:[%s1219] sm:$0x1]
        %v2877 = vld [vmem:[%s1222] sm:$0x1]
        %2878 = vadd.xlane.f32.xlu0 %v2875
        %v2879 = vpop.xlane.xlu0 %2878
        %v2880 = vmul.f32 %v2879, %v1253
        %v2881 = vsub.f32 %v2875, %v2880
        %v2882 = vmul.f32 %v2881, %v2881
        %2883 = vadd.xlane.f32.xlu0 %v2882
        %v2884 = vpop.xlane.xlu0 %2883
        %v2885 = vmul.f32 %v2884, %v1253
        %v2886 = vadd.f32 %v2885, 1e-05
        %v2887 = vrsqrt.pop %v2886
        %v2888 = vmul.f32 %v2887, %v2886
        %v2889 = vmul.f32 %v2888, %v2887
        %v2890 = vmul.f32 0.5, %v2889
        %v2891 = vsub.f32 1.5, %v2890
        %v2892 = vmul.f32 %v2887, %v2891
        %vm2893 = vweird.f32 %v2886
        %vm2894 = vweird.f32 %v2887
        %vm2895 = vmor %vm2893, %vm2894
        %v2896 = vsel %vm2895, %v2887, %v2892
        %v2897 = vmul.f32 %v2881, %v2896
        %v2899 = vperm.slane %v2876, 0
        %v2901 = vmul.f32 %v2897, %v2899
        %v2903 = vperm.slane %v2877, 0
        %v2905 = vadd.f32 %v2901, %v2903
        %v2906 = vld [vmem:[%s1028] sm:$0xff]
        %v2907 = vld [vmem:[%s1028 + $0x8] sm:$0xff]
        %v2908 = vld [vmem:[%s1028 + $0x10] sm:$0xff]
        %v2909 = vld [vmem:[%s1028 + $0x18] sm:$0xff]
        %v2910 = vld [vmem:[%s1028 + $0x20] sm:$0xff]
        %v2911 = vld [vmem:[%s1028 + $0x28] sm:$0xff]
        %v2912 = vld [vmem:[%s1028 + $0x30] sm:$0xff]
        %v2913 = vld [vmem:[%s1028 + $0x38] sm:$0xff]
        %v2914 = vld [vmem:[%s1028 + $0x40] sm:$0xff]
        %v2915 = vld [vmem:[%s1028 + $0x48] sm:$0xff]
        %v2916 = vld [vmem:[%s1028 + $0x50] sm:$0xff]
        %v2917 = vld [vmem:[%s1028 + $0x58] sm:$0xff]
        %v2918 = vld [vmem:[%s1028 + $0x60] sm:$0xff]
        %v2919 = vld [vmem:[%s1028 + $0x68] sm:$0xff]
        %v2920 = vld [vmem:[%s1028 + $0x70] sm:$0xff]
        %v2921 = vld [vmem:[%s1028 + $0x78] sm:$0xff]
        %v2922 = vld [vmem:[%s1226] sm:$0x3]
        %v2923 = vpack.c.bf16 %v2905, %v2905
        %v2925 = vperm.slane %v2922, 0
        %v2926 = vperm.slane %v2922, 1
        %v2945 = vunpack.c.l.b16 %v2906
        %v2946 = vunpack.c.h.b16 %v2906
        %v2947 = vunpack.c.l.b16 %v2907
        %v2948 = vunpack.c.h.b16 %v2907
        %v2949 = vunpack.c.l.b16 %v2908
        %v2950 = vunpack.c.h.b16 %v2908
        %v2951 = vunpack.c.l.b16 %v2909
        %v2952 = vunpack.c.h.b16 %v2909
        %v2953 = vunpack.c.l.b16 %v2910
        %v2954 = vunpack.c.h.b16 %v2910
        %v2955 = vunpack.c.l.b16 %v2911
        %v2956 = vunpack.c.h.b16 %v2911
        %v2957 = vunpack.c.l.b16 %v2912
        %v2958 = vunpack.c.h.b16 %v2912
        %v2959 = vunpack.c.l.b16 %v2913
        %v2960 = vunpack.c.h.b16 %v2913
        %v2961 = vunpack.c.l.b16 %v2914
        %v2962 = vunpack.c.h.b16 %v2914
        %v2963 = vunpack.c.l.b16 %v2915
        %v2964 = vunpack.c.h.b16 %v2915
        %v2965 = vunpack.c.l.b16 %v2916
        %v2966 = vunpack.c.h.b16 %v2916
        %v2967 = vunpack.c.l.b16 %v2917
        %v2968 = vunpack.c.h.b16 %v2917
        %v2969 = vunpack.c.l.b16 %v2918
        %v2970 = vunpack.c.h.b16 %v2918
        %v2971 = vunpack.c.l.b16 %v2919
        %v2972 = vunpack.c.h.b16 %v2919
        %v2973 = vunpack.c.l.b16 %v2920
        %v2974 = vunpack.c.h.b16 %v2920
        %v2975 = vunpack.c.l.b16 %v2921
        %v2976 = vunpack.c.h.b16 %v2921
        %v2977 = vpack.c.b16 %v2947, %v2945
        %v2978 = vpack.c.b16 %v2948, %v2946
        %v2979 = vpack.c.b16 %v2951, %v2949
        %v2980 = vpack.c.b16 %v2952, %v2950
        %v2981 = vpack.c.b16 %v2955, %v2953
        %v2982 = vpack.c.b16 %v2956, %v2954
        %v2983 = vpack.c.b16 %v2959, %v2957
        %v2984 = vpack.c.b16 %v2960, %v2958
        %v2985 = vpack.c.b16 %v2963, %v2961
        %v2986 = vpack.c.b16 %v2964, %v2962
        %v2987 = vpack.c.b16 %v2967, %v2965
        %v2988 = vpack.c.b16 %v2968, %v2966
        %v2989 = vpack.c.b16 %v2971, %v2969
        %v2990 = vpack.c.b16 %v2972, %v2970
        %v2991 = vpack.c.b16 %v2975, %v2973
        %v2992 = vpack.c.b16 %v2976, %v2974
        %3009 = vmatpush.bf16.msra.mxu0 %v2991
        %3010 = vmatpush.bf16.msra.mxu0 %v2989
        %3011 = vmatpush.bf16.msra.mxu0 %v2987
        %3012 = vmatpush.bf16.msra.mxu0 %v2985
        %3013 = vmatpush.bf16.msra.mxu0 %v2983
        %3014 = vmatpush.bf16.msra.mxu0 %v2981
        %3015 = vmatpush.bf16.msra.mxu0 %v2979
        %3016 = vmatpush.bf16.msra.mxu0 %v2977
        %3017 = vmatmul.bf16.gmra.mxu0 %v2923
        %v3018 = vpop.f32.mrf.mxu0
        %v3019 = vadd.f32 %v2925, %v3018
        %v3020 = vpop.f32.mrf.mxu0
        %3021 = vdwg.mxu0
        %3022 = vmatpush.bf16.msra.mxu0 %v2992
        %3023 = vmatpush.bf16.msra.mxu0 %v2990
        %3024 = vmatpush.bf16.msra.mxu0 %v2988
        %3025 = vmatpush.bf16.msra.mxu0 %v2986
        %3026 = vmatpush.bf16.msra.mxu0 %v2984
        %3027 = vmatpush.bf16.msra.mxu0 %v2982
        %3028 = vmatpush.bf16.msra.mxu0 %v2980
        %3029 = vmatpush.bf16.msra.mxu0 %v2978
        %3030 = vmatmul.bf16.gmra.mxu0 %v2923
        %v3031 = vpop.f32.mrf.mxu0
        %v3032 = vadd.f32 %v2926, %v3031
        %v3033 = vpop.f32.mrf.mxu0
        %3034 = vdwg.mxu0
        %v3035 = vmax.f32 %v3019, 0.0
        %v3036 = vmax.f32 %v3032, 0.0
        %v3037 = vld [vmem:[%s1038] sm:$0xf]
        %v3038 = vld [vmem:[%s1038 + $0x4] sm:$0xf]
        %v3039 = vld [vmem:[%s1038 + $0x8] sm:$0xf]
        %v3040 = vld [vmem:[%s1038 + $0xc] sm:$0xf]
        %v3041 = vld [vmem:[%s1038 + $0x10] sm:$0xf]
        %v3042 = vld [vmem:[%s1038 + $0x14] sm:$0xf]
        %v3043 = vld [vmem:[%s1038 + $0x18] sm:$0xf]
        %v3044 = vld [vmem:[%s1038 + $0x1c] sm:$0xf]
        %v3045 = vld [vmem:[%s1038 + $0x20] sm:$0xf]
        %v3046 = vld [vmem:[%s1038 + $0x24] sm:$0xf]
        %v3047 = vld [vmem:[%s1038 + $0x28] sm:$0xf]
        %v3048 = vld [vmem:[%s1038 + $0x2c] sm:$0xf]
        %v3049 = vld [vmem:[%s1038 + $0x30] sm:$0xf]
        %v3050 = vld [vmem:[%s1038 + $0x34] sm:$0xf]
        %v3051 = vld [vmem:[%s1038 + $0x38] sm:$0xf]
        %v3052 = vld [vmem:[%s1038 + $0x3c] sm:$0xf]
        %v3053 = vld [vmem:[%s1038 + $0x40] sm:$0xf]
        %v3054 = vld [vmem:[%s1038 + $0x44] sm:$0xf]
        %v3055 = vld [vmem:[%s1038 + $0x48] sm:$0xf]
        %v3056 = vld [vmem:[%s1038 + $0x4c] sm:$0xf]
        %v3057 = vld [vmem:[%s1038 + $0x50] sm:$0xf]
        %v3058 = vld [vmem:[%s1038 + $0x54] sm:$0xf]
        %v3059 = vld [vmem:[%s1038 + $0x58] sm:$0xf]
        %v3060 = vld [vmem:[%s1038 + $0x5c] sm:$0xf]
        %v3061 = vld [vmem:[%s1038 + $0x60] sm:$0xf]
        %v3062 = vld [vmem:[%s1038 + $0x64] sm:$0xf]
        %v3063 = vld [vmem:[%s1038 + $0x68] sm:$0xf]
        %v3064 = vld [vmem:[%s1038 + $0x6c] sm:$0xf]
        %v3065 = vld [vmem:[%s1038 + $0x70] sm:$0xf]
        %v3066 = vld [vmem:[%s1038 + $0x74] sm:$0xf]
        %v3067 = vld [vmem:[%s1038 + $0x78] sm:$0xf]
        %v3068 = vld [vmem:[%s1038 + $0x7c] sm:$0xf]
        %v3069 = vld [vmem:[%s1047] sm:$0x1]
        %v3070 = vpack.c.bf16 %v3035, %v3035
        %v3071 = vpack.c.bf16 %v3036, %v3036
        %v3073 = vperm.slane %v3069, 0
        %v3107 = vunpack.c.l.b16 %v3037
        %v3108 = vunpack.c.l.b16 %v3038
        %v3109 = vunpack.c.l.b16 %v3039
        %v3110 = vunpack.c.l.b16 %v3040
        %v3111 = vunpack.c.l.b16 %v3041
        %v3112 = vunpack.c.l.b16 %v3042
        %v3113 = vunpack.c.l.b16 %v3043
        %v3114 = vunpack.c.l.b16 %v3044
        %v3115 = vunpack.c.l.b16 %v3045
        %v3116 = vunpack.c.l.b16 %v3046
        %v3117 = vunpack.c.l.b16 %v3047
        %v3118 = vunpack.c.l.b16 %v3048
        %v3119 = vunpack.c.l.b16 %v3049
        %v3120 = vunpack.c.l.b16 %v3050
        %v3121 = vunpack.c.l.b16 %v3051
        %v3122 = vunpack.c.l.b16 %v3052
        %v3123 = vunpack.c.l.b16 %v3053
        %v3124 = vunpack.c.l.b16 %v3054
        %v3125 = vunpack.c.l.b16 %v3055
        %v3126 = vunpack.c.l.b16 %v3056
        %v3127 = vunpack.c.l.b16 %v3057
        %v3128 = vunpack.c.l.b16 %v3058
        %v3129 = vunpack.c.l.b16 %v3059
        %v3130 = vunpack.c.l.b16 %v3060
        %v3131 = vunpack.c.l.b16 %v3061
        %v3132 = vunpack.c.l.b16 %v3062
        %v3133 = vunpack.c.l.b16 %v3063
        %v3134 = vunpack.c.l.b16 %v3064
        %v3135 = vunpack.c.l.b16 %v3065
        %v3136 = vunpack.c.l.b16 %v3066
        %v3137 = vunpack.c.l.b16 %v3067
        %v3138 = vunpack.c.l.b16 %v3068
        %v3139 = vpack.c.b16 %v3108, %v3107
        %v3140 = vpack.c.b16 %v3110, %v3109
        %v3141 = vpack.c.b16 %v3112, %v3111
        %v3142 = vpack.c.b16 %v3114, %v3113
        %v3143 = vpack.c.b16 %v3116, %v3115
        %v3144 = vpack.c.b16 %v3118, %v3117
        %v3145 = vpack.c.b16 %v3120, %v3119
        %v3146 = vpack.c.b16 %v3122, %v3121
        %v3147 = vpack.c.b16 %v3124, %v3123
        %v3148 = vpack.c.b16 %v3126, %v3125
        %v3149 = vpack.c.b16 %v3128, %v3127
        %v3150 = vpack.c.b16 %v3130, %v3129
        %v3151 = vpack.c.b16 %v3132, %v3131
        %v3152 = vpack.c.b16 %v3134, %v3133
        %v3153 = vpack.c.b16 %v3136, %v3135
        %v3154 = vpack.c.b16 %v3138, %v3137
        %3171 = vmatpush.bf16.msra.mxu0 %v3146
        %3172 = vmatpush.bf16.msra.mxu0 %v3145
        %3173 = vmatpush.bf16.msra.mxu0 %v3144
        %3174 = vmatpush.bf16.msra.mxu0 %v3143
        %3175 = vmatpush.bf16.msra.mxu0 %v3142
        %3176 = vmatpush.bf16.msra.mxu0 %v3141
        %3177 = vmatpush.bf16.msra.mxu0 %v3140
        %3178 = vmatpush.bf16.msra.mxu0 %v3139
        %3179 = vmatmul.bf16.gmra.mxu0 %v3070
        %v3180 = vpop.f32.mrf.mxu0
        %v3181 = vadd.f32 %v3073, %v3180
        %v3182 = vpop.f32.mrf.mxu0
        %3183 = vdwg.mxu0
        %3184 = vmatpush.bf16.msra.mxu0 %v3154
        %3185 = vmatpush.bf16.msra.mxu0 %v3153
        %3186 = vmatpush.bf16.msra.mxu0 %v3152
        %3187 = vmatpush.bf16.msra.mxu0 %v3151
        %3188 = vmatpush.bf16.msra.mxu0 %v3150
        %3189 = vmatpush.bf16.msra.mxu0 %v3149
        %3190 = vmatpush.bf16.msra.mxu0 %v3148
        %3191 = vmatpush.bf16.msra.mxu0 %v3147
        %3192 = vmatmul.bf16.gmra.mxu0 %v3071
        %v3193 = vpop.f32.mrf.mxu0
        %v3194 = vadd.f32 %v3181, %v3193
        %v3195 = vpop.f32.mrf.mxu0
        %3196 = vdwg.mxu0
        %v3197 = vadd.f32 %v2875, %v3194
        %3198 = vst [vmem:[#allocation2] sm:$0xff] %v3197
        %p3199 = scmp.eq.s32.totalorder %s58, 1
        // Predicated region
        $region153: #{seq2seq_forward.3} parent=115 // pred_check
          %p3200 = pneg %p3199
        $region154: #{seq2seq_forward.3} parent=115 // pred_check_branch
          %3202 = sbr.rel (%p3200) target = $region156
        $region155: #{seq2seq_forward.3} parent=115 // pred_region
          %v3203 = vld [vmem:[%s20] sm:$0x1]
          %v3204 = vld [vmem:[%s21] sm:$0x1]
          %3205 = vadd.xlane.f32.xlu0 %v3197
          %v3206 = vpop.xlane.xlu0 %3205
          %v3207 = vmul.f32 %v3206, %v1253
          %v3208 = vsub.f32 %v3197, %v3207
          %v3209 = vmul.f32 %v3208, %v3208
          %3210 = vadd.xlane.f32.xlu0 %v3209
          %v3211 = vpop.xlane.xlu0 %3210
          %v3212 = vmul.f32 %v3211, %v1253
          %v3213 = vadd.f32 %v3212, 1e-05
          %v3214 = vrsqrt.pop %v3213
          %v3215 = vmul.f32 %v3214, %v3213
          %v3216 = vmul.f32 %v3215, %v3214
          %v3217 = vmul.f32 0.5, %v3216
          %v3218 = vsub.f32 1.5, %v3217
          %v3219 = vmul.f32 %v3214, %v3218
          %vm3220 = vweird.f32 %v3213
          %vm3221 = vweird.f32 %v3214
          %vm3222 = vmor %vm3220, %vm3221
          %v3223 = vsel %vm3222, %v3214, %v3219
          %v3224 = vmul.f32 %v3208, %v3223
          %v3226 = vperm.slane %v3203, 0
          %v3228 = vmul.f32 %v3224, %v3226
          %v3230 = vperm.slane %v3204, 0
          %v3232 = vadd.f32 %v3228, %v3230
          %v3233 = vld [vmem:[%s22] sm:$0xf]
          %v3234 = vld [vmem:[%s22 + $0x4] sm:$0xf]
          %v3235 = vld [vmem:[%s22 + $0x8] sm:$0xf]
          %v3236 = vld [vmem:[%s22 + $0xc] sm:$0xf]
          %v3237 = vld [vmem:[%s22 + $0x10] sm:$0xf]
          %v3238 = vld [vmem:[%s22 + $0x14] sm:$0xf]
          %v3239 = vld [vmem:[%s22 + $0x18] sm:$0xf]
          %v3240 = vld [vmem:[%s22 + $0x1c] sm:$0xf]
          %v3241 = vld [vmem:[%s22 + $0x20] sm:$0xf]
          %v3242 = vld [vmem:[%s22 + $0x24] sm:$0xf]
          %v3243 = vld [vmem:[%s22 + $0x28] sm:$0xf]
          %v3244 = vld [vmem:[%s22 + $0x2c] sm:$0xf]
          %v3245 = vld [vmem:[%s22 + $0x30] sm:$0xf]
          %v3246 = vld [vmem:[%s22 + $0x34] sm:$0xf]
          %v3247 = vld [vmem:[%s22 + $0x38] sm:$0xf]
          %v3248 = vld [vmem:[%s22 + $0x3c] sm:$0xf]
          %v3249 = vld [vmem:[%s23] sm:$0x1]
          %v3250 = vpack.c.bf16 %v3232, %v3232
          %v3252 = vperm.slane %v3249, 0
          %v3270 = vunpack.c.l.b16 %v3233
          %v3271 = vunpack.c.l.b16 %v3234
          %v3272 = vunpack.c.l.b16 %v3235
          %v3273 = vunpack.c.l.b16 %v3236
          %v3274 = vunpack.c.l.b16 %v3237
          %v3275 = vunpack.c.l.b16 %v3238
          %v3276 = vunpack.c.l.b16 %v3239
          %v3277 = vunpack.c.l.b16 %v3240
          %v3278 = vunpack.c.l.b16 %v3241
          %v3279 = vunpack.c.l.b16 %v3242
          %v3280 = vunpack.c.l.b16 %v3243
          %v3281 = vunpack.c.l.b16 %v3244
          %v3282 = vunpack.c.l.b16 %v3245
          %v3283 = vunpack.c.l.b16 %v3246
          %v3284 = vunpack.c.l.b16 %v3247
          %v3285 = vunpack.c.l.b16 %v3248
          %v3286 = vpack.c.b16 %v3271, %v3270
          %v3287 = vpack.c.b16 %v3273, %v3272
          %v3288 = vpack.c.b16 %v3275, %v3274
          %v3289 = vpack.c.b16 %v3277, %v3276
          %v3290 = vpack.c.b16 %v3279, %v3278
          %v3291 = vpack.c.b16 %v3281, %v3280
          %v3292 = vpack.c.b16 %v3283, %v3282
          %v3293 = vpack.c.b16 %v3285, %v3284
          %3302 = vmatpush.bf16.msra.mxu0 %v3293
          %3303 = vmatpush.bf16.msra.mxu0 %v3292
          %3304 = vmatpush.bf16.msra.mxu0 %v3291
          %3305 = vmatpush.bf16.msra.mxu0 %v3290
          %3306 = vmatpush.bf16.msra.mxu0 %v3289
          %3307 = vmatpush.bf16.msra.mxu0 %v3288
          %3308 = vmatpush.bf16.msra.mxu0 %v3287
          %3309 = vmatpush.bf16.msra.mxu0 %v3286
          %3310 = vmatmul.bf16.gmra.mxu0 %v3250
          %v3311 = vpop.f32.mrf.mxu0
          %v3312 = vadd.f32 %v3252, %v3311
          %v3313 = vpop.f32.mrf.mxu0
          %3314 = vdwg.mxu0
          %3315 = vst [vmem:[%s1186] sm:$0xff] %v3312
        $region156: #{seq2seq_forward.3} parent=115 // pred_fallthru
          _
        %s3316 = sand.u32 %s677, 1
        %s3317 = scalar_lea.sflag [#allocation6], %s3316
        %s3318 = sand.u32 %s677, 1
        %s3319 = smul.addr %s3318, 8
        %s3320 = scalar_lea.vmem [#allocation18], %s3319
        // Predicated region
        $region157: #{seq2seq_forward.3} parent=115 // pred_check
          %p3321 = pneg %p687
        $region158: #{seq2seq_forward.3} parent=115 // pred_check_branch
          %3323 = sbr.rel (%p3321) target = $region160
        $region159: #{seq2seq_forward.3} parent=115 // pred_region
          %3325 = vsyncadd %s3317, 0
          %s3326 = smul.addr %s57, 8
          %s3327 = scalar_lea.hbm %s24, %s3326
          %s3329 = sshll.u32 %s3320, 4
          %s3330 = int_to_ptr.vmem [resolvable:$true] %s3329
          %s3331 = sshll.u32 %s3327, 4
          %s3332 = int_to_ptr.hbm [resolvable:$true] %s3331
          %3334 = dma.vmem_to_hbm [thread:$0]  %s3330, 128, %s3332, %s3317
        $region160: #{seq2seq_forward.3} parent=115 // pred_fallthru
          _
      $region116: #{seq2seq_forward.3} parent=5 // pred_fallthru
        _
      %p3335 = scmp.le.s32.totalorder 2, %s48
      // Predicated region
      $region161: #{seq2seq_forward.3} parent=5 // pred_check
        %p3336 = pneg %p3335
      $region162: #{seq2seq_forward.3} parent=5 // pred_check_branch
        %3338 = sbr.rel (%p3336) target = $region164
      $region163: #{seq2seq_forward.3} parent=5 // pred_region
        %s3339 = ssub.s32 %s48, 2
        // Predicated region
        $region165: #{seq2seq_forward.3} parent=163 // pred_check
          %p3340 = pneg %p693
        $region166: #{seq2seq_forward.3} parent=163 // pred_check_branch
          %3342 = sbr.rel (%p3340) target = $region168
        $region167: #{seq2seq_forward.3} parent=163 // pred_region
          %s3343 = sand.u32 %s678, 1
          %s3344 = scalar_lea.sflag [#allocation6], %s3343
          %s3345 = sand.u32 %s678, 1
          %s3346 = smul.addr %s3345, 8
          %s3347 = scalar_lea.vmem [#allocation18], %s3346
          %3349 = dma.done %s3344, 128
        $region168: #{seq2seq_forward.3} parent=163 // pred_fallthru
          _
      $region164: #{seq2seq_forward.3} parent=5 // pred_fallthru
        _
    $region6: #{seq2seq_forward.3} parent=1 // loop_footer
      %s52 = sadd.s32 1, %s48
    $region7: #{seq2seq_forward.3} parent=1 // loop_footer_branch
      %47 = sbr.rel target = $region3
    $region8: #{seq2seq_forward.3} parent=1 // loop_exit
      _
    %3350 = vsyncpa [#allocation5], 1
    %s3351 = scalar_lea.sflag [#allocation5], 1
    %3352 = vsyncpa %s3351, 1
    %3353 = vsyncpa [#allocation8], 1
    %s3354 = scalar_lea.sflag [#allocation8], 1
    %3355 = vsyncpa %s3354, 1
    %3356 = vsyncpa [#allocation11], 1
    %s3357 = scalar_lea.sflag [#allocation11], 1
    %3358 = vsyncpa %s3357, 1
    %3359 = vsyncpa [#allocation14], 1
    %s3360 = scalar_lea.sflag [#allocation14], 1
    %3361 = vsyncpa %s3360, 1
    %3362 = vsyncpa [#allocation17], 1
    %s3363 = scalar_lea.sflag [#allocation17], 1
    %3364 = vsyncpa %s3363, 1
    %3365 = vsyncpa [#allocation6], 1
    %s3366 = scalar_lea.sflag [#allocation6], 1
    %3367 = vsyncpa %s3366, 1

</llo_original>
